<compile_context>
chip_gen: v7x
topology: tpu7x:2x2x1
jax: 0.10.0
libtpu: 0.0.40
codegen_flags: <defaults>
</compile_context>

<pallas_src>
import jax
import jax.numpy as jnp
from jax.experimental import pallas as pl
from jax.experimental.pallas import tpu as pltpu


def _mlp_kernel(x_ref, w1_ref, b1_ref, w2_ref, b2_ref,
                w3_ref, b3_ref, w4_ref, b4_ref, o_ref):
    # Stream f32 x; cast to bf16 in VMEM (halves the HBM read vs wrapper cast).
    x = x_ref[...].astype(jnp.bfloat16)                                # (TM, 832)
    h1 = jnp.maximum(
        jnp.dot(x, w1_ref[...], preferred_element_type=jnp.float32)
        + b1_ref[...], 0.0)                                            # (TM, 128)
    h2 = jnp.maximum(
        jnp.dot(h1.astype(jnp.bfloat16), w2_ref[...],
                preferred_element_type=jnp.float32) + b2_ref[...], 0.0)  # (TM, 64)
    h3 = jnp.maximum(
        jnp.dot(h2.astype(jnp.bfloat16), w3_ref[...],
                preferred_element_type=jnp.float32) + b3_ref[...], 0.0)  # (TM, 32)
    # Layer 4 on the VPU: (TM,32) * (1,32) broadcast, lane-reduce -> (TM,1).
    z = jnp.sum(h3 * w4_ref[...], axis=-1, keepdims=True) + b4_ref[...]
    y = jax.nn.sigmoid(z) * 32.0                                       # (TM, 1) f32
    # Lane-dense store: one full-width (1, TM) row instead of TM masked stores.
    o_ref[...] = y.reshape(o_ref.shape).astype(o_ref.dtype)


def _xla_forward(x, params):
    # Pure-JAX reference / small-batch fallback path (f32).
    h = x
    for i, (w, b) in enumerate(params):
        h = h @ w + b
        if i < 3:
            h = jnp.maximum(h, 0.0)
    return jax.nn.sigmoid(h) * 32.0


def krk_net_bard_forward(x, params, *, block_m=2048, min_pallas_batch=256,
                         dimension_semantics=("parallel",)):
    """x: [B, 832] float32 -> [B, 1] float32 (eval forward of KRk_Net_Bard)."""
    (w1, b1), (w2, b2), (w3, b3), (w4, b4) = params
    B, D = x.shape
    assert D == 832
    assert block_m % 256 == 0, "block_m should be a multiple of 256"

    # Tiny batches: launch + per-grid-step overhead dominates; plain XLA wins.
    if B < min_pallas_batch:
        return _xla_forward(x, params)

    # Don't allocate tiles much larger than the batch itself.
    tm = min(block_m, ((B + 255) // 256) * 256)
    grid_m = pl.cdiv(B, tm)

    # Layers 1-3: bf16 MXU operands (weights tiny, cast once in the wrapper).
    w1b, w2b, w3b = (w.astype(jnp.bfloat16) for w in (w1, w2, w3))
    # Layer 4 runs on the VPU in f32 as a (1, 32) broadcast row.
    w4r = w4.reshape(1, 32).astype(jnp.float32)

    def resident(a):  # constant index_map -> DMA'd once, VMEM-resident
        return pl.BlockSpec(a.shape, lambda i: (0, 0))

    flops = 2 * B * (832 * 128 + 128 * 64 + 64 * 32 + 32 * 1)
    bytes_accessed = (B * 832 * 4 + grid_m * tm * 4
                      + sum(int(a.size) * a.dtype.itemsize
                            for a in (w1b, w2b, w3b, w4r, b1, b2, b3, b4)))

    out_row = pl.pallas_call(
        _mlp_kernel,
        out_shape=jax.ShapeDtypeStruct((1, grid_m * tm), jnp.float32),
        grid=(grid_m,),
        in_specs=[
            # x: batch-tiled, software-pipelined; ragged tail handled by Pallas.
            pl.BlockSpec((tm, 832), lambda i: (i, 0)),
            resident(w1b), resident(b1),
            resident(w2b), resident(b2),
            resident(w3b), resident(b3),
            resident(w4r), resident(b4),
        ],
        # Lane-dense output: block (1, tm) of a single (1, grid_m*tm) row.
        out_specs=pl.BlockSpec((1, tm), lambda i: (0, i)),
        compiler_params=pltpu.CompilerParams(
            # On v7x pass dimension_semantics=(pltpu.CORE_PARALLEL,) to split
            # the batch grid across both TensorCores; "parallel" is the safe
            # default everywhere (no-op on single-TC v5e/v6e).
            dimension_semantics=tuple(dimension_semantics),
            # Double-buffered f32 x tiles at block_m=2048 are ~13.6 MiB; raise
            # the scoped-VMEM limit past v5e's 16 MiB default while staying
            # under v7x's 64 MiB per-TC physical VMEM.
            vmem_limit_bytes=48 * 1024 * 1024,
        ),
        cost_estimate=pl.CostEstimate(
            flops=flops, transcendentals=B, bytes_accessed=bytes_accessed),
    )(x, w1b, b1, w2b, b2, w3b, b3, w4r, b4)

    # (1, grid_m*tm) -> (B, 1); tail entries (>= B) come from the ragged last
    # x block (garbage rows) and are dropped here.
    return out_row[0, :B].reshape(B, 1)


def init_params(key):
    """Deterministic init mimicking PyTorch Linear default (U[-1/sqrt(fan_in), +])."""
    dims = [(832, 128), (128, 64), (64, 32), (32, 1)]
    params = []
    for i, (fan_in, fan_out) in enumerate(dims):
        kw, kb = jax.random.split(jax.random.fold_in(key, i))
        bound = 1.0 / jnp.sqrt(fan_in)
        # stored as [in, out] (transposed vs. PyTorch's [out, in])
        w = jax.random.uniform(kw, (fan_in, fan_out), jnp.float32, -bound, bound)
        b = jax.random.uniform(kb, (1, fan_out), jnp.float32, -bound, bound)
        params.append((w, b))
    return params


if __name__ == "__main__":
    key = jax.random.PRNGKey(0)
    params = init_params(key)

    # 1337 rows with block_m=512 -> grid of 3 tiles with a ragged tail
    # (313 rows): exercises the software pipeline, ragged last-block handling
    # and the lane-dense output path.
    B = 1337
    x = jax.random.normal(jax.random.fold_in(key, 100), (B, 832), jnp.float32)

    out = jax.block_until_ready(krk_net_bard_forward(x, params, block_m=512))
    ref = _xla_forward(x, params)

    assert out.shape == (B, 1), out.shape
    # bf16 MXU operands (f32 accumulation) vs f32 reference; outputs in (0, 32).
    max_err = float(jnp.max(jnp.abs(out - ref)))
    assert jnp.allclose(out, ref, atol=0.25), max_err

    print("KERNEL_OK")
</pallas_src>

<mosaic_0001>
module attributes {stable_mosaic.version = 11 : i64} {
  func.func @_mlp_kernel(%arg0: i32, %arg1: memref<512x832xf32, #tpu.memory_space<vmem>>, %arg2: memref<832x128xbf16, #tpu.memory_space<vmem>>, %arg3: memref<1x128xf32, #tpu.memory_space<vmem>>, %arg4: memref<128x64xbf16, #tpu.memory_space<vmem>>, %arg5: memref<1x64xf32, #tpu.memory_space<vmem>>, %arg6: memref<64x32xbf16, #tpu.memory_space<vmem>>, %arg7: memref<1x32xf32, #tpu.memory_space<vmem>>, %arg8: memref<1x32xf32, #tpu.memory_space<vmem>>, %arg9: memref<1x1xf32, #tpu.memory_space<vmem>>, %arg10: memref<1x512xf32, #tpu.memory_space<vmem>>) attributes {dimension_semantics = [#tpu.dimension_semantics<parallel>], iteration_bounds = array<i64: 3>, scalar_prefetch = 0 : i64, scratch_operands = 0 : i64, tpu.core_type = #tpu.core_type<tc>, window_params = [{transform_indices = @transform_0, window_bounds = array<i64: 512, 832>}, {pipeline_mode = #tpu.pipeline_mode<synchronous>, transform_indices = @transform_1, window_bounds = array<i64: 832, 128>}, {pipeline_mode = #tpu.pipeline_mode<synchronous>, transform_indices = @transform_2, window_bounds = array<i64: 1, 128>}, {pipeline_mode = #tpu.pipeline_mode<synchronous>, transform_indices = @transform_3, window_bounds = array<i64: 128, 64>}, {pipeline_mode = #tpu.pipeline_mode<synchronous>, transform_indices = @transform_4, window_bounds = array<i64: 1, 64>}, {pipeline_mode = #tpu.pipeline_mode<synchronous>, transform_indices = @transform_5, window_bounds = array<i64: 64, 32>}, {pipeline_mode = #tpu.pipeline_mode<synchronous>, transform_indices = @transform_6, window_bounds = array<i64: 1, 32>}, {pipeline_mode = #tpu.pipeline_mode<synchronous>, transform_indices = @transform_7, window_bounds = array<i64: 1, 32>}, {pipeline_mode = #tpu.pipeline_mode<synchronous>, transform_indices = @transform_8, window_bounds = array<i64: 1, 1>}, {transform_indices = @transform_9, window_bounds = array<i64: 1, 512>}]} {
    %c0 = arith.constant 0 : index
    %c0_0 = arith.constant 0 : index
    %0 = vector.load %arg1[%c0, %c0_0] : memref<512x832xf32, #tpu.memory_space<vmem>>, vector<512x832xf32>
    %1 = arith.truncf %0 : vector<512x832xf32> to vector<512x832xbf16>
    %c0_1 = arith.constant 0 : index
    %c0_2 = arith.constant 0 : index
    %2 = vector.load %arg2[%c0_1, %c0_2] : memref<832x128xbf16, #tpu.memory_space<vmem>>, vector<832x128xbf16>
    %cst = arith.constant dense<0.000000e+00> : vector<512x128xf32>
    %3 = tpu.matmul %1, %2, %cst {dimension_numbers = #tpu.dot_dimension_numbers<[1], [0], [0], [1], [0, 0, 1, 1], [], []>} : vector<512x832xbf16>, vector<832x128xbf16>, vector<512x128xf32> -> vector<512x128xf32>
    %c0_3 = arith.constant 0 : index
    %c0_4 = arith.constant 0 : index
    %4 = vector.load %arg3[%c0_3, %c0_4] : memref<1x128xf32, #tpu.memory_space<vmem>>, vector<1x128xf32>
    %5 = vector.broadcast %4 : vector<1x128xf32> to vector<512x128xf32>
    %6 = arith.addf %3, %5 : vector<512x128xf32>
    %cst_5 = arith.constant 0.000000e+00 : f32
    %7 = vector.broadcast %cst_5 : f32 to vector<512x128xf32>
    %8 = arith.maximumf %6, %7 : vector<512x128xf32>
    %9 = arith.truncf %8 : vector<512x128xf32> to vector<512x128xbf16>
    %c0_6 = arith.constant 0 : index
    %c0_7 = arith.constant 0 : index
    %10 = vector.load %arg4[%c0_6, %c0_7] : memref<128x64xbf16, #tpu.memory_space<vmem>>, vector<128x64xbf16>
    %cst_8 = arith.constant dense<0.000000e+00> : vector<512x64xf32>
    %11 = tpu.matmul %9, %10, %cst_8 {dimension_numbers = #tpu.dot_dimension_numbers<[1], [0], [0], [1], [0, 0, 1, 1], [], []>} : vector<512x128xbf16>, vector<128x64xbf16>, vector<512x64xf32> -> vector<512x64xf32>
    %c0_9 = arith.constant 0 : index
    %c0_10 = arith.constant 0 : index
    %12 = vector.load %arg5[%c0_9, %c0_10] : memref<1x64xf32, #tpu.memory_space<vmem>>, vector<1x64xf32>
    %13 = vector.broadcast %12 : vector<1x64xf32> to vector<512x64xf32>
    %14 = arith.addf %11, %13 : vector<512x64xf32>
    %cst_11 = arith.constant 0.000000e+00 : f32
    %15 = vector.broadcast %cst_11 : f32 to vector<512x64xf32>
    %16 = arith.maximumf %14, %15 : vector<512x64xf32>
    %17 = arith.truncf %16 : vector<512x64xf32> to vector<512x64xbf16>
    %c0_12 = arith.constant 0 : index
    %c0_13 = arith.constant 0 : index
    %18 = vector.load %arg6[%c0_12, %c0_13] : memref<64x32xbf16, #tpu.memory_space<vmem>>, vector<64x32xbf16>
    %cst_14 = arith.constant dense<0.000000e+00> : vector<512x32xf32>
    %19 = tpu.matmul %17, %18, %cst_14 {dimension_numbers = #tpu.dot_dimension_numbers<[1], [0], [0], [1], [0, 0, 1, 1], [], []>} : vector<512x64xbf16>, vector<64x32xbf16>, vector<512x32xf32> -> vector<512x32xf32>
    %c0_15 = arith.constant 0 : index
    %c0_16 = arith.constant 0 : index
    %20 = vector.load %arg7[%c0_15, %c0_16] : memref<1x32xf32, #tpu.memory_space<vmem>>, vector<1x32xf32>
    %21 = vector.broadcast %20 : vector<1x32xf32> to vector<512x32xf32>
    %22 = arith.addf %19, %21 : vector<512x32xf32>
    %cst_17 = arith.constant 0.000000e+00 : f32
    %23 = vector.broadcast %cst_17 : f32 to vector<512x32xf32>
    %24 = arith.maximumf %22, %23 : vector<512x32xf32>
    %c0_18 = arith.constant 0 : index
    %c0_19 = arith.constant 0 : index
    %25 = vector.load %arg8[%c0_18, %c0_19] : memref<1x32xf32, #tpu.memory_space<vmem>>, vector<1x32xf32>
    %26 = vector.broadcast %25 : vector<1x32xf32> to vector<512x32xf32>
    %27 = arith.mulf %24, %26 : vector<512x32xf32>
    %cst_20 = arith.constant dense<0.000000e+00> : vector<512xf32>
    %28 = vector.multi_reduction <add>, %27, %cst_20 [1] : vector<512x32xf32> to vector<512xf32>
    %29 = vector.shape_cast %28 : vector<512xf32> to vector<512x1xf32>
    %c0_21 = arith.constant 0 : index
    %c0_22 = arith.constant 0 : index
    %30 = vector.load %arg9[%c0_21, %c0_22] : memref<1x1xf32, #tpu.memory_space<vmem>>, vector<1x1xf32>
    %31 = vector.broadcast %30 : vector<1x1xf32> to vector<512x1xf32>
    %32 = arith.addf %29, %31 : vector<512x1xf32>
    %33 = arith.negf %32 : vector<512x1xf32>
    %34 = math.exp %33 : vector<512x1xf32>
    %cst_23 = arith.constant 1.000000e+00 : f32
    %35 = vector.broadcast %cst_23 : f32 to vector<512x1xf32>
    %36 = arith.addf %35, %34 : vector<512x1xf32>
    %37 = arith.divf %35, %36 : vector<512x1xf32>
    %cst_24 = arith.constant 3.200000e+01 : f32
    %38 = vector.broadcast %cst_24 : f32 to vector<512x1xf32>
    %39 = arith.mulf %37, %38 : vector<512x1xf32>
    %40 = vector.shape_cast %39 : vector<512x1xf32> to vector<1x512xf32>
    %c0_25 = arith.constant 0 : index
    %c0_26 = arith.constant 0 : index
    %41 = vector.load %arg10[%c0_25, %c0_26] : memref<1x512xf32, #tpu.memory_space<vmem>>, vector<1x512xf32>
    tpu.vector_store %arg10[%c0_25, %c0_26], %40 {strides = array<i32>} : memref<1x512xf32, #tpu.memory_space<vmem>>, vector<1x512xf32>,
    return
  }
  func.func @transform_0(%arg0: i32) -> (i32, i32) {
    %c0_i32 = arith.constant 0 : i32
    %c0_i32_0 = arith.constant 0 : i32
    return %arg0, %c0_i32 : i32, i32
  }
  func.func @transform_1(%arg0: i32) -> (i32, i32) {
    %c0_i32 = arith.constant 0 : i32
    %c0_i32_0 = arith.constant 0 : i32
    %c0_i32_1 = arith.constant 0 : i32
    return %c0_i32, %c0_i32_0 : i32, i32
  }
  func.func @transform_2(%arg0: i32) -> (i32, i32) {
    %c0_i32 = arith.constant 0 : i32
    %c0_i32_0 = arith.constant 0 : i32
    %c0_i32_1 = arith.constant 0 : i32
    return %c0_i32, %c0_i32_0 : i32, i32
  }
  func.func @transform_3(%arg0: i32) -> (i32, i32) {
    %c0_i32 = arith.constant 0 : i32
    %c0_i32_0 = arith.constant 0 : i32
    %c0_i32_1 = arith.constant 0 : i32
    return %c0_i32, %c0_i32_0 : i32, i32
  }
  func.func @transform_4(%arg0: i32) -> (i32, i32) {
    %c0_i32 = arith.constant 0 : i32
    %c0_i32_0 = arith.constant 0 : i32
    %c0_i32_1 = arith.constant 0 : i32
    return %c0_i32, %c0_i32_0 : i32, i32
  }
  func.func @transform_5(%arg0: i32) -> (i32, i32) {
    %c0_i32 = arith.constant 0 : i32
    %c0_i32_0 = arith.constant 0 : i32
    %c0_i32_1 = arith.constant 0 : i32
    return %c0_i32, %c0_i32_0 : i32, i32
  }
  func.func @transform_6(%arg0: i32) -> (i32, i32) {
    %c0_i32 = arith.constant 0 : i32
    %c0_i32_0 = arith.constant 0 : i32
    %c0_i32_1 = arith.constant 0 : i32
    return %c0_i32, %c0_i32_0 : i32, i32
  }
  func.func @transform_7(%arg0: i32) -> (i32, i32) {
    %c0_i32 = arith.constant 0 : i32
    %c0_i32_0 = arith.constant 0 : i32
    %c0_i32_1 = arith.constant 0 : i32
    return %c0_i32, %c0_i32_0 : i32, i32
  }
  func.func @transform_8(%arg0: i32) -> (i32, i32) {
    %c0_i32 = arith.constant 0 : i32
    %c0_i32_0 = arith.constant 0 : i32
    %c0_i32_1 = arith.constant 0 : i32
    return %c0_i32, %c0_i32_0 : i32, i32
  }
  func.func @transform_9(%arg0: i32) -> (i32, i32) {
    %c0_i32 = arith.constant 0 : i32
    %c0_i32_0 = arith.constant 0 : i32
    return %c0_i32, %arg0 : i32, i32
  }
}

</mosaic_0001>

<llo_original>
// kernel: tpu_custom_call.1
$region0: #{tpu_custom_call.1}
  #allocation0 [shape = 'u32[]', space=smem, size = 0x4, offset = 0x4, fixed_abs, tag = 'smem constant byte address 0x4 - core index']
  #allocation1 [shape = 'u32[144,128]{1,0:T(1,128)}', space=vmem, size = 0x12000, scoped, tag = 'internal scratch']
  #allocation2 [shape = 'f32[1,1]{1,0:T(1,128)S(1)}', space=vmem, size = 0x200, scoped, tag = 'scoped memory for tpu_custom_call.1']
  %s0 = inlined_call_operand.vmem [shape: f32[1337,832], index: 0, kind: input, shape index: {}]
  %s1 = inlined_call_operand.vmem [shape: bf16[832,128], index: 1, kind: input, shape index: {}]
  %s2 = inlined_call_operand.vmem [shape: f32[1,128], index: 2, kind: input, shape index: {}]
  %s3 = inlined_call_operand.vmem [shape: bf16[128,64], index: 3, kind: input, shape index: {}]
  %s4 = inlined_call_operand.vmem [shape: f32[1,64], index: 4, kind: input, shape index: {}]
  %s5 = inlined_call_operand.vmem [shape: bf16[64,32], index: 5, kind: input, shape index: {}]
  %s6 = inlined_call_operand.vmem [shape: f32[1,32], index: 6, kind: input, shape index: {}]
  %s7 = inlined_call_operand.vmem [shape: f32[1,32], index: 7, kind: input, shape index: {}]
  %s8 = inlined_call_operand.<no memory space> [shape: f32[1,1], index: 8, kind: input, shape index: {}]
  %s9 = inlined_call_operand.hbm [shape: f32[1,1536], index: 9, kind: output, shape index: {}]
  %s10 = sld [smem:[#allocation0]]
  $region69: #{tpu_custom_call.1} parent=0
    _
  %s12 = ssub.s32 1, %s10
  %s13 = scalar_select 0, %s12, %s10
  %v14 = vstv %s8
  %15 = vst [vmem:[#allocation2] sm:$0x1] %v14
  $region1: #{tpu_custom_call.1} parent=0
    #allocation3 [shape = 'u8[4096]{0}', space=vmem, size = 0x1000, scoped, tag = 'output window, operand 0']
    #allocation4 [shape = 's32[2]{0}', space=sflag, size = 0x8, scoped, tag = 'scoped memory for tpu_custom_call.1']
    %16 = vsyncpa [#allocation4], 0
    %s17 = scalar_lea.sflag [#allocation4], 1
    %18 = vsyncpa %s17, 0
    loop: start=0, step=1, limit=5
    $region2: #{tpu_custom_call.1} parent=1 // loop_pre_header
      _
    $region3: #{tpu_custom_call.1} parent=1 // loop_header
      %s20 = sphi 0, %s24
      %p21 = scmp.ge.s32.totalorder %s20, 5
      %s30 = sphi 0, %s32
      %s33 = sphi 0, %s30
      %s34 = sphi 0, %s33
      %s50 = sphi 0, %s34
      %s54 = sphi 0, %s54
      %s56 = sphi 0, %s54
      %s57 = sphi 0, %s56
      %s71 = sphi 0, %s57
      %s75 = sphi 0, %s75
      %s77 = sphi 0, %s75
      %s78 = sphi 0, %s77
      %s92 = sphi 0, %s78
      %s96 = sphi 0, %s96
      %s98 = sphi 0, %s96
      %s99 = sphi 0, %s98
      %s113 = sphi 0, %s99
      %s117 = sphi 0, %s117
      %s119 = sphi 0, %s117
      %s120 = sphi 0, %s119
      %s134 = sphi 0, %s120
      %s138 = sphi 0, %s138
      %s140 = sphi 0, %s138
      %s141 = sphi 0, %s140
      %s155 = sphi 0, %s141
      %s159 = sphi 0, %s159
      %s161 = sphi 0, %s159
      %s162 = sphi 0, %s161
      %s176 = sphi 0, %s162
      %s180 = sphi 0, %s180
      %s182 = sphi 0, %s180
      %s183 = sphi 0, %s182
      %s197 = sphi 0, %s183
      %s201 = sphi 0, %s201
      %s203 = sphi 0, %s201
      %s204 = sphi 0, %s203
      %s218 = sphi 0, %s204
      %s224 = sphi 0, %s226
      %s227 = sphi 0, %s224
      %s228 = sphi 0, %s227
      %s244 = sphi 0, %s228
    $region4: #{tpu_custom_call.1} parent=1 // loop_header_branch
      %23 = sbr.rel (%p21) target = $region8
    $region5: #{tpu_custom_call.1} parent=1 // loop_body
      %s25 = ssub.s32 %s20, 1
      %s26 = ssub.s32 %s20, 2
      %s27 = sadd.s32 %s20, 1
      %s28 = ssub.s32 %s20, %s27
      %p29 = scmp.eq.s32.totalorder %s28, 0
      %s31 = sadd.s32 %s30, 1
      %s32 = scalar_select %p29, %s30, %s31
      %p35 = pneg %p29
      %p36 = scmp.eq.s32.totalorder %s20, 2
      %p37 = por %p35, %p36
      %p38 = scmp.ne.s32.totalorder %s30, %s33
      %p39 = scmp.eq.s32.totalorder %s20, 0
      %p40 = por %p38, %p39
      %p41 = scmp.ne.s32.totalorder %s30, %s33
      %p42 = scmp.eq.s32.totalorder %s25, 2
      %p43 = por %p41, %p42
      %p44 = scmp.ne.s32.totalorder %s33, %s34
      %p45 = scmp.eq.s32.totalorder %s25, 0
      %p46 = por %p44, %p45
      %p47 = scmp.ne.s32.totalorder %s33, %s34
      %p48 = scmp.eq.s32.totalorder %s26, 2
      %p49 = por %p47, %p48
      %p51 = scmp.ne.s32.totalorder %s34, %s50
      %p52 = scmp.eq.s32.totalorder %s26, 0
      %p53 = por %p51, %p52
      %s55 = sadd.s32 %s54, 1
      %p58 = scmp.eq.s32.totalorder %s20, 2
      %p59 = scmp.ne.s32.totalorder %s54, %s56
      %p60 = scmp.eq.s32.totalorder %s20, 0
      %p61 = por %p59, %p60
      %p62 = scmp.ne.s32.totalorder %s54, %s56
      %p63 = scmp.eq.s32.totalorder %s25, 2
      %p64 = por %p62, %p63
      %p65 = scmp.ne.s32.totalorder %s56, %s57
      %p66 = scmp.eq.s32.totalorder %s25, 0
      %p67 = por %p65, %p66
      %p68 = scmp.ne.s32.totalorder %s56, %s57
      %p69 = scmp.eq.s32.totalorder %s26, 2
      %p70 = por %p68, %p69
      %p72 = scmp.ne.s32.totalorder %s57, %s71
      %p73 = scmp.eq.s32.totalorder %s26, 0
      %p74 = por %p72, %p73
      %s76 = sadd.s32 %s75, 1
      %p79 = scmp.eq.s32.totalorder %s20, 2
      %p80 = scmp.ne.s32.totalorder %s75, %s77
      %p81 = scmp.eq.s32.totalorder %s20, 0
      %p82 = por %p80, %p81
      %p83 = scmp.ne.s32.totalorder %s75, %s77
      %p84 = scmp.eq.s32.totalorder %s25, 2
      %p85 = por %p83, %p84
      %p86 = scmp.ne.s32.totalorder %s77, %s78
      %p87 = scmp.eq.s32.totalorder %s25, 0
      %p88 = por %p86, %p87
      %p89 = scmp.ne.s32.totalorder %s77, %s78
      %p90 = scmp.eq.s32.totalorder %s26, 2
      %p91 = por %p89, %p90
      %p93 = scmp.ne.s32.totalorder %s78, %s92
      %p94 = scmp.eq.s32.totalorder %s26, 0
      %p95 = por %p93, %p94
      %s97 = sadd.s32 %s96, 1
      %p100 = scmp.eq.s32.totalorder %s20, 2
      %p101 = scmp.ne.s32.totalorder %s96, %s98
      %p102 = scmp.eq.s32.totalorder %s20, 0
      %p103 = por %p101, %p102
      %p104 = scmp.ne.s32.totalorder %s96, %s98
      %p105 = scmp.eq.s32.totalorder %s25, 2
      %p106 = por %p104, %p105
      %p107 = scmp.ne.s32.totalorder %s98, %s99
      %p108 = scmp.eq.s32.totalorder %s25, 0
      %p109 = por %p107, %p108
      %p110 = scmp.ne.s32.totalorder %s98, %s99
      %p111 = scmp.eq.s32.totalorder %s26, 2
      %p112 = por %p110, %p111
      %p114 = scmp.ne.s32.totalorder %s99, %s113
      %p115 = scmp.eq.s32.totalorder %s26, 0
      %p116 = por %p114, %p115
      %s118 = sadd.s32 %s117, 1
      %p121 = scmp.eq.s32.totalorder %s20, 2
      %p122 = scmp.ne.s32.totalorder %s117, %s119
      %p123 = scmp.eq.s32.totalorder %s20, 0
      %p124 = por %p122, %p123
      %p125 = scmp.ne.s32.totalorder %s117, %s119
      %p126 = scmp.eq.s32.totalorder %s25, 2
      %p127 = por %p125, %p126
      %p128 = scmp.ne.s32.totalorder %s119, %s120
      %p129 = scmp.eq.s32.totalorder %s25, 0
      %p130 = por %p128, %p129
      %p131 = scmp.ne.s32.totalorder %s119, %s120
      %p132 = scmp.eq.s32.totalorder %s26, 2
      %p133 = por %p131, %p132
      %p135 = scmp.ne.s32.totalorder %s120, %s134
      %p136 = scmp.eq.s32.totalorder %s26, 0
      %p137 = por %p135, %p136
      %s139 = sadd.s32 %s138, 1
      %p142 = scmp.eq.s32.totalorder %s20, 2
      %p143 = scmp.ne.s32.totalorder %s138, %s140
      %p144 = scmp.eq.s32.totalorder %s20, 0
      %p145 = por %p143, %p144
      %p146 = scmp.ne.s32.totalorder %s138, %s140
      %p147 = scmp.eq.s32.totalorder %s25, 2
      %p148 = por %p146, %p147
      %p149 = scmp.ne.s32.totalorder %s140, %s141
      %p150 = scmp.eq.s32.totalorder %s25, 0
      %p151 = por %p149, %p150
      %p152 = scmp.ne.s32.totalorder %s140, %s141
      %p153 = scmp.eq.s32.totalorder %s26, 2
      %p154 = por %p152, %p153
      %p156 = scmp.ne.s32.totalorder %s141, %s155
      %p157 = scmp.eq.s32.totalorder %s26, 0
      %p158 = por %p156, %p157
      %s160 = sadd.s32 %s159, 1
      %p163 = scmp.eq.s32.totalorder %s20, 2
      %p164 = scmp.ne.s32.totalorder %s159, %s161
      %p165 = scmp.eq.s32.totalorder %s20, 0
      %p166 = por %p164, %p165
      %p167 = scmp.ne.s32.totalorder %s159, %s161
      %p168 = scmp.eq.s32.totalorder %s25, 2
      %p169 = por %p167, %p168
      %p170 = scmp.ne.s32.totalorder %s161, %s162
      %p171 = scmp.eq.s32.totalorder %s25, 0
      %p172 = por %p170, %p171
      %p173 = scmp.ne.s32.totalorder %s161, %s162
      %p174 = scmp.eq.s32.totalorder %s26, 2
      %p175 = por %p173, %p174
      %p177 = scmp.ne.s32.totalorder %s162, %s176
      %p178 = scmp.eq.s32.totalorder %s26, 0
      %p179 = por %p177, %p178
      %s181 = sadd.s32 %s180, 1
      %p184 = scmp.eq.s32.totalorder %s20, 2
      %p185 = scmp.ne.s32.totalorder %s180, %s182
      %p186 = scmp.eq.s32.totalorder %s20, 0
      %p187 = por %p185, %p186
      %p188 = scmp.ne.s32.totalorder %s180, %s182
      %p189 = scmp.eq.s32.totalorder %s25, 2
      %p190 = por %p188, %p189
      %p191 = scmp.ne.s32.totalorder %s182, %s183
      %p192 = scmp.eq.s32.totalorder %s25, 0
      %p193 = por %p191, %p192
      %p194 = scmp.ne.s32.totalorder %s182, %s183
      %p195 = scmp.eq.s32.totalorder %s26, 2
      %p196 = por %p194, %p195
      %p198 = scmp.ne.s32.totalorder %s183, %s197
      %p199 = scmp.eq.s32.totalorder %s26, 0
      %p200 = por %p198, %p199
      %s202 = sadd.s32 %s201, 1
      %p205 = scmp.eq.s32.totalorder %s20, 2
      %p206 = scmp.ne.s32.totalorder %s201, %s203
      %p207 = scmp.eq.s32.totalorder %s20, 0
      %p208 = por %p206, %p207
      %p209 = scmp.ne.s32.totalorder %s201, %s203
      %p210 = scmp.eq.s32.totalorder %s25, 2
      %p211 = por %p209, %p210
      %p212 = scmp.ne.s32.totalorder %s203, %s204
      %p213 = scmp.eq.s32.totalorder %s25, 0
      %p214 = por %p212, %p213
      %p215 = scmp.ne.s32.totalorder %s203, %s204
      %p216 = scmp.eq.s32.totalorder %s26, 2
      %p217 = por %p215, %p216
      %p219 = scmp.ne.s32.totalorder %s204, %s218
      %p220 = scmp.eq.s32.totalorder %s26, 0
      %p221 = por %p219, %p220
      %s222 = ssub.s32 %s20, %s27
      %p223 = scmp.eq.s32.totalorder %s222, 0
      %s225 = sadd.s32 %s224, 1
      %s226 = scalar_select %p223, %s224, %s225
      %p229 = pneg %p223
      %p230 = scmp.eq.s32.totalorder %s20, 2
      %p231 = por %p229, %p230
      %p232 = scmp.ne.s32.totalorder %s224, %s227
      %p233 = scmp.eq.s32.totalorder %s20, 0
      %p234 = por %p232, %p233
      %p235 = scmp.ne.s32.totalorder %s224, %s227
      %p236 = scmp.eq.s32.totalorder %s25, 2
      %p237 = por %p235, %p236
      %p238 = scmp.ne.s32.totalorder %s227, %s228
      %p239 = scmp.eq.s32.totalorder %s25, 0
      %p240 = por %p238, %p239
      %p241 = scmp.ne.s32.totalorder %s227, %s228
      %p242 = scmp.eq.s32.totalorder %s26, 2
      %p243 = por %p241, %p242
      %p245 = scmp.ne.s32.totalorder %s228, %s244
      %p246 = scmp.eq.s32.totalorder %s26, 0
      %p247 = por %p245, %p246
      %p248 = scmp.le.s32.totalorder 1, %s20
      %p249 = scmp.lt.s32.totalorder %s20, 4
      %p250 = pnand %p248, %p249
      %p251 = pneg %p250
      // Predicated region
      $region9: #{tpu_custom_call.1} parent=5 // pred_check
        _
      $region10: #{tpu_custom_call.1} parent=5 // pred_check_branch
        %253 = sbr.rel (%p250) target = $region12
      $region11: #{tpu_custom_call.1} parent=5 // pred_region
        %s254 = ssub.s32 %s20, 1
        // Predicated region
        $region13: #{tpu_custom_call.1} parent=11 // pred_check
          %p255 = pneg %p67
        $region14: #{tpu_custom_call.1} parent=11 // pred_check_branch
          %257 = sbr.rel (%p255) target = $region16
        $region15: #{tpu_custom_call.1} parent=11 // pred_region
          _
        $region16: #{tpu_custom_call.1} parent=11 // pred_fallthru
          _
        // Predicated region
        $region17: #{tpu_custom_call.1} parent=11 // pred_check
          %p258 = pneg %p88
        $region18: #{tpu_custom_call.1} parent=11 // pred_check_branch
          %260 = sbr.rel (%p258) target = $region20
        $region19: #{tpu_custom_call.1} parent=11 // pred_region
          _
        $region20: #{tpu_custom_call.1} parent=11 // pred_fallthru
          _
        // Predicated region
        $region21: #{tpu_custom_call.1} parent=11 // pred_check
          %p261 = pneg %p109
        $region22: #{tpu_custom_call.1} parent=11 // pred_check_branch
          %263 = sbr.rel (%p261) target = $region24
        $region23: #{tpu_custom_call.1} parent=11 // pred_region
          _
        $region24: #{tpu_custom_call.1} parent=11 // pred_fallthru
          _
        // Predicated region
        $region25: #{tpu_custom_call.1} parent=11 // pred_check
          %p264 = pneg %p130
        $region26: #{tpu_custom_call.1} parent=11 // pred_check_branch
          %266 = sbr.rel (%p264) target = $region28
        $region27: #{tpu_custom_call.1} parent=11 // pred_region
          _
        $region28: #{tpu_custom_call.1} parent=11 // pred_fallthru
          _
        // Predicated region
        $region29: #{tpu_custom_call.1} parent=11 // pred_check
          %p267 = pneg %p151
        $region30: #{tpu_custom_call.1} parent=11 // pred_check_branch
          %269 = sbr.rel (%p267) target = $region32
        $region31: #{tpu_custom_call.1} parent=11 // pred_region
          _
        $region32: #{tpu_custom_call.1} parent=11 // pred_fallthru
          _
        // Predicated region
        $region33: #{tpu_custom_call.1} parent=11 // pred_check
          %p270 = pneg %p172
        $region34: #{tpu_custom_call.1} parent=11 // pred_check_branch
          %272 = sbr.rel (%p270) target = $region36
        $region35: #{tpu_custom_call.1} parent=11 // pred_region
          _
        $region36: #{tpu_custom_call.1} parent=11 // pred_fallthru
          _
        // Predicated region
        $region37: #{tpu_custom_call.1} parent=11 // pred_check
          %p273 = pneg %p193
        $region38: #{tpu_custom_call.1} parent=11 // pred_check_branch
          %275 = sbr.rel (%p273) target = $region40
        $region39: #{tpu_custom_call.1} parent=11 // pred_region
          _
        $region40: #{tpu_custom_call.1} parent=11 // pred_fallthru
          _
        // Predicated region
        $region41: #{tpu_custom_call.1} parent=11 // pred_check
          %p276 = pneg %p214
        $region42: #{tpu_custom_call.1} parent=11 // pred_check_branch
          %278 = sbr.rel (%p276) target = $region44
        $region43: #{tpu_custom_call.1} parent=11 // pred_region
          _
        $region44: #{tpu_custom_call.1} parent=11 // pred_fallthru
          _
      $region12: #{tpu_custom_call.1} parent=5 // pred_fallthru
        _
      %p279 = scmp.lt.s32.totalorder %s20, 3
      // Predicated region
      $region45: #{tpu_custom_call.1} parent=5 // pred_check
        %p280 = pneg %p279
      $region46: #{tpu_custom_call.1} parent=5 // pred_check_branch
        %282 = sbr.rel (%p280) target = $region48
      $region47: #{tpu_custom_call.1} parent=5 // pred_region
        // Predicated region
        $region49: #{tpu_custom_call.1} parent=47 // pred_check
          %p283 = pneg %p40
        $region50: #{tpu_custom_call.1} parent=47 // pred_check_branch
          %285 = sbr.rel (%p283) target = $region52
        $region51: #{tpu_custom_call.1} parent=47 // pred_region
          %s286 = smul.u32 64, %s20
          %s287 = ssub.s32 168, %s286
          %p288 = scmp.lt.s32.totalorder %s287, 64
          %s289 = scalar_select %p288, %s287, 64
          %s290 = smul.u32 128, %s289
          %s291 = smul.u32 %s290, 7
          %p292 = scmp.lt.s32.totalorder %s286, 167
          %s293 = scalar_select %p292, %s286, 167
          %s294 = smul.addr %s293, 7
          %s295 = smul.addr %s294, 8
          %s296 = scalar_lea.vmem %s0, %s295
          %s297 = smul.u32 64, %s20
          %s298 = ssub.s32 168, %s297
          %p299 = scmp.lt.s32.totalorder %s298, 64
          %s300 = scalar_select %p299, %s298, 64
          %s301 = smul.u32 128, %s300
          %s302 = smul.u32 %s301, 7
        $region52: #{tpu_custom_call.1} parent=47 // pred_fallthru
          _
      $region48: #{tpu_custom_call.1} parent=5 // pred_fallthru
        _
      %p303 = scmp.le.s32.totalorder 1, %s20
      %p304 = scmp.lt.s32.totalorder %s20, 4
      %p305 = pnand %p303, %p304
      %p306 = pneg %p305
      // Predicated region
      $region53: #{tpu_custom_call.1} parent=5 // pred_check
        _
      $region54: #{tpu_custom_call.1} parent=5 // pred_check_branch
        %308 = sbr.rel (%p305) target = $region56
      $region55: #{tpu_custom_call.1} parent=5 // pred_region
        %s309 = ssub.s32 %s20, 1
        %s310 = smul.u32 64, %s25
        %s311 = ssub.s32 168, %s310
        %p312 = scmp.lt.s32.totalorder %s311, 64
        %s313 = scalar_select %p312, %s311, 64
        %s314 = smul.u32 128, %s313
        %s315 = smul.u32 %s314, 7
        %p316 = scmp.lt.s32.totalorder %s310, 167
        %s317 = scalar_select %p316, %s310, 167
        %s318 = smul.addr %s317, 7
        %s319 = smul.addr %s318, 8
        %s320 = scalar_lea.vmem %s0, %s319
        %p321 = pneg %p46
        %p322 = pneg %p43
        %p323 = pneg %p67
        %p324 = pneg %p64
        %p325 = pneg %p88
        %p326 = pneg %p85
        %p327 = pneg %p109
        %p328 = pneg %p106
        %p329 = pneg %p130
        %p330 = pneg %p127
        %p331 = pneg %p151
        %p332 = pneg %p148
        %p333 = pneg %p172
        %p334 = pneg %p169
        %p335 = pneg %p193
        %p336 = pneg %p190
        %p337 = pneg %p214
        %p338 = pneg %p211
        %p339 = pneg %p240
        %p340 = pneg %p237
        %s341 = sand.u32 %s227, 1
        %s342 = scalar_lea.sflag [#allocation4], %s341
        %s343 = sand.u32 %s227, 1
        %s344 = smul.addr %s343, 4
        %s345 = scalar_lea.vmem [#allocation3], %s344
        %s346 = smul.u32 64, %s25
        %s347 = ssub.s32 168, %s346
        %p348 = scmp.lt.s32.totalorder %s347, 64
        %s349 = scalar_select %p348, %s347, 64
        %s350 = smul.u32 128, %s349
        %s351 = smul.u32 %s350, 7
        %p352 = scmp.lt.s32.totalorder %s346, 167
        %s353 = scalar_select %p352, %s346, 167
        %s354 = smul.addr %s353, 7
        %s355 = smul.addr %s354, 8
        %s356 = scalar_lea.vmem %s0, %s355
        %s357 = smul.u32 64, %s25
        %s358 = ssub.s32 168, %s357
        %p359 = scmp.lt.s32.totalorder %s358, 64
        %s360 = scalar_select %p359, %s358, 64
        %s361 = smul.u32 128, %s360
        %s362 = smul.u32 %s361, 7
        %s363 = smul.u32 4, %s25
        %v365 = vld [vmem:[%s356] sm:$0xff]
        %v366 = vld [vmem:[%s356 + $0x8] sm:$0xff]
        %v367 = vld [vmem:[%s356 + $0x10] sm:$0xff]
        %v368 = vld [vmem:[%s356 + $0x18] sm:$0xff]
        %v369 = vld [vmem:[%s356 + $0x20] sm:$0xff]
        %v370 = vld [vmem:[%s356 + $0x28] sm:$0xff]
        %v371 = vld [vmem:[%s356 + $0x30] sm:$0xff]
        %v372 = vld [vmem:[%s356 + $0x38] sm:$0xff]
        %v373 = vld [vmem:[%s356 + $0x40] sm:$0xff]
        %v374 = vld [vmem:[%s356 + $0x48] sm:$0xff]
        %v375 = vld [vmem:[%s356 + $0x50] sm:$0xff]
        %v376 = vld [vmem:[%s356 + $0x58] sm:$0xff]
        %v377 = vld [vmem:[%s356 + $0x60] sm:$0xff]
        %v378 = vld [vmem:[%s356 + $0x68] sm:$0xff]
        %v379 = vld [vmem:[%s356 + $0x70] sm:$0xff]
        %v380 = vld [vmem:[%s356 + $0x78] sm:$0xff]
        %v381 = vld [vmem:[%s356 + $0x80] sm:$0xff]
        %v382 = vld [vmem:[%s356 + $0x88] sm:$0xff]
        %v383 = vld [vmem:[%s356 + $0x90] sm:$0xff]
        %v384 = vld [vmem:[%s356 + $0x98] sm:$0xff]
        %v385 = vld [vmem:[%s356 + $0xa0] sm:$0xff]
        %v386 = vld [vmem:[%s356 + $0xa8] sm:$0xff]
        %v387 = vld [vmem:[%s356 + $0xb0] sm:$0xff]
        %v388 = vld [vmem:[%s356 + $0xb8] sm:$0xff]
        %v389 = vld [vmem:[%s356 + $0xc0] sm:$0xff]
        %v390 = vld [vmem:[%s356 + $0xc8] sm:$0xff]
        %v391 = vld [vmem:[%s356 + $0xd0] sm:$0xff]
        %v392 = vld [vmem:[%s356 + $0xd8] sm:$0xff]
        %v393 = vld [vmem:[%s356 + $0xe0] sm:$0xff]
        %v394 = vld [vmem:[%s356 + $0xe8] sm:$0xff]
        %v395 = vld [vmem:[%s356 + $0xf0] sm:$0xff]
        %v396 = vld [vmem:[%s356 + $0xf8] sm:$0xff]
        %v397 = vld [vmem:[%s356 + $0x100] sm:$0xff]
        %v398 = vld [vmem:[%s356 + $0x108] sm:$0xff]
        %v399 = vld [vmem:[%s356 + $0x110] sm:$0xff]
        %v400 = vld [vmem:[%s356 + $0x118] sm:$0xff]
        %v401 = vld [vmem:[%s356 + $0x120] sm:$0xff]
        %v402 = vld [vmem:[%s356 + $0x128] sm:$0xff]
        %v403 = vld [vmem:[%s356 + $0x130] sm:$0xff]
        %v404 = vld [vmem:[%s356 + $0x138] sm:$0xff]
        %v405 = vld [vmem:[%s356 + $0x140] sm:$0xff]
        %v406 = vld [vmem:[%s356 + $0x148] sm:$0xff]
        %v407 = vld [vmem:[%s356 + $0x150] sm:$0xff]
        %v408 = vld [vmem:[%s356 + $0x158] sm:$0xff]
        %v409 = vld [vmem:[%s356 + $0x160] sm:$0xff]
        %v410 = vld [vmem:[%s356 + $0x168] sm:$0xff]
        %v411 = vld [vmem:[%s356 + $0x170] sm:$0xff]
        %v412 = vld [vmem:[%s356 + $0x178] sm:$0xff]
        %v413 = vld [vmem:[%s356 + $0x180] sm:$0xff]
        %v414 = vld [vmem:[%s356 + $0x188] sm:$0xff]
        %v415 = vld [vmem:[%s356 + $0x190] sm:$0xff]
        %v416 = vld [vmem:[%s356 + $0x198] sm:$0xff]
        %v417 = vld [vmem:[%s356 + $0x1a0] sm:$0xff]
        %v418 = vld [vmem:[%s356 + $0x1a8] sm:$0xff]
        %v419 = vld [vmem:[%s356 + $0x1b0] sm:$0xff]
        %v420 = vld [vmem:[%s356 + $0x1b8] sm:$0xff]
        %v421 = vld [vmem:[%s356 + $0x1c0] sm:$0xff]
        %v422 = vld [vmem:[%s356 + $0x1c8] sm:$0xff]
        %v423 = vld [vmem:[%s356 + $0x1d0] sm:$0xff]
        %v424 = vld [vmem:[%s356 + $0x1d8] sm:$0xff]
        %v425 = vld [vmem:[%s356 + $0x1e0] sm:$0xff]
        %v426 = vld [vmem:[%s356 + $0x1e8] sm:$0xff]
        %v427 = vld [vmem:[%s356 + $0x1f0] sm:$0xff]
        %v428 = vld [vmem:[%s356 + $0x1f8] sm:$0xff]
        %v429 = vld [vmem:[%s356 + $0x200] sm:$0xff]
        %v430 = vld [vmem:[%s356 + $0x208] sm:$0xff]
        %v431 = vld [vmem:[%s356 + $0x210] sm:$0xff]
        %v432 = vld [vmem:[%s356 + $0x218] sm:$0xff]
        %v433 = vld [vmem:[%s356 + $0x220] sm:$0xff]
        %v434 = vld [vmem:[%s356 + $0x228] sm:$0xff]
        %v435 = vld [vmem:[%s356 + $0x230] sm:$0xff]
        %v436 = vld [vmem:[%s356 + $0x238] sm:$0xff]
        %v437 = vld [vmem:[%s356 + $0x240] sm:$0xff]
        %v438 = vld [vmem:[%s356 + $0x248] sm:$0xff]
        %v439 = vld [vmem:[%s356 + $0x250] sm:$0xff]
        %v440 = vld [vmem:[%s356 + $0x258] sm:$0xff]
        %v441 = vld [vmem:[%s356 + $0x260] sm:$0xff]
        %v442 = vld [vmem:[%s356 + $0x268] sm:$0xff]
        %v443 = vld [vmem:[%s356 + $0x270] sm:$0xff]
        %v444 = vld [vmem:[%s356 + $0x278] sm:$0xff]
        %v445 = vld [vmem:[%s356 + $0x280] sm:$0xff]
        %v446 = vld [vmem:[%s356 + $0x288] sm:$0xff]
        %v447 = vld [vmem:[%s356 + $0x290] sm:$0xff]
        %v448 = vld [vmem:[%s356 + $0x298] sm:$0xff]
        %v449 = vld [vmem:[%s356 + $0x2a0] sm:$0xff]
        %v450 = vld [vmem:[%s356 + $0x2a8] sm:$0xff]
        %v451 = vld [vmem:[%s356 + $0x2b0] sm:$0xff]
        %v452 = vld [vmem:[%s356 + $0x2b8] sm:$0xff]
        %v453 = vld [vmem:[%s356 + $0x2c0] sm:$0xff]
        %v454 = vld [vmem:[%s356 + $0x2c8] sm:$0xff]
        %v455 = vld [vmem:[%s356 + $0x2d0] sm:$0xff]
        %v456 = vld [vmem:[%s356 + $0x2d8] sm:$0xff]
        %v457 = vld [vmem:[%s356 + $0x2e0] sm:$0xff]
        %v458 = vld [vmem:[%s356 + $0x2e8] sm:$0xff]
        %v459 = vld [vmem:[%s356 + $0x2f0] sm:$0xff]
        %v460 = vld [vmem:[%s356 + $0x2f8] sm:$0xff]
        %v461 = vld [vmem:[%s356 + $0x300] sm:$0xff]
        %v462 = vld [vmem:[%s356 + $0x308] sm:$0xff]
        %v463 = vld [vmem:[%s356 + $0x310] sm:$0xff]
        %v464 = vld [vmem:[%s356 + $0x318] sm:$0xff]
        %v465 = vld [vmem:[%s356 + $0x320] sm:$0xff]
        %v466 = vld [vmem:[%s356 + $0x328] sm:$0xff]
        %v467 = vld [vmem:[%s356 + $0x330] sm:$0xff]
        %v468 = vld [vmem:[%s356 + $0x338] sm:$0xff]
        %v469 = vld [vmem:[%s356 + $0x340] sm:$0xff]
        %v470 = vld [vmem:[%s356 + $0x348] sm:$0xff]
        %v471 = vld [vmem:[%s356 + $0x350] sm:$0xff]
        %v472 = vld [vmem:[%s356 + $0x358] sm:$0xff]
        %v473 = vld [vmem:[%s356 + $0x360] sm:$0xff]
        %v474 = vld [vmem:[%s356 + $0x368] sm:$0xff]
        %v475 = vld [vmem:[%s356 + $0x370] sm:$0xff]
        %v476 = vld [vmem:[%s356 + $0x378] sm:$0xff]
        %v477 = vld [vmem:[%s356 + $0x380] sm:$0xff]
        %v478 = vld [vmem:[%s356 + $0x388] sm:$0xff]
        %v479 = vld [vmem:[%s356 + $0x390] sm:$0xff]
        %v480 = vld [vmem:[%s356 + $0x398] sm:$0xff]
        %v481 = vld [vmem:[%s356 + $0x3a0] sm:$0xff]
        %v482 = vld [vmem:[%s356 + $0x3a8] sm:$0xff]
        %v483 = vld [vmem:[%s356 + $0x3b0] sm:$0xff]
        %v484 = vld [vmem:[%s356 + $0x3b8] sm:$0xff]
        %v485 = vld [vmem:[%s356 + $0x3c0] sm:$0xff]
        %v486 = vld [vmem:[%s356 + $0x3c8] sm:$0xff]
        %v487 = vld [vmem:[%s356 + $0x3d0] sm:$0xff]
        %v488 = vld [vmem:[%s356 + $0x3d8] sm:$0xff]
        %v489 = vld [vmem:[%s356 + $0x3e0] sm:$0xff]
        %v490 = vld [vmem:[%s356 + $0x3e8] sm:$0xff]
        %v491 = vld [vmem:[%s356 + $0x3f0] sm:$0xff]
        %v492 = vld [vmem:[%s356 + $0x3f8] sm:$0xff]
        %v493 = vld [vmem:[%s356 + $0x400] sm:$0xff]
        %v494 = vld [vmem:[%s356 + $0x408] sm:$0xff]
        %v495 = vld [vmem:[%s356 + $0x410] sm:$0xff]
        %v496 = vld [vmem:[%s356 + $0x418] sm:$0xff]
        %v497 = vld [vmem:[%s356 + $0x420] sm:$0xff]
        %v498 = vld [vmem:[%s356 + $0x428] sm:$0xff]
        %v499 = vld [vmem:[%s356 + $0x430] sm:$0xff]
        %v500 = vld [vmem:[%s356 + $0x438] sm:$0xff]
        %v501 = vld [vmem:[%s356 + $0x440] sm:$0xff]
        %v502 = vld [vmem:[%s356 + $0x448] sm:$0xff]
        %v503 = vld [vmem:[%s356 + $0x450] sm:$0xff]
        %v504 = vld [vmem:[%s356 + $0x458] sm:$0xff]
        %v505 = vld [vmem:[%s356 + $0x460] sm:$0xff]
        %v506 = vld [vmem:[%s356 + $0x468] sm:$0xff]
        %v507 = vld [vmem:[%s356 + $0x470] sm:$0xff]
        %v508 = vld [vmem:[%s356 + $0x478] sm:$0xff]
        %v509 = vld [vmem:[%s356 + $0x480] sm:$0xff]
        %v510 = vld [vmem:[%s356 + $0x488] sm:$0xff]
        %v511 = vld [vmem:[%s356 + $0x490] sm:$0xff]
        %v512 = vld [vmem:[%s356 + $0x498] sm:$0xff]
        %v513 = vld [vmem:[%s356 + $0x4a0] sm:$0xff]
        %v514 = vld [vmem:[%s356 + $0x4a8] sm:$0xff]
        %v515 = vld [vmem:[%s356 + $0x4b0] sm:$0xff]
        %v516 = vld [vmem:[%s356 + $0x4b8] sm:$0xff]
        %v517 = vld [vmem:[%s356 + $0x4c0] sm:$0xff]
        %v518 = vld [vmem:[%s356 + $0x4c8] sm:$0xff]
        %v519 = vld [vmem:[%s356 + $0x4d0] sm:$0xff]
        %v520 = vld [vmem:[%s356 + $0x4d8] sm:$0xff]
        %v521 = vld [vmem:[%s356 + $0x4e0] sm:$0xff]
        %v522 = vld [vmem:[%s356 + $0x4e8] sm:$0xff]
        %v523 = vld [vmem:[%s356 + $0x4f0] sm:$0xff]
        %v524 = vld [vmem:[%s356 + $0x4f8] sm:$0xff]
        %v525 = vld [vmem:[%s356 + $0x500] sm:$0xff]
        %v526 = vld [vmem:[%s356 + $0x508] sm:$0xff]
        %v527 = vld [vmem:[%s356 + $0x510] sm:$0xff]
        %v528 = vld [vmem:[%s356 + $0x518] sm:$0xff]
        %v529 = vld [vmem:[%s356 + $0x520] sm:$0xff]
        %v530 = vld [vmem:[%s356 + $0x528] sm:$0xff]
        %v531 = vld [vmem:[%s356 + $0x530] sm:$0xff]
        %v532 = vld [vmem:[%s356 + $0x538] sm:$0xff]
        %v533 = vld [vmem:[%s356 + $0x540] sm:$0xff]
        %v534 = vld [vmem:[%s356 + $0x548] sm:$0xff]
        %v535 = vld [vmem:[%s356 + $0x550] sm:$0xff]
        %v536 = vld [vmem:[%s356 + $0x558] sm:$0xff]
        %v537 = vld [vmem:[%s356 + $0x560] sm:$0xff]
        %v538 = vld [vmem:[%s356 + $0x568] sm:$0xff]
        %v539 = vld [vmem:[%s356 + $0x570] sm:$0xff]
        %v540 = vld [vmem:[%s356 + $0x578] sm:$0xff]
        %v541 = vld [vmem:[%s356 + $0x580] sm:$0xff]
        %v542 = vld [vmem:[%s356 + $0x588] sm:$0xff]
        %v543 = vld [vmem:[%s356 + $0x590] sm:$0xff]
        %v544 = vld [vmem:[%s356 + $0x598] sm:$0xff]
        %v545 = vld [vmem:[%s356 + $0x5a0] sm:$0xff]
        %v546 = vld [vmem:[%s356 + $0x5a8] sm:$0xff]
        %v547 = vld [vmem:[%s356 + $0x5b0] sm:$0xff]
        %v548 = vld [vmem:[%s356 + $0x5b8] sm:$0xff]
        %v549 = vld [vmem:[%s356 + $0x5c0] sm:$0xff]
        %v550 = vld [vmem:[%s356 + $0x5c8] sm:$0xff]
        %v551 = vld [vmem:[%s356 + $0x5d0] sm:$0xff]
        %v552 = vld [vmem:[%s356 + $0x5d8] sm:$0xff]
        %v553 = vld [vmem:[%s356 + $0x5e0] sm:$0xff]
        %v554 = vld [vmem:[%s356 + $0x5e8] sm:$0xff]
        %v555 = vld [vmem:[%s356 + $0x5f0] sm:$0xff]
        %v556 = vld [vmem:[%s356 + $0x5f8] sm:$0xff]
        %v557 = vld [vmem:[%s356 + $0x600] sm:$0xff]
        %v558 = vld [vmem:[%s356 + $0x608] sm:$0xff]
        %v559 = vld [vmem:[%s356 + $0x610] sm:$0xff]
        %v560 = vld [vmem:[%s356 + $0x618] sm:$0xff]
        %v561 = vld [vmem:[%s356 + $0x620] sm:$0xff]
        %v562 = vld [vmem:[%s356 + $0x628] sm:$0xff]
        %v563 = vld [vmem:[%s356 + $0x630] sm:$0xff]
        %v564 = vld [vmem:[%s356 + $0x638] sm:$0xff]
        %v565 = vld [vmem:[%s356 + $0x640] sm:$0xff]
        %v566 = vld [vmem:[%s356 + $0x648] sm:$0xff]
        %v567 = vld [vmem:[%s356 + $0x650] sm:$0xff]
        %v568 = vld [vmem:[%s356 + $0x658] sm:$0xff]
        %v569 = vld [vmem:[%s356 + $0x660] sm:$0xff]
        %v570 = vld [vmem:[%s356 + $0x668] sm:$0xff]
        %v571 = vld [vmem:[%s356 + $0x670] sm:$0xff]
        %v572 = vld [vmem:[%s356 + $0x678] sm:$0xff]
        %v573 = vld [vmem:[%s356 + $0x680] sm:$0xff]
        %v574 = vld [vmem:[%s356 + $0x688] sm:$0xff]
        %v575 = vld [vmem:[%s356 + $0x690] sm:$0xff]
        %v576 = vld [vmem:[%s356 + $0x698] sm:$0xff]
        %v577 = vld [vmem:[%s356 + $0x6a0] sm:$0xff]
        %v578 = vld [vmem:[%s356 + $0x6a8] sm:$0xff]
        %v579 = vld [vmem:[%s356 + $0x6b0] sm:$0xff]
        %v580 = vld [vmem:[%s356 + $0x6b8] sm:$0xff]
        %v581 = vld [vmem:[%s356 + $0x6c0] sm:$0xff]
        %v582 = vld [vmem:[%s356 + $0x6c8] sm:$0xff]
        %v583 = vld [vmem:[%s356 + $0x6d0] sm:$0xff]
        %v584 = vld [vmem:[%s356 + $0x6d8] sm:$0xff]
        %v585 = vld [vmem:[%s356 + $0x6e0] sm:$0xff]
        %v586 = vld [vmem:[%s356 + $0x6e8] sm:$0xff]
        %v587 = vld [vmem:[%s356 + $0x6f0] sm:$0xff]
        %v588 = vld [vmem:[%s356 + $0x6f8] sm:$0xff]
        %v589 = vld [vmem:[%s356 + $0x700] sm:$0xff]
        %v590 = vld [vmem:[%s356 + $0x708] sm:$0xff]
        %v591 = vld [vmem:[%s356 + $0x710] sm:$0xff]
        %v592 = vld [vmem:[%s356 + $0x718] sm:$0xff]
        %v593 = vld [vmem:[%s356 + $0x720] sm:$0xff]
        %v594 = vld [vmem:[%s356 + $0x728] sm:$0xff]
        %v595 = vld [vmem:[%s356 + $0x730] sm:$0xff]
        %v596 = vld [vmem:[%s356 + $0x738] sm:$0xff]
        %v597 = vld [vmem:[%s356 + $0x740] sm:$0xff]
        %v598 = vld [vmem:[%s356 + $0x748] sm:$0xff]
        %v599 = vld [vmem:[%s356 + $0x750] sm:$0xff]
        %v600 = vld [vmem:[%s356 + $0x758] sm:$0xff]
        %v601 = vld [vmem:[%s356 + $0x760] sm:$0xff]
        %v602 = vld [vmem:[%s356 + $0x768] sm:$0xff]
        %v603 = vld [vmem:[%s356 + $0x770] sm:$0xff]
        %v604 = vld [vmem:[%s356 + $0x778] sm:$0xff]
        %v605 = vld [vmem:[%s356 + $0x780] sm:$0xff]
        %v606 = vld [vmem:[%s356 + $0x788] sm:$0xff]
        %v607 = vld [vmem:[%s356 + $0x790] sm:$0xff]
        %v608 = vld [vmem:[%s356 + $0x798] sm:$0xff]
        %v609 = vld [vmem:[%s356 + $0x7a0] sm:$0xff]
        %v610 = vld [vmem:[%s356 + $0x7a8] sm:$0xff]
        %v611 = vld [vmem:[%s356 + $0x7b0] sm:$0xff]
        %v612 = vld [vmem:[%s356 + $0x7b8] sm:$0xff]
        %v613 = vld [vmem:[%s356 + $0x7c0] sm:$0xff]
        %v614 = vld [vmem:[%s356 + $0x7c8] sm:$0xff]
        %v615 = vld [vmem:[%s356 + $0x7d0] sm:$0xff]
        %v616 = vld [vmem:[%s356 + $0x7d8] sm:$0xff]
        %v617 = vld [vmem:[%s356 + $0x7e0] sm:$0xff]
        %v618 = vld [vmem:[%s356 + $0x7e8] sm:$0xff]
        %v619 = vld [vmem:[%s356 + $0x7f0] sm:$0xff]
        %v620 = vld [vmem:[%s356 + $0x7f8] sm:$0xff]
        %v621 = vld [vmem:[%s356 + $0x800] sm:$0xff]
        %v622 = vld [vmem:[%s356 + $0x808] sm:$0xff]
        %v623 = vld [vmem:[%s356 + $0x810] sm:$0xff]
        %v624 = vld [vmem:[%s356 + $0x818] sm:$0xff]
        %v625 = vld [vmem:[%s356 + $0x820] sm:$0xff]
        %v626 = vld [vmem:[%s356 + $0x828] sm:$0xff]
        %v627 = vld [vmem:[%s356 + $0x830] sm:$0xff]
        %v628 = vld [vmem:[%s356 + $0x838] sm:$0xff]
        %v629 = vld [vmem:[%s356 + $0x840] sm:$0xff]
        %v630 = vld [vmem:[%s356 + $0x848] sm:$0xff]
        %v631 = vld [vmem:[%s356 + $0x850] sm:$0xff]
        %v632 = vld [vmem:[%s356 + $0x858] sm:$0xff]
        %v633 = vld [vmem:[%s356 + $0x860] sm:$0xff]
        %v634 = vld [vmem:[%s356 + $0x868] sm:$0xff]
        %v635 = vld [vmem:[%s356 + $0x870] sm:$0xff]
        %v636 = vld [vmem:[%s356 + $0x878] sm:$0xff]
        %v637 = vld [vmem:[%s356 + $0x880] sm:$0xff]
        %v638 = vld [vmem:[%s356 + $0x888] sm:$0xff]
        %v639 = vld [vmem:[%s356 + $0x890] sm:$0xff]
        %v640 = vld [vmem:[%s356 + $0x898] sm:$0xff]
        %v641 = vld [vmem:[%s356 + $0x8a0] sm:$0xff]
        %v642 = vld [vmem:[%s356 + $0x8a8] sm:$0xff]
        %v643 = vld [vmem:[%s356 + $0x8b0] sm:$0xff]
        %v644 = vld [vmem:[%s356 + $0x8b8] sm:$0xff]
        %v645 = vld [vmem:[%s356 + $0x8c0] sm:$0xff]
        %v646 = vld [vmem:[%s356 + $0x8c8] sm:$0xff]
        %v647 = vld [vmem:[%s356 + $0x8d0] sm:$0xff]
        %v648 = vld [vmem:[%s356 + $0x8d8] sm:$0xff]
        %v649 = vld [vmem:[%s356 + $0x8e0] sm:$0xff]
        %v650 = vld [vmem:[%s356 + $0x8e8] sm:$0xff]
        %v651 = vld [vmem:[%s356 + $0x8f0] sm:$0xff]
        %v652 = vld [vmem:[%s356 + $0x8f8] sm:$0xff]
        %v653 = vld [vmem:[%s356 + $0x900] sm:$0xff]
        %v654 = vld [vmem:[%s356 + $0x908] sm:$0xff]
        %v655 = vld [vmem:[%s356 + $0x910] sm:$0xff]
        %v656 = vld [vmem:[%s356 + $0x918] sm:$0xff]
        %v657 = vld [vmem:[%s356 + $0x920] sm:$0xff]
        %v658 = vld [vmem:[%s356 + $0x928] sm:$0xff]
        %v659 = vld [vmem:[%s356 + $0x930] sm:$0xff]
        %v660 = vld [vmem:[%s356 + $0x938] sm:$0xff]
        %v661 = vld [vmem:[%s356 + $0x940] sm:$0xff]
        %v662 = vld [vmem:[%s356 + $0x948] sm:$0xff]
        %v663 = vld [vmem:[%s356 + $0x950] sm:$0xff]
        %v664 = vld [vmem:[%s356 + $0x958] sm:$0xff]
        %v665 = vld [vmem:[%s356 + $0x960] sm:$0xff]
        %v666 = vld [vmem:[%s356 + $0x968] sm:$0xff]
        %v667 = vld [vmem:[%s356 + $0x970] sm:$0xff]
        %v668 = vld [vmem:[%s356 + $0x978] sm:$0xff]
        %v669 = vld [vmem:[%s356 + $0x980] sm:$0xff]
        %v670 = vld [vmem:[%s356 + $0x988] sm:$0xff]
        %v671 = vld [vmem:[%s356 + $0x990] sm:$0xff]
        %v672 = vld [vmem:[%s356 + $0x998] sm:$0xff]
        %v673 = vld [vmem:[%s356 + $0x9a0] sm:$0xff]
        %v674 = vld [vmem:[%s356 + $0x9a8] sm:$0xff]
        %v675 = vld [vmem:[%s356 + $0x9b0] sm:$0xff]
        %v676 = vld [vmem:[%s356 + $0x9b8] sm:$0xff]
        %v677 = vld [vmem:[%s356 + $0x9c0] sm:$0xff]
        %v678 = vld [vmem:[%s356 + $0x9c8] sm:$0xff]
        %v679 = vld [vmem:[%s356 + $0x9d0] sm:$0xff]
        %v680 = vld [vmem:[%s356 + $0x9d8] sm:$0xff]
        %v681 = vld [vmem:[%s356 + $0x9e0] sm:$0xff]
        %v682 = vld [vmem:[%s356 + $0x9e8] sm:$0xff]
        %v683 = vld [vmem:[%s356 + $0x9f0] sm:$0xff]
        %v684 = vld [vmem:[%s356 + $0x9f8] sm:$0xff]
        %v685 = vld [vmem:[%s356 + $0xa00] sm:$0xff]
        %v686 = vld [vmem:[%s356 + $0xa08] sm:$0xff]
        %v687 = vld [vmem:[%s356 + $0xa10] sm:$0xff]
        %v688 = vld [vmem:[%s356 + $0xa18] sm:$0xff]
        %v689 = vld [vmem:[%s356 + $0xa20] sm:$0xff]
        %v690 = vld [vmem:[%s356 + $0xa28] sm:$0xff]
        %v691 = vld [vmem:[%s356 + $0xa30] sm:$0xff]
        %v692 = vld [vmem:[%s356 + $0xa38] sm:$0xff]
        %v693 = vld [vmem:[%s356 + $0xa40] sm:$0xff]
        %v694 = vld [vmem:[%s356 + $0xa48] sm:$0xff]
        %v695 = vld [vmem:[%s356 + $0xa50] sm:$0xff]
        %v696 = vld [vmem:[%s356 + $0xa58] sm:$0xff]
        %v697 = vld [vmem:[%s356 + $0xa60] sm:$0xff]
        %v698 = vld [vmem:[%s356 + $0xa68] sm:$0xff]
        %v699 = vld [vmem:[%s356 + $0xa70] sm:$0xff]
        %v700 = vld [vmem:[%s356 + $0xa78] sm:$0xff]
        %v701 = vld [vmem:[%s356 + $0xa80] sm:$0xff]
        %v702 = vld [vmem:[%s356 + $0xa88] sm:$0xff]
        %v703 = vld [vmem:[%s356 + $0xa90] sm:$0xff]
        %v704 = vld [vmem:[%s356 + $0xa98] sm:$0xff]
        %v705 = vld [vmem:[%s356 + $0xaa0] sm:$0xff]
        %v706 = vld [vmem:[%s356 + $0xaa8] sm:$0xff]
        %v707 = vld [vmem:[%s356 + $0xab0] sm:$0xff]
        %v708 = vld [vmem:[%s356 + $0xab8] sm:$0xff]
        %v709 = vld [vmem:[%s356 + $0xac0] sm:$0xff]
        %v710 = vld [vmem:[%s356 + $0xac8] sm:$0xff]
        %v711 = vld [vmem:[%s356 + $0xad0] sm:$0xff]
        %v712 = vld [vmem:[%s356 + $0xad8] sm:$0xff]
        %v713 = vld [vmem:[%s356 + $0xae0] sm:$0xff]
        %v714 = vld [vmem:[%s356 + $0xae8] sm:$0xff]
        %v715 = vld [vmem:[%s356 + $0xaf0] sm:$0xff]
        %v716 = vld [vmem:[%s356 + $0xaf8] sm:$0xff]
        %v717 = vld [vmem:[%s356 + $0xb00] sm:$0xff]
        %v718 = vld [vmem:[%s356 + $0xb08] sm:$0xff]
        %v719 = vld [vmem:[%s356 + $0xb10] sm:$0xff]
        %v720 = vld [vmem:[%s356 + $0xb18] sm:$0xff]
        %v721 = vld [vmem:[%s356 + $0xb20] sm:$0xff]
        %v722 = vld [vmem:[%s356 + $0xb28] sm:$0xff]
        %v723 = vld [vmem:[%s356 + $0xb30] sm:$0xff]
        %v724 = vld [vmem:[%s356 + $0xb38] sm:$0xff]
        %v725 = vld [vmem:[%s356 + $0xb40] sm:$0xff]
        %v726 = vld [vmem:[%s356 + $0xb48] sm:$0xff]
        %v727 = vld [vmem:[%s356 + $0xb50] sm:$0xff]
        %v728 = vld [vmem:[%s356 + $0xb58] sm:$0xff]
        %v729 = vld [vmem:[%s356 + $0xb60] sm:$0xff]
        %v730 = vld [vmem:[%s356 + $0xb68] sm:$0xff]
        %v731 = vld [vmem:[%s356 + $0xb70] sm:$0xff]
        %v732 = vld [vmem:[%s356 + $0xb78] sm:$0xff]
        %v733 = vld [vmem:[%s356 + $0xb80] sm:$0xff]
        %v734 = vld [vmem:[%s356 + $0xb88] sm:$0xff]
        %v735 = vld [vmem:[%s356 + $0xb90] sm:$0xff]
        %v736 = vld [vmem:[%s356 + $0xb98] sm:$0xff]
        %v737 = vld [vmem:[%s356 + $0xba0] sm:$0xff]
        %v738 = vld [vmem:[%s356 + $0xba8] sm:$0xff]
        %v739 = vld [vmem:[%s356 + $0xbb0] sm:$0xff]
        %v740 = vld [vmem:[%s356 + $0xbb8] sm:$0xff]
        %v741 = vld [vmem:[%s356 + $0xbc0] sm:$0xff]
        %v742 = vld [vmem:[%s356 + $0xbc8] sm:$0xff]
        %v743 = vld [vmem:[%s356 + $0xbd0] sm:$0xff]
        %v744 = vld [vmem:[%s356 + $0xbd8] sm:$0xff]
        %v745 = vld [vmem:[%s356 + $0xbe0] sm:$0xff]
        %v746 = vld [vmem:[%s356 + $0xbe8] sm:$0xff]
        %v747 = vld [vmem:[%s356 + $0xbf0] sm:$0xff]
        %v748 = vld [vmem:[%s356 + $0xbf8] sm:$0xff]
        %v749 = vld [vmem:[%s356 + $0xc00] sm:$0xff]
        %v750 = vld [vmem:[%s356 + $0xc08] sm:$0xff]
        %v751 = vld [vmem:[%s356 + $0xc10] sm:$0xff]
        %v752 = vld [vmem:[%s356 + $0xc18] sm:$0xff]
        %v753 = vld [vmem:[%s356 + $0xc20] sm:$0xff]
        %v754 = vld [vmem:[%s356 + $0xc28] sm:$0xff]
        %v755 = vld [vmem:[%s356 + $0xc30] sm:$0xff]
        %v756 = vld [vmem:[%s356 + $0xc38] sm:$0xff]
        %v757 = vld [vmem:[%s356 + $0xc40] sm:$0xff]
        %v758 = vld [vmem:[%s356 + $0xc48] sm:$0xff]
        %v759 = vld [vmem:[%s356 + $0xc50] sm:$0xff]
        %v760 = vld [vmem:[%s356 + $0xc58] sm:$0xff]
        %v761 = vld [vmem:[%s356 + $0xc60] sm:$0xff]
        %v762 = vld [vmem:[%s356 + $0xc68] sm:$0xff]
        %v763 = vld [vmem:[%s356 + $0xc70] sm:$0xff]
        %v764 = vld [vmem:[%s356 + $0xc78] sm:$0xff]
        %v765 = vld [vmem:[%s356 + $0xc80] sm:$0xff]
        %v766 = vld [vmem:[%s356 + $0xc88] sm:$0xff]
        %v767 = vld [vmem:[%s356 + $0xc90] sm:$0xff]
        %v768 = vld [vmem:[%s356 + $0xc98] sm:$0xff]
        %v769 = vld [vmem:[%s356 + $0xca0] sm:$0xff]
        %v770 = vld [vmem:[%s356 + $0xca8] sm:$0xff]
        %v771 = vld [vmem:[%s356 + $0xcb0] sm:$0xff]
        %v772 = vld [vmem:[%s356 + $0xcb8] sm:$0xff]
        %v773 = vld [vmem:[%s356 + $0xcc0] sm:$0xff]
        %v774 = vld [vmem:[%s356 + $0xcc8] sm:$0xff]
        %v775 = vld [vmem:[%s356 + $0xcd0] sm:$0xff]
        %v776 = vld [vmem:[%s356 + $0xcd8] sm:$0xff]
        %v777 = vld [vmem:[%s356 + $0xce0] sm:$0xff]
        %v778 = vld [vmem:[%s356 + $0xce8] sm:$0xff]
        %v779 = vld [vmem:[%s356 + $0xcf0] sm:$0xff]
        %v780 = vld [vmem:[%s356 + $0xcf8] sm:$0xff]
        %v781 = vld [vmem:[%s356 + $0xd00] sm:$0xff]
        %v782 = vld [vmem:[%s356 + $0xd08] sm:$0xff]
        %v783 = vld [vmem:[%s356 + $0xd10] sm:$0xff]
        %v784 = vld [vmem:[%s356 + $0xd18] sm:$0xff]
        %v785 = vld [vmem:[%s356 + $0xd20] sm:$0xff]
        %v786 = vld [vmem:[%s356 + $0xd28] sm:$0xff]
        %v787 = vld [vmem:[%s356 + $0xd30] sm:$0xff]
        %v788 = vld [vmem:[%s356 + $0xd38] sm:$0xff]
        %v789 = vld [vmem:[%s356 + $0xd40] sm:$0xff]
        %v790 = vld [vmem:[%s356 + $0xd48] sm:$0xff]
        %v791 = vld [vmem:[%s356 + $0xd50] sm:$0xff]
        %v792 = vld [vmem:[%s356 + $0xd58] sm:$0xff]
        %v793 = vld [vmem:[%s356 + $0xd60] sm:$0xff]
        %v794 = vld [vmem:[%s356 + $0xd68] sm:$0xff]
        %v795 = vld [vmem:[%s356 + $0xd70] sm:$0xff]
        %v796 = vld [vmem:[%s356 + $0xd78] sm:$0xff]
        %v797 = vld [vmem:[%s356 + $0xd80] sm:$0xff]
        %v798 = vld [vmem:[%s356 + $0xd88] sm:$0xff]
        %v799 = vld [vmem:[%s356 + $0xd90] sm:$0xff]
        %v800 = vld [vmem:[%s356 + $0xd98] sm:$0xff]
        %v801 = vld [vmem:[%s356 + $0xda0] sm:$0xff]
        %v802 = vld [vmem:[%s356 + $0xda8] sm:$0xff]
        %v803 = vld [vmem:[%s356 + $0xdb0] sm:$0xff]
        %v804 = vld [vmem:[%s356 + $0xdb8] sm:$0xff]
        %v805 = vld [vmem:[%s356 + $0xdc0] sm:$0xff]
        %v806 = vld [vmem:[%s356 + $0xdc8] sm:$0xff]
        %v807 = vld [vmem:[%s356 + $0xdd0] sm:$0xff]
        %v808 = vld [vmem:[%s356 + $0xdd8] sm:$0xff]
        %v809 = vld [vmem:[%s356 + $0xde0] sm:$0xff]
        %v810 = vld [vmem:[%s356 + $0xde8] sm:$0xff]
        %v811 = vld [vmem:[%s356 + $0xdf0] sm:$0xff]
        %v812 = vld [vmem:[%s356 + $0xdf8] sm:$0xff]
        %v813 = vpack.c.bf16 %v372, %v365
        %v814 = vpack.c.bf16 %v373, %v366
        %v815 = vpack.c.bf16 %v374, %v367
        %v816 = vpack.c.bf16 %v375, %v368
        %v817 = vpack.c.bf16 %v376, %v369
        %v818 = vpack.c.bf16 %v377, %v370
        %v819 = vpack.c.bf16 %v378, %v371
        %v820 = vpack.c.bf16 %v386, %v379
        %v821 = vpack.c.bf16 %v387, %v380
        %v822 = vpack.c.bf16 %v388, %v381
        %v823 = vpack.c.bf16 %v389, %v382
        %v824 = vpack.c.bf16 %v390, %v383
        %v825 = vpack.c.bf16 %v391, %v384
        %v826 = vpack.c.bf16 %v392, %v385
        %v827 = vpack.c.bf16 %v400, %v393
        %v828 = vpack.c.bf16 %v401, %v394
        %v829 = vpack.c.bf16 %v402, %v395
        %v830 = vpack.c.bf16 %v403, %v396
        %v831 = vpack.c.bf16 %v404, %v397
        %v832 = vpack.c.bf16 %v405, %v398
        %v833 = vpack.c.bf16 %v406, %v399
        %v834 = vpack.c.bf16 %v414, %v407
        %v835 = vpack.c.bf16 %v415, %v408
        %v836 = vpack.c.bf16 %v416, %v409
        %v837 = vpack.c.bf16 %v417, %v410
        %v838 = vpack.c.bf16 %v418, %v411
        %v839 = vpack.c.bf16 %v419, %v412
        %v840 = vpack.c.bf16 %v420, %v413
        %v841 = vpack.c.bf16 %v428, %v421
        %v842 = vpack.c.bf16 %v429, %v422
        %v843 = vpack.c.bf16 %v430, %v423
        %v844 = vpack.c.bf16 %v431, %v424
        %v845 = vpack.c.bf16 %v432, %v425
        %v846 = vpack.c.bf16 %v433, %v426
        %v847 = vpack.c.bf16 %v434, %v427
        %v848 = vpack.c.bf16 %v442, %v435
        %v849 = vpack.c.bf16 %v443, %v436
        %v850 = vpack.c.bf16 %v444, %v437
        %v851 = vpack.c.bf16 %v445, %v438
        %v852 = vpack.c.bf16 %v446, %v439
        %v853 = vpack.c.bf16 %v447, %v440
        %v854 = vpack.c.bf16 %v448, %v441
        %v855 = vpack.c.bf16 %v456, %v449
        %v856 = vpack.c.bf16 %v457, %v450
        %v857 = vpack.c.bf16 %v458, %v451
        %v858 = vpack.c.bf16 %v459, %v452
        %v859 = vpack.c.bf16 %v460, %v453
        %v860 = vpack.c.bf16 %v461, %v454
        %v861 = vpack.c.bf16 %v462, %v455
        %v862 = vpack.c.bf16 %v470, %v463
        %v863 = vpack.c.bf16 %v471, %v464
        %v864 = vpack.c.bf16 %v472, %v465
        %v865 = vpack.c.bf16 %v473, %v466
        %v866 = vpack.c.bf16 %v474, %v467
        %v867 = vpack.c.bf16 %v475, %v468
        %v868 = vpack.c.bf16 %v476, %v469
        %v869 = vpack.c.bf16 %v484, %v477
        %v870 = vpack.c.bf16 %v485, %v478
        %v871 = vpack.c.bf16 %v486, %v479
        %v872 = vpack.c.bf16 %v487, %v480
        %v873 = vpack.c.bf16 %v488, %v481
        %v874 = vpack.c.bf16 %v489, %v482
        %v875 = vpack.c.bf16 %v490, %v483
        %v876 = vpack.c.bf16 %v498, %v491
        %v877 = vpack.c.bf16 %v499, %v492
        %v878 = vpack.c.bf16 %v500, %v493
        %v879 = vpack.c.bf16 %v501, %v494
        %v880 = vpack.c.bf16 %v502, %v495
        %v881 = vpack.c.bf16 %v503, %v496
        %v882 = vpack.c.bf16 %v504, %v497
        %v883 = vpack.c.bf16 %v512, %v505
        %v884 = vpack.c.bf16 %v513, %v506
        %v885 = vpack.c.bf16 %v514, %v507
        %v886 = vpack.c.bf16 %v515, %v508
        %v887 = vpack.c.bf16 %v516, %v509
        %v888 = vpack.c.bf16 %v517, %v510
        %v889 = vpack.c.bf16 %v518, %v511
        %v890 = vpack.c.bf16 %v526, %v519
        %v891 = vpack.c.bf16 %v527, %v520
        %v892 = vpack.c.bf16 %v528, %v521
        %v893 = vpack.c.bf16 %v529, %v522
        %v894 = vpack.c.bf16 %v530, %v523
        %v895 = vpack.c.bf16 %v531, %v524
        %v896 = vpack.c.bf16 %v532, %v525
        %v897 = vpack.c.bf16 %v540, %v533
        %v898 = vpack.c.bf16 %v541, %v534
        %v899 = vpack.c.bf16 %v542, %v535
        %v900 = vpack.c.bf16 %v543, %v536
        %v901 = vpack.c.bf16 %v544, %v537
        %v902 = vpack.c.bf16 %v545, %v538
        %v903 = vpack.c.bf16 %v546, %v539
        %v904 = vpack.c.bf16 %v554, %v547
        %v905 = vpack.c.bf16 %v555, %v548
        %v906 = vpack.c.bf16 %v556, %v549
        %v907 = vpack.c.bf16 %v557, %v550
        %v908 = vpack.c.bf16 %v558, %v551
        %v909 = vpack.c.bf16 %v559, %v552
        %v910 = vpack.c.bf16 %v560, %v553
        %v911 = vpack.c.bf16 %v568, %v561
        %v912 = vpack.c.bf16 %v569, %v562
        %v913 = vpack.c.bf16 %v570, %v563
        %v914 = vpack.c.bf16 %v571, %v564
        %v915 = vpack.c.bf16 %v572, %v565
        %v916 = vpack.c.bf16 %v573, %v566
        %v917 = vpack.c.bf16 %v574, %v567
        %v918 = vpack.c.bf16 %v582, %v575
        %v919 = vpack.c.bf16 %v583, %v576
        %v920 = vpack.c.bf16 %v584, %v577
        %v921 = vpack.c.bf16 %v585, %v578
        %v922 = vpack.c.bf16 %v586, %v579
        %v923 = vpack.c.bf16 %v587, %v580
        %v924 = vpack.c.bf16 %v588, %v581
        %v925 = vpack.c.bf16 %v596, %v589
        %v926 = vpack.c.bf16 %v597, %v590
        %v927 = vpack.c.bf16 %v598, %v591
        %v928 = vpack.c.bf16 %v599, %v592
        %v929 = vpack.c.bf16 %v600, %v593
        %v930 = vpack.c.bf16 %v601, %v594
        %v931 = vpack.c.bf16 %v602, %v595
        %v932 = vpack.c.bf16 %v610, %v603
        %v933 = vpack.c.bf16 %v611, %v604
        %v934 = vpack.c.bf16 %v612, %v605
        %v935 = vpack.c.bf16 %v613, %v606
        %v936 = vpack.c.bf16 %v614, %v607
        %v937 = vpack.c.bf16 %v615, %v608
        %v938 = vpack.c.bf16 %v616, %v609
        %v939 = vpack.c.bf16 %v624, %v617
        %v940 = vpack.c.bf16 %v625, %v618
        %v941 = vpack.c.bf16 %v626, %v619
        %v942 = vpack.c.bf16 %v627, %v620
        %v943 = vpack.c.bf16 %v628, %v621
        %v944 = vpack.c.bf16 %v629, %v622
        %v945 = vpack.c.bf16 %v630, %v623
        %v946 = vpack.c.bf16 %v638, %v631
        %v947 = vpack.c.bf16 %v639, %v632
        %v948 = vpack.c.bf16 %v640, %v633
        %v949 = vpack.c.bf16 %v641, %v634
        %v950 = vpack.c.bf16 %v642, %v635
        %v951 = vpack.c.bf16 %v643, %v636
        %v952 = vpack.c.bf16 %v644, %v637
        %v953 = vpack.c.bf16 %v652, %v645
        %v954 = vpack.c.bf16 %v653, %v646
        %v955 = vpack.c.bf16 %v654, %v647
        %v956 = vpack.c.bf16 %v655, %v648
        %v957 = vpack.c.bf16 %v656, %v649
        %v958 = vpack.c.bf16 %v657, %v650
        %v959 = vpack.c.bf16 %v658, %v651
        %v960 = vpack.c.bf16 %v666, %v659
        %v961 = vpack.c.bf16 %v667, %v660
        %v962 = vpack.c.bf16 %v668, %v661
        %v963 = vpack.c.bf16 %v669, %v662
        %v964 = vpack.c.bf16 %v670, %v663
        %v965 = vpack.c.bf16 %v671, %v664
        %v966 = vpack.c.bf16 %v672, %v665
        %v967 = vpack.c.bf16 %v680, %v673
        %v968 = vpack.c.bf16 %v681, %v674
        %v969 = vpack.c.bf16 %v682, %v675
        %v970 = vpack.c.bf16 %v683, %v676
        %v971 = vpack.c.bf16 %v684, %v677
        %v972 = vpack.c.bf16 %v685, %v678
        %v973 = vpack.c.bf16 %v686, %v679
        %v974 = vpack.c.bf16 %v694, %v687
        %v975 = vpack.c.bf16 %v695, %v688
        %v976 = vpack.c.bf16 %v696, %v689
        %v977 = vpack.c.bf16 %v697, %v690
        %v978 = vpack.c.bf16 %v698, %v691
        %v979 = vpack.c.bf16 %v699, %v692
        %v980 = vpack.c.bf16 %v700, %v693
        %v981 = vpack.c.bf16 %v708, %v701
        %v982 = vpack.c.bf16 %v709, %v702
        %v983 = vpack.c.bf16 %v710, %v703
        %v984 = vpack.c.bf16 %v711, %v704
        %v985 = vpack.c.bf16 %v712, %v705
        %v986 = vpack.c.bf16 %v713, %v706
        %v987 = vpack.c.bf16 %v714, %v707
        %v988 = vpack.c.bf16 %v722, %v715
        %v989 = vpack.c.bf16 %v723, %v716
        %v990 = vpack.c.bf16 %v724, %v717
        %v991 = vpack.c.bf16 %v725, %v718
        %v992 = vpack.c.bf16 %v726, %v719
        %v993 = vpack.c.bf16 %v727, %v720
        %v994 = vpack.c.bf16 %v728, %v721
        %v995 = vpack.c.bf16 %v736, %v729
        %v996 = vpack.c.bf16 %v737, %v730
        %v997 = vpack.c.bf16 %v738, %v731
        %v998 = vpack.c.bf16 %v739, %v732
        %v999 = vpack.c.bf16 %v740, %v733
        %v1000 = vpack.c.bf16 %v741, %v734
        %v1001 = vpack.c.bf16 %v742, %v735
        %v1002 = vpack.c.bf16 %v750, %v743
        %v1003 = vpack.c.bf16 %v751, %v744
        %v1004 = vpack.c.bf16 %v752, %v745
        %v1005 = vpack.c.bf16 %v753, %v746
        %v1006 = vpack.c.bf16 %v754, %v747
        %v1007 = vpack.c.bf16 %v755, %v748
        %v1008 = vpack.c.bf16 %v756, %v749
        %v1009 = vpack.c.bf16 %v764, %v757
        %v1010 = vpack.c.bf16 %v765, %v758
        %v1011 = vpack.c.bf16 %v766, %v759
        %v1012 = vpack.c.bf16 %v767, %v760
        %v1013 = vpack.c.bf16 %v768, %v761
        %v1014 = vpack.c.bf16 %v769, %v762
        %v1015 = vpack.c.bf16 %v770, %v763
        %v1016 = vpack.c.bf16 %v778, %v771
        %v1017 = vpack.c.bf16 %v779, %v772
        %v1018 = vpack.c.bf16 %v780, %v773
        %v1019 = vpack.c.bf16 %v781, %v774
        %v1020 = vpack.c.bf16 %v782, %v775
        %v1021 = vpack.c.bf16 %v783, %v776
        %v1022 = vpack.c.bf16 %v784, %v777
        %v1023 = vpack.c.bf16 %v792, %v785
        %v1024 = vpack.c.bf16 %v793, %v786
        %v1025 = vpack.c.bf16 %v794, %v787
        %v1026 = vpack.c.bf16 %v795, %v788
        %v1027 = vpack.c.bf16 %v796, %v789
        %v1028 = vpack.c.bf16 %v797, %v790
        %v1029 = vpack.c.bf16 %v798, %v791
        %v1030 = vpack.c.bf16 %v806, %v799
        %v1031 = vpack.c.bf16 %v807, %v800
        %v1032 = vpack.c.bf16 %v808, %v801
        %v1033 = vpack.c.bf16 %v809, %v802
        %v1034 = vpack.c.bf16 %v810, %v803
        %v1035 = vpack.c.bf16 %v811, %v804
        %v1036 = vpack.c.bf16 %v812, %v805
        %v1037 = vld [vmem:[%s1] sm:$0xf]
        %v1038 = vld [vmem:[%s1 + $0x4] sm:$0xf]
        %v1039 = vld [vmem:[%s1 + $0x8] sm:$0xf]
        %v1040 = vld [vmem:[%s1 + $0xc] sm:$0xf]
        %v1041 = vld [vmem:[%s1 + $0x10] sm:$0xf]
        %v1042 = vld [vmem:[%s1 + $0x14] sm:$0xf]
        %v1043 = vld [vmem:[%s1 + $0x18] sm:$0xf]
        %v1044 = vld [vmem:[%s1 + $0x1c] sm:$0xf]
        %v1045 = vld [vmem:[%s1 + $0x20] sm:$0xf]
        %v1046 = vld [vmem:[%s1 + $0x24] sm:$0xf]
        %v1047 = vld [vmem:[%s1 + $0x28] sm:$0xf]
        %v1048 = vld [vmem:[%s1 + $0x2c] sm:$0xf]
        %v1049 = vld [vmem:[%s1 + $0x30] sm:$0xf]
        %v1050 = vld [vmem:[%s1 + $0x34] sm:$0xf]
        %v1051 = vld [vmem:[%s1 + $0x38] sm:$0xf]
        %v1052 = vld [vmem:[%s1 + $0x3c] sm:$0xf]
        %v1053 = vld [vmem:[%s1 + $0x40] sm:$0xf]
        %v1054 = vld [vmem:[%s1 + $0x44] sm:$0xf]
        %v1055 = vld [vmem:[%s1 + $0x48] sm:$0xf]
        %v1056 = vld [vmem:[%s1 + $0x4c] sm:$0xf]
        %v1057 = vld [vmem:[%s1 + $0x50] sm:$0xf]
        %v1058 = vld [vmem:[%s1 + $0x54] sm:$0xf]
        %v1059 = vld [vmem:[%s1 + $0x58] sm:$0xf]
        %v1060 = vld [vmem:[%s1 + $0x5c] sm:$0xf]
        %v1061 = vld [vmem:[%s1 + $0x60] sm:$0xf]
        %v1062 = vld [vmem:[%s1 + $0x64] sm:$0xf]
        %v1063 = vld [vmem:[%s1 + $0x68] sm:$0xf]
        %v1064 = vld [vmem:[%s1 + $0x6c] sm:$0xf]
        %v1065 = vld [vmem:[%s1 + $0x70] sm:$0xf]
        %v1066 = vld [vmem:[%s1 + $0x74] sm:$0xf]
        %v1067 = vld [vmem:[%s1 + $0x78] sm:$0xf]
        %v1068 = vld [vmem:[%s1 + $0x7c] sm:$0xf]
        %v1069 = vld [vmem:[%s1 + $0x80] sm:$0xf]
        %v1070 = vld [vmem:[%s1 + $0x84] sm:$0xf]
        %v1071 = vld [vmem:[%s1 + $0x88] sm:$0xf]
        %v1072 = vld [vmem:[%s1 + $0x8c] sm:$0xf]
        %v1073 = vld [vmem:[%s1 + $0x90] sm:$0xf]
        %v1074 = vld [vmem:[%s1 + $0x94] sm:$0xf]
        %v1075 = vld [vmem:[%s1 + $0x98] sm:$0xf]
        %v1076 = vld [vmem:[%s1 + $0x9c] sm:$0xf]
        %v1077 = vld [vmem:[%s1 + $0xa0] sm:$0xf]
        %v1078 = vld [vmem:[%s1 + $0xa4] sm:$0xf]
        %v1079 = vld [vmem:[%s1 + $0xa8] sm:$0xf]
        %v1080 = vld [vmem:[%s1 + $0xac] sm:$0xf]
        %v1081 = vld [vmem:[%s1 + $0xb0] sm:$0xf]
        %v1082 = vld [vmem:[%s1 + $0xb4] sm:$0xf]
        %v1083 = vld [vmem:[%s1 + $0xb8] sm:$0xf]
        %v1084 = vld [vmem:[%s1 + $0xbc] sm:$0xf]
        %v1085 = vld [vmem:[%s1 + $0xc0] sm:$0xf]
        %v1086 = vld [vmem:[%s1 + $0xc4] sm:$0xf]
        %v1087 = vld [vmem:[%s1 + $0xc8] sm:$0xf]
        %v1088 = vld [vmem:[%s1 + $0xcc] sm:$0xf]
        %v1089 = vld [vmem:[%s1 + $0xd0] sm:$0xf]
        %v1090 = vld [vmem:[%s1 + $0xd4] sm:$0xf]
        %v1091 = vld [vmem:[%s1 + $0xd8] sm:$0xf]
        %v1092 = vld [vmem:[%s1 + $0xdc] sm:$0xf]
        %v1093 = vld [vmem:[%s1 + $0xe0] sm:$0xf]
        %v1094 = vld [vmem:[%s1 + $0xe4] sm:$0xf]
        %v1095 = vld [vmem:[%s1 + $0xe8] sm:$0xf]
        %v1096 = vld [vmem:[%s1 + $0xec] sm:$0xf]
        %v1097 = vld [vmem:[%s1 + $0xf0] sm:$0xf]
        %v1098 = vld [vmem:[%s1 + $0xf4] sm:$0xf]
        %v1099 = vld [vmem:[%s1 + $0xf8] sm:$0xf]
        %v1100 = vld [vmem:[%s1 + $0xfc] sm:$0xf]
        %v1101 = vld [vmem:[%s1 + $0x100] sm:$0xf]
        %v1102 = vld [vmem:[%s1 + $0x104] sm:$0xf]
        %v1103 = vld [vmem:[%s1 + $0x108] sm:$0xf]
        %v1104 = vld [vmem:[%s1 + $0x10c] sm:$0xf]
        %v1105 = vld [vmem:[%s1 + $0x110] sm:$0xf]
        %v1106 = vld [vmem:[%s1 + $0x114] sm:$0xf]
        %v1107 = vld [vmem:[%s1 + $0x118] sm:$0xf]
        %v1108 = vld [vmem:[%s1 + $0x11c] sm:$0xf]
        %v1109 = vld [vmem:[%s1 + $0x120] sm:$0xf]
        %v1110 = vld [vmem:[%s1 + $0x124] sm:$0xf]
        %v1111 = vld [vmem:[%s1 + $0x128] sm:$0xf]
        %v1112 = vld [vmem:[%s1 + $0x12c] sm:$0xf]
        %v1113 = vld [vmem:[%s1 + $0x130] sm:$0xf]
        %v1114 = vld [vmem:[%s1 + $0x134] sm:$0xf]
        %v1115 = vld [vmem:[%s1 + $0x138] sm:$0xf]
        %v1116 = vld [vmem:[%s1 + $0x13c] sm:$0xf]
        %v1117 = vld [vmem:[%s1 + $0x140] sm:$0xf]
        %v1118 = vld [vmem:[%s1 + $0x144] sm:$0xf]
        %v1119 = vld [vmem:[%s1 + $0x148] sm:$0xf]
        %v1120 = vld [vmem:[%s1 + $0x14c] sm:$0xf]
        %v1121 = vld [vmem:[%s1 + $0x150] sm:$0xf]
        %v1122 = vld [vmem:[%s1 + $0x154] sm:$0xf]
        %v1123 = vld [vmem:[%s1 + $0x158] sm:$0xf]
        %v1124 = vld [vmem:[%s1 + $0x15c] sm:$0xf]
        %v1125 = vld [vmem:[%s1 + $0x160] sm:$0xf]
        %v1126 = vld [vmem:[%s1 + $0x164] sm:$0xf]
        %v1127 = vld [vmem:[%s1 + $0x168] sm:$0xf]
        %v1128 = vld [vmem:[%s1 + $0x16c] sm:$0xf]
        %v1129 = vld [vmem:[%s1 + $0x170] sm:$0xf]
        %v1130 = vld [vmem:[%s1 + $0x174] sm:$0xf]
        %v1131 = vld [vmem:[%s1 + $0x178] sm:$0xf]
        %v1132 = vld [vmem:[%s1 + $0x17c] sm:$0xf]
        %v1133 = vld [vmem:[%s1 + $0x180] sm:$0xf]
        %v1134 = vld [vmem:[%s1 + $0x184] sm:$0xf]
        %v1135 = vld [vmem:[%s1 + $0x188] sm:$0xf]
        %v1136 = vld [vmem:[%s1 + $0x18c] sm:$0xf]
        %v1137 = vld [vmem:[%s1 + $0x190] sm:$0xf]
        %v1138 = vld [vmem:[%s1 + $0x194] sm:$0xf]
        %v1139 = vld [vmem:[%s1 + $0x198] sm:$0xf]
        %v1140 = vld [vmem:[%s1 + $0x19c] sm:$0xf]
        %v1141 = vld [vmem:[%s2] sm:$0x1]
        %v1143 = vlaneseq
        %v1144 = vshrl.u32 %v1143, 7
        %v1145 = vsub.s32 0, %v1144
        %v1146 = vrot.slane %v1141, %v1145
        %v1252 = vunpack.c.l.b16 %v1037
        %v1253 = vunpack.c.l.b16 %v1038
        %v1254 = vunpack.c.l.b16 %v1039
        %v1255 = vunpack.c.l.b16 %v1040
        %v1256 = vunpack.c.l.b16 %v1041
        %v1257 = vunpack.c.l.b16 %v1042
        %v1258 = vunpack.c.l.b16 %v1043
        %v1259 = vunpack.c.l.b16 %v1044
        %v1260 = vunpack.c.l.b16 %v1045
        %v1261 = vunpack.c.l.b16 %v1046
        %v1262 = vunpack.c.l.b16 %v1047
        %v1263 = vunpack.c.l.b16 %v1048
        %v1264 = vunpack.c.l.b16 %v1049
        %v1265 = vunpack.c.l.b16 %v1050
        %v1266 = vunpack.c.l.b16 %v1051
        %v1267 = vunpack.c.l.b16 %v1052
        %v1268 = vunpack.c.l.b16 %v1053
        %v1269 = vunpack.c.l.b16 %v1054
        %v1270 = vunpack.c.l.b16 %v1055
        %v1271 = vunpack.c.l.b16 %v1056
        %v1272 = vunpack.c.l.b16 %v1057
        %v1273 = vunpack.c.l.b16 %v1058
        %v1274 = vunpack.c.l.b16 %v1059
        %v1275 = vunpack.c.l.b16 %v1060
        %v1276 = vunpack.c.l.b16 %v1061
        %v1277 = vunpack.c.l.b16 %v1062
        %v1278 = vunpack.c.l.b16 %v1063
        %v1279 = vunpack.c.l.b16 %v1064
        %v1280 = vunpack.c.l.b16 %v1065
        %v1281 = vunpack.c.l.b16 %v1066
        %v1282 = vunpack.c.l.b16 %v1067
        %v1283 = vunpack.c.l.b16 %v1068
        %v1284 = vunpack.c.l.b16 %v1069
        %v1285 = vunpack.c.l.b16 %v1070
        %v1286 = vunpack.c.l.b16 %v1071
        %v1287 = vunpack.c.l.b16 %v1072
        %v1288 = vunpack.c.l.b16 %v1073
        %v1289 = vunpack.c.l.b16 %v1074
        %v1290 = vunpack.c.l.b16 %v1075
        %v1291 = vunpack.c.l.b16 %v1076
        %v1292 = vunpack.c.l.b16 %v1077
        %v1293 = vunpack.c.l.b16 %v1078
        %v1294 = vunpack.c.l.b16 %v1079
        %v1295 = vunpack.c.l.b16 %v1080
        %v1296 = vunpack.c.l.b16 %v1081
        %v1297 = vunpack.c.l.b16 %v1082
        %v1298 = vunpack.c.l.b16 %v1083
        %v1299 = vunpack.c.l.b16 %v1084
        %v1300 = vunpack.c.l.b16 %v1085
        %v1301 = vunpack.c.l.b16 %v1086
        %v1302 = vunpack.c.l.b16 %v1087
        %v1303 = vunpack.c.l.b16 %v1088
        %v1304 = vunpack.c.l.b16 %v1089
        %v1305 = vunpack.c.l.b16 %v1090
        %v1306 = vunpack.c.l.b16 %v1091
        %v1307 = vunpack.c.l.b16 %v1092
        %v1308 = vunpack.c.l.b16 %v1093
        %v1309 = vunpack.c.l.b16 %v1094
        %v1310 = vunpack.c.l.b16 %v1095
        %v1311 = vunpack.c.l.b16 %v1096
        %v1312 = vunpack.c.l.b16 %v1097
        %v1313 = vunpack.c.l.b16 %v1098
        %v1314 = vunpack.c.l.b16 %v1099
        %v1315 = vunpack.c.l.b16 %v1100
        %v1316 = vunpack.c.l.b16 %v1101
        %v1317 = vunpack.c.l.b16 %v1102
        %v1318 = vunpack.c.l.b16 %v1103
        %v1319 = vunpack.c.l.b16 %v1104
        %v1320 = vunpack.c.l.b16 %v1105
        %v1321 = vunpack.c.l.b16 %v1106
        %v1322 = vunpack.c.l.b16 %v1107
        %v1323 = vunpack.c.l.b16 %v1108
        %v1324 = vunpack.c.l.b16 %v1109
        %v1325 = vunpack.c.l.b16 %v1110
        %v1326 = vunpack.c.l.b16 %v1111
        %v1327 = vunpack.c.l.b16 %v1112
        %v1328 = vunpack.c.l.b16 %v1113
        %v1329 = vunpack.c.l.b16 %v1114
        %v1330 = vunpack.c.l.b16 %v1115
        %v1331 = vunpack.c.l.b16 %v1116
        %v1332 = vunpack.c.l.b16 %v1117
        %v1333 = vunpack.c.l.b16 %v1118
        %v1334 = vunpack.c.l.b16 %v1119
        %v1335 = vunpack.c.l.b16 %v1120
        %v1336 = vunpack.c.l.b16 %v1121
        %v1337 = vunpack.c.l.b16 %v1122
        %v1338 = vunpack.c.l.b16 %v1123
        %v1339 = vunpack.c.l.b16 %v1124
        %v1340 = vunpack.c.l.b16 %v1125
        %v1341 = vunpack.c.l.b16 %v1126
        %v1342 = vunpack.c.l.b16 %v1127
        %v1343 = vunpack.c.l.b16 %v1128
        %v1344 = vunpack.c.l.b16 %v1129
        %v1345 = vunpack.c.l.b16 %v1130
        %v1346 = vunpack.c.l.b16 %v1131
        %v1347 = vunpack.c.l.b16 %v1132
        %v1348 = vunpack.c.l.b16 %v1133
        %v1349 = vunpack.c.l.b16 %v1134
        %v1350 = vunpack.c.l.b16 %v1135
        %v1351 = vunpack.c.l.b16 %v1136
        %v1352 = vunpack.c.l.b16 %v1137
        %v1353 = vunpack.c.l.b16 %v1138
        %v1354 = vunpack.c.l.b16 %v1139
        %v1355 = vunpack.c.l.b16 %v1140
        %v1356 = vpack.c.b16 %v1253, %v1252
        %v1357 = vpack.c.b16 %v1255, %v1254
        %v1358 = vpack.c.b16 %v1257, %v1256
        %v1359 = vpack.c.b16 %v1259, %v1258
        %v1360 = vpack.c.b16 %v1261, %v1260
        %v1361 = vpack.c.b16 %v1263, %v1262
        %v1362 = vpack.c.b16 %v1265, %v1264
        %v1363 = vpack.c.b16 %v1267, %v1266
        %v1364 = vpack.c.b16 %v1269, %v1268
        %v1365 = vpack.c.b16 %v1271, %v1270
        %v1366 = vpack.c.b16 %v1273, %v1272
        %v1367 = vpack.c.b16 %v1275, %v1274
        %v1368 = vpack.c.b16 %v1277, %v1276
        %v1369 = vpack.c.b16 %v1279, %v1278
        %v1370 = vpack.c.b16 %v1281, %v1280
        %v1371 = vpack.c.b16 %v1283, %v1282
        %v1372 = vpack.c.b16 %v1285, %v1284
        %v1373 = vpack.c.b16 %v1287, %v1286
        %v1374 = vpack.c.b16 %v1289, %v1288
        %v1375 = vpack.c.b16 %v1291, %v1290
        %v1376 = vpack.c.b16 %v1293, %v1292
        %v1377 = vpack.c.b16 %v1295, %v1294
        %v1378 = vpack.c.b16 %v1297, %v1296
        %v1379 = vpack.c.b16 %v1299, %v1298
        %v1380 = vpack.c.b16 %v1301, %v1300
        %v1381 = vpack.c.b16 %v1303, %v1302
        %v1382 = vpack.c.b16 %v1305, %v1304
        %v1383 = vpack.c.b16 %v1307, %v1306
        %v1384 = vpack.c.b16 %v1309, %v1308
        %v1385 = vpack.c.b16 %v1311, %v1310
        %v1386 = vpack.c.b16 %v1313, %v1312
        %v1387 = vpack.c.b16 %v1315, %v1314
        %v1388 = vpack.c.b16 %v1317, %v1316
        %v1389 = vpack.c.b16 %v1319, %v1318
        %v1390 = vpack.c.b16 %v1321, %v1320
        %v1391 = vpack.c.b16 %v1323, %v1322
        %v1392 = vpack.c.b16 %v1325, %v1324
        %v1393 = vpack.c.b16 %v1327, %v1326
        %v1394 = vpack.c.b16 %v1329, %v1328
        %v1395 = vpack.c.b16 %v1331, %v1330
        %v1396 = vpack.c.b16 %v1333, %v1332
        %v1397 = vpack.c.b16 %v1335, %v1334
        %v1398 = vpack.c.b16 %v1337, %v1336
        %v1399 = vpack.c.b16 %v1339, %v1338
        %v1400 = vpack.c.b16 %v1341, %v1340
        %v1401 = vpack.c.b16 %v1343, %v1342
        %v1402 = vpack.c.b16 %v1345, %v1344
        %v1403 = vpack.c.b16 %v1347, %v1346
        %v1404 = vpack.c.b16 %v1349, %v1348
        %v1405 = vpack.c.b16 %v1351, %v1350
        %v1406 = vpack.c.b16 %v1353, %v1352
        %v1407 = vpack.c.b16 %v1355, %v1354
        %vm1460 = vcmask 523264
        %v1462 = vsel %vm1460, %v819, 0
        %v1465 = vsel %vm1460, %v826, 0
        %v1468 = vsel %vm1460, %v833, 0
        %v1471 = vsel %vm1460, %v840, 0
        %v1474 = vsel %vm1460, %v847, 0
        %v1477 = vsel %vm1460, %v854, 0
        %v1480 = vsel %vm1460, %v861, 0
        %v1483 = vsel %vm1460, %v868, 0
        %v1486 = vsel %vm1460, %v875, 0
        %v1489 = vsel %vm1460, %v882, 0
        %v1492 = vsel %vm1460, %v889, 0
        %v1495 = vsel %vm1460, %v896, 0
        %v1498 = vsel %vm1460, %v903, 0
        %v1501 = vsel %vm1460, %v910, 0
        %v1504 = vsel %vm1460, %v917, 0
        %v1507 = vsel %vm1460, %v924, 0
        %v1510 = vsel %vm1460, %v931, 0
        %v1513 = vsel %vm1460, %v938, 0
        %v1516 = vsel %vm1460, %v945, 0
        %v1519 = vsel %vm1460, %v952, 0
        %v1522 = vsel %vm1460, %v959, 0
        %v1525 = vsel %vm1460, %v966, 0
        %v1528 = vsel %vm1460, %v973, 0
        %v1531 = vsel %vm1460, %v980, 0
        %v1534 = vsel %vm1460, %v987, 0
        %v1537 = vsel %vm1460, %v994, 0
        %v1540 = vsel %vm1460, %v1001, 0
        %v1543 = vsel %vm1460, %v1008, 0
        %v1546 = vsel %vm1460, %v1015, 0
        %v1549 = vsel %vm1460, %v1022, 0
        %v1552 = vsel %vm1460, %v1029, 0
        %v1555 = vsel %vm1460, %v1036, 0
        %1557 = vmatprep.subr.bf16.mxu0 0
        %1558 = vmatpush1.bf16.msra.mxu0 %v1356
        %1559 = vmatprep.subr.bf16.mxu0 0
        %1560 = vmatpush1.bf16.msra.mxu0 %v1357
        %1561 = vmatprep.subr.bf16.mxu0 0
        %1562 = vmatpush1.bf16.msra.mxu0 %v1358
        %1563 = vmatprep.subr.bf16.mxu0 0
        %1564 = vmatpush1.bf16.msra.mxu0 %v1359
        %1565 = vmatprep.subr.bf16.mxu0 0
        %1566 = vmatpush1.bf16.msra.mxu0 %v1360
        %1567 = vmatprep.subr.bf16.mxu0 0
        %1568 = vmatpush1.bf16.msra.mxu0 %v1361
        %1569 = vmatprep.subr.bf16.mxu0 0
        %1570 = vmatpush1.bf16.msra.mxu0 %v1362
        %1571 = vmatprep.subr.bf16.mxu0 0
        %1572 = vmatpush1.bf16.msra.mxu0 %v1363
        %1573 = vmatprep.subr.bf16.mxu0 0
        %1574 = vmatpush1.bf16.msra.mxu0 %v1364
        %1575 = vmatprep.subr.bf16.mxu0 0
        %1576 = vmatpush1.bf16.msra.mxu0 %v1365
        %1577 = vmatprep.subr.bf16.mxu0 0
        %1578 = vmatpush1.bf16.msra.mxu0 %v1366
        %1579 = vmatprep.subr.bf16.mxu0 0
        %1580 = vmatpush1.bf16.msra.mxu0 %v1367
        %1581 = vmatprep.subr.bf16.mxu0 0
        %1582 = vmatpush1.bf16.msra.mxu0 %v1368
        %1583 = vmatprep.subr.bf16.mxu0 0
        %1584 = vmatpush1.bf16.msra.mxu0 %v1369
        %1585 = vmatprep.subr.bf16.mxu0 0
        %1586 = vmatpush1.bf16.msra.mxu0 %v1370
        %1587 = vmatprep.subr.bf16.mxu0 0
        %1588 = vmatpush1.bf16.msra.mxu0 %v1371
        %1589 = vmatprep.mubr.bf16.mxu0 %v814
        %1590 = vmatmul.mubr.bf16.gmra.mrb[0].mxu0 %v813
        %v1591 = vpop.f32.mrb[0].mxu0
        %v1592 = vadd.f32 %v1146, %v1591
        %v1593 = vpop.f32.mrb[0].mxu0
        %v1594 = vpop.f32.mrb[0].mxu0
        %v1595 = vadd.f32 %v1146, %v1594
        %v1596 = vpop.f32.mrb[0].mxu0
        %1597 = vmatprep.mubr.bf16.mxu0 %v821
        %1598 = vmatmul.mubr.bf16.gmra.mrb[0].mxu0 %v820
        %v1599 = vpop.f32.mrb[0].mxu0
        %v1600 = vadd.f32 %v1146, %v1599
        %v1601 = vpop.f32.mrb[0].mxu0
        %v1602 = vpop.f32.mrb[0].mxu0
        %v1603 = vadd.f32 %v1146, %v1602
        %v1604 = vpop.f32.mrb[0].mxu0
        %1605 = vmatprep.mubr.bf16.mxu0 %v828
        %1606 = vmatmul.mubr.bf16.gmra.mrb[0].mxu0 %v827
        %v1607 = vpop.f32.mrb[0].mxu0
        %v1608 = vadd.f32 %v1146, %v1607
        %v1609 = vpop.f32.mrb[0].mxu0
        %v1610 = vpop.f32.mrb[0].mxu0
        %v1611 = vadd.f32 %v1146, %v1610
        %v1612 = vpop.f32.mrb[0].mxu0
        %1613 = vmatprep.mubr.bf16.mxu0 %v835
        %1614 = vmatmul.mubr.bf16.gmra.mrb[0].mxu0 %v834
        %v1615 = vpop.f32.mrb[0].mxu0
        %v1616 = vadd.f32 %v1146, %v1615
        %v1617 = vpop.f32.mrb[0].mxu0
        %v1618 = vpop.f32.mrb[0].mxu0
        %v1619 = vadd.f32 %v1146, %v1618
        %v1620 = vpop.f32.mrb[0].mxu0
        %1621 = vmatprep.mubr.bf16.mxu0 %v842
        %1622 = vmatmul.mubr.bf16.gmra.mrb[0].mxu0 %v841
        %v1623 = vpop.f32.mrb[0].mxu0
        %v1624 = vadd.f32 %v1146, %v1623
        %v1625 = vpop.f32.mrb[0].mxu0
        %v1626 = vpop.f32.mrb[0].mxu0
        %v1627 = vadd.f32 %v1146, %v1626
        %v1628 = vpop.f32.mrb[0].mxu0
        %1629 = vmatprep.mubr.bf16.mxu0 %v849
        %1630 = vmatmul.mubr.bf16.gmra.mrb[0].mxu0 %v848
        %v1631 = vpop.f32.mrb[0].mxu0
        %v1632 = vadd.f32 %v1146, %v1631
        %v1633 = vpop.f32.mrb[0].mxu0
        %v1634 = vpop.f32.mrb[0].mxu0
        %v1635 = vadd.f32 %v1146, %v1634
        %v1636 = vpop.f32.mrb[0].mxu0
        %1637 = vmatprep.mubr.bf16.mxu0 %v856
        %1638 = vmatmul.mubr.bf16.gmra.mrb[0].mxu0 %v855
        %v1639 = vpop.f32.mrb[0].mxu0
        %v1640 = vadd.f32 %v1146, %v1639
        %v1641 = vpop.f32.mrb[0].mxu0
        %v1642 = vpop.f32.mrb[0].mxu0
        %v1643 = vadd.f32 %v1146, %v1642
        %v1644 = vpop.f32.mrb[0].mxu0
        %1645 = vmatprep.mubr.bf16.mxu0 %v863
        %1646 = vmatmul.mubr.bf16.gmra.mrb[0].mxu0 %v862
        %v1647 = vpop.f32.mrb[0].mxu0
        %v1648 = vadd.f32 %v1146, %v1647
        %v1649 = vpop.f32.mrb[0].mxu0
        %v1650 = vpop.f32.mrb[0].mxu0
        %v1651 = vadd.f32 %v1146, %v1650
        %v1652 = vpop.f32.mrb[0].mxu0
        %1653 = vmatprep.mubr.bf16.mxu0 %v870
        %1654 = vmatmul.mubr.bf16.gmra.mrb[0].mxu0 %v869
        %v1655 = vpop.f32.mrb[0].mxu0
        %v1656 = vadd.f32 %v1146, %v1655
        %v1657 = vpop.f32.mrb[0].mxu0
        %v1658 = vpop.f32.mrb[0].mxu0
        %v1659 = vadd.f32 %v1146, %v1658
        %v1660 = vpop.f32.mrb[0].mxu0
        %1661 = vmatprep.mubr.bf16.mxu0 %v877
        %1662 = vmatmul.mubr.bf16.gmra.mrb[0].mxu0 %v876
        %v1663 = vpop.f32.mrb[0].mxu0
        %v1664 = vadd.f32 %v1146, %v1663
        %v1665 = vpop.f32.mrb[0].mxu0
        %v1666 = vpop.f32.mrb[0].mxu0
        %v1667 = vadd.f32 %v1146, %v1666
        %v1668 = vpop.f32.mrb[0].mxu0
        %1669 = vmatprep.mubr.bf16.mxu0 %v884
        %1670 = vmatmul.mubr.bf16.gmra.mrb[0].mxu0 %v883
        %v1671 = vpop.f32.mrb[0].mxu0
        %v1672 = vadd.f32 %v1146, %v1671
        %v1673 = vpop.f32.mrb[0].mxu0
        %v1674 = vpop.f32.mrb[0].mxu0
        %v1675 = vadd.f32 %v1146, %v1674
        %v1676 = vpop.f32.mrb[0].mxu0
        %1677 = vmatprep.mubr.bf16.mxu0 %v891
        %1678 = vmatmul.mubr.bf16.gmra.mrb[0].mxu0 %v890
        %v1679 = vpop.f32.mrb[0].mxu0
        %v1680 = vadd.f32 %v1146, %v1679
        %v1681 = vpop.f32.mrb[0].mxu0
        %v1682 = vpop.f32.mrb[0].mxu0
        %v1683 = vadd.f32 %v1146, %v1682
        %v1684 = vpop.f32.mrb[0].mxu0
        %1685 = vmatprep.mubr.bf16.mxu0 %v898
        %1686 = vmatmul.mubr.bf16.gmra.mrb[0].mxu0 %v897
        %v1687 = vpop.f32.mrb[0].mxu0
        %v1688 = vadd.f32 %v1146, %v1687
        %v1689 = vpop.f32.mrb[0].mxu0
        %v1690 = vpop.f32.mrb[0].mxu0
        %v1691 = vadd.f32 %v1146, %v1690
        %v1692 = vpop.f32.mrb[0].mxu0
        %1693 = vmatprep.mubr.bf16.mxu0 %v905
        %1694 = vmatmul.mubr.bf16.gmra.mrb[0].mxu0 %v904
        %v1695 = vpop.f32.mrb[0].mxu0
        %v1696 = vadd.f32 %v1146, %v1695
        %v1697 = vpop.f32.mrb[0].mxu0
        %v1698 = vpop.f32.mrb[0].mxu0
        %v1699 = vadd.f32 %v1146, %v1698
        %v1700 = vpop.f32.mrb[0].mxu0
        %1701 = vmatprep.mubr.bf16.mxu0 %v912
        %1702 = vmatmul.mubr.bf16.gmra.mrb[0].mxu0 %v911
        %v1703 = vpop.f32.mrb[0].mxu0
        %v1704 = vadd.f32 %v1146, %v1703
        %v1705 = vpop.f32.mrb[0].mxu0
        %v1706 = vpop.f32.mrb[0].mxu0
        %v1707 = vadd.f32 %v1146, %v1706
        %v1708 = vpop.f32.mrb[0].mxu0
        %1709 = vmatprep.mubr.bf16.mxu0 %v919
        %1710 = vmatmul.mubr.bf16.gmra.mrb[0].mxu0 %v918
        %v1711 = vpop.f32.mrb[0].mxu0
        %v1712 = vadd.f32 %v1146, %v1711
        %v1713 = vpop.f32.mrb[0].mxu0
        %v1714 = vpop.f32.mrb[0].mxu0
        %v1715 = vadd.f32 %v1146, %v1714
        %v1716 = vpop.f32.mrb[0].mxu0
        %1717 = vmatprep.mubr.bf16.mxu0 %v926
        %1718 = vmatmul.mubr.bf16.gmra.mrb[0].mxu0 %v925
        %v1719 = vpop.f32.mrb[0].mxu0
        %v1720 = vadd.f32 %v1146, %v1719
        %v1721 = vpop.f32.mrb[0].mxu0
        %v1722 = vpop.f32.mrb[0].mxu0
        %v1723 = vadd.f32 %v1146, %v1722
        %v1724 = vpop.f32.mrb[0].mxu0
        %1725 = vmatprep.mubr.bf16.mxu0 %v933
        %1726 = vmatmul.mubr.bf16.gmra.mrb[0].mxu0 %v932
        %v1727 = vpop.f32.mrb[0].mxu0
        %v1728 = vadd.f32 %v1146, %v1727
        %v1729 = vpop.f32.mrb[0].mxu0
        %v1730 = vpop.f32.mrb[0].mxu0
        %v1731 = vadd.f32 %v1146, %v1730
        %v1732 = vpop.f32.mrb[0].mxu0
        %1733 = vmatprep.mubr.bf16.mxu0 %v940
        %1734 = vmatmul.mubr.bf16.gmra.mrb[0].mxu0 %v939
        %v1735 = vpop.f32.mrb[0].mxu0
        %v1736 = vadd.f32 %v1146, %v1735
        %v1737 = vpop.f32.mrb[0].mxu0
        %v1738 = vpop.f32.mrb[0].mxu0
        %v1739 = vadd.f32 %v1146, %v1738
        %v1740 = vpop.f32.mrb[0].mxu0
        %1741 = vmatprep.mubr.bf16.mxu0 %v947
        %1742 = vmatmul.mubr.bf16.gmra.mrb[0].mxu0 %v946
        %v1743 = vpop.f32.mrb[0].mxu0
        %v1744 = vadd.f32 %v1146, %v1743
        %v1745 = vpop.f32.mrb[0].mxu0
        %v1746 = vpop.f32.mrb[0].mxu0
        %v1747 = vadd.f32 %v1146, %v1746
        %v1748 = vpop.f32.mrb[0].mxu0
        %1749 = vmatprep.mubr.bf16.mxu0 %v954
        %1750 = vmatmul.mubr.bf16.gmra.mrb[0].mxu0 %v953
        %v1751 = vpop.f32.mrb[0].mxu0
        %v1752 = vadd.f32 %v1146, %v1751
        %v1753 = vpop.f32.mrb[0].mxu0
        %v1754 = vpop.f32.mrb[0].mxu0
        %v1755 = vadd.f32 %v1146, %v1754
        %v1756 = vpop.f32.mrb[0].mxu0
        %1757 = vmatprep.mubr.bf16.mxu0 %v961
        %1758 = vmatmul.mubr.bf16.gmra.mrb[0].mxu0 %v960
        %v1759 = vpop.f32.mrb[0].mxu0
        %v1760 = vadd.f32 %v1146, %v1759
        %v1761 = vpop.f32.mrb[0].mxu0
        %v1762 = vpop.f32.mrb[0].mxu0
        %v1763 = vadd.f32 %v1146, %v1762
        %v1764 = vpop.f32.mrb[0].mxu0
        %1765 = vmatprep.mubr.bf16.mxu0 %v968
        %1766 = vmatmul.mubr.bf16.gmra.mrb[0].mxu0 %v967
        %v1767 = vpop.f32.mrb[0].mxu0
        %v1768 = vadd.f32 %v1146, %v1767
        %v1769 = vpop.f32.mrb[0].mxu0
        %v1770 = vpop.f32.mrb[0].mxu0
        %v1771 = vadd.f32 %v1146, %v1770
        %v1772 = vpop.f32.mrb[0].mxu0
        %1773 = vmatprep.mubr.bf16.mxu0 %v975
        %1774 = vmatmul.mubr.bf16.gmra.mrb[0].mxu0 %v974
        %v1775 = vpop.f32.mrb[0].mxu0
        %v1776 = vadd.f32 %v1146, %v1775
        %v1777 = vpop.f32.mrb[0].mxu0
        %v1778 = vpop.f32.mrb[0].mxu0
        %v1779 = vadd.f32 %v1146, %v1778
        %v1780 = vpop.f32.mrb[0].mxu0
        %1781 = vmatprep.mubr.bf16.mxu0 %v982
        %1782 = vmatmul.mubr.bf16.gmra.mrb[0].mxu0 %v981
        %v1783 = vpop.f32.mrb[0].mxu0
        %v1784 = vadd.f32 %v1146, %v1783
        %v1785 = vpop.f32.mrb[0].mxu0
        %v1786 = vpop.f32.mrb[0].mxu0
        %v1787 = vadd.f32 %v1146, %v1786
        %v1788 = vpop.f32.mrb[0].mxu0
        %1789 = vmatprep.mubr.bf16.mxu0 %v989
        %1790 = vmatmul.mubr.bf16.gmra.mrb[0].mxu0 %v988
        %v1791 = vpop.f32.mrb[0].mxu0
        %v1792 = vadd.f32 %v1146, %v1791
        %v1793 = vpop.f32.mrb[0].mxu0
        %v1794 = vpop.f32.mrb[0].mxu0
        %v1795 = vadd.f32 %v1146, %v1794
        %v1796 = vpop.f32.mrb[0].mxu0
        %1797 = vmatprep.mubr.bf16.mxu0 %v996
        %1798 = vmatmul.mubr.bf16.gmra.mrb[0].mxu0 %v995
        %v1799 = vpop.f32.mrb[0].mxu0
        %v1800 = vadd.f32 %v1146, %v1799
        %v1801 = vpop.f32.mrb[0].mxu0
        %v1802 = vpop.f32.mrb[0].mxu0
        %v1803 = vadd.f32 %v1146, %v1802
        %v1804 = vpop.f32.mrb[0].mxu0
        %1805 = vmatprep.mubr.bf16.mxu0 %v1003
        %1806 = vmatmul.mubr.bf16.gmra.mrb[0].mxu0 %v1002
        %v1807 = vpop.f32.mrb[0].mxu0
        %v1808 = vadd.f32 %v1146, %v1807
        %v1809 = vpop.f32.mrb[0].mxu0
        %v1810 = vpop.f32.mrb[0].mxu0
        %v1811 = vadd.f32 %v1146, %v1810
        %v1812 = vpop.f32.mrb[0].mxu0
        %1813 = vmatprep.mubr.bf16.mxu0 %v1010
        %1814 = vmatmul.mubr.bf16.gmra.mrb[0].mxu0 %v1009
        %v1815 = vpop.f32.mrb[0].mxu0
        %v1816 = vadd.f32 %v1146, %v1815
        %v1817 = vpop.f32.mrb[0].mxu0
        %v1818 = vpop.f32.mrb[0].mxu0
        %v1819 = vadd.f32 %v1146, %v1818
        %v1820 = vpop.f32.mrb[0].mxu0
        %1821 = vmatprep.mubr.bf16.mxu0 %v1017
        %1822 = vmatmul.mubr.bf16.gmra.mrb[0].mxu0 %v1016
        %v1823 = vpop.f32.mrb[0].mxu0
        %v1824 = vadd.f32 %v1146, %v1823
        %v1825 = vpop.f32.mrb[0].mxu0
        %v1826 = vpop.f32.mrb[0].mxu0
        %v1827 = vadd.f32 %v1146, %v1826
        %v1828 = vpop.f32.mrb[0].mxu0
        %1829 = vmatprep.mubr.bf16.mxu0 %v1024
        %1830 = vmatmul.mubr.bf16.gmra.mrb[0].mxu0 %v1023
        %v1831 = vpop.f32.mrb[0].mxu0
        %v1832 = vadd.f32 %v1146, %v1831
        %v1833 = vpop.f32.mrb[0].mxu0
        %v1834 = vpop.f32.mrb[0].mxu0
        %v1835 = vadd.f32 %v1146, %v1834
        %v1836 = vpop.f32.mrb[0].mxu0
        %1837 = vmatprep.mubr.bf16.mxu0 %v1031
        %1838 = vmatmul.mubr.bf16.gmra.mrb[0].mxu0 %v1030
        %v1839 = vpop.f32.mrb[0].mxu0
        %v1840 = vadd.f32 %v1146, %v1839
        %v1841 = vpop.f32.mrb[0].mxu0
        %v1842 = vpop.f32.mrb[0].mxu0
        %v1843 = vadd.f32 %v1146, %v1842
        %v1844 = vpop.f32.mrb[0].mxu0
        %1845 = vdwg.mxu0
        %1846 = vmatprep.subr.bf16.mxu0 0
        %1847 = vmatpush1.bf16.msra.mxu0 %v1372
        %1848 = vmatprep.subr.bf16.mxu0 0
        %1849 = vmatpush1.bf16.msra.mxu0 %v1373
        %1850 = vmatprep.subr.bf16.mxu0 0
        %1851 = vmatpush1.bf16.msra.mxu0 %v1374
        %1852 = vmatprep.subr.bf16.mxu0 0
        %1853 = vmatpush1.bf16.msra.mxu0 %v1375
        %1854 = vmatprep.subr.bf16.mxu0 0
        %1855 = vmatpush1.bf16.msra.mxu0 %v1376
        %1856 = vmatprep.subr.bf16.mxu0 0
        %1857 = vmatpush1.bf16.msra.mxu0 %v1377
        %1858 = vmatprep.subr.bf16.mxu0 0
        %1859 = vmatpush1.bf16.msra.mxu0 %v1378
        %1860 = vmatprep.subr.bf16.mxu0 0
        %1861 = vmatpush1.bf16.msra.mxu0 %v1379
        %1862 = vmatprep.subr.bf16.mxu0 0
        %1863 = vmatpush1.bf16.msra.mxu0 %v1380
        %1864 = vmatprep.subr.bf16.mxu0 0
        %1865 = vmatpush1.bf16.msra.mxu0 %v1381
        %1866 = vmatprep.subr.bf16.mxu0 0
        %1867 = vmatpush1.bf16.msra.mxu0 %v1382
        %1868 = vmatprep.subr.bf16.mxu0 0
        %1869 = vmatpush1.bf16.msra.mxu0 %v1383
        %1870 = vmatprep.subr.bf16.mxu0 0
        %1871 = vmatpush1.bf16.msra.mxu0 %v1384
        %1872 = vmatprep.subr.bf16.mxu0 0
        %1873 = vmatpush1.bf16.msra.mxu0 %v1385
        %1874 = vmatprep.subr.bf16.mxu0 0
        %1875 = vmatpush1.bf16.msra.mxu0 %v1386
        %1876 = vmatprep.subr.bf16.mxu0 0
        %1877 = vmatpush1.bf16.msra.mxu0 %v1387
        %1878 = vmatprep.mubr.bf16.mxu0 %v816
        %1879 = vmatmul.mubr.bf16.gmra.mrb[0].mxu0 %v815
        %v1880 = vpop.f32.mrb[0].mxu0
        %v1881 = vadd.f32 %v1592, %v1880
        %v1882 = vpop.f32.mrb[0].mxu0
        %v1883 = vpop.f32.mrb[0].mxu0
        %v1884 = vadd.f32 %v1595, %v1883
        %v1885 = vpop.f32.mrb[0].mxu0
        %1886 = vmatprep.mubr.bf16.mxu0 %v823
        %1887 = vmatmul.mubr.bf16.gmra.mrb[0].mxu0 %v822
        %v1888 = vpop.f32.mrb[0].mxu0
        %v1889 = vadd.f32 %v1600, %v1888
        %v1890 = vpop.f32.mrb[0].mxu0
        %v1891 = vpop.f32.mrb[0].mxu0
        %v1892 = vadd.f32 %v1603, %v1891
        %v1893 = vpop.f32.mrb[0].mxu0
        %1894 = vmatprep.mubr.bf16.mxu0 %v830
        %1895 = vmatmul.mubr.bf16.gmra.mrb[0].mxu0 %v829
        %v1896 = vpop.f32.mrb[0].mxu0
        %v1897 = vadd.f32 %v1608, %v1896
        %v1898 = vpop.f32.mrb[0].mxu0
        %v1899 = vpop.f32.mrb[0].mxu0
        %v1900 = vadd.f32 %v1611, %v1899
        %v1901 = vpop.f32.mrb[0].mxu0
        %1902 = vmatprep.mubr.bf16.mxu0 %v837
        %1903 = vmatmul.mubr.bf16.gmra.mrb[0].mxu0 %v836
        %v1904 = vpop.f32.mrb[0].mxu0
        %v1905 = vadd.f32 %v1616, %v1904
        %v1906 = vpop.f32.mrb[0].mxu0
        %v1907 = vpop.f32.mrb[0].mxu0
        %v1908 = vadd.f32 %v1619, %v1907
        %v1909 = vpop.f32.mrb[0].mxu0
        %1910 = vmatprep.mubr.bf16.mxu0 %v844
        %1911 = vmatmul.mubr.bf16.gmra.mrb[0].mxu0 %v843
        %v1912 = vpop.f32.mrb[0].mxu0
        %v1913 = vadd.f32 %v1624, %v1912
        %v1914 = vpop.f32.mrb[0].mxu0
        %v1915 = vpop.f32.mrb[0].mxu0
        %v1916 = vadd.f32 %v1627, %v1915
        %v1917 = vpop.f32.mrb[0].mxu0
        %1918 = vmatprep.mubr.bf16.mxu0 %v851
        %1919 = vmatmul.mubr.bf16.gmra.mrb[0].mxu0 %v850
        %v1920 = vpop.f32.mrb[0].mxu0
        %v1921 = vadd.f32 %v1632, %v1920
        %v1922 = vpop.f32.mrb[0].mxu0
        %v1923 = vpop.f32.mrb[0].mxu0
        %v1924 = vadd.f32 %v1635, %v1923
        %v1925 = vpop.f32.mrb[0].mxu0
        %1926 = vmatprep.mubr.bf16.mxu0 %v858
        %1927 = vmatmul.mubr.bf16.gmra.mrb[0].mxu0 %v857
        %v1928 = vpop.f32.mrb[0].mxu0
        %v1929 = vadd.f32 %v1640, %v1928
        %v1930 = vpop.f32.mrb[0].mxu0
        %v1931 = vpop.f32.mrb[0].mxu0
        %v1932 = vadd.f32 %v1643, %v1931
        %v1933 = vpop.f32.mrb[0].mxu0
        %1934 = vmatprep.mubr.bf16.mxu0 %v865
        %1935 = vmatmul.mubr.bf16.gmra.mrb[0].mxu0 %v864
        %v1936 = vpop.f32.mrb[0].mxu0
        %v1937 = vadd.f32 %v1648, %v1936
        %v1938 = vpop.f32.mrb[0].mxu0
        %v1939 = vpop.f32.mrb[0].mxu0
        %v1940 = vadd.f32 %v1651, %v1939
        %v1941 = vpop.f32.mrb[0].mxu0
        %1942 = vmatprep.mubr.bf16.mxu0 %v872
        %1943 = vmatmul.mubr.bf16.gmra.mrb[0].mxu0 %v871
        %v1944 = vpop.f32.mrb[0].mxu0
        %v1945 = vadd.f32 %v1656, %v1944
        %v1946 = vpop.f32.mrb[0].mxu0
        %v1947 = vpop.f32.mrb[0].mxu0
        %v1948 = vadd.f32 %v1659, %v1947
        %v1949 = vpop.f32.mrb[0].mxu0
        %1950 = vmatprep.mubr.bf16.mxu0 %v879
        %1951 = vmatmul.mubr.bf16.gmra.mrb[0].mxu0 %v878
        %v1952 = vpop.f32.mrb[0].mxu0
        %v1953 = vadd.f32 %v1664, %v1952
        %v1954 = vpop.f32.mrb[0].mxu0
        %v1955 = vpop.f32.mrb[0].mxu0
        %v1956 = vadd.f32 %v1667, %v1955
        %v1957 = vpop.f32.mrb[0].mxu0
        %1958 = vmatprep.mubr.bf16.mxu0 %v886
        %1959 = vmatmul.mubr.bf16.gmra.mrb[0].mxu0 %v885
        %v1960 = vpop.f32.mrb[0].mxu0
        %v1961 = vadd.f32 %v1672, %v1960
        %v1962 = vpop.f32.mrb[0].mxu0
        %v1963 = vpop.f32.mrb[0].mxu0
        %v1964 = vadd.f32 %v1675, %v1963
        %v1965 = vpop.f32.mrb[0].mxu0
        %1966 = vmatprep.mubr.bf16.mxu0 %v893
        %1967 = vmatmul.mubr.bf16.gmra.mrb[0].mxu0 %v892
        %v1968 = vpop.f32.mrb[0].mxu0
        %v1969 = vadd.f32 %v1680, %v1968
        %v1970 = vpop.f32.mrb[0].mxu0
        %v1971 = vpop.f32.mrb[0].mxu0
        %v1972 = vadd.f32 %v1683, %v1971
        %v1973 = vpop.f32.mrb[0].mxu0
        %1974 = vmatprep.mubr.bf16.mxu0 %v900
        %1975 = vmatmul.mubr.bf16.gmra.mrb[0].mxu0 %v899
        %v1976 = vpop.f32.mrb[0].mxu0
        %v1977 = vadd.f32 %v1688, %v1976
        %v1978 = vpop.f32.mrb[0].mxu0
        %v1979 = vpop.f32.mrb[0].mxu0
        %v1980 = vadd.f32 %v1691, %v1979
        %v1981 = vpop.f32.mrb[0].mxu0
        %1982 = vmatprep.mubr.bf16.mxu0 %v907
        %1983 = vmatmul.mubr.bf16.gmra.mrb[0].mxu0 %v906
        %v1984 = vpop.f32.mrb[0].mxu0
        %v1985 = vadd.f32 %v1696, %v1984
        %v1986 = vpop.f32.mrb[0].mxu0
        %v1987 = vpop.f32.mrb[0].mxu0
        %v1988 = vadd.f32 %v1699, %v1987
        %v1989 = vpop.f32.mrb[0].mxu0
        %1990 = vmatprep.mubr.bf16.mxu0 %v914
        %1991 = vmatmul.mubr.bf16.gmra.mrb[0].mxu0 %v913
        %v1992 = vpop.f32.mrb[0].mxu0
        %v1993 = vadd.f32 %v1704, %v1992
        %v1994 = vpop.f32.mrb[0].mxu0
        %v1995 = vpop.f32.mrb[0].mxu0
        %v1996 = vadd.f32 %v1707, %v1995
        %v1997 = vpop.f32.mrb[0].mxu0
        %1998 = vmatprep.mubr.bf16.mxu0 %v921
        %1999 = vmatmul.mubr.bf16.gmra.mrb[0].mxu0 %v920
        %v2000 = vpop.f32.mrb[0].mxu0
        %v2001 = vadd.f32 %v1712, %v2000
        %v2002 = vpop.f32.mrb[0].mxu0
        %v2003 = vpop.f32.mrb[0].mxu0
        %v2004 = vadd.f32 %v1715, %v2003
        %v2005 = vpop.f32.mrb[0].mxu0
        %2006 = vmatprep.mubr.bf16.mxu0 %v928
        %2007 = vmatmul.mubr.bf16.gmra.mrb[0].mxu0 %v927
        %v2008 = vpop.f32.mrb[0].mxu0
        %v2009 = vadd.f32 %v1720, %v2008
        %v2010 = vpop.f32.mrb[0].mxu0
        %v2011 = vpop.f32.mrb[0].mxu0
        %v2012 = vadd.f32 %v1723, %v2011
        %v2013 = vpop.f32.mrb[0].mxu0
        %2014 = vmatprep.mubr.bf16.mxu0 %v935
        %2015 = vmatmul.mubr.bf16.gmra.mrb[0].mxu0 %v934
        %v2016 = vpop.f32.mrb[0].mxu0
        %v2017 = vadd.f32 %v1728, %v2016
        %v2018 = vpop.f32.mrb[0].mxu0
        %v2019 = vpop.f32.mrb[0].mxu0
        %v2020 = vadd.f32 %v1731, %v2019
        %v2021 = vpop.f32.mrb[0].mxu0
        %2022 = vmatprep.mubr.bf16.mxu0 %v942
        %2023 = vmatmul.mubr.bf16.gmra.mrb[0].mxu0 %v941
        %v2024 = vpop.f32.mrb[0].mxu0
        %v2025 = vadd.f32 %v1736, %v2024
        %v2026 = vpop.f32.mrb[0].mxu0
        %v2027 = vpop.f32.mrb[0].mxu0
        %v2028 = vadd.f32 %v1739, %v2027
        %v2029 = vpop.f32.mrb[0].mxu0
        %2030 = vmatprep.mubr.bf16.mxu0 %v949
        %2031 = vmatmul.mubr.bf16.gmra.mrb[0].mxu0 %v948
        %v2032 = vpop.f32.mrb[0].mxu0
        %v2033 = vadd.f32 %v1744, %v2032
        %v2034 = vpop.f32.mrb[0].mxu0
        %v2035 = vpop.f32.mrb[0].mxu0
        %v2036 = vadd.f32 %v1747, %v2035
        %v2037 = vpop.f32.mrb[0].mxu0
        %2038 = vmatprep.mubr.bf16.mxu0 %v956
        %2039 = vmatmul.mubr.bf16.gmra.mrb[0].mxu0 %v955
        %v2040 = vpop.f32.mrb[0].mxu0
        %v2041 = vadd.f32 %v1752, %v2040
        %v2042 = vpop.f32.mrb[0].mxu0
        %v2043 = vpop.f32.mrb[0].mxu0
        %v2044 = vadd.f32 %v1755, %v2043
        %v2045 = vpop.f32.mrb[0].mxu0
        %2046 = vmatprep.mubr.bf16.mxu0 %v963
        %2047 = vmatmul.mubr.bf16.gmra.mrb[0].mxu0 %v962
        %v2048 = vpop.f32.mrb[0].mxu0
        %v2049 = vadd.f32 %v1760, %v2048
        %v2050 = vpop.f32.mrb[0].mxu0
        %v2051 = vpop.f32.mrb[0].mxu0
        %v2052 = vadd.f32 %v1763, %v2051
        %v2053 = vpop.f32.mrb[0].mxu0
        %2054 = vmatprep.mubr.bf16.mxu0 %v970
        %2055 = vmatmul.mubr.bf16.gmra.mrb[0].mxu0 %v969
        %v2056 = vpop.f32.mrb[0].mxu0
        %v2057 = vadd.f32 %v1768, %v2056
        %v2058 = vpop.f32.mrb[0].mxu0
        %v2059 = vpop.f32.mrb[0].mxu0
        %v2060 = vadd.f32 %v1771, %v2059
        %v2061 = vpop.f32.mrb[0].mxu0
        %2062 = vmatprep.mubr.bf16.mxu0 %v977
        %2063 = vmatmul.mubr.bf16.gmra.mrb[0].mxu0 %v976
        %v2064 = vpop.f32.mrb[0].mxu0
        %v2065 = vadd.f32 %v1776, %v2064
        %v2066 = vpop.f32.mrb[0].mxu0
        %v2067 = vpop.f32.mrb[0].mxu0
        %v2068 = vadd.f32 %v1779, %v2067
        %v2069 = vpop.f32.mrb[0].mxu0
        %2070 = vmatprep.mubr.bf16.mxu0 %v984
        %2071 = vmatmul.mubr.bf16.gmra.mrb[0].mxu0 %v983
        %v2072 = vpop.f32.mrb[0].mxu0
        %v2073 = vadd.f32 %v1784, %v2072
        %v2074 = vpop.f32.mrb[0].mxu0
        %v2075 = vpop.f32.mrb[0].mxu0
        %v2076 = vadd.f32 %v1787, %v2075
        %v2077 = vpop.f32.mrb[0].mxu0
        %2078 = vmatprep.mubr.bf16.mxu0 %v991
        %2079 = vmatmul.mubr.bf16.gmra.mrb[0].mxu0 %v990
        %v2080 = vpop.f32.mrb[0].mxu0
        %v2081 = vadd.f32 %v1792, %v2080
        %v2082 = vpop.f32.mrb[0].mxu0
        %v2083 = vpop.f32.mrb[0].mxu0
        %v2084 = vadd.f32 %v1795, %v2083
        %v2085 = vpop.f32.mrb[0].mxu0
        %2086 = vmatprep.mubr.bf16.mxu0 %v998
        %2087 = vmatmul.mubr.bf16.gmra.mrb[0].mxu0 %v997
        %v2088 = vpop.f32.mrb[0].mxu0
        %v2089 = vadd.f32 %v1800, %v2088
        %v2090 = vpop.f32.mrb[0].mxu0
        %v2091 = vpop.f32.mrb[0].mxu0
        %v2092 = vadd.f32 %v1803, %v2091
        %v2093 = vpop.f32.mrb[0].mxu0
        %2094 = vmatprep.mubr.bf16.mxu0 %v1005
        %2095 = vmatmul.mubr.bf16.gmra.mrb[0].mxu0 %v1004
        %v2096 = vpop.f32.mrb[0].mxu0
        %v2097 = vadd.f32 %v1808, %v2096
        %v2098 = vpop.f32.mrb[0].mxu0
        %v2099 = vpop.f32.mrb[0].mxu0
        %v2100 = vadd.f32 %v1811, %v2099
        %v2101 = vpop.f32.mrb[0].mxu0
        %2102 = vmatprep.mubr.bf16.mxu0 %v1012
        %2103 = vmatmul.mubr.bf16.gmra.mrb[0].mxu0 %v1011
        %v2104 = vpop.f32.mrb[0].mxu0
        %v2105 = vadd.f32 %v1816, %v2104
        %v2106 = vpop.f32.mrb[0].mxu0
        %v2107 = vpop.f32.mrb[0].mxu0
        %v2108 = vadd.f32 %v1819, %v2107
        %v2109 = vpop.f32.mrb[0].mxu0
        %2110 = vmatprep.mubr.bf16.mxu0 %v1019
        %2111 = vmatmul.mubr.bf16.gmra.mrb[0].mxu0 %v1018
        %v2112 = vpop.f32.mrb[0].mxu0
        %v2113 = vadd.f32 %v1824, %v2112
        %v2114 = vpop.f32.mrb[0].mxu0
        %v2115 = vpop.f32.mrb[0].mxu0
        %v2116 = vadd.f32 %v1827, %v2115
        %v2117 = vpop.f32.mrb[0].mxu0
        %2118 = vmatprep.mubr.bf16.mxu0 %v1026
        %2119 = vmatmul.mubr.bf16.gmra.mrb[0].mxu0 %v1025
        %v2120 = vpop.f32.mrb[0].mxu0
        %v2121 = vadd.f32 %v1832, %v2120
        %v2122 = vpop.f32.mrb[0].mxu0
        %v2123 = vpop.f32.mrb[0].mxu0
        %v2124 = vadd.f32 %v1835, %v2123
        %v2125 = vpop.f32.mrb[0].mxu0
        %2126 = vmatprep.mubr.bf16.mxu0 %v1033
        %2127 = vmatmul.mubr.bf16.gmra.mrb[0].mxu0 %v1032
        %v2128 = vpop.f32.mrb[0].mxu0
        %v2129 = vadd.f32 %v1840, %v2128
        %v2130 = vpop.f32.mrb[0].mxu0
        %v2131 = vpop.f32.mrb[0].mxu0
        %v2132 = vadd.f32 %v1843, %v2131
        %v2133 = vpop.f32.mrb[0].mxu0
        %2134 = vdwg.mxu0
        %2135 = vmatprep.subr.bf16.mxu0 0
        %2136 = vmatpush1.bf16.msra.mxu0 %v1388
        %2137 = vmatprep.subr.bf16.mxu0 0
        %2138 = vmatpush1.bf16.msra.mxu0 %v1389
        %2139 = vmatprep.subr.bf16.mxu0 0
        %2140 = vmatpush1.bf16.msra.mxu0 %v1390
        %2141 = vmatprep.subr.bf16.mxu0 0
        %2142 = vmatpush1.bf16.msra.mxu0 %v1391
        %2143 = vmatprep.subr.bf16.mxu0 0
        %2144 = vmatpush1.bf16.msra.mxu0 %v1392
        %2145 = vmatprep.subr.bf16.mxu0 0
        %2146 = vmatpush1.bf16.msra.mxu0 %v1393
        %2147 = vmatprep.subr.bf16.mxu0 0
        %2148 = vmatpush1.bf16.msra.mxu0 %v1394
        %2149 = vmatprep.subr.bf16.mxu0 0
        %2150 = vmatpush1.bf16.msra.mxu0 %v1395
        %2151 = vmatprep.subr.bf16.mxu0 0
        %2152 = vmatpush1.bf16.msra.mxu0 %v1396
        %2153 = vmatprep.subr.bf16.mxu0 0
        %2154 = vmatpush1.bf16.msra.mxu0 %v1397
        %2155 = vmatprep.subr.bf16.mxu0 0
        %2156 = vmatpush1.bf16.msra.mxu0 %v1398
        %2157 = vmatprep.subr.bf16.mxu0 0
        %2158 = vmatpush1.bf16.msra.mxu0 %v1399
        %2159 = vmatprep.subr.bf16.mxu0 0
        %2160 = vmatpush1.bf16.msra.mxu0 %v1400
        %2161 = vmatprep.subr.bf16.mxu0 0
        %2162 = vmatpush1.bf16.msra.mxu0 %v1401
        %2163 = vmatprep.subr.bf16.mxu0 0
        %2164 = vmatpush1.bf16.msra.mxu0 %v1402
        %2165 = vmatprep.subr.bf16.mxu0 0
        %2166 = vmatpush1.bf16.msra.mxu0 %v1403
        %2167 = vmatprep.mubr.bf16.mxu0 %v818
        %2168 = vmatmul.mubr.bf16.gmra.mrb[0].mxu0 %v817
        %v2169 = vpop.f32.mrb[0].mxu0
        %v2170 = vadd.f32 %v1881, %v2169
        %v2171 = vpop.f32.mrb[0].mxu0
        %v2172 = vpop.f32.mrb[0].mxu0
        %v2173 = vadd.f32 %v1884, %v2172
        %v2174 = vpop.f32.mrb[0].mxu0
        %2175 = vmatprep.mubr.bf16.mxu0 %v825
        %2176 = vmatmul.mubr.bf16.gmra.mrb[0].mxu0 %v824
        %v2177 = vpop.f32.mrb[0].mxu0
        %v2178 = vadd.f32 %v1889, %v2177
        %v2179 = vpop.f32.mrb[0].mxu0
        %v2180 = vpop.f32.mrb[0].mxu0
        %v2181 = vadd.f32 %v1892, %v2180
        %v2182 = vpop.f32.mrb[0].mxu0
        %2183 = vmatprep.mubr.bf16.mxu0 %v832
        %2184 = vmatmul.mubr.bf16.gmra.mrb[0].mxu0 %v831
        %v2185 = vpop.f32.mrb[0].mxu0
        %v2186 = vadd.f32 %v1897, %v2185
        %v2187 = vpop.f32.mrb[0].mxu0
        %v2188 = vpop.f32.mrb[0].mxu0
        %v2189 = vadd.f32 %v1900, %v2188
        %v2190 = vpop.f32.mrb[0].mxu0
        %2191 = vmatprep.mubr.bf16.mxu0 %v839
        %2192 = vmatmul.mubr.bf16.gmra.mrb[0].mxu0 %v838
        %v2193 = vpop.f32.mrb[0].mxu0
        %v2194 = vadd.f32 %v1905, %v2193
        %v2195 = vpop.f32.mrb[0].mxu0
        %v2196 = vpop.f32.mrb[0].mxu0
        %v2197 = vadd.f32 %v1908, %v2196
        %v2198 = vpop.f32.mrb[0].mxu0
        %2199 = vmatprep.mubr.bf16.mxu0 %v846
        %2200 = vmatmul.mubr.bf16.gmra.mrb[0].mxu0 %v845
        %v2201 = vpop.f32.mrb[0].mxu0
        %v2202 = vadd.f32 %v1913, %v2201
        %v2203 = vpop.f32.mrb[0].mxu0
        %v2204 = vpop.f32.mrb[0].mxu0
        %v2205 = vadd.f32 %v1916, %v2204
        %v2206 = vpop.f32.mrb[0].mxu0
        %2207 = vmatprep.mubr.bf16.mxu0 %v853
        %2208 = vmatmul.mubr.bf16.gmra.mrb[0].mxu0 %v852
        %v2209 = vpop.f32.mrb[0].mxu0
        %v2210 = vadd.f32 %v1921, %v2209
        %v2211 = vpop.f32.mrb[0].mxu0
        %v2212 = vpop.f32.mrb[0].mxu0
        %v2213 = vadd.f32 %v1924, %v2212
        %v2214 = vpop.f32.mrb[0].mxu0
        %2215 = vmatprep.mubr.bf16.mxu0 %v860
        %2216 = vmatmul.mubr.bf16.gmra.mrb[0].mxu0 %v859
        %v2217 = vpop.f32.mrb[0].mxu0
        %v2218 = vadd.f32 %v1929, %v2217
        %v2219 = vpop.f32.mrb[0].mxu0
        %v2220 = vpop.f32.mrb[0].mxu0
        %v2221 = vadd.f32 %v1932, %v2220
        %v2222 = vpop.f32.mrb[0].mxu0
        %2223 = vmatprep.mubr.bf16.mxu0 %v867
        %2224 = vmatmul.mubr.bf16.gmra.mrb[0].mxu0 %v866
        %v2225 = vpop.f32.mrb[0].mxu0
        %v2226 = vadd.f32 %v1937, %v2225
        %v2227 = vpop.f32.mrb[0].mxu0
        %v2228 = vpop.f32.mrb[0].mxu0
        %v2229 = vadd.f32 %v1940, %v2228
        %v2230 = vpop.f32.mrb[0].mxu0
        %2231 = vmatprep.mubr.bf16.mxu0 %v874
        %2232 = vmatmul.mubr.bf16.gmra.mrb[0].mxu0 %v873
        %v2233 = vpop.f32.mrb[0].mxu0
        %v2234 = vadd.f32 %v1945, %v2233
        %v2235 = vpop.f32.mrb[0].mxu0
        %v2236 = vpop.f32.mrb[0].mxu0
        %v2237 = vadd.f32 %v1948, %v2236
        %v2238 = vpop.f32.mrb[0].mxu0
        %2239 = vmatprep.mubr.bf16.mxu0 %v881
        %2240 = vmatmul.mubr.bf16.gmra.mrb[0].mxu0 %v880
        %v2241 = vpop.f32.mrb[0].mxu0
        %v2242 = vadd.f32 %v1953, %v2241
        %v2243 = vpop.f32.mrb[0].mxu0
        %v2244 = vpop.f32.mrb[0].mxu0
        %v2245 = vadd.f32 %v1956, %v2244
        %v2246 = vpop.f32.mrb[0].mxu0
        %2247 = vmatprep.mubr.bf16.mxu0 %v888
        %2248 = vmatmul.mubr.bf16.gmra.mrb[0].mxu0 %v887
        %v2249 = vpop.f32.mrb[0].mxu0
        %v2250 = vadd.f32 %v1961, %v2249
        %v2251 = vpop.f32.mrb[0].mxu0
        %v2252 = vpop.f32.mrb[0].mxu0
        %v2253 = vadd.f32 %v1964, %v2252
        %v2254 = vpop.f32.mrb[0].mxu0
        %2255 = vmatprep.mubr.bf16.mxu0 %v895
        %2256 = vmatmul.mubr.bf16.gmra.mrb[0].mxu0 %v894
        %v2257 = vpop.f32.mrb[0].mxu0
        %v2258 = vadd.f32 %v1969, %v2257
        %v2259 = vpop.f32.mrb[0].mxu0
        %v2260 = vpop.f32.mrb[0].mxu0
        %v2261 = vadd.f32 %v1972, %v2260
        %v2262 = vpop.f32.mrb[0].mxu0
        %2263 = vmatprep.mubr.bf16.mxu0 %v902
        %2264 = vmatmul.mubr.bf16.gmra.mrb[0].mxu0 %v901
        %v2265 = vpop.f32.mrb[0].mxu0
        %v2266 = vadd.f32 %v1977, %v2265
        %v2267 = vpop.f32.mrb[0].mxu0
        %v2268 = vpop.f32.mrb[0].mxu0
        %v2269 = vadd.f32 %v1980, %v2268
        %v2270 = vpop.f32.mrb[0].mxu0
        %2271 = vmatprep.mubr.bf16.mxu0 %v909
        %2272 = vmatmul.mubr.bf16.gmra.mrb[0].mxu0 %v908
        %v2273 = vpop.f32.mrb[0].mxu0
        %v2274 = vadd.f32 %v1985, %v2273
        %v2275 = vpop.f32.mrb[0].mxu0
        %v2276 = vpop.f32.mrb[0].mxu0
        %v2277 = vadd.f32 %v1988, %v2276
        %v2278 = vpop.f32.mrb[0].mxu0
        %2279 = vmatprep.mubr.bf16.mxu0 %v916
        %2280 = vmatmul.mubr.bf16.gmra.mrb[0].mxu0 %v915
        %v2281 = vpop.f32.mrb[0].mxu0
        %v2282 = vadd.f32 %v1993, %v2281
        %v2283 = vpop.f32.mrb[0].mxu0
        %v2284 = vpop.f32.mrb[0].mxu0
        %v2285 = vadd.f32 %v1996, %v2284
        %v2286 = vpop.f32.mrb[0].mxu0
        %2287 = vmatprep.mubr.bf16.mxu0 %v923
        %2288 = vmatmul.mubr.bf16.gmra.mrb[0].mxu0 %v922
        %v2289 = vpop.f32.mrb[0].mxu0
        %v2290 = vadd.f32 %v2001, %v2289
        %v2291 = vpop.f32.mrb[0].mxu0
        %v2292 = vpop.f32.mrb[0].mxu0
        %v2293 = vadd.f32 %v2004, %v2292
        %v2294 = vpop.f32.mrb[0].mxu0
        %2295 = vmatprep.mubr.bf16.mxu0 %v930
        %2296 = vmatmul.mubr.bf16.gmra.mrb[0].mxu0 %v929
        %v2297 = vpop.f32.mrb[0].mxu0
        %v2298 = vadd.f32 %v2009, %v2297
        %v2299 = vpop.f32.mrb[0].mxu0
        %v2300 = vpop.f32.mrb[0].mxu0
        %v2301 = vadd.f32 %v2012, %v2300
        %v2302 = vpop.f32.mrb[0].mxu0
        %2303 = vmatprep.mubr.bf16.mxu0 %v937
        %2304 = vmatmul.mubr.bf16.gmra.mrb[0].mxu0 %v936
        %v2305 = vpop.f32.mrb[0].mxu0
        %v2306 = vadd.f32 %v2017, %v2305
        %v2307 = vpop.f32.mrb[0].mxu0
        %v2308 = vpop.f32.mrb[0].mxu0
        %v2309 = vadd.f32 %v2020, %v2308
        %v2310 = vpop.f32.mrb[0].mxu0
        %2311 = vmatprep.mubr.bf16.mxu0 %v944
        %2312 = vmatmul.mubr.bf16.gmra.mrb[0].mxu0 %v943
        %v2313 = vpop.f32.mrb[0].mxu0
        %v2314 = vadd.f32 %v2025, %v2313
        %v2315 = vpop.f32.mrb[0].mxu0
        %v2316 = vpop.f32.mrb[0].mxu0
        %v2317 = vadd.f32 %v2028, %v2316
        %v2318 = vpop.f32.mrb[0].mxu0
        %2319 = vmatprep.mubr.bf16.mxu0 %v951
        %2320 = vmatmul.mubr.bf16.gmra.mrb[0].mxu0 %v950
        %v2321 = vpop.f32.mrb[0].mxu0
        %v2322 = vadd.f32 %v2033, %v2321
        %v2323 = vpop.f32.mrb[0].mxu0
        %v2324 = vpop.f32.mrb[0].mxu0
        %v2325 = vadd.f32 %v2036, %v2324
        %v2326 = vpop.f32.mrb[0].mxu0
        %2327 = vmatprep.mubr.bf16.mxu0 %v958
        %2328 = vmatmul.mubr.bf16.gmra.mrb[0].mxu0 %v957
        %v2329 = vpop.f32.mrb[0].mxu0
        %v2330 = vadd.f32 %v2041, %v2329
        %v2331 = vpop.f32.mrb[0].mxu0
        %v2332 = vpop.f32.mrb[0].mxu0
        %v2333 = vadd.f32 %v2044, %v2332
        %v2334 = vpop.f32.mrb[0].mxu0
        %2335 = vmatprep.mubr.bf16.mxu0 %v965
        %2336 = vmatmul.mubr.bf16.gmra.mrb[0].mxu0 %v964
        %v2337 = vpop.f32.mrb[0].mxu0
        %v2338 = vadd.f32 %v2049, %v2337
        %v2339 = vpop.f32.mrb[0].mxu0
        %v2340 = vpop.f32.mrb[0].mxu0
        %v2341 = vadd.f32 %v2052, %v2340
        %v2342 = vpop.f32.mrb[0].mxu0
        %2343 = vmatprep.mubr.bf16.mxu0 %v972
        %2344 = vmatmul.mubr.bf16.gmra.mrb[0].mxu0 %v971
        %v2345 = vpop.f32.mrb[0].mxu0
        %v2346 = vadd.f32 %v2057, %v2345
        %v2347 = vpop.f32.mrb[0].mxu0
        %v2348 = vpop.f32.mrb[0].mxu0
        %v2349 = vadd.f32 %v2060, %v2348
        %v2350 = vpop.f32.mrb[0].mxu0
        %2351 = vmatprep.mubr.bf16.mxu0 %v979
        %2352 = vmatmul.mubr.bf16.gmra.mrb[0].mxu0 %v978
        %v2353 = vpop.f32.mrb[0].mxu0
        %v2354 = vadd.f32 %v2065, %v2353
        %v2355 = vpop.f32.mrb[0].mxu0
        %v2356 = vpop.f32.mrb[0].mxu0
        %v2357 = vadd.f32 %v2068, %v2356
        %v2358 = vpop.f32.mrb[0].mxu0
        %2359 = vmatprep.mubr.bf16.mxu0 %v986
        %2360 = vmatmul.mubr.bf16.gmra.mrb[0].mxu0 %v985
        %v2361 = vpop.f32.mrb[0].mxu0
        %v2362 = vadd.f32 %v2073, %v2361
        %v2363 = vpop.f32.mrb[0].mxu0
        %v2364 = vpop.f32.mrb[0].mxu0
        %v2365 = vadd.f32 %v2076, %v2364
        %v2366 = vpop.f32.mrb[0].mxu0
        %2367 = vmatprep.mubr.bf16.mxu0 %v993
        %2368 = vmatmul.mubr.bf16.gmra.mrb[0].mxu0 %v992
        %v2369 = vpop.f32.mrb[0].mxu0
        %v2370 = vadd.f32 %v2081, %v2369
        %v2371 = vpop.f32.mrb[0].mxu0
        %v2372 = vpop.f32.mrb[0].mxu0
        %v2373 = vadd.f32 %v2084, %v2372
        %v2374 = vpop.f32.mrb[0].mxu0
        %2375 = vmatprep.mubr.bf16.mxu0 %v1000
        %2376 = vmatmul.mubr.bf16.gmra.mrb[0].mxu0 %v999
        %v2377 = vpop.f32.mrb[0].mxu0
        %v2378 = vadd.f32 %v2089, %v2377
        %v2379 = vpop.f32.mrb[0].mxu0
        %v2380 = vpop.f32.mrb[0].mxu0
        %v2381 = vadd.f32 %v2092, %v2380
        %v2382 = vpop.f32.mrb[0].mxu0
        %2383 = vmatprep.mubr.bf16.mxu0 %v1007
        %2384 = vmatmul.mubr.bf16.gmra.mrb[0].mxu0 %v1006
        %v2385 = vpop.f32.mrb[0].mxu0
        %v2386 = vadd.f32 %v2097, %v2385
        %v2387 = vpop.f32.mrb[0].mxu0
        %v2388 = vpop.f32.mrb[0].mxu0
        %v2389 = vadd.f32 %v2100, %v2388
        %v2390 = vpop.f32.mrb[0].mxu0
        %2391 = vmatprep.mubr.bf16.mxu0 %v1014
        %2392 = vmatmul.mubr.bf16.gmra.mrb[0].mxu0 %v1013
        %v2393 = vpop.f32.mrb[0].mxu0
        %v2394 = vadd.f32 %v2105, %v2393
        %v2395 = vpop.f32.mrb[0].mxu0
        %v2396 = vpop.f32.mrb[0].mxu0
        %v2397 = vadd.f32 %v2108, %v2396
        %v2398 = vpop.f32.mrb[0].mxu0
        %2399 = vmatprep.mubr.bf16.mxu0 %v1021
        %2400 = vmatmul.mubr.bf16.gmra.mrb[0].mxu0 %v1020
        %v2401 = vpop.f32.mrb[0].mxu0
        %v2402 = vadd.f32 %v2113, %v2401
        %v2403 = vpop.f32.mrb[0].mxu0
        %v2404 = vpop.f32.mrb[0].mxu0
        %v2405 = vadd.f32 %v2116, %v2404
        %v2406 = vpop.f32.mrb[0].mxu0
        %2407 = vmatprep.mubr.bf16.mxu0 %v1028
        %2408 = vmatmul.mubr.bf16.gmra.mrb[0].mxu0 %v1027
        %v2409 = vpop.f32.mrb[0].mxu0
        %v2410 = vadd.f32 %v2121, %v2409
        %v2411 = vpop.f32.mrb[0].mxu0
        %v2412 = vpop.f32.mrb[0].mxu0
        %v2413 = vadd.f32 %v2124, %v2412
        %v2414 = vpop.f32.mrb[0].mxu0
        %2415 = vmatprep.mubr.bf16.mxu0 %v1035
        %2416 = vmatmul.mubr.bf16.gmra.mrb[0].mxu0 %v1034
        %v2417 = vpop.f32.mrb[0].mxu0
        %v2418 = vadd.f32 %v2129, %v2417
        %v2419 = vpop.f32.mrb[0].mxu0
        %v2420 = vpop.f32.mrb[0].mxu0
        %v2421 = vadd.f32 %v2132, %v2420
        %v2422 = vpop.f32.mrb[0].mxu0
        %2423 = vdwg.mxu0
        %2424 = vmatprep.subr.bf16.mxu0 0
        %2425 = vmatpush1.bf16.msra.mxu0 %v1404
        %2426 = vmatprep.subr.bf16.mxu0 0
        %2427 = vmatpush1.bf16.msra.mxu0 %v1405
        %2428 = vmatprep.subr.bf16.mxu0 0
        %2429 = vmatpush1.bf16.msra.mxu0 %v1406
        %2430 = vmatprep.subr.bf16.mxu0 0
        %2431 = vmatpush1.bf16.msra.mxu0 %v1407
        %2432 = vmatprep.subr.bf16.mxu0 0
        %2433 = vmatpush1.bf16.msra.mxu0 0
        %2434 = vmatprep.subr.bf16.mxu0 0
        %2435 = vmatpush1.bf16.msra.mxu0 0
        %2436 = vmatprep.subr.bf16.mxu0 0
        %2437 = vmatpush1.bf16.msra.mxu0 0
        %2438 = vmatprep.subr.bf16.mxu0 0
        %2439 = vmatpush1.bf16.msra.mxu0 0
        %2440 = vmatprep.subr.bf16.mxu0 0
        %2441 = vmatpush1.bf16.msra.mxu0 0
        %2442 = vmatprep.subr.bf16.mxu0 0
        %2443 = vmatpush1.bf16.msra.mxu0 0
        %2444 = vmatprep.subr.bf16.mxu0 0
        %2445 = vmatpush1.bf16.msra.mxu0 0
        %2446 = vmatprep.subr.bf16.mxu0 0
        %2447 = vmatpush1.bf16.msra.mxu0 0
        %2448 = vmatprep.subr.bf16.mxu0 0
        %2449 = vmatpush1.bf16.msra.mxu0 0
        %2450 = vmatprep.subr.bf16.mxu0 0
        %2451 = vmatpush1.bf16.msra.mxu0 0
        %2452 = vmatprep.subr.bf16.mxu0 0
        %2453 = vmatpush1.bf16.msra.mxu0 0
        %2454 = vmatprep.subr.bf16.mxu0 0
        %2455 = vmatpush1.bf16.msra.mxu0 0
        %2456 = vmatprep.mubr.bf16.mxu0 0
        %2457 = vmatmul.mubr.bf16.gmra.mrb[0].mxu0 %v1462
        %v2458 = vpop.f32.mrb[0].mxu0
        %v2459 = vadd.f32 %v2170, %v2458
        %v2460 = vpop.f32.mrb[0].mxu0
        %v2461 = vpop.f32.mrb[0].mxu0
        %v2462 = vadd.f32 %v2173, %v2461
        %v2463 = vpop.f32.mrb[0].mxu0
        %2464 = vmatprep.mubr.bf16.mxu0 0
        %2465 = vmatmul.mubr.bf16.gmra.mrb[0].mxu0 %v1465
        %v2466 = vpop.f32.mrb[0].mxu0
        %v2467 = vadd.f32 %v2178, %v2466
        %v2468 = vpop.f32.mrb[0].mxu0
        %v2469 = vpop.f32.mrb[0].mxu0
        %v2470 = vadd.f32 %v2181, %v2469
        %v2471 = vpop.f32.mrb[0].mxu0
        %2472 = vmatprep.mubr.bf16.mxu0 0
        %2473 = vmatmul.mubr.bf16.gmra.mrb[0].mxu0 %v1468
        %v2474 = vpop.f32.mrb[0].mxu0
        %v2475 = vadd.f32 %v2186, %v2474
        %v2476 = vpop.f32.mrb[0].mxu0
        %v2477 = vpop.f32.mrb[0].mxu0
        %v2478 = vadd.f32 %v2189, %v2477
        %v2479 = vpop.f32.mrb[0].mxu0
        %2480 = vmatprep.mubr.bf16.mxu0 0
        %2481 = vmatmul.mubr.bf16.gmra.mrb[0].mxu0 %v1471
        %v2482 = vpop.f32.mrb[0].mxu0
        %v2483 = vadd.f32 %v2194, %v2482
        %v2484 = vpop.f32.mrb[0].mxu0
        %v2485 = vpop.f32.mrb[0].mxu0
        %v2486 = vadd.f32 %v2197, %v2485
        %v2487 = vpop.f32.mrb[0].mxu0
        %2488 = vmatprep.mubr.bf16.mxu0 0
        %2489 = vmatmul.mubr.bf16.gmra.mrb[0].mxu0 %v1474
        %v2490 = vpop.f32.mrb[0].mxu0
        %v2491 = vadd.f32 %v2202, %v2490
        %v2492 = vpop.f32.mrb[0].mxu0
        %v2493 = vpop.f32.mrb[0].mxu0
        %v2494 = vadd.f32 %v2205, %v2493
        %v2495 = vpop.f32.mrb[0].mxu0
        %2496 = vmatprep.mubr.bf16.mxu0 0
        %2497 = vmatmul.mubr.bf16.gmra.mrb[0].mxu0 %v1477
        %v2498 = vpop.f32.mrb[0].mxu0
        %v2499 = vadd.f32 %v2210, %v2498
        %v2500 = vpop.f32.mrb[0].mxu0
        %v2501 = vpop.f32.mrb[0].mxu0
        %v2502 = vadd.f32 %v2213, %v2501
        %v2503 = vpop.f32.mrb[0].mxu0
        %2504 = vmatprep.mubr.bf16.mxu0 0
        %2505 = vmatmul.mubr.bf16.gmra.mrb[0].mxu0 %v1480
        %v2506 = vpop.f32.mrb[0].mxu0
        %v2507 = vadd.f32 %v2218, %v2506
        %v2508 = vpop.f32.mrb[0].mxu0
        %v2509 = vpop.f32.mrb[0].mxu0
        %v2510 = vadd.f32 %v2221, %v2509
        %v2511 = vpop.f32.mrb[0].mxu0
        %2512 = vmatprep.mubr.bf16.mxu0 0
        %2513 = vmatmul.mubr.bf16.gmra.mrb[0].mxu0 %v1483
        %v2514 = vpop.f32.mrb[0].mxu0
        %v2515 = vadd.f32 %v2226, %v2514
        %v2516 = vpop.f32.mrb[0].mxu0
        %v2517 = vpop.f32.mrb[0].mxu0
        %v2518 = vadd.f32 %v2229, %v2517
        %v2519 = vpop.f32.mrb[0].mxu0
        %2520 = vmatprep.mubr.bf16.mxu0 0
        %2521 = vmatmul.mubr.bf16.gmra.mrb[0].mxu0 %v1486
        %v2522 = vpop.f32.mrb[0].mxu0
        %v2523 = vadd.f32 %v2234, %v2522
        %v2524 = vpop.f32.mrb[0].mxu0
        %v2525 = vpop.f32.mrb[0].mxu0
        %v2526 = vadd.f32 %v2237, %v2525
        %v2527 = vpop.f32.mrb[0].mxu0
        %2528 = vmatprep.mubr.bf16.mxu0 0
        %2529 = vmatmul.mubr.bf16.gmra.mrb[0].mxu0 %v1489
        %v2530 = vpop.f32.mrb[0].mxu0
        %v2531 = vadd.f32 %v2242, %v2530
        %v2532 = vpop.f32.mrb[0].mxu0
        %v2533 = vpop.f32.mrb[0].mxu0
        %v2534 = vadd.f32 %v2245, %v2533
        %v2535 = vpop.f32.mrb[0].mxu0
        %2536 = vmatprep.mubr.bf16.mxu0 0
        %2537 = vmatmul.mubr.bf16.gmra.mrb[0].mxu0 %v1492
        %v2538 = vpop.f32.mrb[0].mxu0
        %v2539 = vadd.f32 %v2250, %v2538
        %v2540 = vpop.f32.mrb[0].mxu0
        %v2541 = vpop.f32.mrb[0].mxu0
        %v2542 = vadd.f32 %v2253, %v2541
        %v2543 = vpop.f32.mrb[0].mxu0
        %2544 = vmatprep.mubr.bf16.mxu0 0
        %2545 = vmatmul.mubr.bf16.gmra.mrb[0].mxu0 %v1495
        %v2546 = vpop.f32.mrb[0].mxu0
        %v2547 = vadd.f32 %v2258, %v2546
        %v2548 = vpop.f32.mrb[0].mxu0
        %v2549 = vpop.f32.mrb[0].mxu0
        %v2550 = vadd.f32 %v2261, %v2549
        %v2551 = vpop.f32.mrb[0].mxu0
        %2552 = vmatprep.mubr.bf16.mxu0 0
        %2553 = vmatmul.mubr.bf16.gmra.mrb[0].mxu0 %v1498
        %v2554 = vpop.f32.mrb[0].mxu0
        %v2555 = vadd.f32 %v2266, %v2554
        %v2556 = vpop.f32.mrb[0].mxu0
        %v2557 = vpop.f32.mrb[0].mxu0
        %v2558 = vadd.f32 %v2269, %v2557
        %v2559 = vpop.f32.mrb[0].mxu0
        %2560 = vmatprep.mubr.bf16.mxu0 0
        %2561 = vmatmul.mubr.bf16.gmra.mrb[0].mxu0 %v1501
        %v2562 = vpop.f32.mrb[0].mxu0
        %v2563 = vadd.f32 %v2274, %v2562
        %v2564 = vpop.f32.mrb[0].mxu0
        %v2565 = vpop.f32.mrb[0].mxu0
        %v2566 = vadd.f32 %v2277, %v2565
        %v2567 = vpop.f32.mrb[0].mxu0
        %2568 = vmatprep.mubr.bf16.mxu0 0
        %2569 = vmatmul.mubr.bf16.gmra.mrb[0].mxu0 %v1504
        %v2570 = vpop.f32.mrb[0].mxu0
        %v2571 = vadd.f32 %v2282, %v2570
        %v2572 = vpop.f32.mrb[0].mxu0
        %v2573 = vpop.f32.mrb[0].mxu0
        %v2574 = vadd.f32 %v2285, %v2573
        %v2575 = vpop.f32.mrb[0].mxu0
        %2576 = vmatprep.mubr.bf16.mxu0 0
        %2577 = vmatmul.mubr.bf16.gmra.mrb[0].mxu0 %v1507
        %v2578 = vpop.f32.mrb[0].mxu0
        %v2579 = vadd.f32 %v2290, %v2578
        %v2580 = vpop.f32.mrb[0].mxu0
        %v2581 = vpop.f32.mrb[0].mxu0
        %v2582 = vadd.f32 %v2293, %v2581
        %v2583 = vpop.f32.mrb[0].mxu0
        %2584 = vmatprep.mubr.bf16.mxu0 0
        %2585 = vmatmul.mubr.bf16.gmra.mrb[0].mxu0 %v1510
        %v2586 = vpop.f32.mrb[0].mxu0
        %v2587 = vadd.f32 %v2298, %v2586
        %v2588 = vpop.f32.mrb[0].mxu0
        %v2589 = vpop.f32.mrb[0].mxu0
        %v2590 = vadd.f32 %v2301, %v2589
        %v2591 = vpop.f32.mrb[0].mxu0
        %2592 = vmatprep.mubr.bf16.mxu0 0
        %2593 = vmatmul.mubr.bf16.gmra.mrb[0].mxu0 %v1513
        %v2594 = vpop.f32.mrb[0].mxu0
        %v2595 = vadd.f32 %v2306, %v2594
        %v2596 = vpop.f32.mrb[0].mxu0
        %v2597 = vpop.f32.mrb[0].mxu0
        %v2598 = vadd.f32 %v2309, %v2597
        %v2599 = vpop.f32.mrb[0].mxu0
        %2600 = vmatprep.mubr.bf16.mxu0 0
        %2601 = vmatmul.mubr.bf16.gmra.mrb[0].mxu0 %v1516
        %v2602 = vpop.f32.mrb[0].mxu0
        %v2603 = vadd.f32 %v2314, %v2602
        %v2604 = vpop.f32.mrb[0].mxu0
        %v2605 = vpop.f32.mrb[0].mxu0
        %v2606 = vadd.f32 %v2317, %v2605
        %v2607 = vpop.f32.mrb[0].mxu0
        %2608 = vmatprep.mubr.bf16.mxu0 0
        %2609 = vmatmul.mubr.bf16.gmra.mrb[0].mxu0 %v1519
        %v2610 = vpop.f32.mrb[0].mxu0
        %v2611 = vadd.f32 %v2322, %v2610
        %v2612 = vpop.f32.mrb[0].mxu0
        %v2613 = vpop.f32.mrb[0].mxu0
        %v2614 = vadd.f32 %v2325, %v2613
        %v2615 = vpop.f32.mrb[0].mxu0
        %2616 = vmatprep.mubr.bf16.mxu0 0
        %2617 = vmatmul.mubr.bf16.gmra.mrb[0].mxu0 %v1522
        %v2618 = vpop.f32.mrb[0].mxu0
        %v2619 = vadd.f32 %v2330, %v2618
        %v2620 = vpop.f32.mrb[0].mxu0
        %v2621 = vpop.f32.mrb[0].mxu0
        %v2622 = vadd.f32 %v2333, %v2621
        %v2623 = vpop.f32.mrb[0].mxu0
        %2624 = vmatprep.mubr.bf16.mxu0 0
        %2625 = vmatmul.mubr.bf16.gmra.mrb[0].mxu0 %v1525
        %v2626 = vpop.f32.mrb[0].mxu0
        %v2627 = vadd.f32 %v2338, %v2626
        %v2628 = vpop.f32.mrb[0].mxu0
        %v2629 = vpop.f32.mrb[0].mxu0
        %v2630 = vadd.f32 %v2341, %v2629
        %v2631 = vpop.f32.mrb[0].mxu0
        %2632 = vmatprep.mubr.bf16.mxu0 0
        %2633 = vmatmul.mubr.bf16.gmra.mrb[0].mxu0 %v1528
        %v2634 = vpop.f32.mrb[0].mxu0
        %v2635 = vadd.f32 %v2346, %v2634
        %v2636 = vpop.f32.mrb[0].mxu0
        %v2637 = vpop.f32.mrb[0].mxu0
        %v2638 = vadd.f32 %v2349, %v2637
        %v2639 = vpop.f32.mrb[0].mxu0
        %2640 = vmatprep.mubr.bf16.mxu0 0
        %2641 = vmatmul.mubr.bf16.gmra.mrb[0].mxu0 %v1531
        %v2642 = vpop.f32.mrb[0].mxu0
        %v2643 = vadd.f32 %v2354, %v2642
        %v2644 = vpop.f32.mrb[0].mxu0
        %v2645 = vpop.f32.mrb[0].mxu0
        %v2646 = vadd.f32 %v2357, %v2645
        %v2647 = vpop.f32.mrb[0].mxu0
        %2648 = vmatprep.mubr.bf16.mxu0 0
        %2649 = vmatmul.mubr.bf16.gmra.mrb[0].mxu0 %v1534
        %v2650 = vpop.f32.mrb[0].mxu0
        %v2651 = vadd.f32 %v2362, %v2650
        %v2652 = vpop.f32.mrb[0].mxu0
        %v2653 = vpop.f32.mrb[0].mxu0
        %v2654 = vadd.f32 %v2365, %v2653
        %v2655 = vpop.f32.mrb[0].mxu0
        %2656 = vmatprep.mubr.bf16.mxu0 0
        %2657 = vmatmul.mubr.bf16.gmra.mrb[0].mxu0 %v1537
        %v2658 = vpop.f32.mrb[0].mxu0
        %v2659 = vadd.f32 %v2370, %v2658
        %v2660 = vpop.f32.mrb[0].mxu0
        %v2661 = vpop.f32.mrb[0].mxu0
        %v2662 = vadd.f32 %v2373, %v2661
        %v2663 = vpop.f32.mrb[0].mxu0
        %2664 = vmatprep.mubr.bf16.mxu0 0
        %2665 = vmatmul.mubr.bf16.gmra.mrb[0].mxu0 %v1540
        %v2666 = vpop.f32.mrb[0].mxu0
        %v2667 = vadd.f32 %v2378, %v2666
        %v2668 = vpop.f32.mrb[0].mxu0
        %v2669 = vpop.f32.mrb[0].mxu0
        %v2670 = vadd.f32 %v2381, %v2669
        %v2671 = vpop.f32.mrb[0].mxu0
        %2672 = vmatprep.mubr.bf16.mxu0 0
        %2673 = vmatmul.mubr.bf16.gmra.mrb[0].mxu0 %v1543
        %v2674 = vpop.f32.mrb[0].mxu0
        %v2675 = vadd.f32 %v2386, %v2674
        %v2676 = vpop.f32.mrb[0].mxu0
        %v2677 = vpop.f32.mrb[0].mxu0
        %v2678 = vadd.f32 %v2389, %v2677
        %v2679 = vpop.f32.mrb[0].mxu0
        %2680 = vmatprep.mubr.bf16.mxu0 0
        %2681 = vmatmul.mubr.bf16.gmra.mrb[0].mxu0 %v1546
        %v2682 = vpop.f32.mrb[0].mxu0
        %v2683 = vadd.f32 %v2394, %v2682
        %v2684 = vpop.f32.mrb[0].mxu0
        %v2685 = vpop.f32.mrb[0].mxu0
        %v2686 = vadd.f32 %v2397, %v2685
        %v2687 = vpop.f32.mrb[0].mxu0
        %2688 = vmatprep.mubr.bf16.mxu0 0
        %2689 = vmatmul.mubr.bf16.gmra.mrb[0].mxu0 %v1549
        %v2690 = vpop.f32.mrb[0].mxu0
        %v2691 = vadd.f32 %v2402, %v2690
        %v2692 = vpop.f32.mrb[0].mxu0
        %v2693 = vpop.f32.mrb[0].mxu0
        %v2694 = vadd.f32 %v2405, %v2693
        %v2695 = vpop.f32.mrb[0].mxu0
        %2696 = vmatprep.mubr.bf16.mxu0 0
        %2697 = vmatmul.mubr.bf16.gmra.mrb[0].mxu0 %v1552
        %v2698 = vpop.f32.mrb[0].mxu0
        %v2699 = vadd.f32 %v2410, %v2698
        %v2700 = vpop.f32.mrb[0].mxu0
        %v2701 = vpop.f32.mrb[0].mxu0
        %v2702 = vadd.f32 %v2413, %v2701
        %v2703 = vpop.f32.mrb[0].mxu0
        %2704 = vmatprep.mubr.bf16.mxu0 0
        %2705 = vmatmul.mubr.bf16.gmra.mrb[0].mxu0 %v1555
        %v2706 = vpop.f32.mrb[0].mxu0
        %v2707 = vadd.f32 %v2418, %v2706
        %v2708 = vpop.f32.mrb[0].mxu0
        %v2709 = vpop.f32.mrb[0].mxu0
        %v2710 = vadd.f32 %v2421, %v2709
        %v2711 = vpop.f32.mrb[0].mxu0
        %2712 = vdwg.mxu0
        %v2713 = vmax.f32 %v2459, 0.0
        %v2714 = vmax.f32 %v2462, 0.0
        %v2715 = vmax.f32 %v2467, 0.0
        %v2716 = vmax.f32 %v2470, 0.0
        %v2717 = vmax.f32 %v2475, 0.0
        %v2718 = vmax.f32 %v2478, 0.0
        %v2719 = vmax.f32 %v2483, 0.0
        %v2720 = vmax.f32 %v2486, 0.0
        %v2721 = vmax.f32 %v2491, 0.0
        %v2722 = vmax.f32 %v2494, 0.0
        %v2723 = vmax.f32 %v2499, 0.0
        %v2724 = vmax.f32 %v2502, 0.0
        %v2725 = vmax.f32 %v2507, 0.0
        %v2726 = vmax.f32 %v2510, 0.0
        %v2727 = vmax.f32 %v2515, 0.0
        %v2728 = vmax.f32 %v2518, 0.0
        %v2729 = vmax.f32 %v2523, 0.0
        %v2730 = vmax.f32 %v2526, 0.0
        %v2731 = vmax.f32 %v2531, 0.0
        %v2732 = vmax.f32 %v2534, 0.0
        %v2733 = vmax.f32 %v2539, 0.0
        %v2734 = vmax.f32 %v2542, 0.0
        %v2735 = vmax.f32 %v2547, 0.0
        %v2736 = vmax.f32 %v2550, 0.0
        %v2737 = vmax.f32 %v2555, 0.0
        %v2738 = vmax.f32 %v2558, 0.0
        %v2739 = vmax.f32 %v2563, 0.0
        %v2740 = vmax.f32 %v2566, 0.0
        %v2741 = vmax.f32 %v2571, 0.0
        %v2742 = vmax.f32 %v2574, 0.0
        %v2743 = vmax.f32 %v2579, 0.0
        %v2744 = vmax.f32 %v2582, 0.0
        %v2745 = vmax.f32 %v2587, 0.0
        %v2746 = vmax.f32 %v2590, 0.0
        %v2747 = vmax.f32 %v2595, 0.0
        %v2748 = vmax.f32 %v2598, 0.0
        %v2749 = vmax.f32 %v2603, 0.0
        %v2750 = vmax.f32 %v2606, 0.0
        %v2751 = vmax.f32 %v2611, 0.0
        %v2752 = vmax.f32 %v2614, 0.0
        %v2753 = vmax.f32 %v2619, 0.0
        %v2754 = vmax.f32 %v2622, 0.0
        %v2755 = vmax.f32 %v2627, 0.0
        %v2756 = vmax.f32 %v2630, 0.0
        %v2757 = vmax.f32 %v2635, 0.0
        %v2758 = vmax.f32 %v2638, 0.0
        %v2759 = vmax.f32 %v2643, 0.0
        %v2760 = vmax.f32 %v2646, 0.0
        %v2761 = vmax.f32 %v2651, 0.0
        %v2762 = vmax.f32 %v2654, 0.0
        %v2763 = vmax.f32 %v2659, 0.0
        %v2764 = vmax.f32 %v2662, 0.0
        %v2765 = vmax.f32 %v2667, 0.0
        %v2766 = vmax.f32 %v2670, 0.0
        %v2767 = vmax.f32 %v2675, 0.0
        %v2768 = vmax.f32 %v2678, 0.0
        %v2769 = vmax.f32 %v2683, 0.0
        %v2770 = vmax.f32 %v2686, 0.0
        %v2771 = vmax.f32 %v2691, 0.0
        %v2772 = vmax.f32 %v2694, 0.0
        %v2773 = vmax.f32 %v2699, 0.0
        %v2774 = vmax.f32 %v2702, 0.0
        %v2775 = vmax.f32 %v2707, 0.0
        %v2776 = vmax.f32 %v2710, 0.0
        %v2777 = vpack.c.bf16 %v2714, %v2713
        %v2778 = vpack.c.bf16 %v2716, %v2715
        %v2779 = vpack.c.bf16 %v2718, %v2717
        %v2780 = vpack.c.bf16 %v2720, %v2719
        %v2781 = vpack.c.bf16 %v2722, %v2721
        %v2782 = vpack.c.bf16 %v2724, %v2723
        %v2783 = vpack.c.bf16 %v2726, %v2725
        %v2784 = vpack.c.bf16 %v2728, %v2727
        %v2785 = vpack.c.bf16 %v2730, %v2729
        %v2786 = vpack.c.bf16 %v2732, %v2731
        %v2787 = vpack.c.bf16 %v2734, %v2733
        %v2788 = vpack.c.bf16 %v2736, %v2735
        %v2789 = vpack.c.bf16 %v2738, %v2737
        %v2790 = vpack.c.bf16 %v2740, %v2739
        %v2791 = vpack.c.bf16 %v2742, %v2741
        %v2792 = vpack.c.bf16 %v2744, %v2743
        %v2793 = vpack.c.bf16 %v2746, %v2745
        %v2794 = vpack.c.bf16 %v2748, %v2747
        %v2795 = vpack.c.bf16 %v2750, %v2749
        %v2796 = vpack.c.bf16 %v2752, %v2751
        %v2797 = vpack.c.bf16 %v2754, %v2753
        %v2798 = vpack.c.bf16 %v2756, %v2755
        %v2799 = vpack.c.bf16 %v2758, %v2757
        %v2800 = vpack.c.bf16 %v2760, %v2759
        %v2801 = vpack.c.bf16 %v2762, %v2761
        %v2802 = vpack.c.bf16 %v2764, %v2763
        %v2803 = vpack.c.bf16 %v2766, %v2765
        %v2804 = vpack.c.bf16 %v2768, %v2767
        %v2805 = vpack.c.bf16 %v2770, %v2769
        %v2806 = vpack.c.bf16 %v2772, %v2771
        %v2807 = vpack.c.bf16 %v2774, %v2773
        %v2808 = vpack.c.bf16 %v2776, %v2775
        %v2809 = vld [vmem:[%s3] sm:$0xf]
        %v2810 = vld [vmem:[%s3 + $0x4] sm:$0xf]
        %v2811 = vld [vmem:[%s3 + $0x8] sm:$0xf]
        %v2812 = vld [vmem:[%s3 + $0xc] sm:$0xf]
        %v2813 = vld [vmem:[%s3 + $0x10] sm:$0xf]
        %v2814 = vld [vmem:[%s3 + $0x14] sm:$0xf]
        %v2815 = vld [vmem:[%s3 + $0x18] sm:$0xf]
        %v2816 = vld [vmem:[%s3 + $0x1c] sm:$0xf]
        %v2817 = vld [vmem:[%s3 + $0x20] sm:$0xf]
        %v2818 = vld [vmem:[%s3 + $0x24] sm:$0xf]
        %v2819 = vld [vmem:[%s3 + $0x28] sm:$0xf]
        %v2820 = vld [vmem:[%s3 + $0x2c] sm:$0xf]
        %v2821 = vld [vmem:[%s3 + $0x30] sm:$0xf]
        %v2822 = vld [vmem:[%s3 + $0x34] sm:$0xf]
        %v2823 = vld [vmem:[%s3 + $0x38] sm:$0xf]
        %v2824 = vld [vmem:[%s3 + $0x3c] sm:$0xf]
        %v2825 = vld [vmem:[%s4] sm:$0x1]
        %v2827 = vlaneseq
        %v2828 = vshrl.u32 %v2827, 7
        %v2829 = vsub.s32 0, %v2828
        %v2830 = vrot.slane %v2825, %v2829
        %v2848 = vunpack.c.l.b16 %v2809
        %v2849 = vunpack.c.l.b16 %v2810
        %v2850 = vunpack.c.l.b16 %v2811
        %v2851 = vunpack.c.l.b16 %v2812
        %v2852 = vunpack.c.l.b16 %v2813
        %v2853 = vunpack.c.l.b16 %v2814
        %v2854 = vunpack.c.l.b16 %v2815
        %v2855 = vunpack.c.l.b16 %v2816
        %v2856 = vunpack.c.l.b16 %v2817
        %v2857 = vunpack.c.l.b16 %v2818
        %v2858 = vunpack.c.l.b16 %v2819
        %v2859 = vunpack.c.l.b16 %v2820
        %v2860 = vunpack.c.l.b16 %v2821
        %v2861 = vunpack.c.l.b16 %v2822
        %v2862 = vunpack.c.l.b16 %v2823
        %v2863 = vunpack.c.l.b16 %v2824
        %v2864 = vpack.c.b16 %v2849, %v2848
        %v2865 = vpack.c.b16 %v2851, %v2850
        %v2866 = vpack.c.b16 %v2853, %v2852
        %v2867 = vpack.c.b16 %v2855, %v2854
        %v2868 = vpack.c.b16 %v2857, %v2856
        %v2869 = vpack.c.b16 %v2859, %v2858
        %v2870 = vpack.c.b16 %v2861, %v2860
        %v2871 = vpack.c.b16 %v2863, %v2862
        %2880 = vmatprep.subr.bf16.mxu0 0
        %2881 = vmatpush1.bf16.msra.mxu0 %v2864
        %2882 = vmatprep.subr.bf16.mxu0 0
        %2883 = vmatpush1.bf16.msra.mxu0 %v2865
        %2884 = vmatprep.subr.bf16.mxu0 0
        %2885 = vmatpush1.bf16.msra.mxu0 %v2866
        %2886 = vmatprep.subr.bf16.mxu0 0
        %2887 = vmatpush1.bf16.msra.mxu0 %v2867
        %2888 = vmatprep.subr.bf16.mxu0 0
        %2889 = vmatpush1.bf16.msra.mxu0 %v2868
        %2890 = vmatprep.subr.bf16.mxu0 0
        %2891 = vmatpush1.bf16.msra.mxu0 %v2869
        %2892 = vmatprep.subr.bf16.mxu0 0
        %2893 = vmatpush1.bf16.msra.mxu0 %v2870
        %2894 = vmatprep.subr.bf16.mxu0 0
        %2895 = vmatpush1.bf16.msra.mxu0 %v2871
        %2896 = vmatprep.subr.bf16.mxu0 0
        %2897 = vmatpush1.bf16.msra.mxu0 0
        %2898 = vmatprep.subr.bf16.mxu0 0
        %2899 = vmatpush1.bf16.msra.mxu0 0
        %2900 = vmatprep.subr.bf16.mxu0 0
        %2901 = vmatpush1.bf16.msra.mxu0 0
        %2902 = vmatprep.subr.bf16.mxu0 0
        %2903 = vmatpush1.bf16.msra.mxu0 0
        %2904 = vmatprep.subr.bf16.mxu0 0
        %2905 = vmatpush1.bf16.msra.mxu0 0
        %2906 = vmatprep.subr.bf16.mxu0 0
        %2907 = vmatpush1.bf16.msra.mxu0 0
        %2908 = vmatprep.subr.bf16.mxu0 0
        %2909 = vmatpush1.bf16.msra.mxu0 0
        %2910 = vmatprep.subr.bf16.mxu0 0
        %2911 = vmatpush1.bf16.msra.mxu0 0
        %2912 = vmatprep.mubr.bf16.mxu0 0
        %2913 = vmatmul.mubr.bf16.gmra.mrb[0].mxu0 %v2777
        %v2914 = vpop.f32.mrb[0].mxu0
        %v2915 = vadd.f32 %v2830, %v2914
        %v2916 = vpop.f32.mrb[0].mxu0
        %v2917 = vpop.f32.mrb[0].mxu0
        %v2918 = vadd.f32 %v2830, %v2917
        %v2919 = vpop.f32.mrb[0].mxu0
        %2920 = vmatprep.mubr.bf16.mxu0 0
        %2921 = vmatmul.mubr.bf16.gmra.mrb[0].mxu0 %v2778
        %v2922 = vpop.f32.mrb[0].mxu0
        %v2923 = vadd.f32 %v2830, %v2922
        %v2924 = vpop.f32.mrb[0].mxu0
        %v2925 = vpop.f32.mrb[0].mxu0
        %v2926 = vadd.f32 %v2830, %v2925
        %v2927 = vpop.f32.mrb[0].mxu0
        %2928 = vmatprep.mubr.bf16.mxu0 0
        %2929 = vmatmul.mubr.bf16.gmra.mrb[0].mxu0 %v2779
        %v2930 = vpop.f32.mrb[0].mxu0
        %v2931 = vadd.f32 %v2830, %v2930
        %v2932 = vpop.f32.mrb[0].mxu0
        %v2933 = vpop.f32.mrb[0].mxu0
        %v2934 = vadd.f32 %v2830, %v2933
        %v2935 = vpop.f32.mrb[0].mxu0
        %2936 = vmatprep.mubr.bf16.mxu0 0
        %2937 = vmatmul.mubr.bf16.gmra.mrb[0].mxu0 %v2780
        %v2938 = vpop.f32.mrb[0].mxu0
        %v2939 = vadd.f32 %v2830, %v2938
        %v2940 = vpop.f32.mrb[0].mxu0
        %v2941 = vpop.f32.mrb[0].mxu0
        %v2942 = vadd.f32 %v2830, %v2941
        %v2943 = vpop.f32.mrb[0].mxu0
        %2944 = vmatprep.mubr.bf16.mxu0 0
        %2945 = vmatmul.mubr.bf16.gmra.mrb[0].mxu0 %v2781
        %v2946 = vpop.f32.mrb[0].mxu0
        %v2947 = vadd.f32 %v2830, %v2946
        %v2948 = vpop.f32.mrb[0].mxu0
        %v2949 = vpop.f32.mrb[0].mxu0
        %v2950 = vadd.f32 %v2830, %v2949
        %v2951 = vpop.f32.mrb[0].mxu0
        %2952 = vmatprep.mubr.bf16.mxu0 0
        %2953 = vmatmul.mubr.bf16.gmra.mrb[0].mxu0 %v2782
        %v2954 = vpop.f32.mrb[0].mxu0
        %v2955 = vadd.f32 %v2830, %v2954
        %v2956 = vpop.f32.mrb[0].mxu0
        %v2957 = vpop.f32.mrb[0].mxu0
        %v2958 = vadd.f32 %v2830, %v2957
        %v2959 = vpop.f32.mrb[0].mxu0
        %2960 = vmatprep.mubr.bf16.mxu0 0
        %2961 = vmatmul.mubr.bf16.gmra.mrb[0].mxu0 %v2783
        %v2962 = vpop.f32.mrb[0].mxu0
        %v2963 = vadd.f32 %v2830, %v2962
        %v2964 = vpop.f32.mrb[0].mxu0
        %v2965 = vpop.f32.mrb[0].mxu0
        %v2966 = vadd.f32 %v2830, %v2965
        %v2967 = vpop.f32.mrb[0].mxu0
        %2968 = vmatprep.mubr.bf16.mxu0 0
        %2969 = vmatmul.mubr.bf16.gmra.mrb[0].mxu0 %v2784
        %v2970 = vpop.f32.mrb[0].mxu0
        %v2971 = vadd.f32 %v2830, %v2970
        %v2972 = vpop.f32.mrb[0].mxu0
        %v2973 = vpop.f32.mrb[0].mxu0
        %v2974 = vadd.f32 %v2830, %v2973
        %v2975 = vpop.f32.mrb[0].mxu0
        %2976 = vmatprep.mubr.bf16.mxu0 0
        %2977 = vmatmul.mubr.bf16.gmra.mrb[0].mxu0 %v2785
        %v2978 = vpop.f32.mrb[0].mxu0
        %v2979 = vadd.f32 %v2830, %v2978
        %v2980 = vpop.f32.mrb[0].mxu0
        %v2981 = vpop.f32.mrb[0].mxu0
        %v2982 = vadd.f32 %v2830, %v2981
        %v2983 = vpop.f32.mrb[0].mxu0
        %2984 = vmatprep.mubr.bf16.mxu0 0
        %2985 = vmatmul.mubr.bf16.gmra.mrb[0].mxu0 %v2786
        %v2986 = vpop.f32.mrb[0].mxu0
        %v2987 = vadd.f32 %v2830, %v2986
        %v2988 = vpop.f32.mrb[0].mxu0
        %v2989 = vpop.f32.mrb[0].mxu0
        %v2990 = vadd.f32 %v2830, %v2989
        %v2991 = vpop.f32.mrb[0].mxu0
        %2992 = vmatprep.mubr.bf16.mxu0 0
        %2993 = vmatmul.mubr.bf16.gmra.mrb[0].mxu0 %v2787
        %v2994 = vpop.f32.mrb[0].mxu0
        %v2995 = vadd.f32 %v2830, %v2994
        %v2996 = vpop.f32.mrb[0].mxu0
        %v2997 = vpop.f32.mrb[0].mxu0
        %v2998 = vadd.f32 %v2830, %v2997
        %v2999 = vpop.f32.mrb[0].mxu0
        %3000 = vmatprep.mubr.bf16.mxu0 0
        %3001 = vmatmul.mubr.bf16.gmra.mrb[0].mxu0 %v2788
        %v3002 = vpop.f32.mrb[0].mxu0
        %v3003 = vadd.f32 %v2830, %v3002
        %v3004 = vpop.f32.mrb[0].mxu0
        %v3005 = vpop.f32.mrb[0].mxu0
        %v3006 = vadd.f32 %v2830, %v3005
        %v3007 = vpop.f32.mrb[0].mxu0
        %3008 = vmatprep.mubr.bf16.mxu0 0
        %3009 = vmatmul.mubr.bf16.gmra.mrb[0].mxu0 %v2789
        %v3010 = vpop.f32.mrb[0].mxu0
        %v3011 = vadd.f32 %v2830, %v3010
        %v3012 = vpop.f32.mrb[0].mxu0
        %v3013 = vpop.f32.mrb[0].mxu0
        %v3014 = vadd.f32 %v2830, %v3013
        %v3015 = vpop.f32.mrb[0].mxu0
        %3016 = vmatprep.mubr.bf16.mxu0 0
        %3017 = vmatmul.mubr.bf16.gmra.mrb[0].mxu0 %v2790
        %v3018 = vpop.f32.mrb[0].mxu0
        %v3019 = vadd.f32 %v2830, %v3018
        %v3020 = vpop.f32.mrb[0].mxu0
        %v3021 = vpop.f32.mrb[0].mxu0
        %v3022 = vadd.f32 %v2830, %v3021
        %v3023 = vpop.f32.mrb[0].mxu0
        %3024 = vmatprep.mubr.bf16.mxu0 0
        %3025 = vmatmul.mubr.bf16.gmra.mrb[0].mxu0 %v2791
        %v3026 = vpop.f32.mrb[0].mxu0
        %v3027 = vadd.f32 %v2830, %v3026
        %v3028 = vpop.f32.mrb[0].mxu0
        %v3029 = vpop.f32.mrb[0].mxu0
        %v3030 = vadd.f32 %v2830, %v3029
        %v3031 = vpop.f32.mrb[0].mxu0
        %3032 = vmatprep.mubr.bf16.mxu0 0
        %3033 = vmatmul.mubr.bf16.gmra.mrb[0].mxu0 %v2792
        %v3034 = vpop.f32.mrb[0].mxu0
        %v3035 = vadd.f32 %v2830, %v3034
        %v3036 = vpop.f32.mrb[0].mxu0
        %v3037 = vpop.f32.mrb[0].mxu0
        %v3038 = vadd.f32 %v2830, %v3037
        %v3039 = vpop.f32.mrb[0].mxu0
        %3040 = vmatprep.mubr.bf16.mxu0 0
        %3041 = vmatmul.mubr.bf16.gmra.mrb[0].mxu0 %v2793
        %v3042 = vpop.f32.mrb[0].mxu0
        %v3043 = vadd.f32 %v2830, %v3042
        %v3044 = vpop.f32.mrb[0].mxu0
        %v3045 = vpop.f32.mrb[0].mxu0
        %v3046 = vadd.f32 %v2830, %v3045
        %v3047 = vpop.f32.mrb[0].mxu0
        %3048 = vmatprep.mubr.bf16.mxu0 0
        %3049 = vmatmul.mubr.bf16.gmra.mrb[0].mxu0 %v2794
        %v3050 = vpop.f32.mrb[0].mxu0
        %v3051 = vadd.f32 %v2830, %v3050
        %v3052 = vpop.f32.mrb[0].mxu0
        %v3053 = vpop.f32.mrb[0].mxu0
        %v3054 = vadd.f32 %v2830, %v3053
        %v3055 = vpop.f32.mrb[0].mxu0
        %3056 = vmatprep.mubr.bf16.mxu0 0
        %3057 = vmatmul.mubr.bf16.gmra.mrb[0].mxu0 %v2795
        %v3058 = vpop.f32.mrb[0].mxu0
        %v3059 = vadd.f32 %v2830, %v3058
        %v3060 = vpop.f32.mrb[0].mxu0
        %v3061 = vpop.f32.mrb[0].mxu0
        %v3062 = vadd.f32 %v2830, %v3061
        %v3063 = vpop.f32.mrb[0].mxu0
        %3064 = vmatprep.mubr.bf16.mxu0 0
        %3065 = vmatmul.mubr.bf16.gmra.mrb[0].mxu0 %v2796
        %v3066 = vpop.f32.mrb[0].mxu0
        %v3067 = vadd.f32 %v2830, %v3066
        %v3068 = vpop.f32.mrb[0].mxu0
        %v3069 = vpop.f32.mrb[0].mxu0
        %v3070 = vadd.f32 %v2830, %v3069
        %v3071 = vpop.f32.mrb[0].mxu0
        %3072 = vmatprep.mubr.bf16.mxu0 0
        %3073 = vmatmul.mubr.bf16.gmra.mrb[0].mxu0 %v2797
        %v3074 = vpop.f32.mrb[0].mxu0
        %v3075 = vadd.f32 %v2830, %v3074
        %v3076 = vpop.f32.mrb[0].mxu0
        %v3077 = vpop.f32.mrb[0].mxu0
        %v3078 = vadd.f32 %v2830, %v3077
        %v3079 = vpop.f32.mrb[0].mxu0
        %3080 = vmatprep.mubr.bf16.mxu0 0
        %3081 = vmatmul.mubr.bf16.gmra.mrb[0].mxu0 %v2798
        %v3082 = vpop.f32.mrb[0].mxu0
        %v3083 = vadd.f32 %v2830, %v3082
        %v3084 = vpop.f32.mrb[0].mxu0
        %v3085 = vpop.f32.mrb[0].mxu0
        %v3086 = vadd.f32 %v2830, %v3085
        %v3087 = vpop.f32.mrb[0].mxu0
        %3088 = vmatprep.mubr.bf16.mxu0 0
        %3089 = vmatmul.mubr.bf16.gmra.mrb[0].mxu0 %v2799
        %v3090 = vpop.f32.mrb[0].mxu0
        %v3091 = vadd.f32 %v2830, %v3090
        %v3092 = vpop.f32.mrb[0].mxu0
        %v3093 = vpop.f32.mrb[0].mxu0
        %v3094 = vadd.f32 %v2830, %v3093
        %v3095 = vpop.f32.mrb[0].mxu0
        %3096 = vmatprep.mubr.bf16.mxu0 0
        %3097 = vmatmul.mubr.bf16.gmra.mrb[0].mxu0 %v2800
        %v3098 = vpop.f32.mrb[0].mxu0
        %v3099 = vadd.f32 %v2830, %v3098
        %v3100 = vpop.f32.mrb[0].mxu0
        %v3101 = vpop.f32.mrb[0].mxu0
        %v3102 = vadd.f32 %v2830, %v3101
        %v3103 = vpop.f32.mrb[0].mxu0
        %3104 = vmatprep.mubr.bf16.mxu0 0
        %3105 = vmatmul.mubr.bf16.gmra.mrb[0].mxu0 %v2801
        %v3106 = vpop.f32.mrb[0].mxu0
        %v3107 = vadd.f32 %v2830, %v3106
        %v3108 = vpop.f32.mrb[0].mxu0
        %v3109 = vpop.f32.mrb[0].mxu0
        %v3110 = vadd.f32 %v2830, %v3109
        %v3111 = vpop.f32.mrb[0].mxu0
        %3112 = vmatprep.mubr.bf16.mxu0 0
        %3113 = vmatmul.mubr.bf16.gmra.mrb[0].mxu0 %v2802
        %v3114 = vpop.f32.mrb[0].mxu0
        %v3115 = vadd.f32 %v2830, %v3114
        %v3116 = vpop.f32.mrb[0].mxu0
        %v3117 = vpop.f32.mrb[0].mxu0
        %v3118 = vadd.f32 %v2830, %v3117
        %v3119 = vpop.f32.mrb[0].mxu0
        %3120 = vmatprep.mubr.bf16.mxu0 0
        %3121 = vmatmul.mubr.bf16.gmra.mrb[0].mxu0 %v2803
        %v3122 = vpop.f32.mrb[0].mxu0
        %v3123 = vadd.f32 %v2830, %v3122
        %v3124 = vpop.f32.mrb[0].mxu0
        %v3125 = vpop.f32.mrb[0].mxu0
        %v3126 = vadd.f32 %v2830, %v3125
        %v3127 = vpop.f32.mrb[0].mxu0
        %3128 = vmatprep.mubr.bf16.mxu0 0
        %3129 = vmatmul.mubr.bf16.gmra.mrb[0].mxu0 %v2804
        %v3130 = vpop.f32.mrb[0].mxu0
        %v3131 = vadd.f32 %v2830, %v3130
        %v3132 = vpop.f32.mrb[0].mxu0
        %v3133 = vpop.f32.mrb[0].mxu0
        %v3134 = vadd.f32 %v2830, %v3133
        %v3135 = vpop.f32.mrb[0].mxu0
        %3136 = vmatprep.mubr.bf16.mxu0 0
        %3137 = vmatmul.mubr.bf16.gmra.mrb[0].mxu0 %v2805
        %v3138 = vpop.f32.mrb[0].mxu0
        %v3139 = vadd.f32 %v2830, %v3138
        %v3140 = vpop.f32.mrb[0].mxu0
        %v3141 = vpop.f32.mrb[0].mxu0
        %v3142 = vadd.f32 %v2830, %v3141
        %v3143 = vpop.f32.mrb[0].mxu0
        %3144 = vmatprep.mubr.bf16.mxu0 0
        %3145 = vmatmul.mubr.bf16.gmra.mrb[0].mxu0 %v2806
        %v3146 = vpop.f32.mrb[0].mxu0
        %v3147 = vadd.f32 %v2830, %v3146
        %v3148 = vpop.f32.mrb[0].mxu0
        %v3149 = vpop.f32.mrb[0].mxu0
        %v3150 = vadd.f32 %v2830, %v3149
        %v3151 = vpop.f32.mrb[0].mxu0
        %3152 = vmatprep.mubr.bf16.mxu0 0
        %3153 = vmatmul.mubr.bf16.gmra.mrb[0].mxu0 %v2807
        %v3154 = vpop.f32.mrb[0].mxu0
        %v3155 = vadd.f32 %v2830, %v3154
        %v3156 = vpop.f32.mrb[0].mxu0
        %v3157 = vpop.f32.mrb[0].mxu0
        %v3158 = vadd.f32 %v2830, %v3157
        %v3159 = vpop.f32.mrb[0].mxu0
        %3160 = vmatprep.mubr.bf16.mxu0 0
        %3161 = vmatmul.mubr.bf16.gmra.mrb[0].mxu0 %v2808
        %v3162 = vpop.f32.mrb[0].mxu0
        %v3163 = vadd.f32 %v2830, %v3162
        %v3164 = vpop.f32.mrb[0].mxu0
        %v3165 = vpop.f32.mrb[0].mxu0
        %v3166 = vadd.f32 %v2830, %v3165
        %v3167 = vpop.f32.mrb[0].mxu0
        %3168 = vdwg.mxu0
        %v3169 = vmax.f32 %v2915, 0.0
        %v3170 = vmax.f32 %v2918, 0.0
        %v3171 = vmax.f32 %v2923, 0.0
        %v3172 = vmax.f32 %v2926, 0.0
        %v3173 = vmax.f32 %v2931, 0.0
        %v3174 = vmax.f32 %v2934, 0.0
        %v3175 = vmax.f32 %v2939, 0.0
        %v3176 = vmax.f32 %v2942, 0.0
        %v3177 = vmax.f32 %v2947, 0.0
        %v3178 = vmax.f32 %v2950, 0.0
        %v3179 = vmax.f32 %v2955, 0.0
        %v3180 = vmax.f32 %v2958, 0.0
        %v3181 = vmax.f32 %v2963, 0.0
        %v3182 = vmax.f32 %v2966, 0.0
        %v3183 = vmax.f32 %v2971, 0.0
        %v3184 = vmax.f32 %v2974, 0.0
        %v3185 = vmax.f32 %v2979, 0.0
        %v3186 = vmax.f32 %v2982, 0.0
        %v3187 = vmax.f32 %v2987, 0.0
        %v3188 = vmax.f32 %v2990, 0.0
        %v3189 = vmax.f32 %v2995, 0.0
        %v3190 = vmax.f32 %v2998, 0.0
        %v3191 = vmax.f32 %v3003, 0.0
        %v3192 = vmax.f32 %v3006, 0.0
        %v3193 = vmax.f32 %v3011, 0.0
        %v3194 = vmax.f32 %v3014, 0.0
        %v3195 = vmax.f32 %v3019, 0.0
        %v3196 = vmax.f32 %v3022, 0.0
        %v3197 = vmax.f32 %v3027, 0.0
        %v3198 = vmax.f32 %v3030, 0.0
        %v3199 = vmax.f32 %v3035, 0.0
        %v3200 = vmax.f32 %v3038, 0.0
        %v3201 = vmax.f32 %v3043, 0.0
        %v3202 = vmax.f32 %v3046, 0.0
        %v3203 = vmax.f32 %v3051, 0.0
        %v3204 = vmax.f32 %v3054, 0.0
        %v3205 = vmax.f32 %v3059, 0.0
        %v3206 = vmax.f32 %v3062, 0.0
        %v3207 = vmax.f32 %v3067, 0.0
        %v3208 = vmax.f32 %v3070, 0.0
        %v3209 = vmax.f32 %v3075, 0.0
        %v3210 = vmax.f32 %v3078, 0.0
        %v3211 = vmax.f32 %v3083, 0.0
        %v3212 = vmax.f32 %v3086, 0.0
        %v3213 = vmax.f32 %v3091, 0.0
        %v3214 = vmax.f32 %v3094, 0.0
        %v3215 = vmax.f32 %v3099, 0.0
        %v3216 = vmax.f32 %v3102, 0.0
        %v3217 = vmax.f32 %v3107, 0.0
        %v3218 = vmax.f32 %v3110, 0.0
        %v3219 = vmax.f32 %v3115, 0.0
        %v3220 = vmax.f32 %v3118, 0.0
        %v3221 = vmax.f32 %v3123, 0.0
        %v3222 = vmax.f32 %v3126, 0.0
        %v3223 = vmax.f32 %v3131, 0.0
        %v3224 = vmax.f32 %v3134, 0.0
        %v3225 = vmax.f32 %v3139, 0.0
        %v3226 = vmax.f32 %v3142, 0.0
        %v3227 = vmax.f32 %v3147, 0.0
        %v3228 = vmax.f32 %v3150, 0.0
        %v3229 = vmax.f32 %v3155, 0.0
        %v3230 = vmax.f32 %v3158, 0.0
        %v3231 = vmax.f32 %v3163, 0.0
        %v3232 = vmax.f32 %v3166, 0.0
        %v3233 = vpack.c.bf16 %v3170, %v3169
        %v3234 = vpack.c.bf16 %v3172, %v3171
        %v3235 = vpack.c.bf16 %v3174, %v3173
        %v3236 = vpack.c.bf16 %v3176, %v3175
        %v3237 = vpack.c.bf16 %v3178, %v3177
        %v3238 = vpack.c.bf16 %v3180, %v3179
        %v3239 = vpack.c.bf16 %v3182, %v3181
        %v3240 = vpack.c.bf16 %v3184, %v3183
        %v3241 = vpack.c.bf16 %v3186, %v3185
        %v3242 = vpack.c.bf16 %v3188, %v3187
        %v3243 = vpack.c.bf16 %v3190, %v3189
        %v3244 = vpack.c.bf16 %v3192, %v3191
        %v3245 = vpack.c.bf16 %v3194, %v3193
        %v3246 = vpack.c.bf16 %v3196, %v3195
        %v3247 = vpack.c.bf16 %v3198, %v3197
        %v3248 = vpack.c.bf16 %v3200, %v3199
        %v3249 = vpack.c.bf16 %v3202, %v3201
        %v3250 = vpack.c.bf16 %v3204, %v3203
        %v3251 = vpack.c.bf16 %v3206, %v3205
        %v3252 = vpack.c.bf16 %v3208, %v3207
        %v3253 = vpack.c.bf16 %v3210, %v3209
        %v3254 = vpack.c.bf16 %v3212, %v3211
        %v3255 = vpack.c.bf16 %v3214, %v3213
        %v3256 = vpack.c.bf16 %v3216, %v3215
        %v3257 = vpack.c.bf16 %v3218, %v3217
        %v3258 = vpack.c.bf16 %v3220, %v3219
        %v3259 = vpack.c.bf16 %v3222, %v3221
        %v3260 = vpack.c.bf16 %v3224, %v3223
        %v3261 = vpack.c.bf16 %v3226, %v3225
        %v3262 = vpack.c.bf16 %v3228, %v3227
        %v3263 = vpack.c.bf16 %v3230, %v3229
        %v3264 = vpack.c.bf16 %v3232, %v3231
        %v3265 = vld [vmem:[%s5] sm:$0xf]
        %v3266 = vld [vmem:[%s5 + $0x4] sm:$0xf]
        %v3267 = vld [vmem:[%s5 + $0x8] sm:$0xf]
        %v3268 = vld [vmem:[%s5 + $0xc] sm:$0xf]
        %v3269 = vld [vmem:[%s5 + $0x10] sm:$0xf]
        %v3270 = vld [vmem:[%s5 + $0x14] sm:$0xf]
        %v3271 = vld [vmem:[%s5 + $0x18] sm:$0xf]
        %v3272 = vld [vmem:[%s5 + $0x1c] sm:$0xf]
        %v3273 = vld [vmem:[%s6] sm:$0x1]
        %v3275 = vlaneseq
        %v3276 = vshrl.u32 %v3275, 7
        %v3277 = vsub.s32 0, %v3276
        %v3278 = vrot.slane %v3273, %v3277
        %v3288 = vunpack.c.l.b16 %v3265
        %v3289 = vunpack.c.l.b16 %v3266
        %v3290 = vunpack.c.l.b16 %v3267
        %v3291 = vunpack.c.l.b16 %v3268
        %v3292 = vunpack.c.l.b16 %v3269
        %v3293 = vunpack.c.l.b16 %v3270
        %v3294 = vunpack.c.l.b16 %v3271
        %v3295 = vunpack.c.l.b16 %v3272
        %v3296 = vpack.c.b16 %v3289, %v3288
        %v3297 = vpack.c.b16 %v3291, %v3290
        %v3298 = vpack.c.b16 %v3293, %v3292
        %v3299 = vpack.c.b16 %v3295, %v3294
        %v3305 = vsel %vm1460, %v3233, 0
        %v3308 = vsel %vm1460, %v3234, 0
        %v3311 = vsel %vm1460, %v3235, 0
        %v3314 = vsel %vm1460, %v3236, 0
        %v3317 = vsel %vm1460, %v3237, 0
        %v3320 = vsel %vm1460, %v3238, 0
        %v3323 = vsel %vm1460, %v3239, 0
        %v3326 = vsel %vm1460, %v3240, 0
        %v3329 = vsel %vm1460, %v3241, 0
        %v3332 = vsel %vm1460, %v3242, 0
        %v3335 = vsel %vm1460, %v3243, 0
        %v3338 = vsel %vm1460, %v3244, 0
        %v3341 = vsel %vm1460, %v3245, 0
        %v3344 = vsel %vm1460, %v3246, 0
        %v3347 = vsel %vm1460, %v3247, 0
        %v3350 = vsel %vm1460, %v3248, 0
        %v3353 = vsel %vm1460, %v3249, 0
        %v3356 = vsel %vm1460, %v3250, 0
        %v3359 = vsel %vm1460, %v3251, 0
        %v3362 = vsel %vm1460, %v3252, 0
        %v3365 = vsel %vm1460, %v3253, 0
        %v3368 = vsel %vm1460, %v3254, 0
        %v3371 = vsel %vm1460, %v3255, 0
        %v3374 = vsel %vm1460, %v3256, 0
        %v3377 = vsel %vm1460, %v3257, 0
        %v3380 = vsel %vm1460, %v3258, 0
        %v3383 = vsel %vm1460, %v3259, 0
        %v3386 = vsel %vm1460, %v3260, 0
        %v3389 = vsel %vm1460, %v3261, 0
        %v3392 = vsel %vm1460, %v3262, 0
        %v3395 = vsel %vm1460, %v3263, 0
        %v3398 = vsel %vm1460, %v3264, 0
        %3400 = vmatprep.subr.bf16.mxu0 0
        %3401 = vmatpush1.bf16.msra.mxu0 %v3296
        %3402 = vmatprep.subr.bf16.mxu0 0
        %3403 = vmatpush1.bf16.msra.mxu0 %v3297
        %3404 = vmatprep.subr.bf16.mxu0 0
        %3405 = vmatpush1.bf16.msra.mxu0 %v3298
        %3406 = vmatprep.subr.bf16.mxu0 0
        %3407 = vmatpush1.bf16.msra.mxu0 %v3299
        %3408 = vmatprep.subr.bf16.mxu0 0
        %3409 = vmatpush1.bf16.msra.mxu0 0
        %3410 = vmatprep.subr.bf16.mxu0 0
        %3411 = vmatpush1.bf16.msra.mxu0 0
        %3412 = vmatprep.subr.bf16.mxu0 0
        %3413 = vmatpush1.bf16.msra.mxu0 0
        %3414 = vmatprep.subr.bf16.mxu0 0
        %3415 = vmatpush1.bf16.msra.mxu0 0
        %3416 = vmatprep.subr.bf16.mxu0 0
        %3417 = vmatpush1.bf16.msra.mxu0 0
        %3418 = vmatprep.subr.bf16.mxu0 0
        %3419 = vmatpush1.bf16.msra.mxu0 0
        %3420 = vmatprep.subr.bf16.mxu0 0
        %3421 = vmatpush1.bf16.msra.mxu0 0
        %3422 = vmatprep.subr.bf16.mxu0 0
        %3423 = vmatpush1.bf16.msra.mxu0 0
        %3424 = vmatprep.subr.bf16.mxu0 0
        %3425 = vmatpush1.bf16.msra.mxu0 0
        %3426 = vmatprep.subr.bf16.mxu0 0
        %3427 = vmatpush1.bf16.msra.mxu0 0
        %3428 = vmatprep.subr.bf16.mxu0 0
        %3429 = vmatpush1.bf16.msra.mxu0 0
        %3430 = vmatprep.subr.bf16.mxu0 0
        %3431 = vmatpush1.bf16.msra.mxu0 0
        %3432 = vmatprep.mubr.bf16.mxu0 0
        %3433 = vmatmul.mubr.bf16.gmra.mrb[0].mxu0 %v3305
        %v3434 = vpop.f32.mrb[0].mxu0
        %v3435 = vadd.f32 %v3278, %v3434
        %v3436 = vpop.f32.mrb[0].mxu0
        %v3437 = vpop.f32.mrb[0].mxu0
        %v3438 = vadd.f32 %v3278, %v3437
        %v3439 = vpop.f32.mrb[0].mxu0
        %3440 = vmatprep.mubr.bf16.mxu0 0
        %3441 = vmatmul.mubr.bf16.gmra.mrb[0].mxu0 %v3308
        %v3442 = vpop.f32.mrb[0].mxu0
        %v3443 = vadd.f32 %v3278, %v3442
        %v3444 = vpop.f32.mrb[0].mxu0
        %v3445 = vpop.f32.mrb[0].mxu0
        %v3446 = vadd.f32 %v3278, %v3445
        %v3447 = vpop.f32.mrb[0].mxu0
        %3448 = vmatprep.mubr.bf16.mxu0 0
        %3449 = vmatmul.mubr.bf16.gmra.mrb[0].mxu0 %v3311
        %v3450 = vpop.f32.mrb[0].mxu0
        %v3451 = vadd.f32 %v3278, %v3450
        %v3452 = vpop.f32.mrb[0].mxu0
        %v3453 = vpop.f32.mrb[0].mxu0
        %v3454 = vadd.f32 %v3278, %v3453
        %v3455 = vpop.f32.mrb[0].mxu0
        %3456 = vmatprep.mubr.bf16.mxu0 0
        %3457 = vmatmul.mubr.bf16.gmra.mrb[0].mxu0 %v3314
        %v3458 = vpop.f32.mrb[0].mxu0
        %v3459 = vadd.f32 %v3278, %v3458
        %v3460 = vpop.f32.mrb[0].mxu0
        %v3461 = vpop.f32.mrb[0].mxu0
        %v3462 = vadd.f32 %v3278, %v3461
        %v3463 = vpop.f32.mrb[0].mxu0
        %3464 = vmatprep.mubr.bf16.mxu0 0
        %3465 = vmatmul.mubr.bf16.gmra.mrb[0].mxu0 %v3317
        %v3466 = vpop.f32.mrb[0].mxu0
        %v3467 = vadd.f32 %v3278, %v3466
        %v3468 = vpop.f32.mrb[0].mxu0
        %v3469 = vpop.f32.mrb[0].mxu0
        %v3470 = vadd.f32 %v3278, %v3469
        %v3471 = vpop.f32.mrb[0].mxu0
        %3472 = vmatprep.mubr.bf16.mxu0 0
        %3473 = vmatmul.mubr.bf16.gmra.mrb[0].mxu0 %v3320
        %v3474 = vpop.f32.mrb[0].mxu0
        %v3475 = vadd.f32 %v3278, %v3474
        %v3476 = vpop.f32.mrb[0].mxu0
        %v3477 = vpop.f32.mrb[0].mxu0
        %v3478 = vadd.f32 %v3278, %v3477
        %v3479 = vpop.f32.mrb[0].mxu0
        %3480 = vmatprep.mubr.bf16.mxu0 0
        %3481 = vmatmul.mubr.bf16.gmra.mrb[0].mxu0 %v3323
        %v3482 = vpop.f32.mrb[0].mxu0
        %v3483 = vadd.f32 %v3278, %v3482
        %v3484 = vpop.f32.mrb[0].mxu0
        %v3485 = vpop.f32.mrb[0].mxu0
        %v3486 = vadd.f32 %v3278, %v3485
        %v3487 = vpop.f32.mrb[0].mxu0
        %3488 = vmatprep.mubr.bf16.mxu0 0
        %3489 = vmatmul.mubr.bf16.gmra.mrb[0].mxu0 %v3326
        %v3490 = vpop.f32.mrb[0].mxu0
        %v3491 = vadd.f32 %v3278, %v3490
        %v3492 = vpop.f32.mrb[0].mxu0
        %v3493 = vpop.f32.mrb[0].mxu0
        %v3494 = vadd.f32 %v3278, %v3493
        %v3495 = vpop.f32.mrb[0].mxu0
        %3496 = vmatprep.mubr.bf16.mxu0 0
        %3497 = vmatmul.mubr.bf16.gmra.mrb[0].mxu0 %v3329
        %v3498 = vpop.f32.mrb[0].mxu0
        %v3499 = vadd.f32 %v3278, %v3498
        %v3500 = vpop.f32.mrb[0].mxu0
        %v3501 = vpop.f32.mrb[0].mxu0
        %v3502 = vadd.f32 %v3278, %v3501
        %v3503 = vpop.f32.mrb[0].mxu0
        %3504 = vmatprep.mubr.bf16.mxu0 0
        %3505 = vmatmul.mubr.bf16.gmra.mrb[0].mxu0 %v3332
        %v3506 = vpop.f32.mrb[0].mxu0
        %v3507 = vadd.f32 %v3278, %v3506
        %v3508 = vpop.f32.mrb[0].mxu0
        %v3509 = vpop.f32.mrb[0].mxu0
        %v3510 = vadd.f32 %v3278, %v3509
        %v3511 = vpop.f32.mrb[0].mxu0
        %3512 = vmatprep.mubr.bf16.mxu0 0
        %3513 = vmatmul.mubr.bf16.gmra.mrb[0].mxu0 %v3335
        %v3514 = vpop.f32.mrb[0].mxu0
        %v3515 = vadd.f32 %v3278, %v3514
        %v3516 = vpop.f32.mrb[0].mxu0
        %v3517 = vpop.f32.mrb[0].mxu0
        %v3518 = vadd.f32 %v3278, %v3517
        %v3519 = vpop.f32.mrb[0].mxu0
        %3520 = vmatprep.mubr.bf16.mxu0 0
        %3521 = vmatmul.mubr.bf16.gmra.mrb[0].mxu0 %v3338
        %v3522 = vpop.f32.mrb[0].mxu0
        %v3523 = vadd.f32 %v3278, %v3522
        %v3524 = vpop.f32.mrb[0].mxu0
        %v3525 = vpop.f32.mrb[0].mxu0
        %v3526 = vadd.f32 %v3278, %v3525
        %v3527 = vpop.f32.mrb[0].mxu0
        %3528 = vmatprep.mubr.bf16.mxu0 0
        %3529 = vmatmul.mubr.bf16.gmra.mrb[0].mxu0 %v3341
        %v3530 = vpop.f32.mrb[0].mxu0
        %v3531 = vadd.f32 %v3278, %v3530
        %v3532 = vpop.f32.mrb[0].mxu0
        %v3533 = vpop.f32.mrb[0].mxu0
        %v3534 = vadd.f32 %v3278, %v3533
        %v3535 = vpop.f32.mrb[0].mxu0
        %3536 = vmatprep.mubr.bf16.mxu0 0
        %3537 = vmatmul.mubr.bf16.gmra.mrb[0].mxu0 %v3344
        %v3538 = vpop.f32.mrb[0].mxu0
        %v3539 = vadd.f32 %v3278, %v3538
        %v3540 = vpop.f32.mrb[0].mxu0
        %v3541 = vpop.f32.mrb[0].mxu0
        %v3542 = vadd.f32 %v3278, %v3541
        %v3543 = vpop.f32.mrb[0].mxu0
        %3544 = vmatprep.mubr.bf16.mxu0 0
        %3545 = vmatmul.mubr.bf16.gmra.mrb[0].mxu0 %v3347
        %v3546 = vpop.f32.mrb[0].mxu0
        %v3547 = vadd.f32 %v3278, %v3546
        %v3548 = vpop.f32.mrb[0].mxu0
        %v3549 = vpop.f32.mrb[0].mxu0
        %v3550 = vadd.f32 %v3278, %v3549
        %v3551 = vpop.f32.mrb[0].mxu0
        %3552 = vmatprep.mubr.bf16.mxu0 0
        %3553 = vmatmul.mubr.bf16.gmra.mrb[0].mxu0 %v3350
        %v3554 = vpop.f32.mrb[0].mxu0
        %v3555 = vadd.f32 %v3278, %v3554
        %v3556 = vpop.f32.mrb[0].mxu0
        %v3557 = vpop.f32.mrb[0].mxu0
        %v3558 = vadd.f32 %v3278, %v3557
        %v3559 = vpop.f32.mrb[0].mxu0
        %3560 = vmatprep.mubr.bf16.mxu0 0
        %3561 = vmatmul.mubr.bf16.gmra.mrb[0].mxu0 %v3353
        %v3562 = vpop.f32.mrb[0].mxu0
        %v3563 = vadd.f32 %v3278, %v3562
        %v3564 = vpop.f32.mrb[0].mxu0
        %v3565 = vpop.f32.mrb[0].mxu0
        %v3566 = vadd.f32 %v3278, %v3565
        %v3567 = vpop.f32.mrb[0].mxu0
        %3568 = vmatprep.mubr.bf16.mxu0 0
        %3569 = vmatmul.mubr.bf16.gmra.mrb[0].mxu0 %v3356
        %v3570 = vpop.f32.mrb[0].mxu0
        %v3571 = vadd.f32 %v3278, %v3570
        %v3572 = vpop.f32.mrb[0].mxu0
        %v3573 = vpop.f32.mrb[0].mxu0
        %v3574 = vadd.f32 %v3278, %v3573
        %v3575 = vpop.f32.mrb[0].mxu0
        %3576 = vmatprep.mubr.bf16.mxu0 0
        %3577 = vmatmul.mubr.bf16.gmra.mrb[0].mxu0 %v3359
        %v3578 = vpop.f32.mrb[0].mxu0
        %v3579 = vadd.f32 %v3278, %v3578
        %v3580 = vpop.f32.mrb[0].mxu0
        %v3581 = vpop.f32.mrb[0].mxu0
        %v3582 = vadd.f32 %v3278, %v3581
        %v3583 = vpop.f32.mrb[0].mxu0
        %3584 = vmatprep.mubr.bf16.mxu0 0
        %3585 = vmatmul.mubr.bf16.gmra.mrb[0].mxu0 %v3362
        %v3586 = vpop.f32.mrb[0].mxu0
        %v3587 = vadd.f32 %v3278, %v3586
        %v3588 = vpop.f32.mrb[0].mxu0
        %v3589 = vpop.f32.mrb[0].mxu0
        %v3590 = vadd.f32 %v3278, %v3589
        %v3591 = vpop.f32.mrb[0].mxu0
        %3592 = vmatprep.mubr.bf16.mxu0 0
        %3593 = vmatmul.mubr.bf16.gmra.mrb[0].mxu0 %v3365
        %v3594 = vpop.f32.mrb[0].mxu0
        %v3595 = vadd.f32 %v3278, %v3594
        %v3596 = vpop.f32.mrb[0].mxu0
        %v3597 = vpop.f32.mrb[0].mxu0
        %v3598 = vadd.f32 %v3278, %v3597
        %v3599 = vpop.f32.mrb[0].mxu0
        %3600 = vmatprep.mubr.bf16.mxu0 0
        %3601 = vmatmul.mubr.bf16.gmra.mrb[0].mxu0 %v3368
        %v3602 = vpop.f32.mrb[0].mxu0
        %v3603 = vadd.f32 %v3278, %v3602
        %v3604 = vpop.f32.mrb[0].mxu0
        %v3605 = vpop.f32.mrb[0].mxu0
        %v3606 = vadd.f32 %v3278, %v3605
        %v3607 = vpop.f32.mrb[0].mxu0
        %3608 = vmatprep.mubr.bf16.mxu0 0
        %3609 = vmatmul.mubr.bf16.gmra.mrb[0].mxu0 %v3371
        %v3610 = vpop.f32.mrb[0].mxu0
        %v3611 = vadd.f32 %v3278, %v3610
        %v3612 = vpop.f32.mrb[0].mxu0
        %v3613 = vpop.f32.mrb[0].mxu0
        %v3614 = vadd.f32 %v3278, %v3613
        %v3615 = vpop.f32.mrb[0].mxu0
        %3616 = vmatprep.mubr.bf16.mxu0 0
        %3617 = vmatmul.mubr.bf16.gmra.mrb[0].mxu0 %v3374
        %v3618 = vpop.f32.mrb[0].mxu0
        %v3619 = vadd.f32 %v3278, %v3618
        %v3620 = vpop.f32.mrb[0].mxu0
        %v3621 = vpop.f32.mrb[0].mxu0
        %v3622 = vadd.f32 %v3278, %v3621
        %v3623 = vpop.f32.mrb[0].mxu0
        %3624 = vmatprep.mubr.bf16.mxu0 0
        %3625 = vmatmul.mubr.bf16.gmra.mrb[0].mxu0 %v3377
        %v3626 = vpop.f32.mrb[0].mxu0
        %v3627 = vadd.f32 %v3278, %v3626
        %v3628 = vpop.f32.mrb[0].mxu0
        %v3629 = vpop.f32.mrb[0].mxu0
        %v3630 = vadd.f32 %v3278, %v3629
        %v3631 = vpop.f32.mrb[0].mxu0
        %3632 = vmatprep.mubr.bf16.mxu0 0
        %3633 = vmatmul.mubr.bf16.gmra.mrb[0].mxu0 %v3380
        %v3634 = vpop.f32.mrb[0].mxu0
        %v3635 = vadd.f32 %v3278, %v3634
        %v3636 = vpop.f32.mrb[0].mxu0
        %v3637 = vpop.f32.mrb[0].mxu0
        %v3638 = vadd.f32 %v3278, %v3637
        %v3639 = vpop.f32.mrb[0].mxu0
        %3640 = vmatprep.mubr.bf16.mxu0 0
        %3641 = vmatmul.mubr.bf16.gmra.mrb[0].mxu0 %v3383
        %v3642 = vpop.f32.mrb[0].mxu0
        %v3643 = vadd.f32 %v3278, %v3642
        %v3644 = vpop.f32.mrb[0].mxu0
        %v3645 = vpop.f32.mrb[0].mxu0
        %v3646 = vadd.f32 %v3278, %v3645
        %v3647 = vpop.f32.mrb[0].mxu0
        %3648 = vmatprep.mubr.bf16.mxu0 0
        %3649 = vmatmul.mubr.bf16.gmra.mrb[0].mxu0 %v3386
        %v3650 = vpop.f32.mrb[0].mxu0
        %v3651 = vadd.f32 %v3278, %v3650
        %v3652 = vpop.f32.mrb[0].mxu0
        %v3653 = vpop.f32.mrb[0].mxu0
        %v3654 = vadd.f32 %v3278, %v3653
        %v3655 = vpop.f32.mrb[0].mxu0
        %3656 = vmatprep.mubr.bf16.mxu0 0
        %3657 = vmatmul.mubr.bf16.gmra.mrb[0].mxu0 %v3389
        %v3658 = vpop.f32.mrb[0].mxu0
        %v3659 = vadd.f32 %v3278, %v3658
        %v3660 = vpop.f32.mrb[0].mxu0
        %v3661 = vpop.f32.mrb[0].mxu0
        %v3662 = vadd.f32 %v3278, %v3661
        %v3663 = vpop.f32.mrb[0].mxu0
        %3664 = vmatprep.mubr.bf16.mxu0 0
        %3665 = vmatmul.mubr.bf16.gmra.mrb[0].mxu0 %v3392
        %v3666 = vpop.f32.mrb[0].mxu0
        %v3667 = vadd.f32 %v3278, %v3666
        %v3668 = vpop.f32.mrb[0].mxu0
        %v3669 = vpop.f32.mrb[0].mxu0
        %v3670 = vadd.f32 %v3278, %v3669
        %v3671 = vpop.f32.mrb[0].mxu0
        %3672 = vmatprep.mubr.bf16.mxu0 0
        %3673 = vmatmul.mubr.bf16.gmra.mrb[0].mxu0 %v3395
        %v3674 = vpop.f32.mrb[0].mxu0
        %v3675 = vadd.f32 %v3278, %v3674
        %v3676 = vpop.f32.mrb[0].mxu0
        %v3677 = vpop.f32.mrb[0].mxu0
        %v3678 = vadd.f32 %v3278, %v3677
        %v3679 = vpop.f32.mrb[0].mxu0
        %3680 = vmatprep.mubr.bf16.mxu0 0
        %3681 = vmatmul.mubr.bf16.gmra.mrb[0].mxu0 %v3398
        %v3682 = vpop.f32.mrb[0].mxu0
        %v3683 = vadd.f32 %v3278, %v3682
        %v3684 = vpop.f32.mrb[0].mxu0
        %v3685 = vpop.f32.mrb[0].mxu0
        %v3686 = vadd.f32 %v3278, %v3685
        %v3687 = vpop.f32.mrb[0].mxu0
        %3688 = vdwg.mxu0
        %v3689 = vmax.f32 %v3435, 0.0
        %v3690 = vmax.f32 %v3438, 0.0
        %v3691 = vmax.f32 %v3443, 0.0
        %v3692 = vmax.f32 %v3446, 0.0
        %v3693 = vmax.f32 %v3451, 0.0
        %v3694 = vmax.f32 %v3454, 0.0
        %v3695 = vmax.f32 %v3459, 0.0
        %v3696 = vmax.f32 %v3462, 0.0
        %v3697 = vmax.f32 %v3467, 0.0
        %v3698 = vmax.f32 %v3470, 0.0
        %v3699 = vmax.f32 %v3475, 0.0
        %v3700 = vmax.f32 %v3478, 0.0
        %v3701 = vmax.f32 %v3483, 0.0
        %v3702 = vmax.f32 %v3486, 0.0
        %v3703 = vmax.f32 %v3491, 0.0
        %v3704 = vmax.f32 %v3494, 0.0
        %v3705 = vmax.f32 %v3499, 0.0
        %v3706 = vmax.f32 %v3502, 0.0
        %v3707 = vmax.f32 %v3507, 0.0
        %v3708 = vmax.f32 %v3510, 0.0
        %v3709 = vmax.f32 %v3515, 0.0
        %v3710 = vmax.f32 %v3518, 0.0
        %v3711 = vmax.f32 %v3523, 0.0
        %v3712 = vmax.f32 %v3526, 0.0
        %v3713 = vmax.f32 %v3531, 0.0
        %v3714 = vmax.f32 %v3534, 0.0
        %v3715 = vmax.f32 %v3539, 0.0
        %v3716 = vmax.f32 %v3542, 0.0
        %v3717 = vmax.f32 %v3547, 0.0
        %v3718 = vmax.f32 %v3550, 0.0
        %v3719 = vmax.f32 %v3555, 0.0
        %v3720 = vmax.f32 %v3558, 0.0
        %v3721 = vmax.f32 %v3563, 0.0
        %v3722 = vmax.f32 %v3566, 0.0
        %v3723 = vmax.f32 %v3571, 0.0
        %v3724 = vmax.f32 %v3574, 0.0
        %v3725 = vmax.f32 %v3579, 0.0
        %v3726 = vmax.f32 %v3582, 0.0
        %v3727 = vmax.f32 %v3587, 0.0
        %v3728 = vmax.f32 %v3590, 0.0
        %v3729 = vmax.f32 %v3595, 0.0
        %v3730 = vmax.f32 %v3598, 0.0
        %v3731 = vmax.f32 %v3603, 0.0
        %v3732 = vmax.f32 %v3606, 0.0
        %v3733 = vmax.f32 %v3611, 0.0
        %v3734 = vmax.f32 %v3614, 0.0
        %v3735 = vmax.f32 %v3619, 0.0
        %v3736 = vmax.f32 %v3622, 0.0
        %v3737 = vmax.f32 %v3627, 0.0
        %v3738 = vmax.f32 %v3630, 0.0
        %v3739 = vmax.f32 %v3635, 0.0
        %v3740 = vmax.f32 %v3638, 0.0
        %v3741 = vmax.f32 %v3643, 0.0
        %v3742 = vmax.f32 %v3646, 0.0
        %v3743 = vmax.f32 %v3651, 0.0
        %v3744 = vmax.f32 %v3654, 0.0
        %v3745 = vmax.f32 %v3659, 0.0
        %v3746 = vmax.f32 %v3662, 0.0
        %v3747 = vmax.f32 %v3667, 0.0
        %v3748 = vmax.f32 %v3670, 0.0
        %v3749 = vmax.f32 %v3675, 0.0
        %v3750 = vmax.f32 %v3678, 0.0
        %v3751 = vmax.f32 %v3683, 0.0
        %v3752 = vmax.f32 %v3686, 0.0
        %v3753 = vld [vmem:[%s7] sm:$0x1]
        %v3755 = vlaneseq
        %v3756 = vshrl.u32 %v3755, 7
        %v3757 = vsub.s32 0, %v3756
        %v3758 = vrot.slane %v3753, %v3757
        %v3760 = vmul.f32 %v3689, %v3758
        %v3761 = vmul.f32 %v3690, %v3758
        %v3762 = vmul.f32 %v3691, %v3758
        %v3763 = vmul.f32 %v3692, %v3758
        %v3764 = vmul.f32 %v3693, %v3758
        %v3765 = vmul.f32 %v3694, %v3758
        %v3766 = vmul.f32 %v3695, %v3758
        %v3767 = vmul.f32 %v3696, %v3758
        %v3768 = vmul.f32 %v3697, %v3758
        %v3769 = vmul.f32 %v3698, %v3758
        %v3770 = vmul.f32 %v3699, %v3758
        %v3771 = vmul.f32 %v3700, %v3758
        %v3772 = vmul.f32 %v3701, %v3758
        %v3773 = vmul.f32 %v3702, %v3758
        %v3774 = vmul.f32 %v3703, %v3758
        %v3775 = vmul.f32 %v3704, %v3758
        %v3776 = vmul.f32 %v3705, %v3758
        %v3777 = vmul.f32 %v3706, %v3758
        %v3778 = vmul.f32 %v3707, %v3758
        %v3779 = vmul.f32 %v3708, %v3758
        %v3780 = vmul.f32 %v3709, %v3758
        %v3781 = vmul.f32 %v3710, %v3758
        %v3782 = vmul.f32 %v3711, %v3758
        %v3783 = vmul.f32 %v3712, %v3758
        %v3784 = vmul.f32 %v3713, %v3758
        %v3785 = vmul.f32 %v3714, %v3758
        %v3786 = vmul.f32 %v3715, %v3758
        %v3787 = vmul.f32 %v3716, %v3758
        %v3788 = vmul.f32 %v3717, %v3758
        %v3789 = vmul.f32 %v3718, %v3758
        %v3790 = vmul.f32 %v3719, %v3758
        %v3791 = vmul.f32 %v3720, %v3758
        %v3792 = vmul.f32 %v3721, %v3758
        %v3793 = vmul.f32 %v3722, %v3758
        %v3794 = vmul.f32 %v3723, %v3758
        %v3795 = vmul.f32 %v3724, %v3758
        %v3796 = vmul.f32 %v3725, %v3758
        %v3797 = vmul.f32 %v3726, %v3758
        %v3798 = vmul.f32 %v3727, %v3758
        %v3799 = vmul.f32 %v3728, %v3758
        %v3800 = vmul.f32 %v3729, %v3758
        %v3801 = vmul.f32 %v3730, %v3758
        %v3802 = vmul.f32 %v3731, %v3758
        %v3803 = vmul.f32 %v3732, %v3758
        %v3804 = vmul.f32 %v3733, %v3758
        %v3805 = vmul.f32 %v3734, %v3758
        %v3806 = vmul.f32 %v3735, %v3758
        %v3807 = vmul.f32 %v3736, %v3758
        %v3808 = vmul.f32 %v3737, %v3758
        %v3809 = vmul.f32 %v3738, %v3758
        %v3810 = vmul.f32 %v3739, %v3758
        %v3811 = vmul.f32 %v3740, %v3758
        %v3812 = vmul.f32 %v3741, %v3758
        %v3813 = vmul.f32 %v3742, %v3758
        %v3814 = vmul.f32 %v3743, %v3758
        %v3815 = vmul.f32 %v3744, %v3758
        %v3816 = vmul.f32 %v3745, %v3758
        %v3817 = vmul.f32 %v3746, %v3758
        %v3818 = vmul.f32 %v3747, %v3758
        %v3819 = vmul.f32 %v3748, %v3758
        %v3820 = vmul.f32 %v3749, %v3758
        %v3821 = vmul.f32 %v3750, %v3758
        %v3822 = vmul.f32 %v3751, %v3758
        %v3823 = vmul.f32 %v3752, %v3758
        %vm3824 = vcmask 261120
        %v3825 = vsel %vm3824, %v3760, 0.0
        %3826 = vadd.xlane.f32.xlu0 %v3825
        %v3827 = vpop.xlane.xlu0 %3826
        %v3828 = vsel %vm3824, %v3761, 0.0
        %3829 = vadd.xlane.f32.xlu0 %v3828
        %v3830 = vpop.xlane.xlu0 %3829
        %v3831 = vsel %vm3824, %v3762, 0.0
        %3832 = vadd.xlane.f32.xlu0 %v3831
        %v3833 = vpop.xlane.xlu0 %3832
        %v3834 = vsel %vm3824, %v3763, 0.0
        %3835 = vadd.xlane.f32.xlu0 %v3834
        %v3836 = vpop.xlane.xlu0 %3835
        %v3837 = vsel %vm3824, %v3764, 0.0
        %3838 = vadd.xlane.f32.xlu0 %v3837
        %v3839 = vpop.xlane.xlu0 %3838
        %v3840 = vsel %vm3824, %v3765, 0.0
        %3841 = vadd.xlane.f32.xlu0 %v3840
        %v3842 = vpop.xlane.xlu0 %3841
        %v3843 = vsel %vm3824, %v3766, 0.0
        %3844 = vadd.xlane.f32.xlu0 %v3843
        %v3845 = vpop.xlane.xlu0 %3844
        %v3846 = vsel %vm3824, %v3767, 0.0
        %3847 = vadd.xlane.f32.xlu0 %v3846
        %v3848 = vpop.xlane.xlu0 %3847
        %v3849 = vsel %vm3824, %v3768, 0.0
        %3850 = vadd.xlane.f32.xlu0 %v3849
        %v3851 = vpop.xlane.xlu0 %3850
        %v3852 = vsel %vm3824, %v3769, 0.0
        %3853 = vadd.xlane.f32.xlu0 %v3852
        %v3854 = vpop.xlane.xlu0 %3853
        %v3855 = vsel %vm3824, %v3770, 0.0
        %3856 = vadd.xlane.f32.xlu0 %v3855
        %v3857 = vpop.xlane.xlu0 %3856
        %v3858 = vsel %vm3824, %v3771, 0.0
        %3859 = vadd.xlane.f32.xlu0 %v3858
        %v3860 = vpop.xlane.xlu0 %3859
        %v3861 = vsel %vm3824, %v3772, 0.0
        %3862 = vadd.xlane.f32.xlu0 %v3861
        %v3863 = vpop.xlane.xlu0 %3862
        %v3864 = vsel %vm3824, %v3773, 0.0
        %3865 = vadd.xlane.f32.xlu0 %v3864
        %v3866 = vpop.xlane.xlu0 %3865
        %v3867 = vsel %vm3824, %v3774, 0.0
        %3868 = vadd.xlane.f32.xlu0 %v3867
        %v3869 = vpop.xlane.xlu0 %3868
        %v3870 = vsel %vm3824, %v3775, 0.0
        %3871 = vadd.xlane.f32.xlu0 %v3870
        %v3872 = vpop.xlane.xlu0 %3871
        %v3873 = vsel %vm3824, %v3776, 0.0
        %3874 = vadd.xlane.f32.xlu0 %v3873
        %v3875 = vpop.xlane.xlu0 %3874
        %v3876 = vsel %vm3824, %v3777, 0.0
        %3877 = vadd.xlane.f32.xlu0 %v3876
        %v3878 = vpop.xlane.xlu0 %3877
        %v3879 = vsel %vm3824, %v3778, 0.0
        %3880 = vadd.xlane.f32.xlu0 %v3879
        %v3881 = vpop.xlane.xlu0 %3880
        %v3882 = vsel %vm3824, %v3779, 0.0
        %3883 = vadd.xlane.f32.xlu0 %v3882
        %v3884 = vpop.xlane.xlu0 %3883
        %v3885 = vsel %vm3824, %v3780, 0.0
        %3886 = vadd.xlane.f32.xlu0 %v3885
        %v3887 = vpop.xlane.xlu0 %3886
        %v3888 = vsel %vm3824, %v3781, 0.0
        %3889 = vadd.xlane.f32.xlu0 %v3888
        %v3890 = vpop.xlane.xlu0 %3889
        %v3891 = vsel %vm3824, %v3782, 0.0
        %3892 = vadd.xlane.f32.xlu0 %v3891
        %v3893 = vpop.xlane.xlu0 %3892
        %v3894 = vsel %vm3824, %v3783, 0.0
        %3895 = vadd.xlane.f32.xlu0 %v3894
        %v3896 = vpop.xlane.xlu0 %3895
        %v3897 = vsel %vm3824, %v3784, 0.0
        %3898 = vadd.xlane.f32.xlu0 %v3897
        %v3899 = vpop.xlane.xlu0 %3898
        %v3900 = vsel %vm3824, %v3785, 0.0
        %3901 = vadd.xlane.f32.xlu0 %v3900
        %v3902 = vpop.xlane.xlu0 %3901
        %v3903 = vsel %vm3824, %v3786, 0.0
        %3904 = vadd.xlane.f32.xlu0 %v3903
        %v3905 = vpop.xlane.xlu0 %3904
        %v3906 = vsel %vm3824, %v3787, 0.0
        %3907 = vadd.xlane.f32.xlu0 %v3906
        %v3908 = vpop.xlane.xlu0 %3907
        %v3909 = vsel %vm3824, %v3788, 0.0
        %3910 = vadd.xlane.f32.xlu0 %v3909
        %v3911 = vpop.xlane.xlu0 %3910
        %v3912 = vsel %vm3824, %v3789, 0.0
        %3913 = vadd.xlane.f32.xlu0 %v3912
        %v3914 = vpop.xlane.xlu0 %3913
        %v3915 = vsel %vm3824, %v3790, 0.0
        %3916 = vadd.xlane.f32.xlu0 %v3915
        %v3917 = vpop.xlane.xlu0 %3916
        %v3918 = vsel %vm3824, %v3791, 0.0
        %3919 = vadd.xlane.f32.xlu0 %v3918
        %v3920 = vpop.xlane.xlu0 %3919
        %v3921 = vsel %vm3824, %v3792, 0.0
        %3922 = vadd.xlane.f32.xlu0 %v3921
        %v3923 = vpop.xlane.xlu0 %3922
        %v3924 = vsel %vm3824, %v3793, 0.0
        %3925 = vadd.xlane.f32.xlu0 %v3924
        %v3926 = vpop.xlane.xlu0 %3925
        %v3927 = vsel %vm3824, %v3794, 0.0
        %3928 = vadd.xlane.f32.xlu0 %v3927
        %v3929 = vpop.xlane.xlu0 %3928
        %v3930 = vsel %vm3824, %v3795, 0.0
        %3931 = vadd.xlane.f32.xlu0 %v3930
        %v3932 = vpop.xlane.xlu0 %3931
        %v3933 = vsel %vm3824, %v3796, 0.0
        %3934 = vadd.xlane.f32.xlu0 %v3933
        %v3935 = vpop.xlane.xlu0 %3934
        %v3936 = vsel %vm3824, %v3797, 0.0
        %3937 = vadd.xlane.f32.xlu0 %v3936
        %v3938 = vpop.xlane.xlu0 %3937
        %v3939 = vsel %vm3824, %v3798, 0.0
        %3940 = vadd.xlane.f32.xlu0 %v3939
        %v3941 = vpop.xlane.xlu0 %3940
        %v3942 = vsel %vm3824, %v3799, 0.0
        %3943 = vadd.xlane.f32.xlu0 %v3942
        %v3944 = vpop.xlane.xlu0 %3943
        %v3945 = vsel %vm3824, %v3800, 0.0
        %3946 = vadd.xlane.f32.xlu0 %v3945
        %v3947 = vpop.xlane.xlu0 %3946
        %v3948 = vsel %vm3824, %v3801, 0.0
        %3949 = vadd.xlane.f32.xlu0 %v3948
        %v3950 = vpop.xlane.xlu0 %3949
        %v3951 = vsel %vm3824, %v3802, 0.0
        %3952 = vadd.xlane.f32.xlu0 %v3951
        %v3953 = vpop.xlane.xlu0 %3952
        %v3954 = vsel %vm3824, %v3803, 0.0
        %3955 = vadd.xlane.f32.xlu0 %v3954
        %v3956 = vpop.xlane.xlu0 %3955
        %v3957 = vsel %vm3824, %v3804, 0.0
        %3958 = vadd.xlane.f32.xlu0 %v3957
        %v3959 = vpop.xlane.xlu0 %3958
        %v3960 = vsel %vm3824, %v3805, 0.0
        %3961 = vadd.xlane.f32.xlu0 %v3960
        %v3962 = vpop.xlane.xlu0 %3961
        %v3963 = vsel %vm3824, %v3806, 0.0
        %3964 = vadd.xlane.f32.xlu0 %v3963
        %v3965 = vpop.xlane.xlu0 %3964
        %v3966 = vsel %vm3824, %v3807, 0.0
        %3967 = vadd.xlane.f32.xlu0 %v3966
        %v3968 = vpop.xlane.xlu0 %3967
        %v3969 = vsel %vm3824, %v3808, 0.0
        %3970 = vadd.xlane.f32.xlu0 %v3969
        %v3971 = vpop.xlane.xlu0 %3970
        %v3972 = vsel %vm3824, %v3809, 0.0
        %3973 = vadd.xlane.f32.xlu0 %v3972
        %v3974 = vpop.xlane.xlu0 %3973
        %v3975 = vsel %vm3824, %v3810, 0.0
        %3976 = vadd.xlane.f32.xlu0 %v3975
        %v3977 = vpop.xlane.xlu0 %3976
        %v3978 = vsel %vm3824, %v3811, 0.0
        %3979 = vadd.xlane.f32.xlu0 %v3978
        %v3980 = vpop.xlane.xlu0 %3979
        %v3981 = vsel %vm3824, %v3812, 0.0
        %3982 = vadd.xlane.f32.xlu0 %v3981
        %v3983 = vpop.xlane.xlu0 %3982
        %v3984 = vsel %vm3824, %v3813, 0.0
        %3985 = vadd.xlane.f32.xlu0 %v3984
        %v3986 = vpop.xlane.xlu0 %3985
        %v3987 = vsel %vm3824, %v3814, 0.0
        %3988 = vadd.xlane.f32.xlu0 %v3987
        %v3989 = vpop.xlane.xlu0 %3988
        %v3990 = vsel %vm3824, %v3815, 0.0
        %3991 = vadd.xlane.f32.xlu0 %v3990
        %v3992 = vpop.xlane.xlu0 %3991
        %v3993 = vsel %vm3824, %v3816, 0.0
        %3994 = vadd.xlane.f32.xlu0 %v3993
        %v3995 = vpop.xlane.xlu0 %3994
        %v3996 = vsel %vm3824, %v3817, 0.0
        %3997 = vadd.xlane.f32.xlu0 %v3996
        %v3998 = vpop.xlane.xlu0 %3997
        %v3999 = vsel %vm3824, %v3818, 0.0
        %4000 = vadd.xlane.f32.xlu0 %v3999
        %v4001 = vpop.xlane.xlu0 %4000
        %v4002 = vsel %vm3824, %v3819, 0.0
        %4003 = vadd.xlane.f32.xlu0 %v4002
        %v4004 = vpop.xlane.xlu0 %4003
        %v4005 = vsel %vm3824, %v3820, 0.0
        %4006 = vadd.xlane.f32.xlu0 %v4005
        %v4007 = vpop.xlane.xlu0 %4006
        %v4008 = vsel %vm3824, %v3821, 0.0
        %4009 = vadd.xlane.f32.xlu0 %v4008
        %v4010 = vpop.xlane.xlu0 %4009
        %v4011 = vsel %vm3824, %v3822, 0.0
        %4012 = vadd.xlane.f32.xlu0 %v4011
        %v4013 = vpop.xlane.xlu0 %4012
        %v4014 = vsel %vm3824, %v3823, 0.0
        %4015 = vadd.xlane.f32.xlu0 %v4014
        %v4016 = vpop.xlane.xlu0 %4015
        %v4017 = vld [vmem:[#allocation2] sm:$0x1]
        %v4019 = vlaneseq
        %v4020 = vshrl.u32 %v4019, 7
        %v4021 = vsub.s32 0, %v4020
        %v4022 = vrot.slane %v4017, %v4021
        %v4024 = vadd.f32 %v3827, %v4022
        %v4025 = vadd.f32 %v3830, %v4022
        %v4026 = vadd.f32 %v3833, %v4022
        %v4027 = vadd.f32 %v3836, %v4022
        %v4028 = vadd.f32 %v3839, %v4022
        %v4029 = vadd.f32 %v3842, %v4022
        %v4030 = vadd.f32 %v3845, %v4022
        %v4031 = vadd.f32 %v3848, %v4022
        %v4032 = vadd.f32 %v3851, %v4022
        %v4033 = vadd.f32 %v3854, %v4022
        %v4034 = vadd.f32 %v3857, %v4022
        %v4035 = vadd.f32 %v3860, %v4022
        %v4036 = vadd.f32 %v3863, %v4022
        %v4037 = vadd.f32 %v3866, %v4022
        %v4038 = vadd.f32 %v3869, %v4022
        %v4039 = vadd.f32 %v3872, %v4022
        %v4040 = vadd.f32 %v3875, %v4022
        %v4041 = vadd.f32 %v3878, %v4022
        %v4042 = vadd.f32 %v3881, %v4022
        %v4043 = vadd.f32 %v3884, %v4022
        %v4044 = vadd.f32 %v3887, %v4022
        %v4045 = vadd.f32 %v3890, %v4022
        %v4046 = vadd.f32 %v3893, %v4022
        %v4047 = vadd.f32 %v3896, %v4022
        %v4048 = vadd.f32 %v3899, %v4022
        %v4049 = vadd.f32 %v3902, %v4022
        %v4050 = vadd.f32 %v3905, %v4022
        %v4051 = vadd.f32 %v3908, %v4022
        %v4052 = vadd.f32 %v3911, %v4022
        %v4053 = vadd.f32 %v3914, %v4022
        %v4054 = vadd.f32 %v3917, %v4022
        %v4055 = vadd.f32 %v3920, %v4022
        %v4056 = vadd.f32 %v3923, %v4022
        %v4057 = vadd.f32 %v3926, %v4022
        %v4058 = vadd.f32 %v3929, %v4022
        %v4059 = vadd.f32 %v3932, %v4022
        %v4060 = vadd.f32 %v3935, %v4022
        %v4061 = vadd.f32 %v3938, %v4022
        %v4062 = vadd.f32 %v3941, %v4022
        %v4063 = vadd.f32 %v3944, %v4022
        %v4064 = vadd.f32 %v3947, %v4022
        %v4065 = vadd.f32 %v3950, %v4022
        %v4066 = vadd.f32 %v3953, %v4022
        %v4067 = vadd.f32 %v3956, %v4022
        %v4068 = vadd.f32 %v3959, %v4022
        %v4069 = vadd.f32 %v3962, %v4022
        %v4070 = vadd.f32 %v3965, %v4022
        %v4071 = vadd.f32 %v3968, %v4022
        %v4072 = vadd.f32 %v3971, %v4022
        %v4073 = vadd.f32 %v3974, %v4022
        %v4074 = vadd.f32 %v3977, %v4022
        %v4075 = vadd.f32 %v3980, %v4022
        %v4076 = vadd.f32 %v3983, %v4022
        %v4077 = vadd.f32 %v3986, %v4022
        %v4078 = vadd.f32 %v3989, %v4022
        %v4079 = vadd.f32 %v3992, %v4022
        %v4080 = vadd.f32 %v3995, %v4022
        %v4081 = vadd.f32 %v3998, %v4022
        %v4082 = vadd.f32 %v4001, %v4022
        %v4083 = vadd.f32 %v4004, %v4022
        %v4084 = vadd.f32 %v4007, %v4022
        %v4085 = vadd.f32 %v4010, %v4022
        %v4086 = vadd.f32 %v4013, %v4022
        %v4087 = vadd.f32 %v4016, %v4022
        %v4088 = vxor.u32 %v4024, 2147483648
        %v4089 = vxor.u32 %v4025, 2147483648
        %v4090 = vxor.u32 %v4026, 2147483648
        %v4091 = vxor.u32 %v4027, 2147483648
        %v4092 = vxor.u32 %v4028, 2147483648
        %v4093 = vxor.u32 %v4029, 2147483648
        %v4094 = vxor.u32 %v4030, 2147483648
        %v4095 = vxor.u32 %v4031, 2147483648
        %v4096 = vxor.u32 %v4032, 2147483648
        %v4097 = vxor.u32 %v4033, 2147483648
        %v4098 = vxor.u32 %v4034, 2147483648
        %v4099 = vxor.u32 %v4035, 2147483648
        %v4100 = vxor.u32 %v4036, 2147483648
        %v4101 = vxor.u32 %v4037, 2147483648
        %v4102 = vxor.u32 %v4038, 2147483648
        %v4103 = vxor.u32 %v4039, 2147483648
        %v4104 = vxor.u32 %v4040, 2147483648
        %v4105 = vxor.u32 %v4041, 2147483648
        %v4106 = vxor.u32 %v4042, 2147483648
        %v4107 = vxor.u32 %v4043, 2147483648
        %v4108 = vxor.u32 %v4044, 2147483648
        %v4109 = vxor.u32 %v4045, 2147483648
        %v4110 = vxor.u32 %v4046, 2147483648
        %v4111 = vxor.u32 %v4047, 2147483648
        %v4112 = vxor.u32 %v4048, 2147483648
        %v4113 = vxor.u32 %v4049, 2147483648
        %v4114 = vxor.u32 %v4050, 2147483648
        %v4115 = vxor.u32 %v4051, 2147483648
        %v4116 = vxor.u32 %v4052, 2147483648
        %v4117 = vxor.u32 %v4053, 2147483648
        %v4118 = vxor.u32 %v4054, 2147483648
        %v4119 = vxor.u32 %v4055, 2147483648
        %v4120 = vxor.u32 %v4056, 2147483648
        %v4121 = vxor.u32 %v4057, 2147483648
        %v4122 = vxor.u32 %v4058, 2147483648
        %v4123 = vxor.u32 %v4059, 2147483648
        %v4124 = vxor.u32 %v4060, 2147483648
        %v4125 = vxor.u32 %v4061, 2147483648
        %v4126 = vxor.u32 %v4062, 2147483648
        %v4127 = vxor.u32 %v4063, 2147483648
        %v4128 = vxor.u32 %v4064, 2147483648
        %v4129 = vxor.u32 %v4065, 2147483648
        %v4130 = vxor.u32 %v4066, 2147483648
        %v4131 = vxor.u32 %v4067, 2147483648
        %v4132 = vxor.u32 %v4068, 2147483648
        %v4133 = vxor.u32 %v4069, 2147483648
        %v4134 = vxor.u32 %v4070, 2147483648
        %v4135 = vxor.u32 %v4071, 2147483648
        %v4136 = vxor.u32 %v4072, 2147483648
        %v4137 = vxor.u32 %v4073, 2147483648
        %v4138 = vxor.u32 %v4074, 2147483648
        %v4139 = vxor.u32 %v4075, 2147483648
        %v4140 = vxor.u32 %v4076, 2147483648
        %v4141 = vxor.u32 %v4077, 2147483648
        %v4142 = vxor.u32 %v4078, 2147483648
        %v4143 = vxor.u32 %v4079, 2147483648
        %v4144 = vxor.u32 %v4080, 2147483648
        %v4145 = vxor.u32 %v4081, 2147483648
        %v4146 = vxor.u32 %v4082, 2147483648
        %v4147 = vxor.u32 %v4083, 2147483648
        %v4148 = vxor.u32 %v4084, 2147483648
        %v4149 = vxor.u32 %v4085, 2147483648
        %v4150 = vxor.u32 %v4086, 2147483648
        %v4151 = vxor.u32 %v4087, 2147483648
        %v4152 = vmul.f32 %v4088, 1.442695
        %v4153 = vpow.pop %v4152
        %v4154 = vmul.f32 %v4089, 1.442695
        %v4155 = vpow.pop %v4154
        %v4156 = vmul.f32 %v4090, 1.442695
        %v4157 = vpow.pop %v4156
        %v4158 = vmul.f32 %v4091, 1.442695
        %v4159 = vpow.pop %v4158
        %v4160 = vmul.f32 %v4092, 1.442695
        %v4161 = vpow.pop %v4160
        %v4162 = vmul.f32 %v4093, 1.442695
        %v4163 = vpow.pop %v4162
        %v4164 = vmul.f32 %v4094, 1.442695
        %v4165 = vpow.pop %v4164
        %v4166 = vmul.f32 %v4095, 1.442695
        %v4167 = vpow.pop %v4166
        %v4168 = vmul.f32 %v4096, 1.442695
        %v4169 = vpow.pop %v4168
        %v4170 = vmul.f32 %v4097, 1.442695
        %v4171 = vpow.pop %v4170
        %v4172 = vmul.f32 %v4098, 1.442695
        %v4173 = vpow.pop %v4172
        %v4174 = vmul.f32 %v4099, 1.442695
        %v4175 = vpow.pop %v4174
        %v4176 = vmul.f32 %v4100, 1.442695
        %v4177 = vpow.pop %v4176
        %v4178 = vmul.f32 %v4101, 1.442695
        %v4179 = vpow.pop %v4178
        %v4180 = vmul.f32 %v4102, 1.442695
        %v4181 = vpow.pop %v4180
        %v4182 = vmul.f32 %v4103, 1.442695
        %v4183 = vpow.pop %v4182
        %v4184 = vmul.f32 %v4104, 1.442695
        %v4185 = vpow.pop %v4184
        %v4186 = vmul.f32 %v4105, 1.442695
        %v4187 = vpow.pop %v4186
        %v4188 = vmul.f32 %v4106, 1.442695
        %v4189 = vpow.pop %v4188
        %v4190 = vmul.f32 %v4107, 1.442695
        %v4191 = vpow.pop %v4190
        %v4192 = vmul.f32 %v4108, 1.442695
        %v4193 = vpow.pop %v4192
        %v4194 = vmul.f32 %v4109, 1.442695
        %v4195 = vpow.pop %v4194
        %v4196 = vmul.f32 %v4110, 1.442695
        %v4197 = vpow.pop %v4196
        %v4198 = vmul.f32 %v4111, 1.442695
        %v4199 = vpow.pop %v4198
        %v4200 = vmul.f32 %v4112, 1.442695
        %v4201 = vpow.pop %v4200
        %v4202 = vmul.f32 %v4113, 1.442695
        %v4203 = vpow.pop %v4202
        %v4204 = vmul.f32 %v4114, 1.442695
        %v4205 = vpow.pop %v4204
        %v4206 = vmul.f32 %v4115, 1.442695
        %v4207 = vpow.pop %v4206
        %v4208 = vmul.f32 %v4116, 1.442695
        %v4209 = vpow.pop %v4208
        %v4210 = vmul.f32 %v4117, 1.442695
        %v4211 = vpow.pop %v4210
        %v4212 = vmul.f32 %v4118, 1.442695
        %v4213 = vpow.pop %v4212
        %v4214 = vmul.f32 %v4119, 1.442695
        %v4215 = vpow.pop %v4214
        %v4216 = vmul.f32 %v4120, 1.442695
        %v4217 = vpow.pop %v4216
        %v4218 = vmul.f32 %v4121, 1.442695
        %v4219 = vpow.pop %v4218
        %v4220 = vmul.f32 %v4122, 1.442695
        %v4221 = vpow.pop %v4220
        %v4222 = vmul.f32 %v4123, 1.442695
        %v4223 = vpow.pop %v4222
        %v4224 = vmul.f32 %v4124, 1.442695
        %v4225 = vpow.pop %v4224
        %v4226 = vmul.f32 %v4125, 1.442695
        %v4227 = vpow.pop %v4226
        %v4228 = vmul.f32 %v4126, 1.442695
        %v4229 = vpow.pop %v4228
        %v4230 = vmul.f32 %v4127, 1.442695
        %v4231 = vpow.pop %v4230
        %v4232 = vmul.f32 %v4128, 1.442695
        %v4233 = vpow.pop %v4232
        %v4234 = vmul.f32 %v4129, 1.442695
        %v4235 = vpow.pop %v4234
        %v4236 = vmul.f32 %v4130, 1.442695
        %v4237 = vpow.pop %v4236
        %v4238 = vmul.f32 %v4131, 1.442695
        %v4239 = vpow.pop %v4238
        %v4240 = vmul.f32 %v4132, 1.442695
        %v4241 = vpow.pop %v4240
        %v4242 = vmul.f32 %v4133, 1.442695
        %v4243 = vpow.pop %v4242
        %v4244 = vmul.f32 %v4134, 1.442695
        %v4245 = vpow.pop %v4244
        %v4246 = vmul.f32 %v4135, 1.442695
        %v4247 = vpow.pop %v4246
        %v4248 = vmul.f32 %v4136, 1.442695
        %v4249 = vpow.pop %v4248
        %v4250 = vmul.f32 %v4137, 1.442695
        %v4251 = vpow.pop %v4250
        %v4252 = vmul.f32 %v4138, 1.442695
        %v4253 = vpow.pop %v4252
        %v4254 = vmul.f32 %v4139, 1.442695
        %v4255 = vpow.pop %v4254
        %v4256 = vmul.f32 %v4140, 1.442695
        %v4257 = vpow.pop %v4256
        %v4258 = vmul.f32 %v4141, 1.442695
        %v4259 = vpow.pop %v4258
        %v4260 = vmul.f32 %v4142, 1.442695
        %v4261 = vpow.pop %v4260
        %v4262 = vmul.f32 %v4143, 1.442695
        %v4263 = vpow.pop %v4262
        %v4264 = vmul.f32 %v4144, 1.442695
        %v4265 = vpow.pop %v4264
        %v4266 = vmul.f32 %v4145, 1.442695
        %v4267 = vpow.pop %v4266
        %v4268 = vmul.f32 %v4146, 1.442695
        %v4269 = vpow.pop %v4268
        %v4270 = vmul.f32 %v4147, 1.442695
        %v4271 = vpow.pop %v4270
        %v4272 = vmul.f32 %v4148, 1.442695
        %v4273 = vpow.pop %v4272
        %v4274 = vmul.f32 %v4149, 1.442695
        %v4275 = vpow.pop %v4274
        %v4276 = vmul.f32 %v4150, 1.442695
        %v4277 = vpow.pop %v4276
        %v4278 = vmul.f32 %v4151, 1.442695
        %v4279 = vpow.pop %v4278
        %v4280 = vadd.f32 %v4153, 1.0
        %v4281 = vadd.f32 %v4155, 1.0
        %v4282 = vadd.f32 %v4157, 1.0
        %v4283 = vadd.f32 %v4159, 1.0
        %v4284 = vadd.f32 %v4161, 1.0
        %v4285 = vadd.f32 %v4163, 1.0
        %v4286 = vadd.f32 %v4165, 1.0
        %v4287 = vadd.f32 %v4167, 1.0
        %v4288 = vadd.f32 %v4169, 1.0
        %v4289 = vadd.f32 %v4171, 1.0
        %v4290 = vadd.f32 %v4173, 1.0
        %v4291 = vadd.f32 %v4175, 1.0
        %v4292 = vadd.f32 %v4177, 1.0
        %v4293 = vadd.f32 %v4179, 1.0
        %v4294 = vadd.f32 %v4181, 1.0
        %v4295 = vadd.f32 %v4183, 1.0
        %v4296 = vadd.f32 %v4185, 1.0
        %v4297 = vadd.f32 %v4187, 1.0
        %v4298 = vadd.f32 %v4189, 1.0
        %v4299 = vadd.f32 %v4191, 1.0
        %v4300 = vadd.f32 %v4193, 1.0
        %v4301 = vadd.f32 %v4195, 1.0
        %v4302 = vadd.f32 %v4197, 1.0
        %v4303 = vadd.f32 %v4199, 1.0
        %v4304 = vadd.f32 %v4201, 1.0
        %v4305 = vadd.f32 %v4203, 1.0
        %v4306 = vadd.f32 %v4205, 1.0
        %v4307 = vadd.f32 %v4207, 1.0
        %v4308 = vadd.f32 %v4209, 1.0
        %v4309 = vadd.f32 %v4211, 1.0
        %v4310 = vadd.f32 %v4213, 1.0
        %v4311 = vadd.f32 %v4215, 1.0
        %v4312 = vadd.f32 %v4217, 1.0
        %v4313 = vadd.f32 %v4219, 1.0
        %v4314 = vadd.f32 %v4221, 1.0
        %v4315 = vadd.f32 %v4223, 1.0
        %v4316 = vadd.f32 %v4225, 1.0
        %v4317 = vadd.f32 %v4227, 1.0
        %v4318 = vadd.f32 %v4229, 1.0
        %v4319 = vadd.f32 %v4231, 1.0
        %v4320 = vadd.f32 %v4233, 1.0
        %v4321 = vadd.f32 %v4235, 1.0
        %v4322 = vadd.f32 %v4237, 1.0
        %v4323 = vadd.f32 %v4239, 1.0
        %v4324 = vadd.f32 %v4241, 1.0
        %v4325 = vadd.f32 %v4243, 1.0
        %v4326 = vadd.f32 %v4245, 1.0
        %v4327 = vadd.f32 %v4247, 1.0
        %v4328 = vadd.f32 %v4249, 1.0
        %v4329 = vadd.f32 %v4251, 1.0
        %v4330 = vadd.f32 %v4253, 1.0
        %v4331 = vadd.f32 %v4255, 1.0
        %v4332 = vadd.f32 %v4257, 1.0
        %v4333 = vadd.f32 %v4259, 1.0
        %v4334 = vadd.f32 %v4261, 1.0
        %v4335 = vadd.f32 %v4263, 1.0
        %v4336 = vadd.f32 %v4265, 1.0
        %v4337 = vadd.f32 %v4267, 1.0
        %v4338 = vadd.f32 %v4269, 1.0
        %v4339 = vadd.f32 %v4271, 1.0
        %v4340 = vadd.f32 %v4273, 1.0
        %v4341 = vadd.f32 %v4275, 1.0
        %v4342 = vadd.f32 %v4277, 1.0
        %v4343 = vadd.f32 %v4279, 1.0
        %v4344 = vrcp.pop %v4280
        %v4345 = vmul.f32 1.0, %v4344
        %v4346 = vrcp.pop %v4281
        %v4347 = vmul.f32 1.0, %v4346
        %v4348 = vrcp.pop %v4282
        %v4349 = vmul.f32 1.0, %v4348
        %v4350 = vrcp.pop %v4283
        %v4351 = vmul.f32 1.0, %v4350
        %v4352 = vrcp.pop %v4284
        %v4353 = vmul.f32 1.0, %v4352
        %v4354 = vrcp.pop %v4285
        %v4355 = vmul.f32 1.0, %v4354
        %v4356 = vrcp.pop %v4286
        %v4357 = vmul.f32 1.0, %v4356
        %v4358 = vrcp.pop %v4287
        %v4359 = vmul.f32 1.0, %v4358
        %v4360 = vrcp.pop %v4288
        %v4361 = vmul.f32 1.0, %v4360
        %v4362 = vrcp.pop %v4289
        %v4363 = vmul.f32 1.0, %v4362
        %v4364 = vrcp.pop %v4290
        %v4365 = vmul.f32 1.0, %v4364
        %v4366 = vrcp.pop %v4291
        %v4367 = vmul.f32 1.0, %v4366
        %v4368 = vrcp.pop %v4292
        %v4369 = vmul.f32 1.0, %v4368
        %v4370 = vrcp.pop %v4293
        %v4371 = vmul.f32 1.0, %v4370
        %v4372 = vrcp.pop %v4294
        %v4373 = vmul.f32 1.0, %v4372
        %v4374 = vrcp.pop %v4295
        %v4375 = vmul.f32 1.0, %v4374
        %v4376 = vrcp.pop %v4296
        %v4377 = vmul.f32 1.0, %v4376
        %v4378 = vrcp.pop %v4297
        %v4379 = vmul.f32 1.0, %v4378
        %v4380 = vrcp.pop %v4298
        %v4381 = vmul.f32 1.0, %v4380
        %v4382 = vrcp.pop %v4299
        %v4383 = vmul.f32 1.0, %v4382
        %v4384 = vrcp.pop %v4300
        %v4385 = vmul.f32 1.0, %v4384
        %v4386 = vrcp.pop %v4301
        %v4387 = vmul.f32 1.0, %v4386
        %v4388 = vrcp.pop %v4302
        %v4389 = vmul.f32 1.0, %v4388
        %v4390 = vrcp.pop %v4303
        %v4391 = vmul.f32 1.0, %v4390
        %v4392 = vrcp.pop %v4304
        %v4393 = vmul.f32 1.0, %v4392
        %v4394 = vrcp.pop %v4305
        %v4395 = vmul.f32 1.0, %v4394
        %v4396 = vrcp.pop %v4306
        %v4397 = vmul.f32 1.0, %v4396
        %v4398 = vrcp.pop %v4307
        %v4399 = vmul.f32 1.0, %v4398
        %v4400 = vrcp.pop %v4308
        %v4401 = vmul.f32 1.0, %v4400
        %v4402 = vrcp.pop %v4309
        %v4403 = vmul.f32 1.0, %v4402
        %v4404 = vrcp.pop %v4310
        %v4405 = vmul.f32 1.0, %v4404
        %v4406 = vrcp.pop %v4311
        %v4407 = vmul.f32 1.0, %v4406
        %v4408 = vrcp.pop %v4312
        %v4409 = vmul.f32 1.0, %v4408
        %v4410 = vrcp.pop %v4313
        %v4411 = vmul.f32 1.0, %v4410
        %v4412 = vrcp.pop %v4314
        %v4413 = vmul.f32 1.0, %v4412
        %v4414 = vrcp.pop %v4315
        %v4415 = vmul.f32 1.0, %v4414
        %v4416 = vrcp.pop %v4316
        %v4417 = vmul.f32 1.0, %v4416
        %v4418 = vrcp.pop %v4317
        %v4419 = vmul.f32 1.0, %v4418
        %v4420 = vrcp.pop %v4318
        %v4421 = vmul.f32 1.0, %v4420
        %v4422 = vrcp.pop %v4319
        %v4423 = vmul.f32 1.0, %v4422
        %v4424 = vrcp.pop %v4320
        %v4425 = vmul.f32 1.0, %v4424
        %v4426 = vrcp.pop %v4321
        %v4427 = vmul.f32 1.0, %v4426
        %v4428 = vrcp.pop %v4322
        %v4429 = vmul.f32 1.0, %v4428
        %v4430 = vrcp.pop %v4323
        %v4431 = vmul.f32 1.0, %v4430
        %v4432 = vrcp.pop %v4324
        %v4433 = vmul.f32 1.0, %v4432
        %v4434 = vrcp.pop %v4325
        %v4435 = vmul.f32 1.0, %v4434
        %v4436 = vrcp.pop %v4326
        %v4437 = vmul.f32 1.0, %v4436
        %v4438 = vrcp.pop %v4327
        %v4439 = vmul.f32 1.0, %v4438
        %v4440 = vrcp.pop %v4328
        %v4441 = vmul.f32 1.0, %v4440
        %v4442 = vrcp.pop %v4329
        %v4443 = vmul.f32 1.0, %v4442
        %v4444 = vrcp.pop %v4330
        %v4445 = vmul.f32 1.0, %v4444
        %v4446 = vrcp.pop %v4331
        %v4447 = vmul.f32 1.0, %v4446
        %v4448 = vrcp.pop %v4332
        %v4449 = vmul.f32 1.0, %v4448
        %v4450 = vrcp.pop %v4333
        %v4451 = vmul.f32 1.0, %v4450
        %v4452 = vrcp.pop %v4334
        %v4453 = vmul.f32 1.0, %v4452
        %v4454 = vrcp.pop %v4335
        %v4455 = vmul.f32 1.0, %v4454
        %v4456 = vrcp.pop %v4336
        %v4457 = vmul.f32 1.0, %v4456
        %v4458 = vrcp.pop %v4337
        %v4459 = vmul.f32 1.0, %v4458
        %v4460 = vrcp.pop %v4338
        %v4461 = vmul.f32 1.0, %v4460
        %v4462 = vrcp.pop %v4339
        %v4463 = vmul.f32 1.0, %v4462
        %v4464 = vrcp.pop %v4340
        %v4465 = vmul.f32 1.0, %v4464
        %v4466 = vrcp.pop %v4341
        %v4467 = vmul.f32 1.0, %v4466
        %v4468 = vrcp.pop %v4342
        %v4469 = vmul.f32 1.0, %v4468
        %v4470 = vrcp.pop %v4343
        %v4471 = vmul.f32 1.0, %v4470
        %v4472 = vmul.f32 %v4345, 32.0
        %v4473 = vmul.f32 %v4347, 32.0
        %v4474 = vmul.f32 %v4349, 32.0
        %v4475 = vmul.f32 %v4351, 32.0
        %v4476 = vmul.f32 %v4353, 32.0
        %v4477 = vmul.f32 %v4355, 32.0
        %v4478 = vmul.f32 %v4357, 32.0
        %v4479 = vmul.f32 %v4359, 32.0
        %v4480 = vmul.f32 %v4361, 32.0
        %v4481 = vmul.f32 %v4363, 32.0
        %v4482 = vmul.f32 %v4365, 32.0
        %v4483 = vmul.f32 %v4367, 32.0
        %v4484 = vmul.f32 %v4369, 32.0
        %v4485 = vmul.f32 %v4371, 32.0
        %v4486 = vmul.f32 %v4373, 32.0
        %v4487 = vmul.f32 %v4375, 32.0
        %v4488 = vmul.f32 %v4377, 32.0
        %v4489 = vmul.f32 %v4379, 32.0
        %v4490 = vmul.f32 %v4381, 32.0
        %v4491 = vmul.f32 %v4383, 32.0
        %v4492 = vmul.f32 %v4385, 32.0
        %v4493 = vmul.f32 %v4387, 32.0
        %v4494 = vmul.f32 %v4389, 32.0
        %v4495 = vmul.f32 %v4391, 32.0
        %v4496 = vmul.f32 %v4393, 32.0
        %v4497 = vmul.f32 %v4395, 32.0
        %v4498 = vmul.f32 %v4397, 32.0
        %v4499 = vmul.f32 %v4399, 32.0
        %v4500 = vmul.f32 %v4401, 32.0
        %v4501 = vmul.f32 %v4403, 32.0
        %v4502 = vmul.f32 %v4405, 32.0
        %v4503 = vmul.f32 %v4407, 32.0
        %v4504 = vmul.f32 %v4409, 32.0
        %v4505 = vmul.f32 %v4411, 32.0
        %v4506 = vmul.f32 %v4413, 32.0
        %v4507 = vmul.f32 %v4415, 32.0
        %v4508 = vmul.f32 %v4417, 32.0
        %v4509 = vmul.f32 %v4419, 32.0
        %v4510 = vmul.f32 %v4421, 32.0
        %v4511 = vmul.f32 %v4423, 32.0
        %v4512 = vmul.f32 %v4425, 32.0
        %v4513 = vmul.f32 %v4427, 32.0
        %v4514 = vmul.f32 %v4429, 32.0
        %v4515 = vmul.f32 %v4431, 32.0
        %v4516 = vmul.f32 %v4433, 32.0
        %v4517 = vmul.f32 %v4435, 32.0
        %v4518 = vmul.f32 %v4437, 32.0
        %v4519 = vmul.f32 %v4439, 32.0
        %v4520 = vmul.f32 %v4441, 32.0
        %v4521 = vmul.f32 %v4443, 32.0
        %v4522 = vmul.f32 %v4445, 32.0
        %v4523 = vmul.f32 %v4447, 32.0
        %v4524 = vmul.f32 %v4449, 32.0
        %v4525 = vmul.f32 %v4451, 32.0
        %v4526 = vmul.f32 %v4453, 32.0
        %v4527 = vmul.f32 %v4455, 32.0
        %v4528 = vmul.f32 %v4457, 32.0
        %v4529 = vmul.f32 %v4459, 32.0
        %v4530 = vmul.f32 %v4461, 32.0
        %v4531 = vmul.f32 %v4463, 32.0
        %v4532 = vmul.f32 %v4465, 32.0
        %v4533 = vmul.f32 %v4467, 32.0
        %v4534 = vmul.f32 %v4469, 32.0
        %v4535 = vmul.f32 %v4471, 32.0
        %v4600 = vcombine.high %v4472, %v4472
        %v4602 = vunpack.c.l.s4 1966171168
        %v4603 = vunpack.c.0.s8 %v4602
        %v4604 = vlaneseq
        %v4605 = vshrl.u32 %v4604, 7
        %v4606 = vsub.s32 %v4603, %v4605
        %v4607 = vrot.slane %v4472, %v4606
        %v4609 = vunpack.c.l.s4 1966171168
        %v4610 = vunpack.c.0.s8 %v4609
        %v4611 = vlaneseq
        %v4612 = vshrl.u32 %v4611, 7
        %v4613 = vsub.s32 %v4610, %v4612
        %v4614 = vrot.slane %v4600, %v4613
        %v4615 = vcombine.high %v4607, %v4607
        %v4616 = vcombine.high %v4614, %v4614
        %v4618 = vunpack.c.l.s4 1966171168
        %v4619 = vunpack.c.0.s8 %v4618
        %v4620 = vlaneseq
        %v4621 = vshrl.u32 %v4620, 7
        %v4622 = vsub.s32 %v4619, %v4621
        %v4623 = vrot.slane %v4607, %v4622
        %v4625 = vunpack.c.l.s4 1966171168
        %v4626 = vunpack.c.0.s8 %v4625
        %v4627 = vlaneseq
        %v4628 = vshrl.u32 %v4627, 7
        %v4629 = vsub.s32 %v4626, %v4628
        %v4630 = vrot.slane %v4614, %v4629
        %v4632 = vunpack.c.l.s4 1966171168
        %v4633 = vunpack.c.0.s8 %v4632
        %v4634 = vlaneseq
        %v4635 = vshrl.u32 %v4634, 7
        %v4636 = vsub.s32 %v4633, %v4635
        %v4637 = vrot.slane %v4615, %v4636
        %v4639 = vunpack.c.l.s4 1966171168
        %v4640 = vunpack.c.0.s8 %v4639
        %v4641 = vlaneseq
        %v4642 = vshrl.u32 %v4641, 7
        %v4643 = vsub.s32 %v4640, %v4642
        %v4644 = vrot.slane %v4616, %v4643
        %v4645 = vcombine.high %v4623, %v4623
        %v4646 = vcombine.high %v4630, %v4630
        %v4647 = vcombine.high %v4637, %v4637
        %v4648 = vcombine.high %v4644, %v4644
        %v4649 = vcombine.high %v4473, %v4473
        %v4651 = vunpack.c.l.s4 1966171168
        %v4652 = vunpack.c.0.s8 %v4651
        %v4653 = vlaneseq
        %v4654 = vshrl.u32 %v4653, 7
        %v4655 = vsub.s32 %v4652, %v4654
        %v4656 = vrot.slane %v4473, %v4655
        %v4658 = vunpack.c.l.s4 1966171168
        %v4659 = vunpack.c.0.s8 %v4658
        %v4660 = vlaneseq
        %v4661 = vshrl.u32 %v4660, 7
        %v4662 = vsub.s32 %v4659, %v4661
        %v4663 = vrot.slane %v4649, %v4662
        %v4664 = vcombine.high %v4656, %v4656
        %v4665 = vcombine.high %v4663, %v4663
        %v4667 = vunpack.c.l.s4 1966171168
        %v4668 = vunpack.c.0.s8 %v4667
        %v4669 = vlaneseq
        %v4670 = vshrl.u32 %v4669, 7
        %v4671 = vsub.s32 %v4668, %v4670
        %v4672 = vrot.slane %v4656, %v4671
        %v4674 = vunpack.c.l.s4 1966171168
        %v4675 = vunpack.c.0.s8 %v4674
        %v4676 = vlaneseq
        %v4677 = vshrl.u32 %v4676, 7
        %v4678 = vsub.s32 %v4675, %v4677
        %v4679 = vrot.slane %v4663, %v4678
        %v4681 = vunpack.c.l.s4 1966171168
        %v4682 = vunpack.c.0.s8 %v4681
        %v4683 = vlaneseq
        %v4684 = vshrl.u32 %v4683, 7
        %v4685 = vsub.s32 %v4682, %v4684
        %v4686 = vrot.slane %v4664, %v4685
        %v4688 = vunpack.c.l.s4 1966171168
        %v4689 = vunpack.c.0.s8 %v4688
        %v4690 = vlaneseq
        %v4691 = vshrl.u32 %v4690, 7
        %v4692 = vsub.s32 %v4689, %v4691
        %v4693 = vrot.slane %v4665, %v4692
        %v4694 = vcombine.high %v4672, %v4672
        %v4695 = vcombine.high %v4679, %v4679
        %v4696 = vcombine.high %v4686, %v4686
        %v4697 = vcombine.high %v4693, %v4693
        %v4698 = vcombine.high %v4474, %v4474
        %v4700 = vunpack.c.l.s4 1966171168
        %v4701 = vunpack.c.0.s8 %v4700
        %v4702 = vlaneseq
        %v4703 = vshrl.u32 %v4702, 7
        %v4704 = vsub.s32 %v4701, %v4703
        %v4705 = vrot.slane %v4474, %v4704
        %v4707 = vunpack.c.l.s4 1966171168
        %v4708 = vunpack.c.0.s8 %v4707
        %v4709 = vlaneseq
        %v4710 = vshrl.u32 %v4709, 7
        %v4711 = vsub.s32 %v4708, %v4710
        %v4712 = vrot.slane %v4698, %v4711
        %v4713 = vcombine.high %v4705, %v4705
        %v4714 = vcombine.high %v4712, %v4712
        %v4716 = vunpack.c.l.s4 1966171168
        %v4717 = vunpack.c.0.s8 %v4716
        %v4718 = vlaneseq
        %v4719 = vshrl.u32 %v4718, 7
        %v4720 = vsub.s32 %v4717, %v4719
        %v4721 = vrot.slane %v4705, %v4720
        %v4723 = vunpack.c.l.s4 1966171168
        %v4724 = vunpack.c.0.s8 %v4723
        %v4725 = vlaneseq
        %v4726 = vshrl.u32 %v4725, 7
        %v4727 = vsub.s32 %v4724, %v4726
        %v4728 = vrot.slane %v4712, %v4727
        %v4730 = vunpack.c.l.s4 1966171168
        %v4731 = vunpack.c.0.s8 %v4730
        %v4732 = vlaneseq
        %v4733 = vshrl.u32 %v4732, 7
        %v4734 = vsub.s32 %v4731, %v4733
        %v4735 = vrot.slane %v4713, %v4734
        %v4737 = vunpack.c.l.s4 1966171168
        %v4738 = vunpack.c.0.s8 %v4737
        %v4739 = vlaneseq
        %v4740 = vshrl.u32 %v4739, 7
        %v4741 = vsub.s32 %v4738, %v4740
        %v4742 = vrot.slane %v4714, %v4741
        %v4743 = vcombine.high %v4721, %v4721
        %v4744 = vcombine.high %v4728, %v4728
        %v4745 = vcombine.high %v4735, %v4735
        %v4746 = vcombine.high %v4742, %v4742
        %v4747 = vcombine.high %v4475, %v4475
        %v4749 = vunpack.c.l.s4 1966171168
        %v4750 = vunpack.c.0.s8 %v4749
        %v4751 = vlaneseq
        %v4752 = vshrl.u32 %v4751, 7
        %v4753 = vsub.s32 %v4750, %v4752
        %v4754 = vrot.slane %v4475, %v4753
        %v4756 = vunpack.c.l.s4 1966171168
        %v4757 = vunpack.c.0.s8 %v4756
        %v4758 = vlaneseq
        %v4759 = vshrl.u32 %v4758, 7
        %v4760 = vsub.s32 %v4757, %v4759
        %v4761 = vrot.slane %v4747, %v4760
        %v4762 = vcombine.high %v4754, %v4754
        %v4763 = vcombine.high %v4761, %v4761
        %v4765 = vunpack.c.l.s4 1966171168
        %v4766 = vunpack.c.0.s8 %v4765
        %v4767 = vlaneseq
        %v4768 = vshrl.u32 %v4767, 7
        %v4769 = vsub.s32 %v4766, %v4768
        %v4770 = vrot.slane %v4754, %v4769
        %v4772 = vunpack.c.l.s4 1966171168
        %v4773 = vunpack.c.0.s8 %v4772
        %v4774 = vlaneseq
        %v4775 = vshrl.u32 %v4774, 7
        %v4776 = vsub.s32 %v4773, %v4775
        %v4777 = vrot.slane %v4761, %v4776
        %v4779 = vunpack.c.l.s4 1966171168
        %v4780 = vunpack.c.0.s8 %v4779
        %v4781 = vlaneseq
        %v4782 = vshrl.u32 %v4781, 7
        %v4783 = vsub.s32 %v4780, %v4782
        %v4784 = vrot.slane %v4762, %v4783
        %v4786 = vunpack.c.l.s4 1966171168
        %v4787 = vunpack.c.0.s8 %v4786
        %v4788 = vlaneseq
        %v4789 = vshrl.u32 %v4788, 7
        %v4790 = vsub.s32 %v4787, %v4789
        %v4791 = vrot.slane %v4763, %v4790
        %v4792 = vcombine.high %v4770, %v4770
        %v4793 = vcombine.high %v4777, %v4777
        %v4794 = vcombine.high %v4784, %v4784
        %v4795 = vcombine.high %v4791, %v4791
        %v4796 = vcombine.high %v4476, %v4476
        %v4798 = vunpack.c.l.s4 1966171168
        %v4799 = vunpack.c.0.s8 %v4798
        %v4800 = vlaneseq
        %v4801 = vshrl.u32 %v4800, 7
        %v4802 = vsub.s32 %v4799, %v4801
        %v4803 = vrot.slane %v4476, %v4802
        %v4805 = vunpack.c.l.s4 1966171168
        %v4806 = vunpack.c.0.s8 %v4805
        %v4807 = vlaneseq
        %v4808 = vshrl.u32 %v4807, 7
        %v4809 = vsub.s32 %v4806, %v4808
        %v4810 = vrot.slane %v4796, %v4809
        %v4811 = vcombine.high %v4803, %v4803
        %v4812 = vcombine.high %v4810, %v4810
        %v4814 = vunpack.c.l.s4 1966171168
        %v4815 = vunpack.c.0.s8 %v4814
        %v4816 = vlaneseq
        %v4817 = vshrl.u32 %v4816, 7
        %v4818 = vsub.s32 %v4815, %v4817
        %v4819 = vrot.slane %v4803, %v4818
        %v4821 = vunpack.c.l.s4 1966171168
        %v4822 = vunpack.c.0.s8 %v4821
        %v4823 = vlaneseq
        %v4824 = vshrl.u32 %v4823, 7
        %v4825 = vsub.s32 %v4822, %v4824
        %v4826 = vrot.slane %v4810, %v4825
        %v4828 = vunpack.c.l.s4 1966171168
        %v4829 = vunpack.c.0.s8 %v4828
        %v4830 = vlaneseq
        %v4831 = vshrl.u32 %v4830, 7
        %v4832 = vsub.s32 %v4829, %v4831
        %v4833 = vrot.slane %v4811, %v4832
        %v4835 = vunpack.c.l.s4 1966171168
        %v4836 = vunpack.c.0.s8 %v4835
        %v4837 = vlaneseq
        %v4838 = vshrl.u32 %v4837, 7
        %v4839 = vsub.s32 %v4836, %v4838
        %v4840 = vrot.slane %v4812, %v4839
        %v4841 = vcombine.high %v4819, %v4819
        %v4842 = vcombine.high %v4826, %v4826
        %v4843 = vcombine.high %v4833, %v4833
        %v4844 = vcombine.high %v4840, %v4840
        %v4845 = vcombine.high %v4477, %v4477
        %v4847 = vunpack.c.l.s4 1966171168
        %v4848 = vunpack.c.0.s8 %v4847
        %v4849 = vlaneseq
        %v4850 = vshrl.u32 %v4849, 7
        %v4851 = vsub.s32 %v4848, %v4850
        %v4852 = vrot.slane %v4477, %v4851
        %v4854 = vunpack.c.l.s4 1966171168
        %v4855 = vunpack.c.0.s8 %v4854
        %v4856 = vlaneseq
        %v4857 = vshrl.u32 %v4856, 7
        %v4858 = vsub.s32 %v4855, %v4857
        %v4859 = vrot.slane %v4845, %v4858
        %v4860 = vcombine.high %v4852, %v4852
        %v4861 = vcombine.high %v4859, %v4859
        %v4863 = vunpack.c.l.s4 1966171168
        %v4864 = vunpack.c.0.s8 %v4863
        %v4865 = vlaneseq
        %v4866 = vshrl.u32 %v4865, 7
        %v4867 = vsub.s32 %v4864, %v4866
        %v4868 = vrot.slane %v4852, %v4867
        %v4870 = vunpack.c.l.s4 1966171168
        %v4871 = vunpack.c.0.s8 %v4870
        %v4872 = vlaneseq
        %v4873 = vshrl.u32 %v4872, 7
        %v4874 = vsub.s32 %v4871, %v4873
        %v4875 = vrot.slane %v4859, %v4874
        %v4877 = vunpack.c.l.s4 1966171168
        %v4878 = vunpack.c.0.s8 %v4877
        %v4879 = vlaneseq
        %v4880 = vshrl.u32 %v4879, 7
        %v4881 = vsub.s32 %v4878, %v4880
        %v4882 = vrot.slane %v4860, %v4881
        %v4884 = vunpack.c.l.s4 1966171168
        %v4885 = vunpack.c.0.s8 %v4884
        %v4886 = vlaneseq
        %v4887 = vshrl.u32 %v4886, 7
        %v4888 = vsub.s32 %v4885, %v4887
        %v4889 = vrot.slane %v4861, %v4888
        %v4890 = vcombine.high %v4868, %v4868
        %v4891 = vcombine.high %v4875, %v4875
        %v4892 = vcombine.high %v4882, %v4882
        %v4893 = vcombine.high %v4889, %v4889
        %v4894 = vcombine.high %v4478, %v4478
        %v4896 = vunpack.c.l.s4 1966171168
        %v4897 = vunpack.c.0.s8 %v4896
        %v4898 = vlaneseq
        %v4899 = vshrl.u32 %v4898, 7
        %v4900 = vsub.s32 %v4897, %v4899
        %v4901 = vrot.slane %v4478, %v4900
        %v4903 = vunpack.c.l.s4 1966171168
        %v4904 = vunpack.c.0.s8 %v4903
        %v4905 = vlaneseq
        %v4906 = vshrl.u32 %v4905, 7
        %v4907 = vsub.s32 %v4904, %v4906
        %v4908 = vrot.slane %v4894, %v4907
        %v4909 = vcombine.high %v4901, %v4901
        %v4910 = vcombine.high %v4908, %v4908
        %v4912 = vunpack.c.l.s4 1966171168
        %v4913 = vunpack.c.0.s8 %v4912
        %v4914 = vlaneseq
        %v4915 = vshrl.u32 %v4914, 7
        %v4916 = vsub.s32 %v4913, %v4915
        %v4917 = vrot.slane %v4901, %v4916
        %v4919 = vunpack.c.l.s4 1966171168
        %v4920 = vunpack.c.0.s8 %v4919
        %v4921 = vlaneseq
        %v4922 = vshrl.u32 %v4921, 7
        %v4923 = vsub.s32 %v4920, %v4922
        %v4924 = vrot.slane %v4908, %v4923
        %v4926 = vunpack.c.l.s4 1966171168
        %v4927 = vunpack.c.0.s8 %v4926
        %v4928 = vlaneseq
        %v4929 = vshrl.u32 %v4928, 7
        %v4930 = vsub.s32 %v4927, %v4929
        %v4931 = vrot.slane %v4909, %v4930
        %v4933 = vunpack.c.l.s4 1966171168
        %v4934 = vunpack.c.0.s8 %v4933
        %v4935 = vlaneseq
        %v4936 = vshrl.u32 %v4935, 7
        %v4937 = vsub.s32 %v4934, %v4936
        %v4938 = vrot.slane %v4910, %v4937
        %v4939 = vcombine.high %v4917, %v4917
        %v4940 = vcombine.high %v4924, %v4924
        %v4941 = vcombine.high %v4931, %v4931
        %v4942 = vcombine.high %v4938, %v4938
        %v4943 = vcombine.high %v4479, %v4479
        %v4945 = vunpack.c.l.s4 1966171168
        %v4946 = vunpack.c.0.s8 %v4945
        %v4947 = vlaneseq
        %v4948 = vshrl.u32 %v4947, 7
        %v4949 = vsub.s32 %v4946, %v4948
        %v4950 = vrot.slane %v4479, %v4949
        %v4952 = vunpack.c.l.s4 1966171168
        %v4953 = vunpack.c.0.s8 %v4952
        %v4954 = vlaneseq
        %v4955 = vshrl.u32 %v4954, 7
        %v4956 = vsub.s32 %v4953, %v4955
        %v4957 = vrot.slane %v4943, %v4956
        %v4958 = vcombine.high %v4950, %v4950
        %v4959 = vcombine.high %v4957, %v4957
        %v4961 = vunpack.c.l.s4 1966171168
        %v4962 = vunpack.c.0.s8 %v4961
        %v4963 = vlaneseq
        %v4964 = vshrl.u32 %v4963, 7
        %v4965 = vsub.s32 %v4962, %v4964
        %v4966 = vrot.slane %v4950, %v4965
        %v4968 = vunpack.c.l.s4 1966171168
        %v4969 = vunpack.c.0.s8 %v4968
        %v4970 = vlaneseq
        %v4971 = vshrl.u32 %v4970, 7
        %v4972 = vsub.s32 %v4969, %v4971
        %v4973 = vrot.slane %v4957, %v4972
        %v4975 = vunpack.c.l.s4 1966171168
        %v4976 = vunpack.c.0.s8 %v4975
        %v4977 = vlaneseq
        %v4978 = vshrl.u32 %v4977, 7
        %v4979 = vsub.s32 %v4976, %v4978
        %v4980 = vrot.slane %v4958, %v4979
        %v4982 = vunpack.c.l.s4 1966171168
        %v4983 = vunpack.c.0.s8 %v4982
        %v4984 = vlaneseq
        %v4985 = vshrl.u32 %v4984, 7
        %v4986 = vsub.s32 %v4983, %v4985
        %v4987 = vrot.slane %v4959, %v4986
        %v4988 = vcombine.high %v4966, %v4966
        %v4989 = vcombine.high %v4973, %v4973
        %v4990 = vcombine.high %v4980, %v4980
        %v4991 = vcombine.high %v4987, %v4987
        %v4992 = vcombine.high %v4480, %v4480
        %v4994 = vunpack.c.l.s4 1966171168
        %v4995 = vunpack.c.0.s8 %v4994
        %v4996 = vlaneseq
        %v4997 = vshrl.u32 %v4996, 7
        %v4998 = vsub.s32 %v4995, %v4997
        %v4999 = vrot.slane %v4480, %v4998
        %v5001 = vunpack.c.l.s4 1966171168
        %v5002 = vunpack.c.0.s8 %v5001
        %v5003 = vlaneseq
        %v5004 = vshrl.u32 %v5003, 7
        %v5005 = vsub.s32 %v5002, %v5004
        %v5006 = vrot.slane %v4992, %v5005
        %v5007 = vcombine.high %v4999, %v4999
        %v5008 = vcombine.high %v5006, %v5006
        %v5010 = vunpack.c.l.s4 1966171168
        %v5011 = vunpack.c.0.s8 %v5010
        %v5012 = vlaneseq
        %v5013 = vshrl.u32 %v5012, 7
        %v5014 = vsub.s32 %v5011, %v5013
        %v5015 = vrot.slane %v4999, %v5014
        %v5017 = vunpack.c.l.s4 1966171168
        %v5018 = vunpack.c.0.s8 %v5017
        %v5019 = vlaneseq
        %v5020 = vshrl.u32 %v5019, 7
        %v5021 = vsub.s32 %v5018, %v5020
        %v5022 = vrot.slane %v5006, %v5021
        %v5024 = vunpack.c.l.s4 1966171168
        %v5025 = vunpack.c.0.s8 %v5024
        %v5026 = vlaneseq
        %v5027 = vshrl.u32 %v5026, 7
        %v5028 = vsub.s32 %v5025, %v5027
        %v5029 = vrot.slane %v5007, %v5028
        %v5031 = vunpack.c.l.s4 1966171168
        %v5032 = vunpack.c.0.s8 %v5031
        %v5033 = vlaneseq
        %v5034 = vshrl.u32 %v5033, 7
        %v5035 = vsub.s32 %v5032, %v5034
        %v5036 = vrot.slane %v5008, %v5035
        %v5037 = vcombine.high %v5015, %v5015
        %v5038 = vcombine.high %v5022, %v5022
        %v5039 = vcombine.high %v5029, %v5029
        %v5040 = vcombine.high %v5036, %v5036
        %v5041 = vcombine.high %v4481, %v4481
        %v5043 = vunpack.c.l.s4 1966171168
        %v5044 = vunpack.c.0.s8 %v5043
        %v5045 = vlaneseq
        %v5046 = vshrl.u32 %v5045, 7
        %v5047 = vsub.s32 %v5044, %v5046
        %v5048 = vrot.slane %v4481, %v5047
        %v5050 = vunpack.c.l.s4 1966171168
        %v5051 = vunpack.c.0.s8 %v5050
        %v5052 = vlaneseq
        %v5053 = vshrl.u32 %v5052, 7
        %v5054 = vsub.s32 %v5051, %v5053
        %v5055 = vrot.slane %v5041, %v5054
        %v5056 = vcombine.high %v5048, %v5048
        %v5057 = vcombine.high %v5055, %v5055
        %v5059 = vunpack.c.l.s4 1966171168
        %v5060 = vunpack.c.0.s8 %v5059
        %v5061 = vlaneseq
        %v5062 = vshrl.u32 %v5061, 7
        %v5063 = vsub.s32 %v5060, %v5062
        %v5064 = vrot.slane %v5048, %v5063
        %v5066 = vunpack.c.l.s4 1966171168
        %v5067 = vunpack.c.0.s8 %v5066
        %v5068 = vlaneseq
        %v5069 = vshrl.u32 %v5068, 7
        %v5070 = vsub.s32 %v5067, %v5069
        %v5071 = vrot.slane %v5055, %v5070
        %v5073 = vunpack.c.l.s4 1966171168
        %v5074 = vunpack.c.0.s8 %v5073
        %v5075 = vlaneseq
        %v5076 = vshrl.u32 %v5075, 7
        %v5077 = vsub.s32 %v5074, %v5076
        %v5078 = vrot.slane %v5056, %v5077
        %v5080 = vunpack.c.l.s4 1966171168
        %v5081 = vunpack.c.0.s8 %v5080
        %v5082 = vlaneseq
        %v5083 = vshrl.u32 %v5082, 7
        %v5084 = vsub.s32 %v5081, %v5083
        %v5085 = vrot.slane %v5057, %v5084
        %v5086 = vcombine.high %v5064, %v5064
        %v5087 = vcombine.high %v5071, %v5071
        %v5088 = vcombine.high %v5078, %v5078
        %v5089 = vcombine.high %v5085, %v5085
        %v5090 = vcombine.high %v4482, %v4482
        %v5092 = vunpack.c.l.s4 1966171168
        %v5093 = vunpack.c.0.s8 %v5092
        %v5094 = vlaneseq
        %v5095 = vshrl.u32 %v5094, 7
        %v5096 = vsub.s32 %v5093, %v5095
        %v5097 = vrot.slane %v4482, %v5096
        %v5099 = vunpack.c.l.s4 1966171168
        %v5100 = vunpack.c.0.s8 %v5099
        %v5101 = vlaneseq
        %v5102 = vshrl.u32 %v5101, 7
        %v5103 = vsub.s32 %v5100, %v5102
        %v5104 = vrot.slane %v5090, %v5103
        %v5105 = vcombine.high %v5097, %v5097
        %v5106 = vcombine.high %v5104, %v5104
        %v5108 = vunpack.c.l.s4 1966171168
        %v5109 = vunpack.c.0.s8 %v5108
        %v5110 = vlaneseq
        %v5111 = vshrl.u32 %v5110, 7
        %v5112 = vsub.s32 %v5109, %v5111
        %v5113 = vrot.slane %v5097, %v5112
        %v5115 = vunpack.c.l.s4 1966171168
        %v5116 = vunpack.c.0.s8 %v5115
        %v5117 = vlaneseq
        %v5118 = vshrl.u32 %v5117, 7
        %v5119 = vsub.s32 %v5116, %v5118
        %v5120 = vrot.slane %v5104, %v5119
        %v5122 = vunpack.c.l.s4 1966171168
        %v5123 = vunpack.c.0.s8 %v5122
        %v5124 = vlaneseq
        %v5125 = vshrl.u32 %v5124, 7
        %v5126 = vsub.s32 %v5123, %v5125
        %v5127 = vrot.slane %v5105, %v5126
        %v5129 = vunpack.c.l.s4 1966171168
        %v5130 = vunpack.c.0.s8 %v5129
        %v5131 = vlaneseq
        %v5132 = vshrl.u32 %v5131, 7
        %v5133 = vsub.s32 %v5130, %v5132
        %v5134 = vrot.slane %v5106, %v5133
        %v5135 = vcombine.high %v5113, %v5113
        %v5136 = vcombine.high %v5120, %v5120
        %v5137 = vcombine.high %v5127, %v5127
        %v5138 = vcombine.high %v5134, %v5134
        %v5139 = vcombine.high %v4483, %v4483
        %v5141 = vunpack.c.l.s4 1966171168
        %v5142 = vunpack.c.0.s8 %v5141
        %v5143 = vlaneseq
        %v5144 = vshrl.u32 %v5143, 7
        %v5145 = vsub.s32 %v5142, %v5144
        %v5146 = vrot.slane %v4483, %v5145
        %v5148 = vunpack.c.l.s4 1966171168
        %v5149 = vunpack.c.0.s8 %v5148
        %v5150 = vlaneseq
        %v5151 = vshrl.u32 %v5150, 7
        %v5152 = vsub.s32 %v5149, %v5151
        %v5153 = vrot.slane %v5139, %v5152
        %v5154 = vcombine.high %v5146, %v5146
        %v5155 = vcombine.high %v5153, %v5153
        %v5157 = vunpack.c.l.s4 1966171168
        %v5158 = vunpack.c.0.s8 %v5157
        %v5159 = vlaneseq
        %v5160 = vshrl.u32 %v5159, 7
        %v5161 = vsub.s32 %v5158, %v5160
        %v5162 = vrot.slane %v5146, %v5161
        %v5164 = vunpack.c.l.s4 1966171168
        %v5165 = vunpack.c.0.s8 %v5164
        %v5166 = vlaneseq
        %v5167 = vshrl.u32 %v5166, 7
        %v5168 = vsub.s32 %v5165, %v5167
        %v5169 = vrot.slane %v5153, %v5168
        %v5171 = vunpack.c.l.s4 1966171168
        %v5172 = vunpack.c.0.s8 %v5171
        %v5173 = vlaneseq
        %v5174 = vshrl.u32 %v5173, 7
        %v5175 = vsub.s32 %v5172, %v5174
        %v5176 = vrot.slane %v5154, %v5175
        %v5178 = vunpack.c.l.s4 1966171168
        %v5179 = vunpack.c.0.s8 %v5178
        %v5180 = vlaneseq
        %v5181 = vshrl.u32 %v5180, 7
        %v5182 = vsub.s32 %v5179, %v5181
        %v5183 = vrot.slane %v5155, %v5182
        %v5184 = vcombine.high %v5162, %v5162
        %v5185 = vcombine.high %v5169, %v5169
        %v5186 = vcombine.high %v5176, %v5176
        %v5187 = vcombine.high %v5183, %v5183
        %v5188 = vcombine.high %v4484, %v4484
        %v5190 = vunpack.c.l.s4 1966171168
        %v5191 = vunpack.c.0.s8 %v5190
        %v5192 = vlaneseq
        %v5193 = vshrl.u32 %v5192, 7
        %v5194 = vsub.s32 %v5191, %v5193
        %v5195 = vrot.slane %v4484, %v5194
        %v5197 = vunpack.c.l.s4 1966171168
        %v5198 = vunpack.c.0.s8 %v5197
        %v5199 = vlaneseq
        %v5200 = vshrl.u32 %v5199, 7
        %v5201 = vsub.s32 %v5198, %v5200
        %v5202 = vrot.slane %v5188, %v5201
        %v5203 = vcombine.high %v5195, %v5195
        %v5204 = vcombine.high %v5202, %v5202
        %v5206 = vunpack.c.l.s4 1966171168
        %v5207 = vunpack.c.0.s8 %v5206
        %v5208 = vlaneseq
        %v5209 = vshrl.u32 %v5208, 7
        %v5210 = vsub.s32 %v5207, %v5209
        %v5211 = vrot.slane %v5195, %v5210
        %v5213 = vunpack.c.l.s4 1966171168
        %v5214 = vunpack.c.0.s8 %v5213
        %v5215 = vlaneseq
        %v5216 = vshrl.u32 %v5215, 7
        %v5217 = vsub.s32 %v5214, %v5216
        %v5218 = vrot.slane %v5202, %v5217
        %v5220 = vunpack.c.l.s4 1966171168
        %v5221 = vunpack.c.0.s8 %v5220
        %v5222 = vlaneseq
        %v5223 = vshrl.u32 %v5222, 7
        %v5224 = vsub.s32 %v5221, %v5223
        %v5225 = vrot.slane %v5203, %v5224
        %v5227 = vunpack.c.l.s4 1966171168
        %v5228 = vunpack.c.0.s8 %v5227
        %v5229 = vlaneseq
        %v5230 = vshrl.u32 %v5229, 7
        %v5231 = vsub.s32 %v5228, %v5230
        %v5232 = vrot.slane %v5204, %v5231
        %v5233 = vcombine.high %v5211, %v5211
        %v5234 = vcombine.high %v5218, %v5218
        %v5235 = vcombine.high %v5225, %v5225
        %v5236 = vcombine.high %v5232, %v5232
        %v5237 = vcombine.high %v4485, %v4485
        %v5239 = vunpack.c.l.s4 1966171168
        %v5240 = vunpack.c.0.s8 %v5239
        %v5241 = vlaneseq
        %v5242 = vshrl.u32 %v5241, 7
        %v5243 = vsub.s32 %v5240, %v5242
        %v5244 = vrot.slane %v4485, %v5243
        %v5246 = vunpack.c.l.s4 1966171168
        %v5247 = vunpack.c.0.s8 %v5246
        %v5248 = vlaneseq
        %v5249 = vshrl.u32 %v5248, 7
        %v5250 = vsub.s32 %v5247, %v5249
        %v5251 = vrot.slane %v5237, %v5250
        %v5252 = vcombine.high %v5244, %v5244
        %v5253 = vcombine.high %v5251, %v5251
        %v5255 = vunpack.c.l.s4 1966171168
        %v5256 = vunpack.c.0.s8 %v5255
        %v5257 = vlaneseq
        %v5258 = vshrl.u32 %v5257, 7
        %v5259 = vsub.s32 %v5256, %v5258
        %v5260 = vrot.slane %v5244, %v5259
        %v5262 = vunpack.c.l.s4 1966171168
        %v5263 = vunpack.c.0.s8 %v5262
        %v5264 = vlaneseq
        %v5265 = vshrl.u32 %v5264, 7
        %v5266 = vsub.s32 %v5263, %v5265
        %v5267 = vrot.slane %v5251, %v5266
        %v5269 = vunpack.c.l.s4 1966171168
        %v5270 = vunpack.c.0.s8 %v5269
        %v5271 = vlaneseq
        %v5272 = vshrl.u32 %v5271, 7
        %v5273 = vsub.s32 %v5270, %v5272
        %v5274 = vrot.slane %v5252, %v5273
        %v5276 = vunpack.c.l.s4 1966171168
        %v5277 = vunpack.c.0.s8 %v5276
        %v5278 = vlaneseq
        %v5279 = vshrl.u32 %v5278, 7
        %v5280 = vsub.s32 %v5277, %v5279
        %v5281 = vrot.slane %v5253, %v5280
        %v5282 = vcombine.high %v5260, %v5260
        %v5283 = vcombine.high %v5267, %v5267
        %v5284 = vcombine.high %v5274, %v5274
        %v5285 = vcombine.high %v5281, %v5281
        %v5286 = vcombine.high %v4486, %v4486
        %v5288 = vunpack.c.l.s4 1966171168
        %v5289 = vunpack.c.0.s8 %v5288
        %v5290 = vlaneseq
        %v5291 = vshrl.u32 %v5290, 7
        %v5292 = vsub.s32 %v5289, %v5291
        %v5293 = vrot.slane %v4486, %v5292
        %v5295 = vunpack.c.l.s4 1966171168
        %v5296 = vunpack.c.0.s8 %v5295
        %v5297 = vlaneseq
        %v5298 = vshrl.u32 %v5297, 7
        %v5299 = vsub.s32 %v5296, %v5298
        %v5300 = vrot.slane %v5286, %v5299
        %v5301 = vcombine.high %v5293, %v5293
        %v5302 = vcombine.high %v5300, %v5300
        %v5304 = vunpack.c.l.s4 1966171168
        %v5305 = vunpack.c.0.s8 %v5304
        %v5306 = vlaneseq
        %v5307 = vshrl.u32 %v5306, 7
        %v5308 = vsub.s32 %v5305, %v5307
        %v5309 = vrot.slane %v5293, %v5308
        %v5311 = vunpack.c.l.s4 1966171168
        %v5312 = vunpack.c.0.s8 %v5311
        %v5313 = vlaneseq
        %v5314 = vshrl.u32 %v5313, 7
        %v5315 = vsub.s32 %v5312, %v5314
        %v5316 = vrot.slane %v5300, %v5315
        %v5318 = vunpack.c.l.s4 1966171168
        %v5319 = vunpack.c.0.s8 %v5318
        %v5320 = vlaneseq
        %v5321 = vshrl.u32 %v5320, 7
        %v5322 = vsub.s32 %v5319, %v5321
        %v5323 = vrot.slane %v5301, %v5322
        %v5325 = vunpack.c.l.s4 1966171168
        %v5326 = vunpack.c.0.s8 %v5325
        %v5327 = vlaneseq
        %v5328 = vshrl.u32 %v5327, 7
        %v5329 = vsub.s32 %v5326, %v5328
        %v5330 = vrot.slane %v5302, %v5329
        %v5331 = vcombine.high %v5309, %v5309
        %v5332 = vcombine.high %v5316, %v5316
        %v5333 = vcombine.high %v5323, %v5323
        %v5334 = vcombine.high %v5330, %v5330
        %v5335 = vcombine.high %v4487, %v4487
        %v5337 = vunpack.c.l.s4 1966171168
        %v5338 = vunpack.c.0.s8 %v5337
        %v5339 = vlaneseq
        %v5340 = vshrl.u32 %v5339, 7
        %v5341 = vsub.s32 %v5338, %v5340
        %v5342 = vrot.slane %v4487, %v5341
        %v5344 = vunpack.c.l.s4 1966171168
        %v5345 = vunpack.c.0.s8 %v5344
        %v5346 = vlaneseq
        %v5347 = vshrl.u32 %v5346, 7
        %v5348 = vsub.s32 %v5345, %v5347
        %v5349 = vrot.slane %v5335, %v5348
        %v5350 = vcombine.high %v5342, %v5342
        %v5351 = vcombine.high %v5349, %v5349
        %v5353 = vunpack.c.l.s4 1966171168
        %v5354 = vunpack.c.0.s8 %v5353
        %v5355 = vlaneseq
        %v5356 = vshrl.u32 %v5355, 7
        %v5357 = vsub.s32 %v5354, %v5356
        %v5358 = vrot.slane %v5342, %v5357
        %v5360 = vunpack.c.l.s4 1966171168
        %v5361 = vunpack.c.0.s8 %v5360
        %v5362 = vlaneseq
        %v5363 = vshrl.u32 %v5362, 7
        %v5364 = vsub.s32 %v5361, %v5363
        %v5365 = vrot.slane %v5349, %v5364
        %v5367 = vunpack.c.l.s4 1966171168
        %v5368 = vunpack.c.0.s8 %v5367
        %v5369 = vlaneseq
        %v5370 = vshrl.u32 %v5369, 7
        %v5371 = vsub.s32 %v5368, %v5370
        %v5372 = vrot.slane %v5350, %v5371
        %v5374 = vunpack.c.l.s4 1966171168
        %v5375 = vunpack.c.0.s8 %v5374
        %v5376 = vlaneseq
        %v5377 = vshrl.u32 %v5376, 7
        %v5378 = vsub.s32 %v5375, %v5377
        %v5379 = vrot.slane %v5351, %v5378
        %v5380 = vcombine.high %v5358, %v5358
        %v5381 = vcombine.high %v5365, %v5365
        %v5382 = vcombine.high %v5372, %v5372
        %v5383 = vcombine.high %v5379, %v5379
        %v5384 = vcombine.high %v4488, %v4488
        %v5386 = vunpack.c.l.s4 1966171168
        %v5387 = vunpack.c.0.s8 %v5386
        %v5388 = vlaneseq
        %v5389 = vshrl.u32 %v5388, 7
        %v5390 = vsub.s32 %v5387, %v5389
        %v5391 = vrot.slane %v4488, %v5390
        %v5393 = vunpack.c.l.s4 1966171168
        %v5394 = vunpack.c.0.s8 %v5393
        %v5395 = vlaneseq
        %v5396 = vshrl.u32 %v5395, 7
        %v5397 = vsub.s32 %v5394, %v5396
        %v5398 = vrot.slane %v5384, %v5397
        %v5399 = vcombine.high %v5391, %v5391
        %v5400 = vcombine.high %v5398, %v5398
        %v5402 = vunpack.c.l.s4 1966171168
        %v5403 = vunpack.c.0.s8 %v5402
        %v5404 = vlaneseq
        %v5405 = vshrl.u32 %v5404, 7
        %v5406 = vsub.s32 %v5403, %v5405
        %v5407 = vrot.slane %v5391, %v5406
        %v5409 = vunpack.c.l.s4 1966171168
        %v5410 = vunpack.c.0.s8 %v5409
        %v5411 = vlaneseq
        %v5412 = vshrl.u32 %v5411, 7
        %v5413 = vsub.s32 %v5410, %v5412
        %v5414 = vrot.slane %v5398, %v5413
        %v5416 = vunpack.c.l.s4 1966171168
        %v5417 = vunpack.c.0.s8 %v5416
        %v5418 = vlaneseq
        %v5419 = vshrl.u32 %v5418, 7
        %v5420 = vsub.s32 %v5417, %v5419
        %v5421 = vrot.slane %v5399, %v5420
        %v5423 = vunpack.c.l.s4 1966171168
        %v5424 = vunpack.c.0.s8 %v5423
        %v5425 = vlaneseq
        %v5426 = vshrl.u32 %v5425, 7
        %v5427 = vsub.s32 %v5424, %v5426
        %v5428 = vrot.slane %v5400, %v5427
        %v5429 = vcombine.high %v5407, %v5407
        %v5430 = vcombine.high %v5414, %v5414
        %v5431 = vcombine.high %v5421, %v5421
        %v5432 = vcombine.high %v5428, %v5428
        %v5433 = vcombine.high %v4489, %v4489
        %v5435 = vunpack.c.l.s4 1966171168
        %v5436 = vunpack.c.0.s8 %v5435
        %v5437 = vlaneseq
        %v5438 = vshrl.u32 %v5437, 7
        %v5439 = vsub.s32 %v5436, %v5438
        %v5440 = vrot.slane %v4489, %v5439
        %v5442 = vunpack.c.l.s4 1966171168
        %v5443 = vunpack.c.0.s8 %v5442
        %v5444 = vlaneseq
        %v5445 = vshrl.u32 %v5444, 7
        %v5446 = vsub.s32 %v5443, %v5445
        %v5447 = vrot.slane %v5433, %v5446
        %v5448 = vcombine.high %v5440, %v5440
        %v5449 = vcombine.high %v5447, %v5447
        %v5451 = vunpack.c.l.s4 1966171168
        %v5452 = vunpack.c.0.s8 %v5451
        %v5453 = vlaneseq
        %v5454 = vshrl.u32 %v5453, 7
        %v5455 = vsub.s32 %v5452, %v5454
        %v5456 = vrot.slane %v5440, %v5455
        %v5458 = vunpack.c.l.s4 1966171168
        %v5459 = vunpack.c.0.s8 %v5458
        %v5460 = vlaneseq
        %v5461 = vshrl.u32 %v5460, 7
        %v5462 = vsub.s32 %v5459, %v5461
        %v5463 = vrot.slane %v5447, %v5462
        %v5465 = vunpack.c.l.s4 1966171168
        %v5466 = vunpack.c.0.s8 %v5465
        %v5467 = vlaneseq
        %v5468 = vshrl.u32 %v5467, 7
        %v5469 = vsub.s32 %v5466, %v5468
        %v5470 = vrot.slane %v5448, %v5469
        %v5472 = vunpack.c.l.s4 1966171168
        %v5473 = vunpack.c.0.s8 %v5472
        %v5474 = vlaneseq
        %v5475 = vshrl.u32 %v5474, 7
        %v5476 = vsub.s32 %v5473, %v5475
        %v5477 = vrot.slane %v5449, %v5476
        %v5478 = vcombine.high %v5456, %v5456
        %v5479 = vcombine.high %v5463, %v5463
        %v5480 = vcombine.high %v5470, %v5470
        %v5481 = vcombine.high %v5477, %v5477
        %v5482 = vcombine.high %v4490, %v4490
        %v5484 = vunpack.c.l.s4 1966171168
        %v5485 = vunpack.c.0.s8 %v5484
        %v5486 = vlaneseq
        %v5487 = vshrl.u32 %v5486, 7
        %v5488 = vsub.s32 %v5485, %v5487
        %v5489 = vrot.slane %v4490, %v5488
        %v5491 = vunpack.c.l.s4 1966171168
        %v5492 = vunpack.c.0.s8 %v5491
        %v5493 = vlaneseq
        %v5494 = vshrl.u32 %v5493, 7
        %v5495 = vsub.s32 %v5492, %v5494
        %v5496 = vrot.slane %v5482, %v5495
        %v5497 = vcombine.high %v5489, %v5489
        %v5498 = vcombine.high %v5496, %v5496
        %v5500 = vunpack.c.l.s4 1966171168
        %v5501 = vunpack.c.0.s8 %v5500
        %v5502 = vlaneseq
        %v5503 = vshrl.u32 %v5502, 7
        %v5504 = vsub.s32 %v5501, %v5503
        %v5505 = vrot.slane %v5489, %v5504
        %v5507 = vunpack.c.l.s4 1966171168
        %v5508 = vunpack.c.0.s8 %v5507
        %v5509 = vlaneseq
        %v5510 = vshrl.u32 %v5509, 7
        %v5511 = vsub.s32 %v5508, %v5510
        %v5512 = vrot.slane %v5496, %v5511
        %v5514 = vunpack.c.l.s4 1966171168
        %v5515 = vunpack.c.0.s8 %v5514
        %v5516 = vlaneseq
        %v5517 = vshrl.u32 %v5516, 7
        %v5518 = vsub.s32 %v5515, %v5517
        %v5519 = vrot.slane %v5497, %v5518
        %v5521 = vunpack.c.l.s4 1966171168
        %v5522 = vunpack.c.0.s8 %v5521
        %v5523 = vlaneseq
        %v5524 = vshrl.u32 %v5523, 7
        %v5525 = vsub.s32 %v5522, %v5524
        %v5526 = vrot.slane %v5498, %v5525
        %v5527 = vcombine.high %v5505, %v5505
        %v5528 = vcombine.high %v5512, %v5512
        %v5529 = vcombine.high %v5519, %v5519
        %v5530 = vcombine.high %v5526, %v5526
        %v5531 = vcombine.high %v4491, %v4491
        %v5533 = vunpack.c.l.s4 1966171168
        %v5534 = vunpack.c.0.s8 %v5533
        %v5535 = vlaneseq
        %v5536 = vshrl.u32 %v5535, 7
        %v5537 = vsub.s32 %v5534, %v5536
        %v5538 = vrot.slane %v4491, %v5537
        %v5540 = vunpack.c.l.s4 1966171168
        %v5541 = vunpack.c.0.s8 %v5540
        %v5542 = vlaneseq
        %v5543 = vshrl.u32 %v5542, 7
        %v5544 = vsub.s32 %v5541, %v5543
        %v5545 = vrot.slane %v5531, %v5544
        %v5546 = vcombine.high %v5538, %v5538
        %v5547 = vcombine.high %v5545, %v5545
        %v5549 = vunpack.c.l.s4 1966171168
        %v5550 = vunpack.c.0.s8 %v5549
        %v5551 = vlaneseq
        %v5552 = vshrl.u32 %v5551, 7
        %v5553 = vsub.s32 %v5550, %v5552
        %v5554 = vrot.slane %v5538, %v5553
        %v5556 = vunpack.c.l.s4 1966171168
        %v5557 = vunpack.c.0.s8 %v5556
        %v5558 = vlaneseq
        %v5559 = vshrl.u32 %v5558, 7
        %v5560 = vsub.s32 %v5557, %v5559
        %v5561 = vrot.slane %v5545, %v5560
        %v5563 = vunpack.c.l.s4 1966171168
        %v5564 = vunpack.c.0.s8 %v5563
        %v5565 = vlaneseq
        %v5566 = vshrl.u32 %v5565, 7
        %v5567 = vsub.s32 %v5564, %v5566
        %v5568 = vrot.slane %v5546, %v5567
        %v5570 = vunpack.c.l.s4 1966171168
        %v5571 = vunpack.c.0.s8 %v5570
        %v5572 = vlaneseq
        %v5573 = vshrl.u32 %v5572, 7
        %v5574 = vsub.s32 %v5571, %v5573
        %v5575 = vrot.slane %v5547, %v5574
        %v5576 = vcombine.high %v5554, %v5554
        %v5577 = vcombine.high %v5561, %v5561
        %v5578 = vcombine.high %v5568, %v5568
        %v5579 = vcombine.high %v5575, %v5575
        %v5580 = vcombine.high %v4492, %v4492
        %v5582 = vunpack.c.l.s4 1966171168
        %v5583 = vunpack.c.0.s8 %v5582
        %v5584 = vlaneseq
        %v5585 = vshrl.u32 %v5584, 7
        %v5586 = vsub.s32 %v5583, %v5585
        %v5587 = vrot.slane %v4492, %v5586
        %v5589 = vunpack.c.l.s4 1966171168
        %v5590 = vunpack.c.0.s8 %v5589
        %v5591 = vlaneseq
        %v5592 = vshrl.u32 %v5591, 7
        %v5593 = vsub.s32 %v5590, %v5592
        %v5594 = vrot.slane %v5580, %v5593
        %v5595 = vcombine.high %v5587, %v5587
        %v5596 = vcombine.high %v5594, %v5594
        %v5598 = vunpack.c.l.s4 1966171168
        %v5599 = vunpack.c.0.s8 %v5598
        %v5600 = vlaneseq
        %v5601 = vshrl.u32 %v5600, 7
        %v5602 = vsub.s32 %v5599, %v5601
        %v5603 = vrot.slane %v5587, %v5602
        %v5605 = vunpack.c.l.s4 1966171168
        %v5606 = vunpack.c.0.s8 %v5605
        %v5607 = vlaneseq
        %v5608 = vshrl.u32 %v5607, 7
        %v5609 = vsub.s32 %v5606, %v5608
        %v5610 = vrot.slane %v5594, %v5609
        %v5612 = vunpack.c.l.s4 1966171168
        %v5613 = vunpack.c.0.s8 %v5612
        %v5614 = vlaneseq
        %v5615 = vshrl.u32 %v5614, 7
        %v5616 = vsub.s32 %v5613, %v5615
        %v5617 = vrot.slane %v5595, %v5616
        %v5619 = vunpack.c.l.s4 1966171168
        %v5620 = vunpack.c.0.s8 %v5619
        %v5621 = vlaneseq
        %v5622 = vshrl.u32 %v5621, 7
        %v5623 = vsub.s32 %v5620, %v5622
        %v5624 = vrot.slane %v5596, %v5623
        %v5625 = vcombine.high %v5603, %v5603
        %v5626 = vcombine.high %v5610, %v5610
        %v5627 = vcombine.high %v5617, %v5617
        %v5628 = vcombine.high %v5624, %v5624
        %v5629 = vcombine.high %v4493, %v4493
        %v5631 = vunpack.c.l.s4 1966171168
        %v5632 = vunpack.c.0.s8 %v5631
        %v5633 = vlaneseq
        %v5634 = vshrl.u32 %v5633, 7
        %v5635 = vsub.s32 %v5632, %v5634
        %v5636 = vrot.slane %v4493, %v5635
        %v5638 = vunpack.c.l.s4 1966171168
        %v5639 = vunpack.c.0.s8 %v5638
        %v5640 = vlaneseq
        %v5641 = vshrl.u32 %v5640, 7
        %v5642 = vsub.s32 %v5639, %v5641
        %v5643 = vrot.slane %v5629, %v5642
        %v5644 = vcombine.high %v5636, %v5636
        %v5645 = vcombine.high %v5643, %v5643
        %v5647 = vunpack.c.l.s4 1966171168
        %v5648 = vunpack.c.0.s8 %v5647
        %v5649 = vlaneseq
        %v5650 = vshrl.u32 %v5649, 7
        %v5651 = vsub.s32 %v5648, %v5650
        %v5652 = vrot.slane %v5636, %v5651
        %v5654 = vunpack.c.l.s4 1966171168
        %v5655 = vunpack.c.0.s8 %v5654
        %v5656 = vlaneseq
        %v5657 = vshrl.u32 %v5656, 7
        %v5658 = vsub.s32 %v5655, %v5657
        %v5659 = vrot.slane %v5643, %v5658
        %v5661 = vunpack.c.l.s4 1966171168
        %v5662 = vunpack.c.0.s8 %v5661
        %v5663 = vlaneseq
        %v5664 = vshrl.u32 %v5663, 7
        %v5665 = vsub.s32 %v5662, %v5664
        %v5666 = vrot.slane %v5644, %v5665
        %v5668 = vunpack.c.l.s4 1966171168
        %v5669 = vunpack.c.0.s8 %v5668
        %v5670 = vlaneseq
        %v5671 = vshrl.u32 %v5670, 7
        %v5672 = vsub.s32 %v5669, %v5671
        %v5673 = vrot.slane %v5645, %v5672
        %v5674 = vcombine.high %v5652, %v5652
        %v5675 = vcombine.high %v5659, %v5659
        %v5676 = vcombine.high %v5666, %v5666
        %v5677 = vcombine.high %v5673, %v5673
        %v5678 = vcombine.high %v4494, %v4494
        %v5680 = vunpack.c.l.s4 1966171168
        %v5681 = vunpack.c.0.s8 %v5680
        %v5682 = vlaneseq
        %v5683 = vshrl.u32 %v5682, 7
        %v5684 = vsub.s32 %v5681, %v5683
        %v5685 = vrot.slane %v4494, %v5684
        %v5687 = vunpack.c.l.s4 1966171168
        %v5688 = vunpack.c.0.s8 %v5687
        %v5689 = vlaneseq
        %v5690 = vshrl.u32 %v5689, 7
        %v5691 = vsub.s32 %v5688, %v5690
        %v5692 = vrot.slane %v5678, %v5691
        %v5693 = vcombine.high %v5685, %v5685
        %v5694 = vcombine.high %v5692, %v5692
        %v5696 = vunpack.c.l.s4 1966171168
        %v5697 = vunpack.c.0.s8 %v5696
        %v5698 = vlaneseq
        %v5699 = vshrl.u32 %v5698, 7
        %v5700 = vsub.s32 %v5697, %v5699
        %v5701 = vrot.slane %v5685, %v5700
        %v5703 = vunpack.c.l.s4 1966171168
        %v5704 = vunpack.c.0.s8 %v5703
        %v5705 = vlaneseq
        %v5706 = vshrl.u32 %v5705, 7
        %v5707 = vsub.s32 %v5704, %v5706
        %v5708 = vrot.slane %v5692, %v5707
        %v5710 = vunpack.c.l.s4 1966171168
        %v5711 = vunpack.c.0.s8 %v5710
        %v5712 = vlaneseq
        %v5713 = vshrl.u32 %v5712, 7
        %v5714 = vsub.s32 %v5711, %v5713
        %v5715 = vrot.slane %v5693, %v5714
        %v5717 = vunpack.c.l.s4 1966171168
        %v5718 = vunpack.c.0.s8 %v5717
        %v5719 = vlaneseq
        %v5720 = vshrl.u32 %v5719, 7
        %v5721 = vsub.s32 %v5718, %v5720
        %v5722 = vrot.slane %v5694, %v5721
        %v5723 = vcombine.high %v5701, %v5701
        %v5724 = vcombine.high %v5708, %v5708
        %v5725 = vcombine.high %v5715, %v5715
        %v5726 = vcombine.high %v5722, %v5722
        %v5727 = vcombine.high %v4495, %v4495
        %v5729 = vunpack.c.l.s4 1966171168
        %v5730 = vunpack.c.0.s8 %v5729
        %v5731 = vlaneseq
        %v5732 = vshrl.u32 %v5731, 7
        %v5733 = vsub.s32 %v5730, %v5732
        %v5734 = vrot.slane %v4495, %v5733
        %v5736 = vunpack.c.l.s4 1966171168
        %v5737 = vunpack.c.0.s8 %v5736
        %v5738 = vlaneseq
        %v5739 = vshrl.u32 %v5738, 7
        %v5740 = vsub.s32 %v5737, %v5739
        %v5741 = vrot.slane %v5727, %v5740
        %v5742 = vcombine.high %v5734, %v5734
        %v5743 = vcombine.high %v5741, %v5741
        %v5745 = vunpack.c.l.s4 1966171168
        %v5746 = vunpack.c.0.s8 %v5745
        %v5747 = vlaneseq
        %v5748 = vshrl.u32 %v5747, 7
        %v5749 = vsub.s32 %v5746, %v5748
        %v5750 = vrot.slane %v5734, %v5749
        %v5752 = vunpack.c.l.s4 1966171168
        %v5753 = vunpack.c.0.s8 %v5752
        %v5754 = vlaneseq
        %v5755 = vshrl.u32 %v5754, 7
        %v5756 = vsub.s32 %v5753, %v5755
        %v5757 = vrot.slane %v5741, %v5756
        %v5759 = vunpack.c.l.s4 1966171168
        %v5760 = vunpack.c.0.s8 %v5759
        %v5761 = vlaneseq
        %v5762 = vshrl.u32 %v5761, 7
        %v5763 = vsub.s32 %v5760, %v5762
        %v5764 = vrot.slane %v5742, %v5763
        %v5766 = vunpack.c.l.s4 1966171168
        %v5767 = vunpack.c.0.s8 %v5766
        %v5768 = vlaneseq
        %v5769 = vshrl.u32 %v5768, 7
        %v5770 = vsub.s32 %v5767, %v5769
        %v5771 = vrot.slane %v5743, %v5770
        %v5772 = vcombine.high %v5750, %v5750
        %v5773 = vcombine.high %v5757, %v5757
        %v5774 = vcombine.high %v5764, %v5764
        %v5775 = vcombine.high %v5771, %v5771
        %v5776 = vcombine.high %v4496, %v4496
        %v5778 = vunpack.c.l.s4 1966171168
        %v5779 = vunpack.c.0.s8 %v5778
        %v5780 = vlaneseq
        %v5781 = vshrl.u32 %v5780, 7
        %v5782 = vsub.s32 %v5779, %v5781
        %v5783 = vrot.slane %v4496, %v5782
        %v5785 = vunpack.c.l.s4 1966171168
        %v5786 = vunpack.c.0.s8 %v5785
        %v5787 = vlaneseq
        %v5788 = vshrl.u32 %v5787, 7
        %v5789 = vsub.s32 %v5786, %v5788
        %v5790 = vrot.slane %v5776, %v5789
        %v5791 = vcombine.high %v5783, %v5783
        %v5792 = vcombine.high %v5790, %v5790
        %v5794 = vunpack.c.l.s4 1966171168
        %v5795 = vunpack.c.0.s8 %v5794
        %v5796 = vlaneseq
        %v5797 = vshrl.u32 %v5796, 7
        %v5798 = vsub.s32 %v5795, %v5797
        %v5799 = vrot.slane %v5783, %v5798
        %v5801 = vunpack.c.l.s4 1966171168
        %v5802 = vunpack.c.0.s8 %v5801
        %v5803 = vlaneseq
        %v5804 = vshrl.u32 %v5803, 7
        %v5805 = vsub.s32 %v5802, %v5804
        %v5806 = vrot.slane %v5790, %v5805
        %v5808 = vunpack.c.l.s4 1966171168
        %v5809 = vunpack.c.0.s8 %v5808
        %v5810 = vlaneseq
        %v5811 = vshrl.u32 %v5810, 7
        %v5812 = vsub.s32 %v5809, %v5811
        %v5813 = vrot.slane %v5791, %v5812
        %v5815 = vunpack.c.l.s4 1966171168
        %v5816 = vunpack.c.0.s8 %v5815
        %v5817 = vlaneseq
        %v5818 = vshrl.u32 %v5817, 7
        %v5819 = vsub.s32 %v5816, %v5818
        %v5820 = vrot.slane %v5792, %v5819
        %v5821 = vcombine.high %v5799, %v5799
        %v5822 = vcombine.high %v5806, %v5806
        %v5823 = vcombine.high %v5813, %v5813
        %v5824 = vcombine.high %v5820, %v5820
        %v5825 = vcombine.high %v4497, %v4497
        %v5827 = vunpack.c.l.s4 1966171168
        %v5828 = vunpack.c.0.s8 %v5827
        %v5829 = vlaneseq
        %v5830 = vshrl.u32 %v5829, 7
        %v5831 = vsub.s32 %v5828, %v5830
        %v5832 = vrot.slane %v4497, %v5831
        %v5834 = vunpack.c.l.s4 1966171168
        %v5835 = vunpack.c.0.s8 %v5834
        %v5836 = vlaneseq
        %v5837 = vshrl.u32 %v5836, 7
        %v5838 = vsub.s32 %v5835, %v5837
        %v5839 = vrot.slane %v5825, %v5838
        %v5840 = vcombine.high %v5832, %v5832
        %v5841 = vcombine.high %v5839, %v5839
        %v5843 = vunpack.c.l.s4 1966171168
        %v5844 = vunpack.c.0.s8 %v5843
        %v5845 = vlaneseq
        %v5846 = vshrl.u32 %v5845, 7
        %v5847 = vsub.s32 %v5844, %v5846
        %v5848 = vrot.slane %v5832, %v5847
        %v5850 = vunpack.c.l.s4 1966171168
        %v5851 = vunpack.c.0.s8 %v5850
        %v5852 = vlaneseq
        %v5853 = vshrl.u32 %v5852, 7
        %v5854 = vsub.s32 %v5851, %v5853
        %v5855 = vrot.slane %v5839, %v5854
        %v5857 = vunpack.c.l.s4 1966171168
        %v5858 = vunpack.c.0.s8 %v5857
        %v5859 = vlaneseq
        %v5860 = vshrl.u32 %v5859, 7
        %v5861 = vsub.s32 %v5858, %v5860
        %v5862 = vrot.slane %v5840, %v5861
        %v5864 = vunpack.c.l.s4 1966171168
        %v5865 = vunpack.c.0.s8 %v5864
        %v5866 = vlaneseq
        %v5867 = vshrl.u32 %v5866, 7
        %v5868 = vsub.s32 %v5865, %v5867
        %v5869 = vrot.slane %v5841, %v5868
        %v5870 = vcombine.high %v5848, %v5848
        %v5871 = vcombine.high %v5855, %v5855
        %v5872 = vcombine.high %v5862, %v5862
        %v5873 = vcombine.high %v5869, %v5869
        %v5874 = vcombine.high %v4498, %v4498
        %v5876 = vunpack.c.l.s4 1966171168
        %v5877 = vunpack.c.0.s8 %v5876
        %v5878 = vlaneseq
        %v5879 = vshrl.u32 %v5878, 7
        %v5880 = vsub.s32 %v5877, %v5879
        %v5881 = vrot.slane %v4498, %v5880
        %v5883 = vunpack.c.l.s4 1966171168
        %v5884 = vunpack.c.0.s8 %v5883
        %v5885 = vlaneseq
        %v5886 = vshrl.u32 %v5885, 7
        %v5887 = vsub.s32 %v5884, %v5886
        %v5888 = vrot.slane %v5874, %v5887
        %v5889 = vcombine.high %v5881, %v5881
        %v5890 = vcombine.high %v5888, %v5888
        %v5892 = vunpack.c.l.s4 1966171168
        %v5893 = vunpack.c.0.s8 %v5892
        %v5894 = vlaneseq
        %v5895 = vshrl.u32 %v5894, 7
        %v5896 = vsub.s32 %v5893, %v5895
        %v5897 = vrot.slane %v5881, %v5896
        %v5899 = vunpack.c.l.s4 1966171168
        %v5900 = vunpack.c.0.s8 %v5899
        %v5901 = vlaneseq
        %v5902 = vshrl.u32 %v5901, 7
        %v5903 = vsub.s32 %v5900, %v5902
        %v5904 = vrot.slane %v5888, %v5903
        %v5906 = vunpack.c.l.s4 1966171168
        %v5907 = vunpack.c.0.s8 %v5906
        %v5908 = vlaneseq
        %v5909 = vshrl.u32 %v5908, 7
        %v5910 = vsub.s32 %v5907, %v5909
        %v5911 = vrot.slane %v5889, %v5910
        %v5913 = vunpack.c.l.s4 1966171168
        %v5914 = vunpack.c.0.s8 %v5913
        %v5915 = vlaneseq
        %v5916 = vshrl.u32 %v5915, 7
        %v5917 = vsub.s32 %v5914, %v5916
        %v5918 = vrot.slane %v5890, %v5917
        %v5919 = vcombine.high %v5897, %v5897
        %v5920 = vcombine.high %v5904, %v5904
        %v5921 = vcombine.high %v5911, %v5911
        %v5922 = vcombine.high %v5918, %v5918
        %v5923 = vcombine.high %v4499, %v4499
        %v5925 = vunpack.c.l.s4 1966171168
        %v5926 = vunpack.c.0.s8 %v5925
        %v5927 = vlaneseq
        %v5928 = vshrl.u32 %v5927, 7
        %v5929 = vsub.s32 %v5926, %v5928
        %v5930 = vrot.slane %v4499, %v5929
        %v5932 = vunpack.c.l.s4 1966171168
        %v5933 = vunpack.c.0.s8 %v5932
        %v5934 = vlaneseq
        %v5935 = vshrl.u32 %v5934, 7
        %v5936 = vsub.s32 %v5933, %v5935
        %v5937 = vrot.slane %v5923, %v5936
        %v5938 = vcombine.high %v5930, %v5930
        %v5939 = vcombine.high %v5937, %v5937
        %v5941 = vunpack.c.l.s4 1966171168
        %v5942 = vunpack.c.0.s8 %v5941
        %v5943 = vlaneseq
        %v5944 = vshrl.u32 %v5943, 7
        %v5945 = vsub.s32 %v5942, %v5944
        %v5946 = vrot.slane %v5930, %v5945
        %v5948 = vunpack.c.l.s4 1966171168
        %v5949 = vunpack.c.0.s8 %v5948
        %v5950 = vlaneseq
        %v5951 = vshrl.u32 %v5950, 7
        %v5952 = vsub.s32 %v5949, %v5951
        %v5953 = vrot.slane %v5937, %v5952
        %v5955 = vunpack.c.l.s4 1966171168
        %v5956 = vunpack.c.0.s8 %v5955
        %v5957 = vlaneseq
        %v5958 = vshrl.u32 %v5957, 7
        %v5959 = vsub.s32 %v5956, %v5958
        %v5960 = vrot.slane %v5938, %v5959
        %v5962 = vunpack.c.l.s4 1966171168
        %v5963 = vunpack.c.0.s8 %v5962
        %v5964 = vlaneseq
        %v5965 = vshrl.u32 %v5964, 7
        %v5966 = vsub.s32 %v5963, %v5965
        %v5967 = vrot.slane %v5939, %v5966
        %v5968 = vcombine.high %v5946, %v5946
        %v5969 = vcombine.high %v5953, %v5953
        %v5970 = vcombine.high %v5960, %v5960
        %v5971 = vcombine.high %v5967, %v5967
        %v5972 = vcombine.high %v4500, %v4500
        %v5974 = vunpack.c.l.s4 1966171168
        %v5975 = vunpack.c.0.s8 %v5974
        %v5976 = vlaneseq
        %v5977 = vshrl.u32 %v5976, 7
        %v5978 = vsub.s32 %v5975, %v5977
        %v5979 = vrot.slane %v4500, %v5978
        %v5981 = vunpack.c.l.s4 1966171168
        %v5982 = vunpack.c.0.s8 %v5981
        %v5983 = vlaneseq
        %v5984 = vshrl.u32 %v5983, 7
        %v5985 = vsub.s32 %v5982, %v5984
        %v5986 = vrot.slane %v5972, %v5985
        %v5987 = vcombine.high %v5979, %v5979
        %v5988 = vcombine.high %v5986, %v5986
        %v5990 = vunpack.c.l.s4 1966171168
        %v5991 = vunpack.c.0.s8 %v5990
        %v5992 = vlaneseq
        %v5993 = vshrl.u32 %v5992, 7
        %v5994 = vsub.s32 %v5991, %v5993
        %v5995 = vrot.slane %v5979, %v5994
        %v5997 = vunpack.c.l.s4 1966171168
        %v5998 = vunpack.c.0.s8 %v5997
        %v5999 = vlaneseq
        %v6000 = vshrl.u32 %v5999, 7
        %v6001 = vsub.s32 %v5998, %v6000
        %v6002 = vrot.slane %v5986, %v6001
        %v6004 = vunpack.c.l.s4 1966171168
        %v6005 = vunpack.c.0.s8 %v6004
        %v6006 = vlaneseq
        %v6007 = vshrl.u32 %v6006, 7
        %v6008 = vsub.s32 %v6005, %v6007
        %v6009 = vrot.slane %v5987, %v6008
        %v6011 = vunpack.c.l.s4 1966171168
        %v6012 = vunpack.c.0.s8 %v6011
        %v6013 = vlaneseq
        %v6014 = vshrl.u32 %v6013, 7
        %v6015 = vsub.s32 %v6012, %v6014
        %v6016 = vrot.slane %v5988, %v6015
        %v6017 = vcombine.high %v5995, %v5995
        %v6018 = vcombine.high %v6002, %v6002
        %v6019 = vcombine.high %v6009, %v6009
        %v6020 = vcombine.high %v6016, %v6016
        %v6021 = vcombine.high %v4501, %v4501
        %v6023 = vunpack.c.l.s4 1966171168
        %v6024 = vunpack.c.0.s8 %v6023
        %v6025 = vlaneseq
        %v6026 = vshrl.u32 %v6025, 7
        %v6027 = vsub.s32 %v6024, %v6026
        %v6028 = vrot.slane %v4501, %v6027
        %v6030 = vunpack.c.l.s4 1966171168
        %v6031 = vunpack.c.0.s8 %v6030
        %v6032 = vlaneseq
        %v6033 = vshrl.u32 %v6032, 7
        %v6034 = vsub.s32 %v6031, %v6033
        %v6035 = vrot.slane %v6021, %v6034
        %v6036 = vcombine.high %v6028, %v6028
        %v6037 = vcombine.high %v6035, %v6035
        %v6039 = vunpack.c.l.s4 1966171168
        %v6040 = vunpack.c.0.s8 %v6039
        %v6041 = vlaneseq
        %v6042 = vshrl.u32 %v6041, 7
        %v6043 = vsub.s32 %v6040, %v6042
        %v6044 = vrot.slane %v6028, %v6043
        %v6046 = vunpack.c.l.s4 1966171168
        %v6047 = vunpack.c.0.s8 %v6046
        %v6048 = vlaneseq
        %v6049 = vshrl.u32 %v6048, 7
        %v6050 = vsub.s32 %v6047, %v6049
        %v6051 = vrot.slane %v6035, %v6050
        %v6053 = vunpack.c.l.s4 1966171168
        %v6054 = vunpack.c.0.s8 %v6053
        %v6055 = vlaneseq
        %v6056 = vshrl.u32 %v6055, 7
        %v6057 = vsub.s32 %v6054, %v6056
        %v6058 = vrot.slane %v6036, %v6057
        %v6060 = vunpack.c.l.s4 1966171168
        %v6061 = vunpack.c.0.s8 %v6060
        %v6062 = vlaneseq
        %v6063 = vshrl.u32 %v6062, 7
        %v6064 = vsub.s32 %v6061, %v6063
        %v6065 = vrot.slane %v6037, %v6064
        %v6066 = vcombine.high %v6044, %v6044
        %v6067 = vcombine.high %v6051, %v6051
        %v6068 = vcombine.high %v6058, %v6058
        %v6069 = vcombine.high %v6065, %v6065
        %v6070 = vcombine.high %v4502, %v4502
        %v6072 = vunpack.c.l.s4 1966171168
        %v6073 = vunpack.c.0.s8 %v6072
        %v6074 = vlaneseq
        %v6075 = vshrl.u32 %v6074, 7
        %v6076 = vsub.s32 %v6073, %v6075
        %v6077 = vrot.slane %v4502, %v6076
        %v6079 = vunpack.c.l.s4 1966171168
        %v6080 = vunpack.c.0.s8 %v6079
        %v6081 = vlaneseq
        %v6082 = vshrl.u32 %v6081, 7
        %v6083 = vsub.s32 %v6080, %v6082
        %v6084 = vrot.slane %v6070, %v6083
        %v6085 = vcombine.high %v6077, %v6077
        %v6086 = vcombine.high %v6084, %v6084
        %v6088 = vunpack.c.l.s4 1966171168
        %v6089 = vunpack.c.0.s8 %v6088
        %v6090 = vlaneseq
        %v6091 = vshrl.u32 %v6090, 7
        %v6092 = vsub.s32 %v6089, %v6091
        %v6093 = vrot.slane %v6077, %v6092
        %v6095 = vunpack.c.l.s4 1966171168
        %v6096 = vunpack.c.0.s8 %v6095
        %v6097 = vlaneseq
        %v6098 = vshrl.u32 %v6097, 7
        %v6099 = vsub.s32 %v6096, %v6098
        %v6100 = vrot.slane %v6084, %v6099
        %v6102 = vunpack.c.l.s4 1966171168
        %v6103 = vunpack.c.0.s8 %v6102
        %v6104 = vlaneseq
        %v6105 = vshrl.u32 %v6104, 7
        %v6106 = vsub.s32 %v6103, %v6105
        %v6107 = vrot.slane %v6085, %v6106
        %v6109 = vunpack.c.l.s4 1966171168
        %v6110 = vunpack.c.0.s8 %v6109
        %v6111 = vlaneseq
        %v6112 = vshrl.u32 %v6111, 7
        %v6113 = vsub.s32 %v6110, %v6112
        %v6114 = vrot.slane %v6086, %v6113
        %v6115 = vcombine.high %v6093, %v6093
        %v6116 = vcombine.high %v6100, %v6100
        %v6117 = vcombine.high %v6107, %v6107
        %v6118 = vcombine.high %v6114, %v6114
        %v6119 = vcombine.high %v4503, %v4503
        %v6121 = vunpack.c.l.s4 1966171168
        %v6122 = vunpack.c.0.s8 %v6121
        %v6123 = vlaneseq
        %v6124 = vshrl.u32 %v6123, 7
        %v6125 = vsub.s32 %v6122, %v6124
        %v6126 = vrot.slane %v4503, %v6125
        %v6128 = vunpack.c.l.s4 1966171168
        %v6129 = vunpack.c.0.s8 %v6128
        %v6130 = vlaneseq
        %v6131 = vshrl.u32 %v6130, 7
        %v6132 = vsub.s32 %v6129, %v6131
        %v6133 = vrot.slane %v6119, %v6132
        %v6134 = vcombine.high %v6126, %v6126
        %v6135 = vcombine.high %v6133, %v6133
        %v6137 = vunpack.c.l.s4 1966171168
        %v6138 = vunpack.c.0.s8 %v6137
        %v6139 = vlaneseq
        %v6140 = vshrl.u32 %v6139, 7
        %v6141 = vsub.s32 %v6138, %v6140
        %v6142 = vrot.slane %v6126, %v6141
        %v6144 = vunpack.c.l.s4 1966171168
        %v6145 = vunpack.c.0.s8 %v6144
        %v6146 = vlaneseq
        %v6147 = vshrl.u32 %v6146, 7
        %v6148 = vsub.s32 %v6145, %v6147
        %v6149 = vrot.slane %v6133, %v6148
        %v6151 = vunpack.c.l.s4 1966171168
        %v6152 = vunpack.c.0.s8 %v6151
        %v6153 = vlaneseq
        %v6154 = vshrl.u32 %v6153, 7
        %v6155 = vsub.s32 %v6152, %v6154
        %v6156 = vrot.slane %v6134, %v6155
        %v6158 = vunpack.c.l.s4 1966171168
        %v6159 = vunpack.c.0.s8 %v6158
        %v6160 = vlaneseq
        %v6161 = vshrl.u32 %v6160, 7
        %v6162 = vsub.s32 %v6159, %v6161
        %v6163 = vrot.slane %v6135, %v6162
        %v6164 = vcombine.high %v6142, %v6142
        %v6165 = vcombine.high %v6149, %v6149
        %v6166 = vcombine.high %v6156, %v6156
        %v6167 = vcombine.high %v6163, %v6163
        %v6168 = vcombine.high %v4504, %v4504
        %v6170 = vunpack.c.l.s4 1966171168
        %v6171 = vunpack.c.0.s8 %v6170
        %v6172 = vlaneseq
        %v6173 = vshrl.u32 %v6172, 7
        %v6174 = vsub.s32 %v6171, %v6173
        %v6175 = vrot.slane %v4504, %v6174
        %v6177 = vunpack.c.l.s4 1966171168
        %v6178 = vunpack.c.0.s8 %v6177
        %v6179 = vlaneseq
        %v6180 = vshrl.u32 %v6179, 7
        %v6181 = vsub.s32 %v6178, %v6180
        %v6182 = vrot.slane %v6168, %v6181
        %v6183 = vcombine.high %v6175, %v6175
        %v6184 = vcombine.high %v6182, %v6182
        %v6186 = vunpack.c.l.s4 1966171168
        %v6187 = vunpack.c.0.s8 %v6186
        %v6188 = vlaneseq
        %v6189 = vshrl.u32 %v6188, 7
        %v6190 = vsub.s32 %v6187, %v6189
        %v6191 = vrot.slane %v6175, %v6190
        %v6193 = vunpack.c.l.s4 1966171168
        %v6194 = vunpack.c.0.s8 %v6193
        %v6195 = vlaneseq
        %v6196 = vshrl.u32 %v6195, 7
        %v6197 = vsub.s32 %v6194, %v6196
        %v6198 = vrot.slane %v6182, %v6197
        %v6200 = vunpack.c.l.s4 1966171168
        %v6201 = vunpack.c.0.s8 %v6200
        %v6202 = vlaneseq
        %v6203 = vshrl.u32 %v6202, 7
        %v6204 = vsub.s32 %v6201, %v6203
        %v6205 = vrot.slane %v6183, %v6204
        %v6207 = vunpack.c.l.s4 1966171168
        %v6208 = vunpack.c.0.s8 %v6207
        %v6209 = vlaneseq
        %v6210 = vshrl.u32 %v6209, 7
        %v6211 = vsub.s32 %v6208, %v6210
        %v6212 = vrot.slane %v6184, %v6211
        %v6213 = vcombine.high %v6191, %v6191
        %v6214 = vcombine.high %v6198, %v6198
        %v6215 = vcombine.high %v6205, %v6205
        %v6216 = vcombine.high %v6212, %v6212
        %v6217 = vcombine.high %v4505, %v4505
        %v6219 = vunpack.c.l.s4 1966171168
        %v6220 = vunpack.c.0.s8 %v6219
        %v6221 = vlaneseq
        %v6222 = vshrl.u32 %v6221, 7
        %v6223 = vsub.s32 %v6220, %v6222
        %v6224 = vrot.slane %v4505, %v6223
        %v6226 = vunpack.c.l.s4 1966171168
        %v6227 = vunpack.c.0.s8 %v6226
        %v6228 = vlaneseq
        %v6229 = vshrl.u32 %v6228, 7
        %v6230 = vsub.s32 %v6227, %v6229
        %v6231 = vrot.slane %v6217, %v6230
        %v6232 = vcombine.high %v6224, %v6224
        %v6233 = vcombine.high %v6231, %v6231
        %v6235 = vunpack.c.l.s4 1966171168
        %v6236 = vunpack.c.0.s8 %v6235
        %v6237 = vlaneseq
        %v6238 = vshrl.u32 %v6237, 7
        %v6239 = vsub.s32 %v6236, %v6238
        %v6240 = vrot.slane %v6224, %v6239
        %v6242 = vunpack.c.l.s4 1966171168
        %v6243 = vunpack.c.0.s8 %v6242
        %v6244 = vlaneseq
        %v6245 = vshrl.u32 %v6244, 7
        %v6246 = vsub.s32 %v6243, %v6245
        %v6247 = vrot.slane %v6231, %v6246
        %v6249 = vunpack.c.l.s4 1966171168
        %v6250 = vunpack.c.0.s8 %v6249
        %v6251 = vlaneseq
        %v6252 = vshrl.u32 %v6251, 7
        %v6253 = vsub.s32 %v6250, %v6252
        %v6254 = vrot.slane %v6232, %v6253
        %v6256 = vunpack.c.l.s4 1966171168
        %v6257 = vunpack.c.0.s8 %v6256
        %v6258 = vlaneseq
        %v6259 = vshrl.u32 %v6258, 7
        %v6260 = vsub.s32 %v6257, %v6259
        %v6261 = vrot.slane %v6233, %v6260
        %v6262 = vcombine.high %v6240, %v6240
        %v6263 = vcombine.high %v6247, %v6247
        %v6264 = vcombine.high %v6254, %v6254
        %v6265 = vcombine.high %v6261, %v6261
        %v6266 = vcombine.high %v4506, %v4506
        %v6268 = vunpack.c.l.s4 1966171168
        %v6269 = vunpack.c.0.s8 %v6268
        %v6270 = vlaneseq
        %v6271 = vshrl.u32 %v6270, 7
        %v6272 = vsub.s32 %v6269, %v6271
        %v6273 = vrot.slane %v4506, %v6272
        %v6275 = vunpack.c.l.s4 1966171168
        %v6276 = vunpack.c.0.s8 %v6275
        %v6277 = vlaneseq
        %v6278 = vshrl.u32 %v6277, 7
        %v6279 = vsub.s32 %v6276, %v6278
        %v6280 = vrot.slane %v6266, %v6279
        %v6281 = vcombine.high %v6273, %v6273
        %v6282 = vcombine.high %v6280, %v6280
        %v6284 = vunpack.c.l.s4 1966171168
        %v6285 = vunpack.c.0.s8 %v6284
        %v6286 = vlaneseq
        %v6287 = vshrl.u32 %v6286, 7
        %v6288 = vsub.s32 %v6285, %v6287
        %v6289 = vrot.slane %v6273, %v6288
        %v6291 = vunpack.c.l.s4 1966171168
        %v6292 = vunpack.c.0.s8 %v6291
        %v6293 = vlaneseq
        %v6294 = vshrl.u32 %v6293, 7
        %v6295 = vsub.s32 %v6292, %v6294
        %v6296 = vrot.slane %v6280, %v6295
        %v6298 = vunpack.c.l.s4 1966171168
        %v6299 = vunpack.c.0.s8 %v6298
        %v6300 = vlaneseq
        %v6301 = vshrl.u32 %v6300, 7
        %v6302 = vsub.s32 %v6299, %v6301
        %v6303 = vrot.slane %v6281, %v6302
        %v6305 = vunpack.c.l.s4 1966171168
        %v6306 = vunpack.c.0.s8 %v6305
        %v6307 = vlaneseq
        %v6308 = vshrl.u32 %v6307, 7
        %v6309 = vsub.s32 %v6306, %v6308
        %v6310 = vrot.slane %v6282, %v6309
        %v6311 = vcombine.high %v6289, %v6289
        %v6312 = vcombine.high %v6296, %v6296
        %v6313 = vcombine.high %v6303, %v6303
        %v6314 = vcombine.high %v6310, %v6310
        %v6315 = vcombine.high %v4507, %v4507
        %v6317 = vunpack.c.l.s4 1966171168
        %v6318 = vunpack.c.0.s8 %v6317
        %v6319 = vlaneseq
        %v6320 = vshrl.u32 %v6319, 7
        %v6321 = vsub.s32 %v6318, %v6320
        %v6322 = vrot.slane %v4507, %v6321
        %v6324 = vunpack.c.l.s4 1966171168
        %v6325 = vunpack.c.0.s8 %v6324
        %v6326 = vlaneseq
        %v6327 = vshrl.u32 %v6326, 7
        %v6328 = vsub.s32 %v6325, %v6327
        %v6329 = vrot.slane %v6315, %v6328
        %v6330 = vcombine.high %v6322, %v6322
        %v6331 = vcombine.high %v6329, %v6329
        %v6333 = vunpack.c.l.s4 1966171168
        %v6334 = vunpack.c.0.s8 %v6333
        %v6335 = vlaneseq
        %v6336 = vshrl.u32 %v6335, 7
        %v6337 = vsub.s32 %v6334, %v6336
        %v6338 = vrot.slane %v6322, %v6337
        %v6340 = vunpack.c.l.s4 1966171168
        %v6341 = vunpack.c.0.s8 %v6340
        %v6342 = vlaneseq
        %v6343 = vshrl.u32 %v6342, 7
        %v6344 = vsub.s32 %v6341, %v6343
        %v6345 = vrot.slane %v6329, %v6344
        %v6347 = vunpack.c.l.s4 1966171168
        %v6348 = vunpack.c.0.s8 %v6347
        %v6349 = vlaneseq
        %v6350 = vshrl.u32 %v6349, 7
        %v6351 = vsub.s32 %v6348, %v6350
        %v6352 = vrot.slane %v6330, %v6351
        %v6354 = vunpack.c.l.s4 1966171168
        %v6355 = vunpack.c.0.s8 %v6354
        %v6356 = vlaneseq
        %v6357 = vshrl.u32 %v6356, 7
        %v6358 = vsub.s32 %v6355, %v6357
        %v6359 = vrot.slane %v6331, %v6358
        %v6360 = vcombine.high %v6338, %v6338
        %v6361 = vcombine.high %v6345, %v6345
        %v6362 = vcombine.high %v6352, %v6352
        %v6363 = vcombine.high %v6359, %v6359
        %v6364 = vcombine.high %v4508, %v4508
        %v6366 = vunpack.c.l.s4 1966171168
        %v6367 = vunpack.c.0.s8 %v6366
        %v6368 = vlaneseq
        %v6369 = vshrl.u32 %v6368, 7
        %v6370 = vsub.s32 %v6367, %v6369
        %v6371 = vrot.slane %v4508, %v6370
        %v6373 = vunpack.c.l.s4 1966171168
        %v6374 = vunpack.c.0.s8 %v6373
        %v6375 = vlaneseq
        %v6376 = vshrl.u32 %v6375, 7
        %v6377 = vsub.s32 %v6374, %v6376
        %v6378 = vrot.slane %v6364, %v6377
        %v6379 = vcombine.high %v6371, %v6371
        %v6380 = vcombine.high %v6378, %v6378
        %v6382 = vunpack.c.l.s4 1966171168
        %v6383 = vunpack.c.0.s8 %v6382
        %v6384 = vlaneseq
        %v6385 = vshrl.u32 %v6384, 7
        %v6386 = vsub.s32 %v6383, %v6385
        %v6387 = vrot.slane %v6371, %v6386
        %v6389 = vunpack.c.l.s4 1966171168
        %v6390 = vunpack.c.0.s8 %v6389
        %v6391 = vlaneseq
        %v6392 = vshrl.u32 %v6391, 7
        %v6393 = vsub.s32 %v6390, %v6392
        %v6394 = vrot.slane %v6378, %v6393
        %v6396 = vunpack.c.l.s4 1966171168
        %v6397 = vunpack.c.0.s8 %v6396
        %v6398 = vlaneseq
        %v6399 = vshrl.u32 %v6398, 7
        %v6400 = vsub.s32 %v6397, %v6399
        %v6401 = vrot.slane %v6379, %v6400
        %v6403 = vunpack.c.l.s4 1966171168
        %v6404 = vunpack.c.0.s8 %v6403
        %v6405 = vlaneseq
        %v6406 = vshrl.u32 %v6405, 7
        %v6407 = vsub.s32 %v6404, %v6406
        %v6408 = vrot.slane %v6380, %v6407
        %v6409 = vcombine.high %v6387, %v6387
        %v6410 = vcombine.high %v6394, %v6394
        %v6411 = vcombine.high %v6401, %v6401
        %v6412 = vcombine.high %v6408, %v6408
        %v6413 = vcombine.high %v4509, %v4509
        %v6415 = vunpack.c.l.s4 1966171168
        %v6416 = vunpack.c.0.s8 %v6415
        %v6417 = vlaneseq
        %v6418 = vshrl.u32 %v6417, 7
        %v6419 = vsub.s32 %v6416, %v6418
        %v6420 = vrot.slane %v4509, %v6419
        %v6422 = vunpack.c.l.s4 1966171168
        %v6423 = vunpack.c.0.s8 %v6422
        %v6424 = vlaneseq
        %v6425 = vshrl.u32 %v6424, 7
        %v6426 = vsub.s32 %v6423, %v6425
        %v6427 = vrot.slane %v6413, %v6426
        %v6428 = vcombine.high %v6420, %v6420
        %v6429 = vcombine.high %v6427, %v6427
        %v6431 = vunpack.c.l.s4 1966171168
        %v6432 = vunpack.c.0.s8 %v6431
        %v6433 = vlaneseq
        %v6434 = vshrl.u32 %v6433, 7
        %v6435 = vsub.s32 %v6432, %v6434
        %v6436 = vrot.slane %v6420, %v6435
        %v6438 = vunpack.c.l.s4 1966171168
        %v6439 = vunpack.c.0.s8 %v6438
        %v6440 = vlaneseq
        %v6441 = vshrl.u32 %v6440, 7
        %v6442 = vsub.s32 %v6439, %v6441
        %v6443 = vrot.slane %v6427, %v6442
        %v6445 = vunpack.c.l.s4 1966171168
        %v6446 = vunpack.c.0.s8 %v6445
        %v6447 = vlaneseq
        %v6448 = vshrl.u32 %v6447, 7
        %v6449 = vsub.s32 %v6446, %v6448
        %v6450 = vrot.slane %v6428, %v6449
        %v6452 = vunpack.c.l.s4 1966171168
        %v6453 = vunpack.c.0.s8 %v6452
        %v6454 = vlaneseq
        %v6455 = vshrl.u32 %v6454, 7
        %v6456 = vsub.s32 %v6453, %v6455
        %v6457 = vrot.slane %v6429, %v6456
        %v6458 = vcombine.high %v6436, %v6436
        %v6459 = vcombine.high %v6443, %v6443
        %v6460 = vcombine.high %v6450, %v6450
        %v6461 = vcombine.high %v6457, %v6457
        %v6462 = vcombine.high %v4510, %v4510
        %v6464 = vunpack.c.l.s4 1966171168
        %v6465 = vunpack.c.0.s8 %v6464
        %v6466 = vlaneseq
        %v6467 = vshrl.u32 %v6466, 7
        %v6468 = vsub.s32 %v6465, %v6467
        %v6469 = vrot.slane %v4510, %v6468
        %v6471 = vunpack.c.l.s4 1966171168
        %v6472 = vunpack.c.0.s8 %v6471
        %v6473 = vlaneseq
        %v6474 = vshrl.u32 %v6473, 7
        %v6475 = vsub.s32 %v6472, %v6474
        %v6476 = vrot.slane %v6462, %v6475
        %v6477 = vcombine.high %v6469, %v6469
        %v6478 = vcombine.high %v6476, %v6476
        %v6480 = vunpack.c.l.s4 1966171168
        %v6481 = vunpack.c.0.s8 %v6480
        %v6482 = vlaneseq
        %v6483 = vshrl.u32 %v6482, 7
        %v6484 = vsub.s32 %v6481, %v6483
        %v6485 = vrot.slane %v6469, %v6484
        %v6487 = vunpack.c.l.s4 1966171168
        %v6488 = vunpack.c.0.s8 %v6487
        %v6489 = vlaneseq
        %v6490 = vshrl.u32 %v6489, 7
        %v6491 = vsub.s32 %v6488, %v6490
        %v6492 = vrot.slane %v6476, %v6491
        %v6494 = vunpack.c.l.s4 1966171168
        %v6495 = vunpack.c.0.s8 %v6494
        %v6496 = vlaneseq
        %v6497 = vshrl.u32 %v6496, 7
        %v6498 = vsub.s32 %v6495, %v6497
        %v6499 = vrot.slane %v6477, %v6498
        %v6501 = vunpack.c.l.s4 1966171168
        %v6502 = vunpack.c.0.s8 %v6501
        %v6503 = vlaneseq
        %v6504 = vshrl.u32 %v6503, 7
        %v6505 = vsub.s32 %v6502, %v6504
        %v6506 = vrot.slane %v6478, %v6505
        %v6507 = vcombine.high %v6485, %v6485
        %v6508 = vcombine.high %v6492, %v6492
        %v6509 = vcombine.high %v6499, %v6499
        %v6510 = vcombine.high %v6506, %v6506
        %v6511 = vcombine.high %v4511, %v4511
        %v6513 = vunpack.c.l.s4 1966171168
        %v6514 = vunpack.c.0.s8 %v6513
        %v6515 = vlaneseq
        %v6516 = vshrl.u32 %v6515, 7
        %v6517 = vsub.s32 %v6514, %v6516
        %v6518 = vrot.slane %v4511, %v6517
        %v6520 = vunpack.c.l.s4 1966171168
        %v6521 = vunpack.c.0.s8 %v6520
        %v6522 = vlaneseq
        %v6523 = vshrl.u32 %v6522, 7
        %v6524 = vsub.s32 %v6521, %v6523
        %v6525 = vrot.slane %v6511, %v6524
        %v6526 = vcombine.high %v6518, %v6518
        %v6527 = vcombine.high %v6525, %v6525
        %v6529 = vunpack.c.l.s4 1966171168
        %v6530 = vunpack.c.0.s8 %v6529
        %v6531 = vlaneseq
        %v6532 = vshrl.u32 %v6531, 7
        %v6533 = vsub.s32 %v6530, %v6532
        %v6534 = vrot.slane %v6518, %v6533
        %v6536 = vunpack.c.l.s4 1966171168
        %v6537 = vunpack.c.0.s8 %v6536
        %v6538 = vlaneseq
        %v6539 = vshrl.u32 %v6538, 7
        %v6540 = vsub.s32 %v6537, %v6539
        %v6541 = vrot.slane %v6525, %v6540
        %v6543 = vunpack.c.l.s4 1966171168
        %v6544 = vunpack.c.0.s8 %v6543
        %v6545 = vlaneseq
        %v6546 = vshrl.u32 %v6545, 7
        %v6547 = vsub.s32 %v6544, %v6546
        %v6548 = vrot.slane %v6526, %v6547
        %v6550 = vunpack.c.l.s4 1966171168
        %v6551 = vunpack.c.0.s8 %v6550
        %v6552 = vlaneseq
        %v6553 = vshrl.u32 %v6552, 7
        %v6554 = vsub.s32 %v6551, %v6553
        %v6555 = vrot.slane %v6527, %v6554
        %v6556 = vcombine.high %v6534, %v6534
        %v6557 = vcombine.high %v6541, %v6541
        %v6558 = vcombine.high %v6548, %v6548
        %v6559 = vcombine.high %v6555, %v6555
        %v6560 = vcombine.high %v4512, %v4512
        %v6562 = vunpack.c.l.s4 1966171168
        %v6563 = vunpack.c.0.s8 %v6562
        %v6564 = vlaneseq
        %v6565 = vshrl.u32 %v6564, 7
        %v6566 = vsub.s32 %v6563, %v6565
        %v6567 = vrot.slane %v4512, %v6566
        %v6569 = vunpack.c.l.s4 1966171168
        %v6570 = vunpack.c.0.s8 %v6569
        %v6571 = vlaneseq
        %v6572 = vshrl.u32 %v6571, 7
        %v6573 = vsub.s32 %v6570, %v6572
        %v6574 = vrot.slane %v6560, %v6573
        %v6575 = vcombine.high %v6567, %v6567
        %v6576 = vcombine.high %v6574, %v6574
        %v6578 = vunpack.c.l.s4 1966171168
        %v6579 = vunpack.c.0.s8 %v6578
        %v6580 = vlaneseq
        %v6581 = vshrl.u32 %v6580, 7
        %v6582 = vsub.s32 %v6579, %v6581
        %v6583 = vrot.slane %v6567, %v6582
        %v6585 = vunpack.c.l.s4 1966171168
        %v6586 = vunpack.c.0.s8 %v6585
        %v6587 = vlaneseq
        %v6588 = vshrl.u32 %v6587, 7
        %v6589 = vsub.s32 %v6586, %v6588
        %v6590 = vrot.slane %v6574, %v6589
        %v6592 = vunpack.c.l.s4 1966171168
        %v6593 = vunpack.c.0.s8 %v6592
        %v6594 = vlaneseq
        %v6595 = vshrl.u32 %v6594, 7
        %v6596 = vsub.s32 %v6593, %v6595
        %v6597 = vrot.slane %v6575, %v6596
        %v6599 = vunpack.c.l.s4 1966171168
        %v6600 = vunpack.c.0.s8 %v6599
        %v6601 = vlaneseq
        %v6602 = vshrl.u32 %v6601, 7
        %v6603 = vsub.s32 %v6600, %v6602
        %v6604 = vrot.slane %v6576, %v6603
        %v6605 = vcombine.high %v6583, %v6583
        %v6606 = vcombine.high %v6590, %v6590
        %v6607 = vcombine.high %v6597, %v6597
        %v6608 = vcombine.high %v6604, %v6604
        %v6609 = vcombine.high %v4513, %v4513
        %v6611 = vunpack.c.l.s4 1966171168
        %v6612 = vunpack.c.0.s8 %v6611
        %v6613 = vlaneseq
        %v6614 = vshrl.u32 %v6613, 7
        %v6615 = vsub.s32 %v6612, %v6614
        %v6616 = vrot.slane %v4513, %v6615
        %v6618 = vunpack.c.l.s4 1966171168
        %v6619 = vunpack.c.0.s8 %v6618
        %v6620 = vlaneseq
        %v6621 = vshrl.u32 %v6620, 7
        %v6622 = vsub.s32 %v6619, %v6621
        %v6623 = vrot.slane %v6609, %v6622
        %v6624 = vcombine.high %v6616, %v6616
        %v6625 = vcombine.high %v6623, %v6623
        %v6627 = vunpack.c.l.s4 1966171168
        %v6628 = vunpack.c.0.s8 %v6627
        %v6629 = vlaneseq
        %v6630 = vshrl.u32 %v6629, 7
        %v6631 = vsub.s32 %v6628, %v6630
        %v6632 = vrot.slane %v6616, %v6631
        %v6634 = vunpack.c.l.s4 1966171168
        %v6635 = vunpack.c.0.s8 %v6634
        %v6636 = vlaneseq
        %v6637 = vshrl.u32 %v6636, 7
        %v6638 = vsub.s32 %v6635, %v6637
        %v6639 = vrot.slane %v6623, %v6638
        %v6641 = vunpack.c.l.s4 1966171168
        %v6642 = vunpack.c.0.s8 %v6641
        %v6643 = vlaneseq
        %v6644 = vshrl.u32 %v6643, 7
        %v6645 = vsub.s32 %v6642, %v6644
        %v6646 = vrot.slane %v6624, %v6645
        %v6648 = vunpack.c.l.s4 1966171168
        %v6649 = vunpack.c.0.s8 %v6648
        %v6650 = vlaneseq
        %v6651 = vshrl.u32 %v6650, 7
        %v6652 = vsub.s32 %v6649, %v6651
        %v6653 = vrot.slane %v6625, %v6652
        %v6654 = vcombine.high %v6632, %v6632
        %v6655 = vcombine.high %v6639, %v6639
        %v6656 = vcombine.high %v6646, %v6646
        %v6657 = vcombine.high %v6653, %v6653
        %v6658 = vcombine.high %v4514, %v4514
        %v6660 = vunpack.c.l.s4 1966171168
        %v6661 = vunpack.c.0.s8 %v6660
        %v6662 = vlaneseq
        %v6663 = vshrl.u32 %v6662, 7
        %v6664 = vsub.s32 %v6661, %v6663
        %v6665 = vrot.slane %v4514, %v6664
        %v6667 = vunpack.c.l.s4 1966171168
        %v6668 = vunpack.c.0.s8 %v6667
        %v6669 = vlaneseq
        %v6670 = vshrl.u32 %v6669, 7
        %v6671 = vsub.s32 %v6668, %v6670
        %v6672 = vrot.slane %v6658, %v6671
        %v6673 = vcombine.high %v6665, %v6665
        %v6674 = vcombine.high %v6672, %v6672
        %v6676 = vunpack.c.l.s4 1966171168
        %v6677 = vunpack.c.0.s8 %v6676
        %v6678 = vlaneseq
        %v6679 = vshrl.u32 %v6678, 7
        %v6680 = vsub.s32 %v6677, %v6679
        %v6681 = vrot.slane %v6665, %v6680
        %v6683 = vunpack.c.l.s4 1966171168
        %v6684 = vunpack.c.0.s8 %v6683
        %v6685 = vlaneseq
        %v6686 = vshrl.u32 %v6685, 7
        %v6687 = vsub.s32 %v6684, %v6686
        %v6688 = vrot.slane %v6672, %v6687
        %v6690 = vunpack.c.l.s4 1966171168
        %v6691 = vunpack.c.0.s8 %v6690
        %v6692 = vlaneseq
        %v6693 = vshrl.u32 %v6692, 7
        %v6694 = vsub.s32 %v6691, %v6693
        %v6695 = vrot.slane %v6673, %v6694
        %v6697 = vunpack.c.l.s4 1966171168
        %v6698 = vunpack.c.0.s8 %v6697
        %v6699 = vlaneseq
        %v6700 = vshrl.u32 %v6699, 7
        %v6701 = vsub.s32 %v6698, %v6700
        %v6702 = vrot.slane %v6674, %v6701
        %v6703 = vcombine.high %v6681, %v6681
        %v6704 = vcombine.high %v6688, %v6688
        %v6705 = vcombine.high %v6695, %v6695
        %v6706 = vcombine.high %v6702, %v6702
        %v6707 = vcombine.high %v4515, %v4515
        %v6709 = vunpack.c.l.s4 1966171168
        %v6710 = vunpack.c.0.s8 %v6709
        %v6711 = vlaneseq
        %v6712 = vshrl.u32 %v6711, 7
        %v6713 = vsub.s32 %v6710, %v6712
        %v6714 = vrot.slane %v4515, %v6713
        %v6716 = vunpack.c.l.s4 1966171168
        %v6717 = vunpack.c.0.s8 %v6716
        %v6718 = vlaneseq
        %v6719 = vshrl.u32 %v6718, 7
        %v6720 = vsub.s32 %v6717, %v6719
        %v6721 = vrot.slane %v6707, %v6720
        %v6722 = vcombine.high %v6714, %v6714
        %v6723 = vcombine.high %v6721, %v6721
        %v6725 = vunpack.c.l.s4 1966171168
        %v6726 = vunpack.c.0.s8 %v6725
        %v6727 = vlaneseq
        %v6728 = vshrl.u32 %v6727, 7
        %v6729 = vsub.s32 %v6726, %v6728
        %v6730 = vrot.slane %v6714, %v6729
        %v6732 = vunpack.c.l.s4 1966171168
        %v6733 = vunpack.c.0.s8 %v6732
        %v6734 = vlaneseq
        %v6735 = vshrl.u32 %v6734, 7
        %v6736 = vsub.s32 %v6733, %v6735
        %v6737 = vrot.slane %v6721, %v6736
        %v6739 = vunpack.c.l.s4 1966171168
        %v6740 = vunpack.c.0.s8 %v6739
        %v6741 = vlaneseq
        %v6742 = vshrl.u32 %v6741, 7
        %v6743 = vsub.s32 %v6740, %v6742
        %v6744 = vrot.slane %v6722, %v6743
        %v6746 = vunpack.c.l.s4 1966171168
        %v6747 = vunpack.c.0.s8 %v6746
        %v6748 = vlaneseq
        %v6749 = vshrl.u32 %v6748, 7
        %v6750 = vsub.s32 %v6747, %v6749
        %v6751 = vrot.slane %v6723, %v6750
        %v6752 = vcombine.high %v6730, %v6730
        %v6753 = vcombine.high %v6737, %v6737
        %v6754 = vcombine.high %v6744, %v6744
        %v6755 = vcombine.high %v6751, %v6751
        %v6756 = vcombine.high %v4516, %v4516
        %v6758 = vunpack.c.l.s4 1966171168
        %v6759 = vunpack.c.0.s8 %v6758
        %v6760 = vlaneseq
        %v6761 = vshrl.u32 %v6760, 7
        %v6762 = vsub.s32 %v6759, %v6761
        %v6763 = vrot.slane %v4516, %v6762
        %v6765 = vunpack.c.l.s4 1966171168
        %v6766 = vunpack.c.0.s8 %v6765
        %v6767 = vlaneseq
        %v6768 = vshrl.u32 %v6767, 7
        %v6769 = vsub.s32 %v6766, %v6768
        %v6770 = vrot.slane %v6756, %v6769
        %v6771 = vcombine.high %v6763, %v6763
        %v6772 = vcombine.high %v6770, %v6770
        %v6774 = vunpack.c.l.s4 1966171168
        %v6775 = vunpack.c.0.s8 %v6774
        %v6776 = vlaneseq
        %v6777 = vshrl.u32 %v6776, 7
        %v6778 = vsub.s32 %v6775, %v6777
        %v6779 = vrot.slane %v6763, %v6778
        %v6781 = vunpack.c.l.s4 1966171168
        %v6782 = vunpack.c.0.s8 %v6781
        %v6783 = vlaneseq
        %v6784 = vshrl.u32 %v6783, 7
        %v6785 = vsub.s32 %v6782, %v6784
        %v6786 = vrot.slane %v6770, %v6785
        %v6788 = vunpack.c.l.s4 1966171168
        %v6789 = vunpack.c.0.s8 %v6788
        %v6790 = vlaneseq
        %v6791 = vshrl.u32 %v6790, 7
        %v6792 = vsub.s32 %v6789, %v6791
        %v6793 = vrot.slane %v6771, %v6792
        %v6795 = vunpack.c.l.s4 1966171168
        %v6796 = vunpack.c.0.s8 %v6795
        %v6797 = vlaneseq
        %v6798 = vshrl.u32 %v6797, 7
        %v6799 = vsub.s32 %v6796, %v6798
        %v6800 = vrot.slane %v6772, %v6799
        %v6801 = vcombine.high %v6779, %v6779
        %v6802 = vcombine.high %v6786, %v6786
        %v6803 = vcombine.high %v6793, %v6793
        %v6804 = vcombine.high %v6800, %v6800
        %v6805 = vcombine.high %v4517, %v4517
        %v6807 = vunpack.c.l.s4 1966171168
        %v6808 = vunpack.c.0.s8 %v6807
        %v6809 = vlaneseq
        %v6810 = vshrl.u32 %v6809, 7
        %v6811 = vsub.s32 %v6808, %v6810
        %v6812 = vrot.slane %v4517, %v6811
        %v6814 = vunpack.c.l.s4 1966171168
        %v6815 = vunpack.c.0.s8 %v6814
        %v6816 = vlaneseq
        %v6817 = vshrl.u32 %v6816, 7
        %v6818 = vsub.s32 %v6815, %v6817
        %v6819 = vrot.slane %v6805, %v6818
        %v6820 = vcombine.high %v6812, %v6812
        %v6821 = vcombine.high %v6819, %v6819
        %v6823 = vunpack.c.l.s4 1966171168
        %v6824 = vunpack.c.0.s8 %v6823
        %v6825 = vlaneseq
        %v6826 = vshrl.u32 %v6825, 7
        %v6827 = vsub.s32 %v6824, %v6826
        %v6828 = vrot.slane %v6812, %v6827
        %v6830 = vunpack.c.l.s4 1966171168
        %v6831 = vunpack.c.0.s8 %v6830
        %v6832 = vlaneseq
        %v6833 = vshrl.u32 %v6832, 7
        %v6834 = vsub.s32 %v6831, %v6833
        %v6835 = vrot.slane %v6819, %v6834
        %v6837 = vunpack.c.l.s4 1966171168
        %v6838 = vunpack.c.0.s8 %v6837
        %v6839 = vlaneseq
        %v6840 = vshrl.u32 %v6839, 7
        %v6841 = vsub.s32 %v6838, %v6840
        %v6842 = vrot.slane %v6820, %v6841
        %v6844 = vunpack.c.l.s4 1966171168
        %v6845 = vunpack.c.0.s8 %v6844
        %v6846 = vlaneseq
        %v6847 = vshrl.u32 %v6846, 7
        %v6848 = vsub.s32 %v6845, %v6847
        %v6849 = vrot.slane %v6821, %v6848
        %v6850 = vcombine.high %v6828, %v6828
        %v6851 = vcombine.high %v6835, %v6835
        %v6852 = vcombine.high %v6842, %v6842
        %v6853 = vcombine.high %v6849, %v6849
        %v6854 = vcombine.high %v4518, %v4518
        %v6856 = vunpack.c.l.s4 1966171168
        %v6857 = vunpack.c.0.s8 %v6856
        %v6858 = vlaneseq
        %v6859 = vshrl.u32 %v6858, 7
        %v6860 = vsub.s32 %v6857, %v6859
        %v6861 = vrot.slane %v4518, %v6860
        %v6863 = vunpack.c.l.s4 1966171168
        %v6864 = vunpack.c.0.s8 %v6863
        %v6865 = vlaneseq
        %v6866 = vshrl.u32 %v6865, 7
        %v6867 = vsub.s32 %v6864, %v6866
        %v6868 = vrot.slane %v6854, %v6867
        %v6869 = vcombine.high %v6861, %v6861
        %v6870 = vcombine.high %v6868, %v6868
        %v6872 = vunpack.c.l.s4 1966171168
        %v6873 = vunpack.c.0.s8 %v6872
        %v6874 = vlaneseq
        %v6875 = vshrl.u32 %v6874, 7
        %v6876 = vsub.s32 %v6873, %v6875
        %v6877 = vrot.slane %v6861, %v6876
        %v6879 = vunpack.c.l.s4 1966171168
        %v6880 = vunpack.c.0.s8 %v6879
        %v6881 = vlaneseq
        %v6882 = vshrl.u32 %v6881, 7
        %v6883 = vsub.s32 %v6880, %v6882
        %v6884 = vrot.slane %v6868, %v6883
        %v6886 = vunpack.c.l.s4 1966171168
        %v6887 = vunpack.c.0.s8 %v6886
        %v6888 = vlaneseq
        %v6889 = vshrl.u32 %v6888, 7
        %v6890 = vsub.s32 %v6887, %v6889
        %v6891 = vrot.slane %v6869, %v6890
        %v6893 = vunpack.c.l.s4 1966171168
        %v6894 = vunpack.c.0.s8 %v6893
        %v6895 = vlaneseq
        %v6896 = vshrl.u32 %v6895, 7
        %v6897 = vsub.s32 %v6894, %v6896
        %v6898 = vrot.slane %v6870, %v6897
        %v6899 = vcombine.high %v6877, %v6877
        %v6900 = vcombine.high %v6884, %v6884
        %v6901 = vcombine.high %v6891, %v6891
        %v6902 = vcombine.high %v6898, %v6898
        %v6903 = vcombine.high %v4519, %v4519
        %v6905 = vunpack.c.l.s4 1966171168
        %v6906 = vunpack.c.0.s8 %v6905
        %v6907 = vlaneseq
        %v6908 = vshrl.u32 %v6907, 7
        %v6909 = vsub.s32 %v6906, %v6908
        %v6910 = vrot.slane %v4519, %v6909
        %v6912 = vunpack.c.l.s4 1966171168
        %v6913 = vunpack.c.0.s8 %v6912
        %v6914 = vlaneseq
        %v6915 = vshrl.u32 %v6914, 7
        %v6916 = vsub.s32 %v6913, %v6915
        %v6917 = vrot.slane %v6903, %v6916
        %v6918 = vcombine.high %v6910, %v6910
        %v6919 = vcombine.high %v6917, %v6917
        %v6921 = vunpack.c.l.s4 1966171168
        %v6922 = vunpack.c.0.s8 %v6921
        %v6923 = vlaneseq
        %v6924 = vshrl.u32 %v6923, 7
        %v6925 = vsub.s32 %v6922, %v6924
        %v6926 = vrot.slane %v6910, %v6925
        %v6928 = vunpack.c.l.s4 1966171168
        %v6929 = vunpack.c.0.s8 %v6928
        %v6930 = vlaneseq
        %v6931 = vshrl.u32 %v6930, 7
        %v6932 = vsub.s32 %v6929, %v6931
        %v6933 = vrot.slane %v6917, %v6932
        %v6935 = vunpack.c.l.s4 1966171168
        %v6936 = vunpack.c.0.s8 %v6935
        %v6937 = vlaneseq
        %v6938 = vshrl.u32 %v6937, 7
        %v6939 = vsub.s32 %v6936, %v6938
        %v6940 = vrot.slane %v6918, %v6939
        %v6942 = vunpack.c.l.s4 1966171168
        %v6943 = vunpack.c.0.s8 %v6942
        %v6944 = vlaneseq
        %v6945 = vshrl.u32 %v6944, 7
        %v6946 = vsub.s32 %v6943, %v6945
        %v6947 = vrot.slane %v6919, %v6946
        %v6948 = vcombine.high %v6926, %v6926
        %v6949 = vcombine.high %v6933, %v6933
        %v6950 = vcombine.high %v6940, %v6940
        %v6951 = vcombine.high %v6947, %v6947
        %v6952 = vcombine.high %v4520, %v4520
        %v6954 = vunpack.c.l.s4 1966171168
        %v6955 = vunpack.c.0.s8 %v6954
        %v6956 = vlaneseq
        %v6957 = vshrl.u32 %v6956, 7
        %v6958 = vsub.s32 %v6955, %v6957
        %v6959 = vrot.slane %v4520, %v6958
        %v6961 = vunpack.c.l.s4 1966171168
        %v6962 = vunpack.c.0.s8 %v6961
        %v6963 = vlaneseq
        %v6964 = vshrl.u32 %v6963, 7
        %v6965 = vsub.s32 %v6962, %v6964
        %v6966 = vrot.slane %v6952, %v6965
        %v6967 = vcombine.high %v6959, %v6959
        %v6968 = vcombine.high %v6966, %v6966
        %v6970 = vunpack.c.l.s4 1966171168
        %v6971 = vunpack.c.0.s8 %v6970
        %v6972 = vlaneseq
        %v6973 = vshrl.u32 %v6972, 7
        %v6974 = vsub.s32 %v6971, %v6973
        %v6975 = vrot.slane %v6959, %v6974
        %v6977 = vunpack.c.l.s4 1966171168
        %v6978 = vunpack.c.0.s8 %v6977
        %v6979 = vlaneseq
        %v6980 = vshrl.u32 %v6979, 7
        %v6981 = vsub.s32 %v6978, %v6980
        %v6982 = vrot.slane %v6966, %v6981
        %v6984 = vunpack.c.l.s4 1966171168
        %v6985 = vunpack.c.0.s8 %v6984
        %v6986 = vlaneseq
        %v6987 = vshrl.u32 %v6986, 7
        %v6988 = vsub.s32 %v6985, %v6987
        %v6989 = vrot.slane %v6967, %v6988
        %v6991 = vunpack.c.l.s4 1966171168
        %v6992 = vunpack.c.0.s8 %v6991
        %v6993 = vlaneseq
        %v6994 = vshrl.u32 %v6993, 7
        %v6995 = vsub.s32 %v6992, %v6994
        %v6996 = vrot.slane %v6968, %v6995
        %v6997 = vcombine.high %v6975, %v6975
        %v6998 = vcombine.high %v6982, %v6982
        %v6999 = vcombine.high %v6989, %v6989
        %v7000 = vcombine.high %v6996, %v6996
        %v7001 = vcombine.high %v4521, %v4521
        %v7003 = vunpack.c.l.s4 1966171168
        %v7004 = vunpack.c.0.s8 %v7003
        %v7005 = vlaneseq
        %v7006 = vshrl.u32 %v7005, 7
        %v7007 = vsub.s32 %v7004, %v7006
        %v7008 = vrot.slane %v4521, %v7007
        %v7010 = vunpack.c.l.s4 1966171168
        %v7011 = vunpack.c.0.s8 %v7010
        %v7012 = vlaneseq
        %v7013 = vshrl.u32 %v7012, 7
        %v7014 = vsub.s32 %v7011, %v7013
        %v7015 = vrot.slane %v7001, %v7014
        %v7016 = vcombine.high %v7008, %v7008
        %v7017 = vcombine.high %v7015, %v7015
        %v7019 = vunpack.c.l.s4 1966171168
        %v7020 = vunpack.c.0.s8 %v7019
        %v7021 = vlaneseq
        %v7022 = vshrl.u32 %v7021, 7
        %v7023 = vsub.s32 %v7020, %v7022
        %v7024 = vrot.slane %v7008, %v7023
        %v7026 = vunpack.c.l.s4 1966171168
        %v7027 = vunpack.c.0.s8 %v7026
        %v7028 = vlaneseq
        %v7029 = vshrl.u32 %v7028, 7
        %v7030 = vsub.s32 %v7027, %v7029
        %v7031 = vrot.slane %v7015, %v7030
        %v7033 = vunpack.c.l.s4 1966171168
        %v7034 = vunpack.c.0.s8 %v7033
        %v7035 = vlaneseq
        %v7036 = vshrl.u32 %v7035, 7
        %v7037 = vsub.s32 %v7034, %v7036
        %v7038 = vrot.slane %v7016, %v7037
        %v7040 = vunpack.c.l.s4 1966171168
        %v7041 = vunpack.c.0.s8 %v7040
        %v7042 = vlaneseq
        %v7043 = vshrl.u32 %v7042, 7
        %v7044 = vsub.s32 %v7041, %v7043
        %v7045 = vrot.slane %v7017, %v7044
        %v7046 = vcombine.high %v7024, %v7024
        %v7047 = vcombine.high %v7031, %v7031
        %v7048 = vcombine.high %v7038, %v7038
        %v7049 = vcombine.high %v7045, %v7045
        %v7050 = vcombine.high %v4522, %v4522
        %v7052 = vunpack.c.l.s4 1966171168
        %v7053 = vunpack.c.0.s8 %v7052
        %v7054 = vlaneseq
        %v7055 = vshrl.u32 %v7054, 7
        %v7056 = vsub.s32 %v7053, %v7055
        %v7057 = vrot.slane %v4522, %v7056
        %v7059 = vunpack.c.l.s4 1966171168
        %v7060 = vunpack.c.0.s8 %v7059
        %v7061 = vlaneseq
        %v7062 = vshrl.u32 %v7061, 7
        %v7063 = vsub.s32 %v7060, %v7062
        %v7064 = vrot.slane %v7050, %v7063
        %v7065 = vcombine.high %v7057, %v7057
        %v7066 = vcombine.high %v7064, %v7064
        %v7068 = vunpack.c.l.s4 1966171168
        %v7069 = vunpack.c.0.s8 %v7068
        %v7070 = vlaneseq
        %v7071 = vshrl.u32 %v7070, 7
        %v7072 = vsub.s32 %v7069, %v7071
        %v7073 = vrot.slane %v7057, %v7072
        %v7075 = vunpack.c.l.s4 1966171168
        %v7076 = vunpack.c.0.s8 %v7075
        %v7077 = vlaneseq
        %v7078 = vshrl.u32 %v7077, 7
        %v7079 = vsub.s32 %v7076, %v7078
        %v7080 = vrot.slane %v7064, %v7079
        %v7082 = vunpack.c.l.s4 1966171168
        %v7083 = vunpack.c.0.s8 %v7082
        %v7084 = vlaneseq
        %v7085 = vshrl.u32 %v7084, 7
        %v7086 = vsub.s32 %v7083, %v7085
        %v7087 = vrot.slane %v7065, %v7086
        %v7089 = vunpack.c.l.s4 1966171168
        %v7090 = vunpack.c.0.s8 %v7089
        %v7091 = vlaneseq
        %v7092 = vshrl.u32 %v7091, 7
        %v7093 = vsub.s32 %v7090, %v7092
        %v7094 = vrot.slane %v7066, %v7093
        %v7095 = vcombine.high %v7073, %v7073
        %v7096 = vcombine.high %v7080, %v7080
        %v7097 = vcombine.high %v7087, %v7087
        %v7098 = vcombine.high %v7094, %v7094
        %v7099 = vcombine.high %v4523, %v4523
        %v7101 = vunpack.c.l.s4 1966171168
        %v7102 = vunpack.c.0.s8 %v7101
        %v7103 = vlaneseq
        %v7104 = vshrl.u32 %v7103, 7
        %v7105 = vsub.s32 %v7102, %v7104
        %v7106 = vrot.slane %v4523, %v7105
        %v7108 = vunpack.c.l.s4 1966171168
        %v7109 = vunpack.c.0.s8 %v7108
        %v7110 = vlaneseq
        %v7111 = vshrl.u32 %v7110, 7
        %v7112 = vsub.s32 %v7109, %v7111
        %v7113 = vrot.slane %v7099, %v7112
        %v7114 = vcombine.high %v7106, %v7106
        %v7115 = vcombine.high %v7113, %v7113
        %v7117 = vunpack.c.l.s4 1966171168
        %v7118 = vunpack.c.0.s8 %v7117
        %v7119 = vlaneseq
        %v7120 = vshrl.u32 %v7119, 7
        %v7121 = vsub.s32 %v7118, %v7120
        %v7122 = vrot.slane %v7106, %v7121
        %v7124 = vunpack.c.l.s4 1966171168
        %v7125 = vunpack.c.0.s8 %v7124
        %v7126 = vlaneseq
        %v7127 = vshrl.u32 %v7126, 7
        %v7128 = vsub.s32 %v7125, %v7127
        %v7129 = vrot.slane %v7113, %v7128
        %v7131 = vunpack.c.l.s4 1966171168
        %v7132 = vunpack.c.0.s8 %v7131
        %v7133 = vlaneseq
        %v7134 = vshrl.u32 %v7133, 7
        %v7135 = vsub.s32 %v7132, %v7134
        %v7136 = vrot.slane %v7114, %v7135
        %v7138 = vunpack.c.l.s4 1966171168
        %v7139 = vunpack.c.0.s8 %v7138
        %v7140 = vlaneseq
        %v7141 = vshrl.u32 %v7140, 7
        %v7142 = vsub.s32 %v7139, %v7141
        %v7143 = vrot.slane %v7115, %v7142
        %v7144 = vcombine.high %v7122, %v7122
        %v7145 = vcombine.high %v7129, %v7129
        %v7146 = vcombine.high %v7136, %v7136
        %v7147 = vcombine.high %v7143, %v7143
        %v7148 = vcombine.high %v4524, %v4524
        %v7150 = vunpack.c.l.s4 1966171168
        %v7151 = vunpack.c.0.s8 %v7150
        %v7152 = vlaneseq
        %v7153 = vshrl.u32 %v7152, 7
        %v7154 = vsub.s32 %v7151, %v7153
        %v7155 = vrot.slane %v4524, %v7154
        %v7157 = vunpack.c.l.s4 1966171168
        %v7158 = vunpack.c.0.s8 %v7157
        %v7159 = vlaneseq
        %v7160 = vshrl.u32 %v7159, 7
        %v7161 = vsub.s32 %v7158, %v7160
        %v7162 = vrot.slane %v7148, %v7161
        %v7163 = vcombine.high %v7155, %v7155
        %v7164 = vcombine.high %v7162, %v7162
        %v7166 = vunpack.c.l.s4 1966171168
        %v7167 = vunpack.c.0.s8 %v7166
        %v7168 = vlaneseq
        %v7169 = vshrl.u32 %v7168, 7
        %v7170 = vsub.s32 %v7167, %v7169
        %v7171 = vrot.slane %v7155, %v7170
        %v7173 = vunpack.c.l.s4 1966171168
        %v7174 = vunpack.c.0.s8 %v7173
        %v7175 = vlaneseq
        %v7176 = vshrl.u32 %v7175, 7
        %v7177 = vsub.s32 %v7174, %v7176
        %v7178 = vrot.slane %v7162, %v7177
        %v7180 = vunpack.c.l.s4 1966171168
        %v7181 = vunpack.c.0.s8 %v7180
        %v7182 = vlaneseq
        %v7183 = vshrl.u32 %v7182, 7
        %v7184 = vsub.s32 %v7181, %v7183
        %v7185 = vrot.slane %v7163, %v7184
        %v7187 = vunpack.c.l.s4 1966171168
        %v7188 = vunpack.c.0.s8 %v7187
        %v7189 = vlaneseq
        %v7190 = vshrl.u32 %v7189, 7
        %v7191 = vsub.s32 %v7188, %v7190
        %v7192 = vrot.slane %v7164, %v7191
        %v7193 = vcombine.high %v7171, %v7171
        %v7194 = vcombine.high %v7178, %v7178
        %v7195 = vcombine.high %v7185, %v7185
        %v7196 = vcombine.high %v7192, %v7192
        %v7197 = vcombine.high %v4525, %v4525
        %v7199 = vunpack.c.l.s4 1966171168
        %v7200 = vunpack.c.0.s8 %v7199
        %v7201 = vlaneseq
        %v7202 = vshrl.u32 %v7201, 7
        %v7203 = vsub.s32 %v7200, %v7202
        %v7204 = vrot.slane %v4525, %v7203
        %v7206 = vunpack.c.l.s4 1966171168
        %v7207 = vunpack.c.0.s8 %v7206
        %v7208 = vlaneseq
        %v7209 = vshrl.u32 %v7208, 7
        %v7210 = vsub.s32 %v7207, %v7209
        %v7211 = vrot.slane %v7197, %v7210
        %v7212 = vcombine.high %v7204, %v7204
        %v7213 = vcombine.high %v7211, %v7211
        %v7215 = vunpack.c.l.s4 1966171168
        %v7216 = vunpack.c.0.s8 %v7215
        %v7217 = vlaneseq
        %v7218 = vshrl.u32 %v7217, 7
        %v7219 = vsub.s32 %v7216, %v7218
        %v7220 = vrot.slane %v7204, %v7219
        %v7222 = vunpack.c.l.s4 1966171168
        %v7223 = vunpack.c.0.s8 %v7222
        %v7224 = vlaneseq
        %v7225 = vshrl.u32 %v7224, 7
        %v7226 = vsub.s32 %v7223, %v7225
        %v7227 = vrot.slane %v7211, %v7226
        %v7229 = vunpack.c.l.s4 1966171168
        %v7230 = vunpack.c.0.s8 %v7229
        %v7231 = vlaneseq
        %v7232 = vshrl.u32 %v7231, 7
        %v7233 = vsub.s32 %v7230, %v7232
        %v7234 = vrot.slane %v7212, %v7233
        %v7236 = vunpack.c.l.s4 1966171168
        %v7237 = vunpack.c.0.s8 %v7236
        %v7238 = vlaneseq
        %v7239 = vshrl.u32 %v7238, 7
        %v7240 = vsub.s32 %v7237, %v7239
        %v7241 = vrot.slane %v7213, %v7240
        %v7242 = vcombine.high %v7220, %v7220
        %v7243 = vcombine.high %v7227, %v7227
        %v7244 = vcombine.high %v7234, %v7234
        %v7245 = vcombine.high %v7241, %v7241
        %v7246 = vcombine.high %v4526, %v4526
        %v7248 = vunpack.c.l.s4 1966171168
        %v7249 = vunpack.c.0.s8 %v7248
        %v7250 = vlaneseq
        %v7251 = vshrl.u32 %v7250, 7
        %v7252 = vsub.s32 %v7249, %v7251
        %v7253 = vrot.slane %v4526, %v7252
        %v7255 = vunpack.c.l.s4 1966171168
        %v7256 = vunpack.c.0.s8 %v7255
        %v7257 = vlaneseq
        %v7258 = vshrl.u32 %v7257, 7
        %v7259 = vsub.s32 %v7256, %v7258
        %v7260 = vrot.slane %v7246, %v7259
        %v7261 = vcombine.high %v7253, %v7253
        %v7262 = vcombine.high %v7260, %v7260
        %v7264 = vunpack.c.l.s4 1966171168
        %v7265 = vunpack.c.0.s8 %v7264
        %v7266 = vlaneseq
        %v7267 = vshrl.u32 %v7266, 7
        %v7268 = vsub.s32 %v7265, %v7267
        %v7269 = vrot.slane %v7253, %v7268
        %v7271 = vunpack.c.l.s4 1966171168
        %v7272 = vunpack.c.0.s8 %v7271
        %v7273 = vlaneseq
        %v7274 = vshrl.u32 %v7273, 7
        %v7275 = vsub.s32 %v7272, %v7274
        %v7276 = vrot.slane %v7260, %v7275
        %v7278 = vunpack.c.l.s4 1966171168
        %v7279 = vunpack.c.0.s8 %v7278
        %v7280 = vlaneseq
        %v7281 = vshrl.u32 %v7280, 7
        %v7282 = vsub.s32 %v7279, %v7281
        %v7283 = vrot.slane %v7261, %v7282
        %v7285 = vunpack.c.l.s4 1966171168
        %v7286 = vunpack.c.0.s8 %v7285
        %v7287 = vlaneseq
        %v7288 = vshrl.u32 %v7287, 7
        %v7289 = vsub.s32 %v7286, %v7288
        %v7290 = vrot.slane %v7262, %v7289
        %v7291 = vcombine.high %v7269, %v7269
        %v7292 = vcombine.high %v7276, %v7276
        %v7293 = vcombine.high %v7283, %v7283
        %v7294 = vcombine.high %v7290, %v7290
        %v7295 = vcombine.high %v4527, %v4527
        %v7297 = vunpack.c.l.s4 1966171168
        %v7298 = vunpack.c.0.s8 %v7297
        %v7299 = vlaneseq
        %v7300 = vshrl.u32 %v7299, 7
        %v7301 = vsub.s32 %v7298, %v7300
        %v7302 = vrot.slane %v4527, %v7301
        %v7304 = vunpack.c.l.s4 1966171168
        %v7305 = vunpack.c.0.s8 %v7304
        %v7306 = vlaneseq
        %v7307 = vshrl.u32 %v7306, 7
        %v7308 = vsub.s32 %v7305, %v7307
        %v7309 = vrot.slane %v7295, %v7308
        %v7310 = vcombine.high %v7302, %v7302
        %v7311 = vcombine.high %v7309, %v7309
        %v7313 = vunpack.c.l.s4 1966171168
        %v7314 = vunpack.c.0.s8 %v7313
        %v7315 = vlaneseq
        %v7316 = vshrl.u32 %v7315, 7
        %v7317 = vsub.s32 %v7314, %v7316
        %v7318 = vrot.slane %v7302, %v7317
        %v7320 = vunpack.c.l.s4 1966171168
        %v7321 = vunpack.c.0.s8 %v7320
        %v7322 = vlaneseq
        %v7323 = vshrl.u32 %v7322, 7
        %v7324 = vsub.s32 %v7321, %v7323
        %v7325 = vrot.slane %v7309, %v7324
        %v7327 = vunpack.c.l.s4 1966171168
        %v7328 = vunpack.c.0.s8 %v7327
        %v7329 = vlaneseq
        %v7330 = vshrl.u32 %v7329, 7
        %v7331 = vsub.s32 %v7328, %v7330
        %v7332 = vrot.slane %v7310, %v7331
        %v7334 = vunpack.c.l.s4 1966171168
        %v7335 = vunpack.c.0.s8 %v7334
        %v7336 = vlaneseq
        %v7337 = vshrl.u32 %v7336, 7
        %v7338 = vsub.s32 %v7335, %v7337
        %v7339 = vrot.slane %v7311, %v7338
        %v7340 = vcombine.high %v7318, %v7318
        %v7341 = vcombine.high %v7325, %v7325
        %v7342 = vcombine.high %v7332, %v7332
        %v7343 = vcombine.high %v7339, %v7339
        %v7344 = vcombine.high %v4528, %v4528
        %v7346 = vunpack.c.l.s4 1966171168
        %v7347 = vunpack.c.0.s8 %v7346
        %v7348 = vlaneseq
        %v7349 = vshrl.u32 %v7348, 7
        %v7350 = vsub.s32 %v7347, %v7349
        %v7351 = vrot.slane %v4528, %v7350
        %v7353 = vunpack.c.l.s4 1966171168
        %v7354 = vunpack.c.0.s8 %v7353
        %v7355 = vlaneseq
        %v7356 = vshrl.u32 %v7355, 7
        %v7357 = vsub.s32 %v7354, %v7356
        %v7358 = vrot.slane %v7344, %v7357
        %v7359 = vcombine.high %v7351, %v7351
        %v7360 = vcombine.high %v7358, %v7358
        %v7362 = vunpack.c.l.s4 1966171168
        %v7363 = vunpack.c.0.s8 %v7362
        %v7364 = vlaneseq
        %v7365 = vshrl.u32 %v7364, 7
        %v7366 = vsub.s32 %v7363, %v7365
        %v7367 = vrot.slane %v7351, %v7366
        %v7369 = vunpack.c.l.s4 1966171168
        %v7370 = vunpack.c.0.s8 %v7369
        %v7371 = vlaneseq
        %v7372 = vshrl.u32 %v7371, 7
        %v7373 = vsub.s32 %v7370, %v7372
        %v7374 = vrot.slane %v7358, %v7373
        %v7376 = vunpack.c.l.s4 1966171168
        %v7377 = vunpack.c.0.s8 %v7376
        %v7378 = vlaneseq
        %v7379 = vshrl.u32 %v7378, 7
        %v7380 = vsub.s32 %v7377, %v7379
        %v7381 = vrot.slane %v7359, %v7380
        %v7383 = vunpack.c.l.s4 1966171168
        %v7384 = vunpack.c.0.s8 %v7383
        %v7385 = vlaneseq
        %v7386 = vshrl.u32 %v7385, 7
        %v7387 = vsub.s32 %v7384, %v7386
        %v7388 = vrot.slane %v7360, %v7387
        %v7389 = vcombine.high %v7367, %v7367
        %v7390 = vcombine.high %v7374, %v7374
        %v7391 = vcombine.high %v7381, %v7381
        %v7392 = vcombine.high %v7388, %v7388
        %v7393 = vcombine.high %v4529, %v4529
        %v7395 = vunpack.c.l.s4 1966171168
        %v7396 = vunpack.c.0.s8 %v7395
        %v7397 = vlaneseq
        %v7398 = vshrl.u32 %v7397, 7
        %v7399 = vsub.s32 %v7396, %v7398
        %v7400 = vrot.slane %v4529, %v7399
        %v7402 = vunpack.c.l.s4 1966171168
        %v7403 = vunpack.c.0.s8 %v7402
        %v7404 = vlaneseq
        %v7405 = vshrl.u32 %v7404, 7
        %v7406 = vsub.s32 %v7403, %v7405
        %v7407 = vrot.slane %v7393, %v7406
        %v7408 = vcombine.high %v7400, %v7400
        %v7409 = vcombine.high %v7407, %v7407
        %v7411 = vunpack.c.l.s4 1966171168
        %v7412 = vunpack.c.0.s8 %v7411
        %v7413 = vlaneseq
        %v7414 = vshrl.u32 %v7413, 7
        %v7415 = vsub.s32 %v7412, %v7414
        %v7416 = vrot.slane %v7400, %v7415
        %v7418 = vunpack.c.l.s4 1966171168
        %v7419 = vunpack.c.0.s8 %v7418
        %v7420 = vlaneseq
        %v7421 = vshrl.u32 %v7420, 7
        %v7422 = vsub.s32 %v7419, %v7421
        %v7423 = vrot.slane %v7407, %v7422
        %v7425 = vunpack.c.l.s4 1966171168
        %v7426 = vunpack.c.0.s8 %v7425
        %v7427 = vlaneseq
        %v7428 = vshrl.u32 %v7427, 7
        %v7429 = vsub.s32 %v7426, %v7428
        %v7430 = vrot.slane %v7408, %v7429
        %v7432 = vunpack.c.l.s4 1966171168
        %v7433 = vunpack.c.0.s8 %v7432
        %v7434 = vlaneseq
        %v7435 = vshrl.u32 %v7434, 7
        %v7436 = vsub.s32 %v7433, %v7435
        %v7437 = vrot.slane %v7409, %v7436
        %v7438 = vcombine.high %v7416, %v7416
        %v7439 = vcombine.high %v7423, %v7423
        %v7440 = vcombine.high %v7430, %v7430
        %v7441 = vcombine.high %v7437, %v7437
        %v7442 = vcombine.high %v4530, %v4530
        %v7444 = vunpack.c.l.s4 1966171168
        %v7445 = vunpack.c.0.s8 %v7444
        %v7446 = vlaneseq
        %v7447 = vshrl.u32 %v7446, 7
        %v7448 = vsub.s32 %v7445, %v7447
        %v7449 = vrot.slane %v4530, %v7448
        %v7451 = vunpack.c.l.s4 1966171168
        %v7452 = vunpack.c.0.s8 %v7451
        %v7453 = vlaneseq
        %v7454 = vshrl.u32 %v7453, 7
        %v7455 = vsub.s32 %v7452, %v7454
        %v7456 = vrot.slane %v7442, %v7455
        %v7457 = vcombine.high %v7449, %v7449
        %v7458 = vcombine.high %v7456, %v7456
        %v7460 = vunpack.c.l.s4 1966171168
        %v7461 = vunpack.c.0.s8 %v7460
        %v7462 = vlaneseq
        %v7463 = vshrl.u32 %v7462, 7
        %v7464 = vsub.s32 %v7461, %v7463
        %v7465 = vrot.slane %v7449, %v7464
        %v7467 = vunpack.c.l.s4 1966171168
        %v7468 = vunpack.c.0.s8 %v7467
        %v7469 = vlaneseq
        %v7470 = vshrl.u32 %v7469, 7
        %v7471 = vsub.s32 %v7468, %v7470
        %v7472 = vrot.slane %v7456, %v7471
        %v7474 = vunpack.c.l.s4 1966171168
        %v7475 = vunpack.c.0.s8 %v7474
        %v7476 = vlaneseq
        %v7477 = vshrl.u32 %v7476, 7
        %v7478 = vsub.s32 %v7475, %v7477
        %v7479 = vrot.slane %v7457, %v7478
        %v7481 = vunpack.c.l.s4 1966171168
        %v7482 = vunpack.c.0.s8 %v7481
        %v7483 = vlaneseq
        %v7484 = vshrl.u32 %v7483, 7
        %v7485 = vsub.s32 %v7482, %v7484
        %v7486 = vrot.slane %v7458, %v7485
        %v7487 = vcombine.high %v7465, %v7465
        %v7488 = vcombine.high %v7472, %v7472
        %v7489 = vcombine.high %v7479, %v7479
        %v7490 = vcombine.high %v7486, %v7486
        %v7491 = vcombine.high %v4531, %v4531
        %v7493 = vunpack.c.l.s4 1966171168
        %v7494 = vunpack.c.0.s8 %v7493
        %v7495 = vlaneseq
        %v7496 = vshrl.u32 %v7495, 7
        %v7497 = vsub.s32 %v7494, %v7496
        %v7498 = vrot.slane %v4531, %v7497
        %v7500 = vunpack.c.l.s4 1966171168
        %v7501 = vunpack.c.0.s8 %v7500
        %v7502 = vlaneseq
        %v7503 = vshrl.u32 %v7502, 7
        %v7504 = vsub.s32 %v7501, %v7503
        %v7505 = vrot.slane %v7491, %v7504
        %v7506 = vcombine.high %v7498, %v7498
        %v7507 = vcombine.high %v7505, %v7505
        %v7509 = vunpack.c.l.s4 1966171168
        %v7510 = vunpack.c.0.s8 %v7509
        %v7511 = vlaneseq
        %v7512 = vshrl.u32 %v7511, 7
        %v7513 = vsub.s32 %v7510, %v7512
        %v7514 = vrot.slane %v7498, %v7513
        %v7516 = vunpack.c.l.s4 1966171168
        %v7517 = vunpack.c.0.s8 %v7516
        %v7518 = vlaneseq
        %v7519 = vshrl.u32 %v7518, 7
        %v7520 = vsub.s32 %v7517, %v7519
        %v7521 = vrot.slane %v7505, %v7520
        %v7523 = vunpack.c.l.s4 1966171168
        %v7524 = vunpack.c.0.s8 %v7523
        %v7525 = vlaneseq
        %v7526 = vshrl.u32 %v7525, 7
        %v7527 = vsub.s32 %v7524, %v7526
        %v7528 = vrot.slane %v7506, %v7527
        %v7530 = vunpack.c.l.s4 1966171168
        %v7531 = vunpack.c.0.s8 %v7530
        %v7532 = vlaneseq
        %v7533 = vshrl.u32 %v7532, 7
        %v7534 = vsub.s32 %v7531, %v7533
        %v7535 = vrot.slane %v7507, %v7534
        %v7536 = vcombine.high %v7514, %v7514
        %v7537 = vcombine.high %v7521, %v7521
        %v7538 = vcombine.high %v7528, %v7528
        %v7539 = vcombine.high %v7535, %v7535
        %v7540 = vcombine.high %v4532, %v4532
        %v7542 = vunpack.c.l.s4 1966171168
        %v7543 = vunpack.c.0.s8 %v7542
        %v7544 = vlaneseq
        %v7545 = vshrl.u32 %v7544, 7
        %v7546 = vsub.s32 %v7543, %v7545
        %v7547 = vrot.slane %v4532, %v7546
        %v7549 = vunpack.c.l.s4 1966171168
        %v7550 = vunpack.c.0.s8 %v7549
        %v7551 = vlaneseq
        %v7552 = vshrl.u32 %v7551, 7
        %v7553 = vsub.s32 %v7550, %v7552
        %v7554 = vrot.slane %v7540, %v7553
        %v7555 = vcombine.high %v7547, %v7547
        %v7556 = vcombine.high %v7554, %v7554
        %v7558 = vunpack.c.l.s4 1966171168
        %v7559 = vunpack.c.0.s8 %v7558
        %v7560 = vlaneseq
        %v7561 = vshrl.u32 %v7560, 7
        %v7562 = vsub.s32 %v7559, %v7561
        %v7563 = vrot.slane %v7547, %v7562
        %v7565 = vunpack.c.l.s4 1966171168
        %v7566 = vunpack.c.0.s8 %v7565
        %v7567 = vlaneseq
        %v7568 = vshrl.u32 %v7567, 7
        %v7569 = vsub.s32 %v7566, %v7568
        %v7570 = vrot.slane %v7554, %v7569
        %v7572 = vunpack.c.l.s4 1966171168
        %v7573 = vunpack.c.0.s8 %v7572
        %v7574 = vlaneseq
        %v7575 = vshrl.u32 %v7574, 7
        %v7576 = vsub.s32 %v7573, %v7575
        %v7577 = vrot.slane %v7555, %v7576
        %v7579 = vunpack.c.l.s4 1966171168
        %v7580 = vunpack.c.0.s8 %v7579
        %v7581 = vlaneseq
        %v7582 = vshrl.u32 %v7581, 7
        %v7583 = vsub.s32 %v7580, %v7582
        %v7584 = vrot.slane %v7556, %v7583
        %v7585 = vcombine.high %v7563, %v7563
        %v7586 = vcombine.high %v7570, %v7570
        %v7587 = vcombine.high %v7577, %v7577
        %v7588 = vcombine.high %v7584, %v7584
        %v7589 = vcombine.high %v4533, %v4533
        %v7591 = vunpack.c.l.s4 1966171168
        %v7592 = vunpack.c.0.s8 %v7591
        %v7593 = vlaneseq
        %v7594 = vshrl.u32 %v7593, 7
        %v7595 = vsub.s32 %v7592, %v7594
        %v7596 = vrot.slane %v4533, %v7595
        %v7598 = vunpack.c.l.s4 1966171168
        %v7599 = vunpack.c.0.s8 %v7598
        %v7600 = vlaneseq
        %v7601 = vshrl.u32 %v7600, 7
        %v7602 = vsub.s32 %v7599, %v7601
        %v7603 = vrot.slane %v7589, %v7602
        %v7604 = vcombine.high %v7596, %v7596
        %v7605 = vcombine.high %v7603, %v7603
        %v7607 = vunpack.c.l.s4 1966171168
        %v7608 = vunpack.c.0.s8 %v7607
        %v7609 = vlaneseq
        %v7610 = vshrl.u32 %v7609, 7
        %v7611 = vsub.s32 %v7608, %v7610
        %v7612 = vrot.slane %v7596, %v7611
        %v7614 = vunpack.c.l.s4 1966171168
        %v7615 = vunpack.c.0.s8 %v7614
        %v7616 = vlaneseq
        %v7617 = vshrl.u32 %v7616, 7
        %v7618 = vsub.s32 %v7615, %v7617
        %v7619 = vrot.slane %v7603, %v7618
        %v7621 = vunpack.c.l.s4 1966171168
        %v7622 = vunpack.c.0.s8 %v7621
        %v7623 = vlaneseq
        %v7624 = vshrl.u32 %v7623, 7
        %v7625 = vsub.s32 %v7622, %v7624
        %v7626 = vrot.slane %v7604, %v7625
        %v7628 = vunpack.c.l.s4 1966171168
        %v7629 = vunpack.c.0.s8 %v7628
        %v7630 = vlaneseq
        %v7631 = vshrl.u32 %v7630, 7
        %v7632 = vsub.s32 %v7629, %v7631
        %v7633 = vrot.slane %v7605, %v7632
        %v7634 = vcombine.high %v7612, %v7612
        %v7635 = vcombine.high %v7619, %v7619
        %v7636 = vcombine.high %v7626, %v7626
        %v7637 = vcombine.high %v7633, %v7633
        %v7638 = vcombine.high %v4534, %v4534
        %v7640 = vunpack.c.l.s4 1966171168
        %v7641 = vunpack.c.0.s8 %v7640
        %v7642 = vlaneseq
        %v7643 = vshrl.u32 %v7642, 7
        %v7644 = vsub.s32 %v7641, %v7643
        %v7645 = vrot.slane %v4534, %v7644
        %v7647 = vunpack.c.l.s4 1966171168
        %v7648 = vunpack.c.0.s8 %v7647
        %v7649 = vlaneseq
        %v7650 = vshrl.u32 %v7649, 7
        %v7651 = vsub.s32 %v7648, %v7650
        %v7652 = vrot.slane %v7638, %v7651
        %v7653 = vcombine.high %v7645, %v7645
        %v7654 = vcombine.high %v7652, %v7652
        %v7656 = vunpack.c.l.s4 1966171168
        %v7657 = vunpack.c.0.s8 %v7656
        %v7658 = vlaneseq
        %v7659 = vshrl.u32 %v7658, 7
        %v7660 = vsub.s32 %v7657, %v7659
        %v7661 = vrot.slane %v7645, %v7660
        %v7663 = vunpack.c.l.s4 1966171168
        %v7664 = vunpack.c.0.s8 %v7663
        %v7665 = vlaneseq
        %v7666 = vshrl.u32 %v7665, 7
        %v7667 = vsub.s32 %v7664, %v7666
        %v7668 = vrot.slane %v7652, %v7667
        %v7670 = vunpack.c.l.s4 1966171168
        %v7671 = vunpack.c.0.s8 %v7670
        %v7672 = vlaneseq
        %v7673 = vshrl.u32 %v7672, 7
        %v7674 = vsub.s32 %v7671, %v7673
        %v7675 = vrot.slane %v7653, %v7674
        %v7677 = vunpack.c.l.s4 1966171168
        %v7678 = vunpack.c.0.s8 %v7677
        %v7679 = vlaneseq
        %v7680 = vshrl.u32 %v7679, 7
        %v7681 = vsub.s32 %v7678, %v7680
        %v7682 = vrot.slane %v7654, %v7681
        %v7683 = vcombine.high %v7661, %v7661
        %v7684 = vcombine.high %v7668, %v7668
        %v7685 = vcombine.high %v7675, %v7675
        %v7686 = vcombine.high %v7682, %v7682
        %v7687 = vcombine.high %v4535, %v4535
        %v7689 = vunpack.c.l.s4 1966171168
        %v7690 = vunpack.c.0.s8 %v7689
        %v7691 = vlaneseq
        %v7692 = vshrl.u32 %v7691, 7
        %v7693 = vsub.s32 %v7690, %v7692
        %v7694 = vrot.slane %v4535, %v7693
        %v7696 = vunpack.c.l.s4 1966171168
        %v7697 = vunpack.c.0.s8 %v7696
        %v7698 = vlaneseq
        %v7699 = vshrl.u32 %v7698, 7
        %v7700 = vsub.s32 %v7697, %v7699
        %v7701 = vrot.slane %v7687, %v7700
        %v7702 = vcombine.high %v7694, %v7694
        %v7703 = vcombine.high %v7701, %v7701
        %v7705 = vunpack.c.l.s4 1966171168
        %v7706 = vunpack.c.0.s8 %v7705
        %v7707 = vlaneseq
        %v7708 = vshrl.u32 %v7707, 7
        %v7709 = vsub.s32 %v7706, %v7708
        %v7710 = vrot.slane %v7694, %v7709
        %v7712 = vunpack.c.l.s4 1966171168
        %v7713 = vunpack.c.0.s8 %v7712
        %v7714 = vlaneseq
        %v7715 = vshrl.u32 %v7714, 7
        %v7716 = vsub.s32 %v7713, %v7715
        %v7717 = vrot.slane %v7701, %v7716
        %v7719 = vunpack.c.l.s4 1966171168
        %v7720 = vunpack.c.0.s8 %v7719
        %v7721 = vlaneseq
        %v7722 = vshrl.u32 %v7721, 7
        %v7723 = vsub.s32 %v7720, %v7722
        %v7724 = vrot.slane %v7702, %v7723
        %v7726 = vunpack.c.l.s4 1966171168
        %v7727 = vunpack.c.0.s8 %v7726
        %v7728 = vlaneseq
        %v7729 = vshrl.u32 %v7728, 7
        %v7730 = vsub.s32 %v7727, %v7729
        %v7731 = vrot.slane %v7703, %v7730
        %v7732 = vcombine.high %v7710, %v7710
        %v7733 = vcombine.high %v7717, %v7717
        %v7734 = vcombine.high %v7724, %v7724
        %v7735 = vcombine.high %v7731, %v7731
        %v7736 = vcombine.low %v4623, %v4637
        %v7737 = vcombine.low %v4645, %v4647
        %v7738 = vcombine.low %v4630, %v4644
        %v7739 = vcombine.low %v4646, %v4648
        %v7741 = vunpack.c.l.s4 1966171168
        %v7742 = vunpack.c.0.s8 %v7741
        %v7743 = vlaneseq
        %v7744 = vshrl.u32 %v7743, 7
        %v7745 = vsub.s32 %v7742, %v7744
        %v7746 = vrot.slane %v7736, %v7745
        %v7748 = vunpack.c.l.s4 1966171168
        %v7749 = vunpack.c.0.s8 %v7748
        %v7750 = vlaneseq
        %v7751 = vshrl.u32 %v7750, 7
        %v7752 = vsub.s32 %v7749, %v7751
        %v7753 = vrot.slane %v7737, %v7752
        %v7755 = vunpack.c.l.s4 1966171168
        %v7756 = vunpack.c.0.s8 %v7755
        %v7757 = vlaneseq
        %v7758 = vshrl.u32 %v7757, 7
        %v7759 = vsub.s32 %v7756, %v7758
        %v7760 = vrot.slane %v7738, %v7759
        %v7762 = vunpack.c.l.s4 1966171168
        %v7763 = vunpack.c.0.s8 %v7762
        %v7764 = vlaneseq
        %v7765 = vshrl.u32 %v7764, 7
        %v7766 = vsub.s32 %v7763, %v7765
        %v7767 = vrot.slane %v7739, %v7766
        %v7768 = vcombine.low %v7746, %v7753
        %v7769 = vcombine.low %v7760, %v7767
        %v7771 = vunpack.c.l.s4 1966171168
        %v7772 = vunpack.c.0.s8 %v7771
        %v7773 = vlaneseq
        %v7774 = vshrl.u32 %v7773, 7
        %v7775 = vsub.s32 %v7772, %v7774
        %v7776 = vrot.slane %v7768, %v7775
        %v7778 = vunpack.c.l.s4 1966171168
        %v7779 = vunpack.c.0.s8 %v7778
        %v7780 = vlaneseq
        %v7781 = vshrl.u32 %v7780, 7
        %v7782 = vsub.s32 %v7779, %v7781
        %v7783 = vrot.slane %v7769, %v7782
        %v7784 = vcombine.low %v7776, %v7783
        %v7785 = vcombine.low %v4672, %v4686
        %v7786 = vcombine.low %v4694, %v4696
        %v7787 = vcombine.low %v4679, %v4693
        %v7788 = vcombine.low %v4695, %v4697
        %v7790 = vunpack.c.l.s4 1966171168
        %v7791 = vunpack.c.0.s8 %v7790
        %v7792 = vlaneseq
        %v7793 = vshrl.u32 %v7792, 7
        %v7794 = vsub.s32 %v7791, %v7793
        %v7795 = vrot.slane %v7785, %v7794
        %v7797 = vunpack.c.l.s4 1966171168
        %v7798 = vunpack.c.0.s8 %v7797
        %v7799 = vlaneseq
        %v7800 = vshrl.u32 %v7799, 7
        %v7801 = vsub.s32 %v7798, %v7800
        %v7802 = vrot.slane %v7786, %v7801
        %v7804 = vunpack.c.l.s4 1966171168
        %v7805 = vunpack.c.0.s8 %v7804
        %v7806 = vlaneseq
        %v7807 = vshrl.u32 %v7806, 7
        %v7808 = vsub.s32 %v7805, %v7807
        %v7809 = vrot.slane %v7787, %v7808
        %v7811 = vunpack.c.l.s4 1966171168
        %v7812 = vunpack.c.0.s8 %v7811
        %v7813 = vlaneseq
        %v7814 = vshrl.u32 %v7813, 7
        %v7815 = vsub.s32 %v7812, %v7814
        %v7816 = vrot.slane %v7788, %v7815
        %v7817 = vcombine.low %v7795, %v7802
        %v7818 = vcombine.low %v7809, %v7816
        %v7820 = vunpack.c.l.s4 1966171168
        %v7821 = vunpack.c.0.s8 %v7820
        %v7822 = vlaneseq
        %v7823 = vshrl.u32 %v7822, 7
        %v7824 = vsub.s32 %v7821, %v7823
        %v7825 = vrot.slane %v7817, %v7824
        %v7827 = vunpack.c.l.s4 1966171168
        %v7828 = vunpack.c.0.s8 %v7827
        %v7829 = vlaneseq
        %v7830 = vshrl.u32 %v7829, 7
        %v7831 = vsub.s32 %v7828, %v7830
        %v7832 = vrot.slane %v7818, %v7831
        %v7833 = vcombine.low %v7825, %v7832
        %v7834 = vcombine.low %v4721, %v4735
        %v7835 = vcombine.low %v4743, %v4745
        %v7836 = vcombine.low %v4728, %v4742
        %v7837 = vcombine.low %v4744, %v4746
        %v7839 = vunpack.c.l.s4 1966171168
        %v7840 = vunpack.c.0.s8 %v7839
        %v7841 = vlaneseq
        %v7842 = vshrl.u32 %v7841, 7
        %v7843 = vsub.s32 %v7840, %v7842
        %v7844 = vrot.slane %v7834, %v7843
        %v7846 = vunpack.c.l.s4 1966171168
        %v7847 = vunpack.c.0.s8 %v7846
        %v7848 = vlaneseq
        %v7849 = vshrl.u32 %v7848, 7
        %v7850 = vsub.s32 %v7847, %v7849
        %v7851 = vrot.slane %v7835, %v7850
        %v7853 = vunpack.c.l.s4 1966171168
        %v7854 = vunpack.c.0.s8 %v7853
        %v7855 = vlaneseq
        %v7856 = vshrl.u32 %v7855, 7
        %v7857 = vsub.s32 %v7854, %v7856
        %v7858 = vrot.slane %v7836, %v7857
        %v7860 = vunpack.c.l.s4 1966171168
        %v7861 = vunpack.c.0.s8 %v7860
        %v7862 = vlaneseq
        %v7863 = vshrl.u32 %v7862, 7
        %v7864 = vsub.s32 %v7861, %v7863
        %v7865 = vrot.slane %v7837, %v7864
        %v7866 = vcombine.low %v7844, %v7851
        %v7867 = vcombine.low %v7858, %v7865
        %v7869 = vunpack.c.l.s4 1966171168
        %v7870 = vunpack.c.0.s8 %v7869
        %v7871 = vlaneseq
        %v7872 = vshrl.u32 %v7871, 7
        %v7873 = vsub.s32 %v7870, %v7872
        %v7874 = vrot.slane %v7866, %v7873
        %v7876 = vunpack.c.l.s4 1966171168
        %v7877 = vunpack.c.0.s8 %v7876
        %v7878 = vlaneseq
        %v7879 = vshrl.u32 %v7878, 7
        %v7880 = vsub.s32 %v7877, %v7879
        %v7881 = vrot.slane %v7867, %v7880
        %v7882 = vcombine.low %v7874, %v7881
        %v7883 = vcombine.low %v4770, %v4784
        %v7884 = vcombine.low %v4792, %v4794
        %v7885 = vcombine.low %v4777, %v4791
        %v7886 = vcombine.low %v4793, %v4795
        %v7888 = vunpack.c.l.s4 1966171168
        %v7889 = vunpack.c.0.s8 %v7888
        %v7890 = vlaneseq
        %v7891 = vshrl.u32 %v7890, 7
        %v7892 = vsub.s32 %v7889, %v7891
        %v7893 = vrot.slane %v7883, %v7892
        %v7895 = vunpack.c.l.s4 1966171168
        %v7896 = vunpack.c.0.s8 %v7895
        %v7897 = vlaneseq
        %v7898 = vshrl.u32 %v7897, 7
        %v7899 = vsub.s32 %v7896, %v7898
        %v7900 = vrot.slane %v7884, %v7899
        %v7902 = vunpack.c.l.s4 1966171168
        %v7903 = vunpack.c.0.s8 %v7902
        %v7904 = vlaneseq
        %v7905 = vshrl.u32 %v7904, 7
        %v7906 = vsub.s32 %v7903, %v7905
        %v7907 = vrot.slane %v7885, %v7906
        %v7909 = vunpack.c.l.s4 1966171168
        %v7910 = vunpack.c.0.s8 %v7909
        %v7911 = vlaneseq
        %v7912 = vshrl.u32 %v7911, 7
        %v7913 = vsub.s32 %v7910, %v7912
        %v7914 = vrot.slane %v7886, %v7913
        %v7915 = vcombine.low %v7893, %v7900
        %v7916 = vcombine.low %v7907, %v7914
        %v7918 = vunpack.c.l.s4 1966171168
        %v7919 = vunpack.c.0.s8 %v7918
        %v7920 = vlaneseq
        %v7921 = vshrl.u32 %v7920, 7
        %v7922 = vsub.s32 %v7919, %v7921
        %v7923 = vrot.slane %v7915, %v7922
        %v7925 = vunpack.c.l.s4 1966171168
        %v7926 = vunpack.c.0.s8 %v7925
        %v7927 = vlaneseq
        %v7928 = vshrl.u32 %v7927, 7
        %v7929 = vsub.s32 %v7926, %v7928
        %v7930 = vrot.slane %v7916, %v7929
        %v7931 = vcombine.low %v7923, %v7930
        %v7932 = vcombine.low %v4819, %v4833
        %v7933 = vcombine.low %v4841, %v4843
        %v7934 = vcombine.low %v4826, %v4840
        %v7935 = vcombine.low %v4842, %v4844
        %v7937 = vunpack.c.l.s4 1966171168
        %v7938 = vunpack.c.0.s8 %v7937
        %v7939 = vlaneseq
        %v7940 = vshrl.u32 %v7939, 7
        %v7941 = vsub.s32 %v7938, %v7940
        %v7942 = vrot.slane %v7932, %v7941
        %v7944 = vunpack.c.l.s4 1966171168
        %v7945 = vunpack.c.0.s8 %v7944
        %v7946 = vlaneseq
        %v7947 = vshrl.u32 %v7946, 7
        %v7948 = vsub.s32 %v7945, %v7947
        %v7949 = vrot.slane %v7933, %v7948
        %v7951 = vunpack.c.l.s4 1966171168
        %v7952 = vunpack.c.0.s8 %v7951
        %v7953 = vlaneseq
        %v7954 = vshrl.u32 %v7953, 7
        %v7955 = vsub.s32 %v7952, %v7954
        %v7956 = vrot.slane %v7934, %v7955
        %v7958 = vunpack.c.l.s4 1966171168
        %v7959 = vunpack.c.0.s8 %v7958
        %v7960 = vlaneseq
        %v7961 = vshrl.u32 %v7960, 7
        %v7962 = vsub.s32 %v7959, %v7961
        %v7963 = vrot.slane %v7935, %v7962
        %v7964 = vcombine.low %v7942, %v7949
        %v7965 = vcombine.low %v7956, %v7963
        %v7967 = vunpack.c.l.s4 1966171168
        %v7968 = vunpack.c.0.s8 %v7967
        %v7969 = vlaneseq
        %v7970 = vshrl.u32 %v7969, 7
        %v7971 = vsub.s32 %v7968, %v7970
        %v7972 = vrot.slane %v7964, %v7971
        %v7974 = vunpack.c.l.s4 1966171168
        %v7975 = vunpack.c.0.s8 %v7974
        %v7976 = vlaneseq
        %v7977 = vshrl.u32 %v7976, 7
        %v7978 = vsub.s32 %v7975, %v7977
        %v7979 = vrot.slane %v7965, %v7978
        %v7980 = vcombine.low %v7972, %v7979
        %v7981 = vcombine.low %v4868, %v4882
        %v7982 = vcombine.low %v4890, %v4892
        %v7983 = vcombine.low %v4875, %v4889
        %v7984 = vcombine.low %v4891, %v4893
        %v7986 = vunpack.c.l.s4 1966171168
        %v7987 = vunpack.c.0.s8 %v7986
        %v7988 = vlaneseq
        %v7989 = vshrl.u32 %v7988, 7
        %v7990 = vsub.s32 %v7987, %v7989
        %v7991 = vrot.slane %v7981, %v7990
        %v7993 = vunpack.c.l.s4 1966171168
        %v7994 = vunpack.c.0.s8 %v7993
        %v7995 = vlaneseq
        %v7996 = vshrl.u32 %v7995, 7
        %v7997 = vsub.s32 %v7994, %v7996
        %v7998 = vrot.slane %v7982, %v7997
        %v8000 = vunpack.c.l.s4 1966171168
        %v8001 = vunpack.c.0.s8 %v8000
        %v8002 = vlaneseq
        %v8003 = vshrl.u32 %v8002, 7
        %v8004 = vsub.s32 %v8001, %v8003
        %v8005 = vrot.slane %v7983, %v8004
        %v8007 = vunpack.c.l.s4 1966171168
        %v8008 = vunpack.c.0.s8 %v8007
        %v8009 = vlaneseq
        %v8010 = vshrl.u32 %v8009, 7
        %v8011 = vsub.s32 %v8008, %v8010
        %v8012 = vrot.slane %v7984, %v8011
        %v8013 = vcombine.low %v7991, %v7998
        %v8014 = vcombine.low %v8005, %v8012
        %v8016 = vunpack.c.l.s4 1966171168
        %v8017 = vunpack.c.0.s8 %v8016
        %v8018 = vlaneseq
        %v8019 = vshrl.u32 %v8018, 7
        %v8020 = vsub.s32 %v8017, %v8019
        %v8021 = vrot.slane %v8013, %v8020
        %v8023 = vunpack.c.l.s4 1966171168
        %v8024 = vunpack.c.0.s8 %v8023
        %v8025 = vlaneseq
        %v8026 = vshrl.u32 %v8025, 7
        %v8027 = vsub.s32 %v8024, %v8026
        %v8028 = vrot.slane %v8014, %v8027
        %v8029 = vcombine.low %v8021, %v8028
        %v8030 = vcombine.low %v4917, %v4931
        %v8031 = vcombine.low %v4939, %v4941
        %v8032 = vcombine.low %v4924, %v4938
        %v8033 = vcombine.low %v4940, %v4942
        %v8035 = vunpack.c.l.s4 1966171168
        %v8036 = vunpack.c.0.s8 %v8035
        %v8037 = vlaneseq
        %v8038 = vshrl.u32 %v8037, 7
        %v8039 = vsub.s32 %v8036, %v8038
        %v8040 = vrot.slane %v8030, %v8039
        %v8042 = vunpack.c.l.s4 1966171168
        %v8043 = vunpack.c.0.s8 %v8042
        %v8044 = vlaneseq
        %v8045 = vshrl.u32 %v8044, 7
        %v8046 = vsub.s32 %v8043, %v8045
        %v8047 = vrot.slane %v8031, %v8046
        %v8049 = vunpack.c.l.s4 1966171168
        %v8050 = vunpack.c.0.s8 %v8049
        %v8051 = vlaneseq
        %v8052 = vshrl.u32 %v8051, 7
        %v8053 = vsub.s32 %v8050, %v8052
        %v8054 = vrot.slane %v8032, %v8053
        %v8056 = vunpack.c.l.s4 1966171168
        %v8057 = vunpack.c.0.s8 %v8056
        %v8058 = vlaneseq
        %v8059 = vshrl.u32 %v8058, 7
        %v8060 = vsub.s32 %v8057, %v8059
        %v8061 = vrot.slane %v8033, %v8060
        %v8062 = vcombine.low %v8040, %v8047
        %v8063 = vcombine.low %v8054, %v8061
        %v8065 = vunpack.c.l.s4 1966171168
        %v8066 = vunpack.c.0.s8 %v8065
        %v8067 = vlaneseq
        %v8068 = vshrl.u32 %v8067, 7
        %v8069 = vsub.s32 %v8066, %v8068
        %v8070 = vrot.slane %v8062, %v8069
        %v8072 = vunpack.c.l.s4 1966171168
        %v8073 = vunpack.c.0.s8 %v8072
        %v8074 = vlaneseq
        %v8075 = vshrl.u32 %v8074, 7
        %v8076 = vsub.s32 %v8073, %v8075
        %v8077 = vrot.slane %v8063, %v8076
        %v8078 = vcombine.low %v8070, %v8077
        %v8079 = vcombine.low %v4966, %v4980
        %v8080 = vcombine.low %v4988, %v4990
        %v8081 = vcombine.low %v4973, %v4987
        %v8082 = vcombine.low %v4989, %v4991
        %v8084 = vunpack.c.l.s4 1966171168
        %v8085 = vunpack.c.0.s8 %v8084
        %v8086 = vlaneseq
        %v8087 = vshrl.u32 %v8086, 7
        %v8088 = vsub.s32 %v8085, %v8087
        %v8089 = vrot.slane %v8079, %v8088
        %v8091 = vunpack.c.l.s4 1966171168
        %v8092 = vunpack.c.0.s8 %v8091
        %v8093 = vlaneseq
        %v8094 = vshrl.u32 %v8093, 7
        %v8095 = vsub.s32 %v8092, %v8094
        %v8096 = vrot.slane %v8080, %v8095
        %v8098 = vunpack.c.l.s4 1966171168
        %v8099 = vunpack.c.0.s8 %v8098
        %v8100 = vlaneseq
        %v8101 = vshrl.u32 %v8100, 7
        %v8102 = vsub.s32 %v8099, %v8101
        %v8103 = vrot.slane %v8081, %v8102
        %v8105 = vunpack.c.l.s4 1966171168
        %v8106 = vunpack.c.0.s8 %v8105
        %v8107 = vlaneseq
        %v8108 = vshrl.u32 %v8107, 7
        %v8109 = vsub.s32 %v8106, %v8108
        %v8110 = vrot.slane %v8082, %v8109
        %v8111 = vcombine.low %v8089, %v8096
        %v8112 = vcombine.low %v8103, %v8110
        %v8114 = vunpack.c.l.s4 1966171168
        %v8115 = vunpack.c.0.s8 %v8114
        %v8116 = vlaneseq
        %v8117 = vshrl.u32 %v8116, 7
        %v8118 = vsub.s32 %v8115, %v8117
        %v8119 = vrot.slane %v8111, %v8118
        %v8121 = vunpack.c.l.s4 1966171168
        %v8122 = vunpack.c.0.s8 %v8121
        %v8123 = vlaneseq
        %v8124 = vshrl.u32 %v8123, 7
        %v8125 = vsub.s32 %v8122, %v8124
        %v8126 = vrot.slane %v8112, %v8125
        %v8127 = vcombine.low %v8119, %v8126
        %v8128 = vcombine.low %v5015, %v5029
        %v8129 = vcombine.low %v5037, %v5039
        %v8130 = vcombine.low %v5022, %v5036
        %v8131 = vcombine.low %v5038, %v5040
        %v8133 = vunpack.c.l.s4 1966171168
        %v8134 = vunpack.c.0.s8 %v8133
        %v8135 = vlaneseq
        %v8136 = vshrl.u32 %v8135, 7
        %v8137 = vsub.s32 %v8134, %v8136
        %v8138 = vrot.slane %v8128, %v8137
        %v8140 = vunpack.c.l.s4 1966171168
        %v8141 = vunpack.c.0.s8 %v8140
        %v8142 = vlaneseq
        %v8143 = vshrl.u32 %v8142, 7
        %v8144 = vsub.s32 %v8141, %v8143
        %v8145 = vrot.slane %v8129, %v8144
        %v8147 = vunpack.c.l.s4 1966171168
        %v8148 = vunpack.c.0.s8 %v8147
        %v8149 = vlaneseq
        %v8150 = vshrl.u32 %v8149, 7
        %v8151 = vsub.s32 %v8148, %v8150
        %v8152 = vrot.slane %v8130, %v8151
        %v8154 = vunpack.c.l.s4 1966171168
        %v8155 = vunpack.c.0.s8 %v8154
        %v8156 = vlaneseq
        %v8157 = vshrl.u32 %v8156, 7
        %v8158 = vsub.s32 %v8155, %v8157
        %v8159 = vrot.slane %v8131, %v8158
        %v8160 = vcombine.low %v8138, %v8145
        %v8161 = vcombine.low %v8152, %v8159
        %v8163 = vunpack.c.l.s4 1966171168
        %v8164 = vunpack.c.0.s8 %v8163
        %v8165 = vlaneseq
        %v8166 = vshrl.u32 %v8165, 7
        %v8167 = vsub.s32 %v8164, %v8166
        %v8168 = vrot.slane %v8160, %v8167
        %v8170 = vunpack.c.l.s4 1966171168
        %v8171 = vunpack.c.0.s8 %v8170
        %v8172 = vlaneseq
        %v8173 = vshrl.u32 %v8172, 7
        %v8174 = vsub.s32 %v8171, %v8173
        %v8175 = vrot.slane %v8161, %v8174
        %v8176 = vcombine.low %v8168, %v8175
        %v8177 = vcombine.low %v5064, %v5078
        %v8178 = vcombine.low %v5086, %v5088
        %v8179 = vcombine.low %v5071, %v5085
        %v8180 = vcombine.low %v5087, %v5089
        %v8182 = vunpack.c.l.s4 1966171168
        %v8183 = vunpack.c.0.s8 %v8182
        %v8184 = vlaneseq
        %v8185 = vshrl.u32 %v8184, 7
        %v8186 = vsub.s32 %v8183, %v8185
        %v8187 = vrot.slane %v8177, %v8186
        %v8189 = vunpack.c.l.s4 1966171168
        %v8190 = vunpack.c.0.s8 %v8189
        %v8191 = vlaneseq
        %v8192 = vshrl.u32 %v8191, 7
        %v8193 = vsub.s32 %v8190, %v8192
        %v8194 = vrot.slane %v8178, %v8193
        %v8196 = vunpack.c.l.s4 1966171168
        %v8197 = vunpack.c.0.s8 %v8196
        %v8198 = vlaneseq
        %v8199 = vshrl.u32 %v8198, 7
        %v8200 = vsub.s32 %v8197, %v8199
        %v8201 = vrot.slane %v8179, %v8200
        %v8203 = vunpack.c.l.s4 1966171168
        %v8204 = vunpack.c.0.s8 %v8203
        %v8205 = vlaneseq
        %v8206 = vshrl.u32 %v8205, 7
        %v8207 = vsub.s32 %v8204, %v8206
        %v8208 = vrot.slane %v8180, %v8207
        %v8209 = vcombine.low %v8187, %v8194
        %v8210 = vcombine.low %v8201, %v8208
        %v8212 = vunpack.c.l.s4 1966171168
        %v8213 = vunpack.c.0.s8 %v8212
        %v8214 = vlaneseq
        %v8215 = vshrl.u32 %v8214, 7
        %v8216 = vsub.s32 %v8213, %v8215
        %v8217 = vrot.slane %v8209, %v8216
        %v8219 = vunpack.c.l.s4 1966171168
        %v8220 = vunpack.c.0.s8 %v8219
        %v8221 = vlaneseq
        %v8222 = vshrl.u32 %v8221, 7
        %v8223 = vsub.s32 %v8220, %v8222
        %v8224 = vrot.slane %v8210, %v8223
        %v8225 = vcombine.low %v8217, %v8224
        %v8226 = vcombine.low %v5113, %v5127
        %v8227 = vcombine.low %v5135, %v5137
        %v8228 = vcombine.low %v5120, %v5134
        %v8229 = vcombine.low %v5136, %v5138
        %v8231 = vunpack.c.l.s4 1966171168
        %v8232 = vunpack.c.0.s8 %v8231
        %v8233 = vlaneseq
        %v8234 = vshrl.u32 %v8233, 7
        %v8235 = vsub.s32 %v8232, %v8234
        %v8236 = vrot.slane %v8226, %v8235
        %v8238 = vunpack.c.l.s4 1966171168
        %v8239 = vunpack.c.0.s8 %v8238
        %v8240 = vlaneseq
        %v8241 = vshrl.u32 %v8240, 7
        %v8242 = vsub.s32 %v8239, %v8241
        %v8243 = vrot.slane %v8227, %v8242
        %v8245 = vunpack.c.l.s4 1966171168
        %v8246 = vunpack.c.0.s8 %v8245
        %v8247 = vlaneseq
        %v8248 = vshrl.u32 %v8247, 7
        %v8249 = vsub.s32 %v8246, %v8248
        %v8250 = vrot.slane %v8228, %v8249
        %v8252 = vunpack.c.l.s4 1966171168
        %v8253 = vunpack.c.0.s8 %v8252
        %v8254 = vlaneseq
        %v8255 = vshrl.u32 %v8254, 7
        %v8256 = vsub.s32 %v8253, %v8255
        %v8257 = vrot.slane %v8229, %v8256
        %v8258 = vcombine.low %v8236, %v8243
        %v8259 = vcombine.low %v8250, %v8257
        %v8261 = vunpack.c.l.s4 1966171168
        %v8262 = vunpack.c.0.s8 %v8261
        %v8263 = vlaneseq
        %v8264 = vshrl.u32 %v8263, 7
        %v8265 = vsub.s32 %v8262, %v8264
        %v8266 = vrot.slane %v8258, %v8265
        %v8268 = vunpack.c.l.s4 1966171168
        %v8269 = vunpack.c.0.s8 %v8268
        %v8270 = vlaneseq
        %v8271 = vshrl.u32 %v8270, 7
        %v8272 = vsub.s32 %v8269, %v8271
        %v8273 = vrot.slane %v8259, %v8272
        %v8274 = vcombine.low %v8266, %v8273
        %v8275 = vcombine.low %v5162, %v5176
        %v8276 = vcombine.low %v5184, %v5186
        %v8277 = vcombine.low %v5169, %v5183
        %v8278 = vcombine.low %v5185, %v5187
        %v8280 = vunpack.c.l.s4 1966171168
        %v8281 = vunpack.c.0.s8 %v8280
        %v8282 = vlaneseq
        %v8283 = vshrl.u32 %v8282, 7
        %v8284 = vsub.s32 %v8281, %v8283
        %v8285 = vrot.slane %v8275, %v8284
        %v8287 = vunpack.c.l.s4 1966171168
        %v8288 = vunpack.c.0.s8 %v8287
        %v8289 = vlaneseq
        %v8290 = vshrl.u32 %v8289, 7
        %v8291 = vsub.s32 %v8288, %v8290
        %v8292 = vrot.slane %v8276, %v8291
        %v8294 = vunpack.c.l.s4 1966171168
        %v8295 = vunpack.c.0.s8 %v8294
        %v8296 = vlaneseq
        %v8297 = vshrl.u32 %v8296, 7
        %v8298 = vsub.s32 %v8295, %v8297
        %v8299 = vrot.slane %v8277, %v8298
        %v8301 = vunpack.c.l.s4 1966171168
        %v8302 = vunpack.c.0.s8 %v8301
        %v8303 = vlaneseq
        %v8304 = vshrl.u32 %v8303, 7
        %v8305 = vsub.s32 %v8302, %v8304
        %v8306 = vrot.slane %v8278, %v8305
        %v8307 = vcombine.low %v8285, %v8292
        %v8308 = vcombine.low %v8299, %v8306
        %v8310 = vunpack.c.l.s4 1966171168
        %v8311 = vunpack.c.0.s8 %v8310
        %v8312 = vlaneseq
        %v8313 = vshrl.u32 %v8312, 7
        %v8314 = vsub.s32 %v8311, %v8313
        %v8315 = vrot.slane %v8307, %v8314
        %v8317 = vunpack.c.l.s4 1966171168
        %v8318 = vunpack.c.0.s8 %v8317
        %v8319 = vlaneseq
        %v8320 = vshrl.u32 %v8319, 7
        %v8321 = vsub.s32 %v8318, %v8320
        %v8322 = vrot.slane %v8308, %v8321
        %v8323 = vcombine.low %v8315, %v8322
        %v8324 = vcombine.low %v5211, %v5225
        %v8325 = vcombine.low %v5233, %v5235
        %v8326 = vcombine.low %v5218, %v5232
        %v8327 = vcombine.low %v5234, %v5236
        %v8329 = vunpack.c.l.s4 1966171168
        %v8330 = vunpack.c.0.s8 %v8329
        %v8331 = vlaneseq
        %v8332 = vshrl.u32 %v8331, 7
        %v8333 = vsub.s32 %v8330, %v8332
        %v8334 = vrot.slane %v8324, %v8333
        %v8336 = vunpack.c.l.s4 1966171168
        %v8337 = vunpack.c.0.s8 %v8336
        %v8338 = vlaneseq
        %v8339 = vshrl.u32 %v8338, 7
        %v8340 = vsub.s32 %v8337, %v8339
        %v8341 = vrot.slane %v8325, %v8340
        %v8343 = vunpack.c.l.s4 1966171168
        %v8344 = vunpack.c.0.s8 %v8343
        %v8345 = vlaneseq
        %v8346 = vshrl.u32 %v8345, 7
        %v8347 = vsub.s32 %v8344, %v8346
        %v8348 = vrot.slane %v8326, %v8347
        %v8350 = vunpack.c.l.s4 1966171168
        %v8351 = vunpack.c.0.s8 %v8350
        %v8352 = vlaneseq
        %v8353 = vshrl.u32 %v8352, 7
        %v8354 = vsub.s32 %v8351, %v8353
        %v8355 = vrot.slane %v8327, %v8354
        %v8356 = vcombine.low %v8334, %v8341
        %v8357 = vcombine.low %v8348, %v8355
        %v8359 = vunpack.c.l.s4 1966171168
        %v8360 = vunpack.c.0.s8 %v8359
        %v8361 = vlaneseq
        %v8362 = vshrl.u32 %v8361, 7
        %v8363 = vsub.s32 %v8360, %v8362
        %v8364 = vrot.slane %v8356, %v8363
        %v8366 = vunpack.c.l.s4 1966171168
        %v8367 = vunpack.c.0.s8 %v8366
        %v8368 = vlaneseq
        %v8369 = vshrl.u32 %v8368, 7
        %v8370 = vsub.s32 %v8367, %v8369
        %v8371 = vrot.slane %v8357, %v8370
        %v8372 = vcombine.low %v8364, %v8371
        %v8373 = vcombine.low %v5260, %v5274
        %v8374 = vcombine.low %v5282, %v5284
        %v8375 = vcombine.low %v5267, %v5281
        %v8376 = vcombine.low %v5283, %v5285
        %v8378 = vunpack.c.l.s4 1966171168
        %v8379 = vunpack.c.0.s8 %v8378
        %v8380 = vlaneseq
        %v8381 = vshrl.u32 %v8380, 7
        %v8382 = vsub.s32 %v8379, %v8381
        %v8383 = vrot.slane %v8373, %v8382
        %v8385 = vunpack.c.l.s4 1966171168
        %v8386 = vunpack.c.0.s8 %v8385
        %v8387 = vlaneseq
        %v8388 = vshrl.u32 %v8387, 7
        %v8389 = vsub.s32 %v8386, %v8388
        %v8390 = vrot.slane %v8374, %v8389
        %v8392 = vunpack.c.l.s4 1966171168
        %v8393 = vunpack.c.0.s8 %v8392
        %v8394 = vlaneseq
        %v8395 = vshrl.u32 %v8394, 7
        %v8396 = vsub.s32 %v8393, %v8395
        %v8397 = vrot.slane %v8375, %v8396
        %v8399 = vunpack.c.l.s4 1966171168
        %v8400 = vunpack.c.0.s8 %v8399
        %v8401 = vlaneseq
        %v8402 = vshrl.u32 %v8401, 7
        %v8403 = vsub.s32 %v8400, %v8402
        %v8404 = vrot.slane %v8376, %v8403
        %v8405 = vcombine.low %v8383, %v8390
        %v8406 = vcombine.low %v8397, %v8404
        %v8408 = vunpack.c.l.s4 1966171168
        %v8409 = vunpack.c.0.s8 %v8408
        %v8410 = vlaneseq
        %v8411 = vshrl.u32 %v8410, 7
        %v8412 = vsub.s32 %v8409, %v8411
        %v8413 = vrot.slane %v8405, %v8412
        %v8415 = vunpack.c.l.s4 1966171168
        %v8416 = vunpack.c.0.s8 %v8415
        %v8417 = vlaneseq
        %v8418 = vshrl.u32 %v8417, 7
        %v8419 = vsub.s32 %v8416, %v8418
        %v8420 = vrot.slane %v8406, %v8419
        %v8421 = vcombine.low %v8413, %v8420
        %v8422 = vcombine.low %v5309, %v5323
        %v8423 = vcombine.low %v5331, %v5333
        %v8424 = vcombine.low %v5316, %v5330
        %v8425 = vcombine.low %v5332, %v5334
        %v8427 = vunpack.c.l.s4 1966171168
        %v8428 = vunpack.c.0.s8 %v8427
        %v8429 = vlaneseq
        %v8430 = vshrl.u32 %v8429, 7
        %v8431 = vsub.s32 %v8428, %v8430
        %v8432 = vrot.slane %v8422, %v8431
        %v8434 = vunpack.c.l.s4 1966171168
        %v8435 = vunpack.c.0.s8 %v8434
        %v8436 = vlaneseq
        %v8437 = vshrl.u32 %v8436, 7
        %v8438 = vsub.s32 %v8435, %v8437
        %v8439 = vrot.slane %v8423, %v8438
        %v8441 = vunpack.c.l.s4 1966171168
        %v8442 = vunpack.c.0.s8 %v8441
        %v8443 = vlaneseq
        %v8444 = vshrl.u32 %v8443, 7
        %v8445 = vsub.s32 %v8442, %v8444
        %v8446 = vrot.slane %v8424, %v8445
        %v8448 = vunpack.c.l.s4 1966171168
        %v8449 = vunpack.c.0.s8 %v8448
        %v8450 = vlaneseq
        %v8451 = vshrl.u32 %v8450, 7
        %v8452 = vsub.s32 %v8449, %v8451
        %v8453 = vrot.slane %v8425, %v8452
        %v8454 = vcombine.low %v8432, %v8439
        %v8455 = vcombine.low %v8446, %v8453
        %v8457 = vunpack.c.l.s4 1966171168
        %v8458 = vunpack.c.0.s8 %v8457
        %v8459 = vlaneseq
        %v8460 = vshrl.u32 %v8459, 7
        %v8461 = vsub.s32 %v8458, %v8460
        %v8462 = vrot.slane %v8454, %v8461
        %v8464 = vunpack.c.l.s4 1966171168
        %v8465 = vunpack.c.0.s8 %v8464
        %v8466 = vlaneseq
        %v8467 = vshrl.u32 %v8466, 7
        %v8468 = vsub.s32 %v8465, %v8467
        %v8469 = vrot.slane %v8455, %v8468
        %v8470 = vcombine.low %v8462, %v8469
        %v8471 = vcombine.low %v5358, %v5372
        %v8472 = vcombine.low %v5380, %v5382
        %v8473 = vcombine.low %v5365, %v5379
        %v8474 = vcombine.low %v5381, %v5383
        %v8476 = vunpack.c.l.s4 1966171168
        %v8477 = vunpack.c.0.s8 %v8476
        %v8478 = vlaneseq
        %v8479 = vshrl.u32 %v8478, 7
        %v8480 = vsub.s32 %v8477, %v8479
        %v8481 = vrot.slane %v8471, %v8480
        %v8483 = vunpack.c.l.s4 1966171168
        %v8484 = vunpack.c.0.s8 %v8483
        %v8485 = vlaneseq
        %v8486 = vshrl.u32 %v8485, 7
        %v8487 = vsub.s32 %v8484, %v8486
        %v8488 = vrot.slane %v8472, %v8487
        %v8490 = vunpack.c.l.s4 1966171168
        %v8491 = vunpack.c.0.s8 %v8490
        %v8492 = vlaneseq
        %v8493 = vshrl.u32 %v8492, 7
        %v8494 = vsub.s32 %v8491, %v8493
        %v8495 = vrot.slane %v8473, %v8494
        %v8497 = vunpack.c.l.s4 1966171168
        %v8498 = vunpack.c.0.s8 %v8497
        %v8499 = vlaneseq
        %v8500 = vshrl.u32 %v8499, 7
        %v8501 = vsub.s32 %v8498, %v8500
        %v8502 = vrot.slane %v8474, %v8501
        %v8503 = vcombine.low %v8481, %v8488
        %v8504 = vcombine.low %v8495, %v8502
        %v8506 = vunpack.c.l.s4 1966171168
        %v8507 = vunpack.c.0.s8 %v8506
        %v8508 = vlaneseq
        %v8509 = vshrl.u32 %v8508, 7
        %v8510 = vsub.s32 %v8507, %v8509
        %v8511 = vrot.slane %v8503, %v8510
        %v8513 = vunpack.c.l.s4 1966171168
        %v8514 = vunpack.c.0.s8 %v8513
        %v8515 = vlaneseq
        %v8516 = vshrl.u32 %v8515, 7
        %v8517 = vsub.s32 %v8514, %v8516
        %v8518 = vrot.slane %v8504, %v8517
        %v8519 = vcombine.low %v8511, %v8518
        %v8520 = vcombine.low %v5407, %v5421
        %v8521 = vcombine.low %v5429, %v5431
        %v8522 = vcombine.low %v5414, %v5428
        %v8523 = vcombine.low %v5430, %v5432
        %v8525 = vunpack.c.l.s4 1966171168
        %v8526 = vunpack.c.0.s8 %v8525
        %v8527 = vlaneseq
        %v8528 = vshrl.u32 %v8527, 7
        %v8529 = vsub.s32 %v8526, %v8528
        %v8530 = vrot.slane %v8520, %v8529
        %v8532 = vunpack.c.l.s4 1966171168
        %v8533 = vunpack.c.0.s8 %v8532
        %v8534 = vlaneseq
        %v8535 = vshrl.u32 %v8534, 7
        %v8536 = vsub.s32 %v8533, %v8535
        %v8537 = vrot.slane %v8521, %v8536
        %v8539 = vunpack.c.l.s4 1966171168
        %v8540 = vunpack.c.0.s8 %v8539
        %v8541 = vlaneseq
        %v8542 = vshrl.u32 %v8541, 7
        %v8543 = vsub.s32 %v8540, %v8542
        %v8544 = vrot.slane %v8522, %v8543
        %v8546 = vunpack.c.l.s4 1966171168
        %v8547 = vunpack.c.0.s8 %v8546
        %v8548 = vlaneseq
        %v8549 = vshrl.u32 %v8548, 7
        %v8550 = vsub.s32 %v8547, %v8549
        %v8551 = vrot.slane %v8523, %v8550
        %v8552 = vcombine.low %v8530, %v8537
        %v8553 = vcombine.low %v8544, %v8551
        %v8555 = vunpack.c.l.s4 1966171168
        %v8556 = vunpack.c.0.s8 %v8555
        %v8557 = vlaneseq
        %v8558 = vshrl.u32 %v8557, 7
        %v8559 = vsub.s32 %v8556, %v8558
        %v8560 = vrot.slane %v8552, %v8559
        %v8562 = vunpack.c.l.s4 1966171168
        %v8563 = vunpack.c.0.s8 %v8562
        %v8564 = vlaneseq
        %v8565 = vshrl.u32 %v8564, 7
        %v8566 = vsub.s32 %v8563, %v8565
        %v8567 = vrot.slane %v8553, %v8566
        %v8568 = vcombine.low %v8560, %v8567
        %v8569 = vcombine.low %v5456, %v5470
        %v8570 = vcombine.low %v5478, %v5480
        %v8571 = vcombine.low %v5463, %v5477
        %v8572 = vcombine.low %v5479, %v5481
        %v8574 = vunpack.c.l.s4 1966171168
        %v8575 = vunpack.c.0.s8 %v8574
        %v8576 = vlaneseq
        %v8577 = vshrl.u32 %v8576, 7
        %v8578 = vsub.s32 %v8575, %v8577
        %v8579 = vrot.slane %v8569, %v8578
        %v8581 = vunpack.c.l.s4 1966171168
        %v8582 = vunpack.c.0.s8 %v8581
        %v8583 = vlaneseq
        %v8584 = vshrl.u32 %v8583, 7
        %v8585 = vsub.s32 %v8582, %v8584
        %v8586 = vrot.slane %v8570, %v8585
        %v8588 = vunpack.c.l.s4 1966171168
        %v8589 = vunpack.c.0.s8 %v8588
        %v8590 = vlaneseq
        %v8591 = vshrl.u32 %v8590, 7
        %v8592 = vsub.s32 %v8589, %v8591
        %v8593 = vrot.slane %v8571, %v8592
        %v8595 = vunpack.c.l.s4 1966171168
        %v8596 = vunpack.c.0.s8 %v8595
        %v8597 = vlaneseq
        %v8598 = vshrl.u32 %v8597, 7
        %v8599 = vsub.s32 %v8596, %v8598
        %v8600 = vrot.slane %v8572, %v8599
        %v8601 = vcombine.low %v8579, %v8586
        %v8602 = vcombine.low %v8593, %v8600
        %v8604 = vunpack.c.l.s4 1966171168
        %v8605 = vunpack.c.0.s8 %v8604
        %v8606 = vlaneseq
        %v8607 = vshrl.u32 %v8606, 7
        %v8608 = vsub.s32 %v8605, %v8607
        %v8609 = vrot.slane %v8601, %v8608
        %v8611 = vunpack.c.l.s4 1966171168
        %v8612 = vunpack.c.0.s8 %v8611
        %v8613 = vlaneseq
        %v8614 = vshrl.u32 %v8613, 7
        %v8615 = vsub.s32 %v8612, %v8614
        %v8616 = vrot.slane %v8602, %v8615
        %v8617 = vcombine.low %v8609, %v8616
        %v8618 = vcombine.low %v5505, %v5519
        %v8619 = vcombine.low %v5527, %v5529
        %v8620 = vcombine.low %v5512, %v5526
        %v8621 = vcombine.low %v5528, %v5530
        %v8623 = vunpack.c.l.s4 1966171168
        %v8624 = vunpack.c.0.s8 %v8623
        %v8625 = vlaneseq
        %v8626 = vshrl.u32 %v8625, 7
        %v8627 = vsub.s32 %v8624, %v8626
        %v8628 = vrot.slane %v8618, %v8627
        %v8630 = vunpack.c.l.s4 1966171168
        %v8631 = vunpack.c.0.s8 %v8630
        %v8632 = vlaneseq
        %v8633 = vshrl.u32 %v8632, 7
        %v8634 = vsub.s32 %v8631, %v8633
        %v8635 = vrot.slane %v8619, %v8634
        %v8637 = vunpack.c.l.s4 1966171168
        %v8638 = vunpack.c.0.s8 %v8637
        %v8639 = vlaneseq
        %v8640 = vshrl.u32 %v8639, 7
        %v8641 = vsub.s32 %v8638, %v8640
        %v8642 = vrot.slane %v8620, %v8641
        %v8644 = vunpack.c.l.s4 1966171168
        %v8645 = vunpack.c.0.s8 %v8644
        %v8646 = vlaneseq
        %v8647 = vshrl.u32 %v8646, 7
        %v8648 = vsub.s32 %v8645, %v8647
        %v8649 = vrot.slane %v8621, %v8648
        %v8650 = vcombine.low %v8628, %v8635
        %v8651 = vcombine.low %v8642, %v8649
        %v8653 = vunpack.c.l.s4 1966171168
        %v8654 = vunpack.c.0.s8 %v8653
        %v8655 = vlaneseq
        %v8656 = vshrl.u32 %v8655, 7
        %v8657 = vsub.s32 %v8654, %v8656
        %v8658 = vrot.slane %v8650, %v8657
        %v8660 = vunpack.c.l.s4 1966171168
        %v8661 = vunpack.c.0.s8 %v8660
        %v8662 = vlaneseq
        %v8663 = vshrl.u32 %v8662, 7
        %v8664 = vsub.s32 %v8661, %v8663
        %v8665 = vrot.slane %v8651, %v8664
        %v8666 = vcombine.low %v8658, %v8665
        %v8667 = vcombine.low %v5554, %v5568
        %v8668 = vcombine.low %v5576, %v5578
        %v8669 = vcombine.low %v5561, %v5575
        %v8670 = vcombine.low %v5577, %v5579
        %v8672 = vunpack.c.l.s4 1966171168
        %v8673 = vunpack.c.0.s8 %v8672
        %v8674 = vlaneseq
        %v8675 = vshrl.u32 %v8674, 7
        %v8676 = vsub.s32 %v8673, %v8675
        %v8677 = vrot.slane %v8667, %v8676
        %v8679 = vunpack.c.l.s4 1966171168
        %v8680 = vunpack.c.0.s8 %v8679
        %v8681 = vlaneseq
        %v8682 = vshrl.u32 %v8681, 7
        %v8683 = vsub.s32 %v8680, %v8682
        %v8684 = vrot.slane %v8668, %v8683
        %v8686 = vunpack.c.l.s4 1966171168
        %v8687 = vunpack.c.0.s8 %v8686
        %v8688 = vlaneseq
        %v8689 = vshrl.u32 %v8688, 7
        %v8690 = vsub.s32 %v8687, %v8689
        %v8691 = vrot.slane %v8669, %v8690
        %v8693 = vunpack.c.l.s4 1966171168
        %v8694 = vunpack.c.0.s8 %v8693
        %v8695 = vlaneseq
        %v8696 = vshrl.u32 %v8695, 7
        %v8697 = vsub.s32 %v8694, %v8696
        %v8698 = vrot.slane %v8670, %v8697
        %v8699 = vcombine.low %v8677, %v8684
        %v8700 = vcombine.low %v8691, %v8698
        %v8702 = vunpack.c.l.s4 1966171168
        %v8703 = vunpack.c.0.s8 %v8702
        %v8704 = vlaneseq
        %v8705 = vshrl.u32 %v8704, 7
        %v8706 = vsub.s32 %v8703, %v8705
        %v8707 = vrot.slane %v8699, %v8706
        %v8709 = vunpack.c.l.s4 1966171168
        %v8710 = vunpack.c.0.s8 %v8709
        %v8711 = vlaneseq
        %v8712 = vshrl.u32 %v8711, 7
        %v8713 = vsub.s32 %v8710, %v8712
        %v8714 = vrot.slane %v8700, %v8713
        %v8715 = vcombine.low %v8707, %v8714
        %v8716 = vcombine.low %v5603, %v5617
        %v8717 = vcombine.low %v5625, %v5627
        %v8718 = vcombine.low %v5610, %v5624
        %v8719 = vcombine.low %v5626, %v5628
        %v8721 = vunpack.c.l.s4 1966171168
        %v8722 = vunpack.c.0.s8 %v8721
        %v8723 = vlaneseq
        %v8724 = vshrl.u32 %v8723, 7
        %v8725 = vsub.s32 %v8722, %v8724
        %v8726 = vrot.slane %v8716, %v8725
        %v8728 = vunpack.c.l.s4 1966171168
        %v8729 = vunpack.c.0.s8 %v8728
        %v8730 = vlaneseq
        %v8731 = vshrl.u32 %v8730, 7
        %v8732 = vsub.s32 %v8729, %v8731
        %v8733 = vrot.slane %v8717, %v8732
        %v8735 = vunpack.c.l.s4 1966171168
        %v8736 = vunpack.c.0.s8 %v8735
        %v8737 = vlaneseq
        %v8738 = vshrl.u32 %v8737, 7
        %v8739 = vsub.s32 %v8736, %v8738
        %v8740 = vrot.slane %v8718, %v8739
        %v8742 = vunpack.c.l.s4 1966171168
        %v8743 = vunpack.c.0.s8 %v8742
        %v8744 = vlaneseq
        %v8745 = vshrl.u32 %v8744, 7
        %v8746 = vsub.s32 %v8743, %v8745
        %v8747 = vrot.slane %v8719, %v8746
        %v8748 = vcombine.low %v8726, %v8733
        %v8749 = vcombine.low %v8740, %v8747
        %v8751 = vunpack.c.l.s4 1966171168
        %v8752 = vunpack.c.0.s8 %v8751
        %v8753 = vlaneseq
        %v8754 = vshrl.u32 %v8753, 7
        %v8755 = vsub.s32 %v8752, %v8754
        %v8756 = vrot.slane %v8748, %v8755
        %v8758 = vunpack.c.l.s4 1966171168
        %v8759 = vunpack.c.0.s8 %v8758
        %v8760 = vlaneseq
        %v8761 = vshrl.u32 %v8760, 7
        %v8762 = vsub.s32 %v8759, %v8761
        %v8763 = vrot.slane %v8749, %v8762
        %v8764 = vcombine.low %v8756, %v8763
        %v8765 = vcombine.low %v5652, %v5666
        %v8766 = vcombine.low %v5674, %v5676
        %v8767 = vcombine.low %v5659, %v5673
        %v8768 = vcombine.low %v5675, %v5677
        %v8770 = vunpack.c.l.s4 1966171168
        %v8771 = vunpack.c.0.s8 %v8770
        %v8772 = vlaneseq
        %v8773 = vshrl.u32 %v8772, 7
        %v8774 = vsub.s32 %v8771, %v8773
        %v8775 = vrot.slane %v8765, %v8774
        %v8777 = vunpack.c.l.s4 1966171168
        %v8778 = vunpack.c.0.s8 %v8777
        %v8779 = vlaneseq
        %v8780 = vshrl.u32 %v8779, 7
        %v8781 = vsub.s32 %v8778, %v8780
        %v8782 = vrot.slane %v8766, %v8781
        %v8784 = vunpack.c.l.s4 1966171168
        %v8785 = vunpack.c.0.s8 %v8784
        %v8786 = vlaneseq
        %v8787 = vshrl.u32 %v8786, 7
        %v8788 = vsub.s32 %v8785, %v8787
        %v8789 = vrot.slane %v8767, %v8788
        %v8791 = vunpack.c.l.s4 1966171168
        %v8792 = vunpack.c.0.s8 %v8791
        %v8793 = vlaneseq
        %v8794 = vshrl.u32 %v8793, 7
        %v8795 = vsub.s32 %v8792, %v8794
        %v8796 = vrot.slane %v8768, %v8795
        %v8797 = vcombine.low %v8775, %v8782
        %v8798 = vcombine.low %v8789, %v8796
        %v8800 = vunpack.c.l.s4 1966171168
        %v8801 = vunpack.c.0.s8 %v8800
        %v8802 = vlaneseq
        %v8803 = vshrl.u32 %v8802, 7
        %v8804 = vsub.s32 %v8801, %v8803
        %v8805 = vrot.slane %v8797, %v8804
        %v8807 = vunpack.c.l.s4 1966171168
        %v8808 = vunpack.c.0.s8 %v8807
        %v8809 = vlaneseq
        %v8810 = vshrl.u32 %v8809, 7
        %v8811 = vsub.s32 %v8808, %v8810
        %v8812 = vrot.slane %v8798, %v8811
        %v8813 = vcombine.low %v8805, %v8812
        %v8814 = vcombine.low %v5701, %v5715
        %v8815 = vcombine.low %v5723, %v5725
        %v8816 = vcombine.low %v5708, %v5722
        %v8817 = vcombine.low %v5724, %v5726
        %v8819 = vunpack.c.l.s4 1966171168
        %v8820 = vunpack.c.0.s8 %v8819
        %v8821 = vlaneseq
        %v8822 = vshrl.u32 %v8821, 7
        %v8823 = vsub.s32 %v8820, %v8822
        %v8824 = vrot.slane %v8814, %v8823
        %v8826 = vunpack.c.l.s4 1966171168
        %v8827 = vunpack.c.0.s8 %v8826
        %v8828 = vlaneseq
        %v8829 = vshrl.u32 %v8828, 7
        %v8830 = vsub.s32 %v8827, %v8829
        %v8831 = vrot.slane %v8815, %v8830
        %v8833 = vunpack.c.l.s4 1966171168
        %v8834 = vunpack.c.0.s8 %v8833
        %v8835 = vlaneseq
        %v8836 = vshrl.u32 %v8835, 7
        %v8837 = vsub.s32 %v8834, %v8836
        %v8838 = vrot.slane %v8816, %v8837
        %v8840 = vunpack.c.l.s4 1966171168
        %v8841 = vunpack.c.0.s8 %v8840
        %v8842 = vlaneseq
        %v8843 = vshrl.u32 %v8842, 7
        %v8844 = vsub.s32 %v8841, %v8843
        %v8845 = vrot.slane %v8817, %v8844
        %v8846 = vcombine.low %v8824, %v8831
        %v8847 = vcombine.low %v8838, %v8845
        %v8849 = vunpack.c.l.s4 1966171168
        %v8850 = vunpack.c.0.s8 %v8849
        %v8851 = vlaneseq
        %v8852 = vshrl.u32 %v8851, 7
        %v8853 = vsub.s32 %v8850, %v8852
        %v8854 = vrot.slane %v8846, %v8853
        %v8856 = vunpack.c.l.s4 1966171168
        %v8857 = vunpack.c.0.s8 %v8856
        %v8858 = vlaneseq
        %v8859 = vshrl.u32 %v8858, 7
        %v8860 = vsub.s32 %v8857, %v8859
        %v8861 = vrot.slane %v8847, %v8860
        %v8862 = vcombine.low %v8854, %v8861
        %v8863 = vcombine.low %v5750, %v5764
        %v8864 = vcombine.low %v5772, %v5774
        %v8865 = vcombine.low %v5757, %v5771
        %v8866 = vcombine.low %v5773, %v5775
        %v8868 = vunpack.c.l.s4 1966171168
        %v8869 = vunpack.c.0.s8 %v8868
        %v8870 = vlaneseq
        %v8871 = vshrl.u32 %v8870, 7
        %v8872 = vsub.s32 %v8869, %v8871
        %v8873 = vrot.slane %v8863, %v8872
        %v8875 = vunpack.c.l.s4 1966171168
        %v8876 = vunpack.c.0.s8 %v8875
        %v8877 = vlaneseq
        %v8878 = vshrl.u32 %v8877, 7
        %v8879 = vsub.s32 %v8876, %v8878
        %v8880 = vrot.slane %v8864, %v8879
        %v8882 = vunpack.c.l.s4 1966171168
        %v8883 = vunpack.c.0.s8 %v8882
        %v8884 = vlaneseq
        %v8885 = vshrl.u32 %v8884, 7
        %v8886 = vsub.s32 %v8883, %v8885
        %v8887 = vrot.slane %v8865, %v8886
        %v8889 = vunpack.c.l.s4 1966171168
        %v8890 = vunpack.c.0.s8 %v8889
        %v8891 = vlaneseq
        %v8892 = vshrl.u32 %v8891, 7
        %v8893 = vsub.s32 %v8890, %v8892
        %v8894 = vrot.slane %v8866, %v8893
        %v8895 = vcombine.low %v8873, %v8880
        %v8896 = vcombine.low %v8887, %v8894
        %v8898 = vunpack.c.l.s4 1966171168
        %v8899 = vunpack.c.0.s8 %v8898
        %v8900 = vlaneseq
        %v8901 = vshrl.u32 %v8900, 7
        %v8902 = vsub.s32 %v8899, %v8901
        %v8903 = vrot.slane %v8895, %v8902
        %v8905 = vunpack.c.l.s4 1966171168
        %v8906 = vunpack.c.0.s8 %v8905
        %v8907 = vlaneseq
        %v8908 = vshrl.u32 %v8907, 7
        %v8909 = vsub.s32 %v8906, %v8908
        %v8910 = vrot.slane %v8896, %v8909
        %v8911 = vcombine.low %v8903, %v8910
        %v8912 = vcombine.low %v5799, %v5813
        %v8913 = vcombine.low %v5821, %v5823
        %v8914 = vcombine.low %v5806, %v5820
        %v8915 = vcombine.low %v5822, %v5824
        %v8917 = vunpack.c.l.s4 1966171168
        %v8918 = vunpack.c.0.s8 %v8917
        %v8919 = vlaneseq
        %v8920 = vshrl.u32 %v8919, 7
        %v8921 = vsub.s32 %v8918, %v8920
        %v8922 = vrot.slane %v8912, %v8921
        %v8924 = vunpack.c.l.s4 1966171168
        %v8925 = vunpack.c.0.s8 %v8924
        %v8926 = vlaneseq
        %v8927 = vshrl.u32 %v8926, 7
        %v8928 = vsub.s32 %v8925, %v8927
        %v8929 = vrot.slane %v8913, %v8928
        %v8931 = vunpack.c.l.s4 1966171168
        %v8932 = vunpack.c.0.s8 %v8931
        %v8933 = vlaneseq
        %v8934 = vshrl.u32 %v8933, 7
        %v8935 = vsub.s32 %v8932, %v8934
        %v8936 = vrot.slane %v8914, %v8935
        %v8938 = vunpack.c.l.s4 1966171168
        %v8939 = vunpack.c.0.s8 %v8938
        %v8940 = vlaneseq
        %v8941 = vshrl.u32 %v8940, 7
        %v8942 = vsub.s32 %v8939, %v8941
        %v8943 = vrot.slane %v8915, %v8942
        %v8944 = vcombine.low %v8922, %v8929
        %v8945 = vcombine.low %v8936, %v8943
        %v8947 = vunpack.c.l.s4 1966171168
        %v8948 = vunpack.c.0.s8 %v8947
        %v8949 = vlaneseq
        %v8950 = vshrl.u32 %v8949, 7
        %v8951 = vsub.s32 %v8948, %v8950
        %v8952 = vrot.slane %v8944, %v8951
        %v8954 = vunpack.c.l.s4 1966171168
        %v8955 = vunpack.c.0.s8 %v8954
        %v8956 = vlaneseq
        %v8957 = vshrl.u32 %v8956, 7
        %v8958 = vsub.s32 %v8955, %v8957
        %v8959 = vrot.slane %v8945, %v8958
        %v8960 = vcombine.low %v8952, %v8959
        %v8961 = vcombine.low %v5848, %v5862
        %v8962 = vcombine.low %v5870, %v5872
        %v8963 = vcombine.low %v5855, %v5869
        %v8964 = vcombine.low %v5871, %v5873
        %v8966 = vunpack.c.l.s4 1966171168
        %v8967 = vunpack.c.0.s8 %v8966
        %v8968 = vlaneseq
        %v8969 = vshrl.u32 %v8968, 7
        %v8970 = vsub.s32 %v8967, %v8969
        %v8971 = vrot.slane %v8961, %v8970
        %v8973 = vunpack.c.l.s4 1966171168
        %v8974 = vunpack.c.0.s8 %v8973
        %v8975 = vlaneseq
        %v8976 = vshrl.u32 %v8975, 7
        %v8977 = vsub.s32 %v8974, %v8976
        %v8978 = vrot.slane %v8962, %v8977
        %v8980 = vunpack.c.l.s4 1966171168
        %v8981 = vunpack.c.0.s8 %v8980
        %v8982 = vlaneseq
        %v8983 = vshrl.u32 %v8982, 7
        %v8984 = vsub.s32 %v8981, %v8983
        %v8985 = vrot.slane %v8963, %v8984
        %v8987 = vunpack.c.l.s4 1966171168
        %v8988 = vunpack.c.0.s8 %v8987
        %v8989 = vlaneseq
        %v8990 = vshrl.u32 %v8989, 7
        %v8991 = vsub.s32 %v8988, %v8990
        %v8992 = vrot.slane %v8964, %v8991
        %v8993 = vcombine.low %v8971, %v8978
        %v8994 = vcombine.low %v8985, %v8992
        %v8996 = vunpack.c.l.s4 1966171168
        %v8997 = vunpack.c.0.s8 %v8996
        %v8998 = vlaneseq
        %v8999 = vshrl.u32 %v8998, 7
        %v9000 = vsub.s32 %v8997, %v8999
        %v9001 = vrot.slane %v8993, %v9000
        %v9003 = vunpack.c.l.s4 1966171168
        %v9004 = vunpack.c.0.s8 %v9003
        %v9005 = vlaneseq
        %v9006 = vshrl.u32 %v9005, 7
        %v9007 = vsub.s32 %v9004, %v9006
        %v9008 = vrot.slane %v8994, %v9007
        %v9009 = vcombine.low %v9001, %v9008
        %v9010 = vcombine.low %v5897, %v5911
        %v9011 = vcombine.low %v5919, %v5921
        %v9012 = vcombine.low %v5904, %v5918
        %v9013 = vcombine.low %v5920, %v5922
        %v9015 = vunpack.c.l.s4 1966171168
        %v9016 = vunpack.c.0.s8 %v9015
        %v9017 = vlaneseq
        %v9018 = vshrl.u32 %v9017, 7
        %v9019 = vsub.s32 %v9016, %v9018
        %v9020 = vrot.slane %v9010, %v9019
        %v9022 = vunpack.c.l.s4 1966171168
        %v9023 = vunpack.c.0.s8 %v9022
        %v9024 = vlaneseq
        %v9025 = vshrl.u32 %v9024, 7
        %v9026 = vsub.s32 %v9023, %v9025
        %v9027 = vrot.slane %v9011, %v9026
        %v9029 = vunpack.c.l.s4 1966171168
        %v9030 = vunpack.c.0.s8 %v9029
        %v9031 = vlaneseq
        %v9032 = vshrl.u32 %v9031, 7
        %v9033 = vsub.s32 %v9030, %v9032
        %v9034 = vrot.slane %v9012, %v9033
        %v9036 = vunpack.c.l.s4 1966171168
        %v9037 = vunpack.c.0.s8 %v9036
        %v9038 = vlaneseq
        %v9039 = vshrl.u32 %v9038, 7
        %v9040 = vsub.s32 %v9037, %v9039
        %v9041 = vrot.slane %v9013, %v9040
        %v9042 = vcombine.low %v9020, %v9027
        %v9043 = vcombine.low %v9034, %v9041
        %v9045 = vunpack.c.l.s4 1966171168
        %v9046 = vunpack.c.0.s8 %v9045
        %v9047 = vlaneseq
        %v9048 = vshrl.u32 %v9047, 7
        %v9049 = vsub.s32 %v9046, %v9048
        %v9050 = vrot.slane %v9042, %v9049
        %v9052 = vunpack.c.l.s4 1966171168
        %v9053 = vunpack.c.0.s8 %v9052
        %v9054 = vlaneseq
        %v9055 = vshrl.u32 %v9054, 7
        %v9056 = vsub.s32 %v9053, %v9055
        %v9057 = vrot.slane %v9043, %v9056
        %v9058 = vcombine.low %v9050, %v9057
        %v9059 = vcombine.low %v5946, %v5960
        %v9060 = vcombine.low %v5968, %v5970
        %v9061 = vcombine.low %v5953, %v5967
        %v9062 = vcombine.low %v5969, %v5971
        %v9064 = vunpack.c.l.s4 1966171168
        %v9065 = vunpack.c.0.s8 %v9064
        %v9066 = vlaneseq
        %v9067 = vshrl.u32 %v9066, 7
        %v9068 = vsub.s32 %v9065, %v9067
        %v9069 = vrot.slane %v9059, %v9068
        %v9071 = vunpack.c.l.s4 1966171168
        %v9072 = vunpack.c.0.s8 %v9071
        %v9073 = vlaneseq
        %v9074 = vshrl.u32 %v9073, 7
        %v9075 = vsub.s32 %v9072, %v9074
        %v9076 = vrot.slane %v9060, %v9075
        %v9078 = vunpack.c.l.s4 1966171168
        %v9079 = vunpack.c.0.s8 %v9078
        %v9080 = vlaneseq
        %v9081 = vshrl.u32 %v9080, 7
        %v9082 = vsub.s32 %v9079, %v9081
        %v9083 = vrot.slane %v9061, %v9082
        %v9085 = vunpack.c.l.s4 1966171168
        %v9086 = vunpack.c.0.s8 %v9085
        %v9087 = vlaneseq
        %v9088 = vshrl.u32 %v9087, 7
        %v9089 = vsub.s32 %v9086, %v9088
        %v9090 = vrot.slane %v9062, %v9089
        %v9091 = vcombine.low %v9069, %v9076
        %v9092 = vcombine.low %v9083, %v9090
        %v9094 = vunpack.c.l.s4 1966171168
        %v9095 = vunpack.c.0.s8 %v9094
        %v9096 = vlaneseq
        %v9097 = vshrl.u32 %v9096, 7
        %v9098 = vsub.s32 %v9095, %v9097
        %v9099 = vrot.slane %v9091, %v9098
        %v9101 = vunpack.c.l.s4 1966171168
        %v9102 = vunpack.c.0.s8 %v9101
        %v9103 = vlaneseq
        %v9104 = vshrl.u32 %v9103, 7
        %v9105 = vsub.s32 %v9102, %v9104
        %v9106 = vrot.slane %v9092, %v9105
        %v9107 = vcombine.low %v9099, %v9106
        %v9108 = vcombine.low %v5995, %v6009
        %v9109 = vcombine.low %v6017, %v6019
        %v9110 = vcombine.low %v6002, %v6016
        %v9111 = vcombine.low %v6018, %v6020
        %v9113 = vunpack.c.l.s4 1966171168
        %v9114 = vunpack.c.0.s8 %v9113
        %v9115 = vlaneseq
        %v9116 = vshrl.u32 %v9115, 7
        %v9117 = vsub.s32 %v9114, %v9116
        %v9118 = vrot.slane %v9108, %v9117
        %v9120 = vunpack.c.l.s4 1966171168
        %v9121 = vunpack.c.0.s8 %v9120
        %v9122 = vlaneseq
        %v9123 = vshrl.u32 %v9122, 7
        %v9124 = vsub.s32 %v9121, %v9123
        %v9125 = vrot.slane %v9109, %v9124
        %v9127 = vunpack.c.l.s4 1966171168
        %v9128 = vunpack.c.0.s8 %v9127
        %v9129 = vlaneseq
        %v9130 = vshrl.u32 %v9129, 7
        %v9131 = vsub.s32 %v9128, %v9130
        %v9132 = vrot.slane %v9110, %v9131
        %v9134 = vunpack.c.l.s4 1966171168
        %v9135 = vunpack.c.0.s8 %v9134
        %v9136 = vlaneseq
        %v9137 = vshrl.u32 %v9136, 7
        %v9138 = vsub.s32 %v9135, %v9137
        %v9139 = vrot.slane %v9111, %v9138
        %v9140 = vcombine.low %v9118, %v9125
        %v9141 = vcombine.low %v9132, %v9139
        %v9143 = vunpack.c.l.s4 1966171168
        %v9144 = vunpack.c.0.s8 %v9143
        %v9145 = vlaneseq
        %v9146 = vshrl.u32 %v9145, 7
        %v9147 = vsub.s32 %v9144, %v9146
        %v9148 = vrot.slane %v9140, %v9147
        %v9150 = vunpack.c.l.s4 1966171168
        %v9151 = vunpack.c.0.s8 %v9150
        %v9152 = vlaneseq
        %v9153 = vshrl.u32 %v9152, 7
        %v9154 = vsub.s32 %v9151, %v9153
        %v9155 = vrot.slane %v9141, %v9154
        %v9156 = vcombine.low %v9148, %v9155
        %v9157 = vcombine.low %v6044, %v6058
        %v9158 = vcombine.low %v6066, %v6068
        %v9159 = vcombine.low %v6051, %v6065
        %v9160 = vcombine.low %v6067, %v6069
        %v9162 = vunpack.c.l.s4 1966171168
        %v9163 = vunpack.c.0.s8 %v9162
        %v9164 = vlaneseq
        %v9165 = vshrl.u32 %v9164, 7
        %v9166 = vsub.s32 %v9163, %v9165
        %v9167 = vrot.slane %v9157, %v9166
        %v9169 = vunpack.c.l.s4 1966171168
        %v9170 = vunpack.c.0.s8 %v9169
        %v9171 = vlaneseq
        %v9172 = vshrl.u32 %v9171, 7
        %v9173 = vsub.s32 %v9170, %v9172
        %v9174 = vrot.slane %v9158, %v9173
        %v9176 = vunpack.c.l.s4 1966171168
        %v9177 = vunpack.c.0.s8 %v9176
        %v9178 = vlaneseq
        %v9179 = vshrl.u32 %v9178, 7
        %v9180 = vsub.s32 %v9177, %v9179
        %v9181 = vrot.slane %v9159, %v9180
        %v9183 = vunpack.c.l.s4 1966171168
        %v9184 = vunpack.c.0.s8 %v9183
        %v9185 = vlaneseq
        %v9186 = vshrl.u32 %v9185, 7
        %v9187 = vsub.s32 %v9184, %v9186
        %v9188 = vrot.slane %v9160, %v9187
        %v9189 = vcombine.low %v9167, %v9174
        %v9190 = vcombine.low %v9181, %v9188
        %v9192 = vunpack.c.l.s4 1966171168
        %v9193 = vunpack.c.0.s8 %v9192
        %v9194 = vlaneseq
        %v9195 = vshrl.u32 %v9194, 7
        %v9196 = vsub.s32 %v9193, %v9195
        %v9197 = vrot.slane %v9189, %v9196
        %v9199 = vunpack.c.l.s4 1966171168
        %v9200 = vunpack.c.0.s8 %v9199
        %v9201 = vlaneseq
        %v9202 = vshrl.u32 %v9201, 7
        %v9203 = vsub.s32 %v9200, %v9202
        %v9204 = vrot.slane %v9190, %v9203
        %v9205 = vcombine.low %v9197, %v9204
        %v9206 = vcombine.low %v6093, %v6107
        %v9207 = vcombine.low %v6115, %v6117
        %v9208 = vcombine.low %v6100, %v6114
        %v9209 = vcombine.low %v6116, %v6118
        %v9211 = vunpack.c.l.s4 1966171168
        %v9212 = vunpack.c.0.s8 %v9211
        %v9213 = vlaneseq
        %v9214 = vshrl.u32 %v9213, 7
        %v9215 = vsub.s32 %v9212, %v9214
        %v9216 = vrot.slane %v9206, %v9215
        %v9218 = vunpack.c.l.s4 1966171168
        %v9219 = vunpack.c.0.s8 %v9218
        %v9220 = vlaneseq
        %v9221 = vshrl.u32 %v9220, 7
        %v9222 = vsub.s32 %v9219, %v9221
        %v9223 = vrot.slane %v9207, %v9222
        %v9225 = vunpack.c.l.s4 1966171168
        %v9226 = vunpack.c.0.s8 %v9225
        %v9227 = vlaneseq
        %v9228 = vshrl.u32 %v9227, 7
        %v9229 = vsub.s32 %v9226, %v9228
        %v9230 = vrot.slane %v9208, %v9229
        %v9232 = vunpack.c.l.s4 1966171168
        %v9233 = vunpack.c.0.s8 %v9232
        %v9234 = vlaneseq
        %v9235 = vshrl.u32 %v9234, 7
        %v9236 = vsub.s32 %v9233, %v9235
        %v9237 = vrot.slane %v9209, %v9236
        %v9238 = vcombine.low %v9216, %v9223
        %v9239 = vcombine.low %v9230, %v9237
        %v9241 = vunpack.c.l.s4 1966171168
        %v9242 = vunpack.c.0.s8 %v9241
        %v9243 = vlaneseq
        %v9244 = vshrl.u32 %v9243, 7
        %v9245 = vsub.s32 %v9242, %v9244
        %v9246 = vrot.slane %v9238, %v9245
        %v9248 = vunpack.c.l.s4 1966171168
        %v9249 = vunpack.c.0.s8 %v9248
        %v9250 = vlaneseq
        %v9251 = vshrl.u32 %v9250, 7
        %v9252 = vsub.s32 %v9249, %v9251
        %v9253 = vrot.slane %v9239, %v9252
        %v9254 = vcombine.low %v9246, %v9253
        %v9255 = vcombine.low %v6142, %v6156
        %v9256 = vcombine.low %v6164, %v6166
        %v9257 = vcombine.low %v6149, %v6163
        %v9258 = vcombine.low %v6165, %v6167
        %v9260 = vunpack.c.l.s4 1966171168
        %v9261 = vunpack.c.0.s8 %v9260
        %v9262 = vlaneseq
        %v9263 = vshrl.u32 %v9262, 7
        %v9264 = vsub.s32 %v9261, %v9263
        %v9265 = vrot.slane %v9255, %v9264
        %v9267 = vunpack.c.l.s4 1966171168
        %v9268 = vunpack.c.0.s8 %v9267
        %v9269 = vlaneseq
        %v9270 = vshrl.u32 %v9269, 7
        %v9271 = vsub.s32 %v9268, %v9270
        %v9272 = vrot.slane %v9256, %v9271
        %v9274 = vunpack.c.l.s4 1966171168
        %v9275 = vunpack.c.0.s8 %v9274
        %v9276 = vlaneseq
        %v9277 = vshrl.u32 %v9276, 7
        %v9278 = vsub.s32 %v9275, %v9277
        %v9279 = vrot.slane %v9257, %v9278
        %v9281 = vunpack.c.l.s4 1966171168
        %v9282 = vunpack.c.0.s8 %v9281
        %v9283 = vlaneseq
        %v9284 = vshrl.u32 %v9283, 7
        %v9285 = vsub.s32 %v9282, %v9284
        %v9286 = vrot.slane %v9258, %v9285
        %v9287 = vcombine.low %v9265, %v9272
        %v9288 = vcombine.low %v9279, %v9286
        %v9290 = vunpack.c.l.s4 1966171168
        %v9291 = vunpack.c.0.s8 %v9290
        %v9292 = vlaneseq
        %v9293 = vshrl.u32 %v9292, 7
        %v9294 = vsub.s32 %v9291, %v9293
        %v9295 = vrot.slane %v9287, %v9294
        %v9297 = vunpack.c.l.s4 1966171168
        %v9298 = vunpack.c.0.s8 %v9297
        %v9299 = vlaneseq
        %v9300 = vshrl.u32 %v9299, 7
        %v9301 = vsub.s32 %v9298, %v9300
        %v9302 = vrot.slane %v9288, %v9301
        %v9303 = vcombine.low %v9295, %v9302
        %v9304 = vcombine.low %v6191, %v6205
        %v9305 = vcombine.low %v6213, %v6215
        %v9306 = vcombine.low %v6198, %v6212
        %v9307 = vcombine.low %v6214, %v6216
        %v9309 = vunpack.c.l.s4 1966171168
        %v9310 = vunpack.c.0.s8 %v9309
        %v9311 = vlaneseq
        %v9312 = vshrl.u32 %v9311, 7
        %v9313 = vsub.s32 %v9310, %v9312
        %v9314 = vrot.slane %v9304, %v9313
        %v9316 = vunpack.c.l.s4 1966171168
        %v9317 = vunpack.c.0.s8 %v9316
        %v9318 = vlaneseq
        %v9319 = vshrl.u32 %v9318, 7
        %v9320 = vsub.s32 %v9317, %v9319
        %v9321 = vrot.slane %v9305, %v9320
        %v9323 = vunpack.c.l.s4 1966171168
        %v9324 = vunpack.c.0.s8 %v9323
        %v9325 = vlaneseq
        %v9326 = vshrl.u32 %v9325, 7
        %v9327 = vsub.s32 %v9324, %v9326
        %v9328 = vrot.slane %v9306, %v9327
        %v9330 = vunpack.c.l.s4 1966171168
        %v9331 = vunpack.c.0.s8 %v9330
        %v9332 = vlaneseq
        %v9333 = vshrl.u32 %v9332, 7
        %v9334 = vsub.s32 %v9331, %v9333
        %v9335 = vrot.slane %v9307, %v9334
        %v9336 = vcombine.low %v9314, %v9321
        %v9337 = vcombine.low %v9328, %v9335
        %v9339 = vunpack.c.l.s4 1966171168
        %v9340 = vunpack.c.0.s8 %v9339
        %v9341 = vlaneseq
        %v9342 = vshrl.u32 %v9341, 7
        %v9343 = vsub.s32 %v9340, %v9342
        %v9344 = vrot.slane %v9336, %v9343
        %v9346 = vunpack.c.l.s4 1966171168
        %v9347 = vunpack.c.0.s8 %v9346
        %v9348 = vlaneseq
        %v9349 = vshrl.u32 %v9348, 7
        %v9350 = vsub.s32 %v9347, %v9349
        %v9351 = vrot.slane %v9337, %v9350
        %v9352 = vcombine.low %v9344, %v9351
        %v9353 = vcombine.low %v6240, %v6254
        %v9354 = vcombine.low %v6262, %v6264
        %v9355 = vcombine.low %v6247, %v6261
        %v9356 = vcombine.low %v6263, %v6265
        %v9358 = vunpack.c.l.s4 1966171168
        %v9359 = vunpack.c.0.s8 %v9358
        %v9360 = vlaneseq
        %v9361 = vshrl.u32 %v9360, 7
        %v9362 = vsub.s32 %v9359, %v9361
        %v9363 = vrot.slane %v9353, %v9362
        %v9365 = vunpack.c.l.s4 1966171168
        %v9366 = vunpack.c.0.s8 %v9365
        %v9367 = vlaneseq
        %v9368 = vshrl.u32 %v9367, 7
        %v9369 = vsub.s32 %v9366, %v9368
        %v9370 = vrot.slane %v9354, %v9369
        %v9372 = vunpack.c.l.s4 1966171168
        %v9373 = vunpack.c.0.s8 %v9372
        %v9374 = vlaneseq
        %v9375 = vshrl.u32 %v9374, 7
        %v9376 = vsub.s32 %v9373, %v9375
        %v9377 = vrot.slane %v9355, %v9376
        %v9379 = vunpack.c.l.s4 1966171168
        %v9380 = vunpack.c.0.s8 %v9379
        %v9381 = vlaneseq
        %v9382 = vshrl.u32 %v9381, 7
        %v9383 = vsub.s32 %v9380, %v9382
        %v9384 = vrot.slane %v9356, %v9383
        %v9385 = vcombine.low %v9363, %v9370
        %v9386 = vcombine.low %v9377, %v9384
        %v9388 = vunpack.c.l.s4 1966171168
        %v9389 = vunpack.c.0.s8 %v9388
        %v9390 = vlaneseq
        %v9391 = vshrl.u32 %v9390, 7
        %v9392 = vsub.s32 %v9389, %v9391
        %v9393 = vrot.slane %v9385, %v9392
        %v9395 = vunpack.c.l.s4 1966171168
        %v9396 = vunpack.c.0.s8 %v9395
        %v9397 = vlaneseq
        %v9398 = vshrl.u32 %v9397, 7
        %v9399 = vsub.s32 %v9396, %v9398
        %v9400 = vrot.slane %v9386, %v9399
        %v9401 = vcombine.low %v9393, %v9400
        %v9402 = vcombine.low %v6289, %v6303
        %v9403 = vcombine.low %v6311, %v6313
        %v9404 = vcombine.low %v6296, %v6310
        %v9405 = vcombine.low %v6312, %v6314
        %v9407 = vunpack.c.l.s4 1966171168
        %v9408 = vunpack.c.0.s8 %v9407
        %v9409 = vlaneseq
        %v9410 = vshrl.u32 %v9409, 7
        %v9411 = vsub.s32 %v9408, %v9410
        %v9412 = vrot.slane %v9402, %v9411
        %v9414 = vunpack.c.l.s4 1966171168
        %v9415 = vunpack.c.0.s8 %v9414
        %v9416 = vlaneseq
        %v9417 = vshrl.u32 %v9416, 7
        %v9418 = vsub.s32 %v9415, %v9417
        %v9419 = vrot.slane %v9403, %v9418
        %v9421 = vunpack.c.l.s4 1966171168
        %v9422 = vunpack.c.0.s8 %v9421
        %v9423 = vlaneseq
        %v9424 = vshrl.u32 %v9423, 7
        %v9425 = vsub.s32 %v9422, %v9424
        %v9426 = vrot.slane %v9404, %v9425
        %v9428 = vunpack.c.l.s4 1966171168
        %v9429 = vunpack.c.0.s8 %v9428
        %v9430 = vlaneseq
        %v9431 = vshrl.u32 %v9430, 7
        %v9432 = vsub.s32 %v9429, %v9431
        %v9433 = vrot.slane %v9405, %v9432
        %v9434 = vcombine.low %v9412, %v9419
        %v9435 = vcombine.low %v9426, %v9433
        %v9437 = vunpack.c.l.s4 1966171168
        %v9438 = vunpack.c.0.s8 %v9437
        %v9439 = vlaneseq
        %v9440 = vshrl.u32 %v9439, 7
        %v9441 = vsub.s32 %v9438, %v9440
        %v9442 = vrot.slane %v9434, %v9441
        %v9444 = vunpack.c.l.s4 1966171168
        %v9445 = vunpack.c.0.s8 %v9444
        %v9446 = vlaneseq
        %v9447 = vshrl.u32 %v9446, 7
        %v9448 = vsub.s32 %v9445, %v9447
        %v9449 = vrot.slane %v9435, %v9448
        %v9450 = vcombine.low %v9442, %v9449
        %v9451 = vcombine.low %v6338, %v6352
        %v9452 = vcombine.low %v6360, %v6362
        %v9453 = vcombine.low %v6345, %v6359
        %v9454 = vcombine.low %v6361, %v6363
        %v9456 = vunpack.c.l.s4 1966171168
        %v9457 = vunpack.c.0.s8 %v9456
        %v9458 = vlaneseq
        %v9459 = vshrl.u32 %v9458, 7
        %v9460 = vsub.s32 %v9457, %v9459
        %v9461 = vrot.slane %v9451, %v9460
        %v9463 = vunpack.c.l.s4 1966171168
        %v9464 = vunpack.c.0.s8 %v9463
        %v9465 = vlaneseq
        %v9466 = vshrl.u32 %v9465, 7
        %v9467 = vsub.s32 %v9464, %v9466
        %v9468 = vrot.slane %v9452, %v9467
        %v9470 = vunpack.c.l.s4 1966171168
        %v9471 = vunpack.c.0.s8 %v9470
        %v9472 = vlaneseq
        %v9473 = vshrl.u32 %v9472, 7
        %v9474 = vsub.s32 %v9471, %v9473
        %v9475 = vrot.slane %v9453, %v9474
        %v9477 = vunpack.c.l.s4 1966171168
        %v9478 = vunpack.c.0.s8 %v9477
        %v9479 = vlaneseq
        %v9480 = vshrl.u32 %v9479, 7
        %v9481 = vsub.s32 %v9478, %v9480
        %v9482 = vrot.slane %v9454, %v9481
        %v9483 = vcombine.low %v9461, %v9468
        %v9484 = vcombine.low %v9475, %v9482
        %v9486 = vunpack.c.l.s4 1966171168
        %v9487 = vunpack.c.0.s8 %v9486
        %v9488 = vlaneseq
        %v9489 = vshrl.u32 %v9488, 7
        %v9490 = vsub.s32 %v9487, %v9489
        %v9491 = vrot.slane %v9483, %v9490
        %v9493 = vunpack.c.l.s4 1966171168
        %v9494 = vunpack.c.0.s8 %v9493
        %v9495 = vlaneseq
        %v9496 = vshrl.u32 %v9495, 7
        %v9497 = vsub.s32 %v9494, %v9496
        %v9498 = vrot.slane %v9484, %v9497
        %v9499 = vcombine.low %v9491, %v9498
        %v9500 = vcombine.low %v6387, %v6401
        %v9501 = vcombine.low %v6409, %v6411
        %v9502 = vcombine.low %v6394, %v6408
        %v9503 = vcombine.low %v6410, %v6412
        %v9505 = vunpack.c.l.s4 1966171168
        %v9506 = vunpack.c.0.s8 %v9505
        %v9507 = vlaneseq
        %v9508 = vshrl.u32 %v9507, 7
        %v9509 = vsub.s32 %v9506, %v9508
        %v9510 = vrot.slane %v9500, %v9509
        %v9512 = vunpack.c.l.s4 1966171168
        %v9513 = vunpack.c.0.s8 %v9512
        %v9514 = vlaneseq
        %v9515 = vshrl.u32 %v9514, 7
        %v9516 = vsub.s32 %v9513, %v9515
        %v9517 = vrot.slane %v9501, %v9516
        %v9519 = vunpack.c.l.s4 1966171168
        %v9520 = vunpack.c.0.s8 %v9519
        %v9521 = vlaneseq
        %v9522 = vshrl.u32 %v9521, 7
        %v9523 = vsub.s32 %v9520, %v9522
        %v9524 = vrot.slane %v9502, %v9523
        %v9526 = vunpack.c.l.s4 1966171168
        %v9527 = vunpack.c.0.s8 %v9526
        %v9528 = vlaneseq
        %v9529 = vshrl.u32 %v9528, 7
        %v9530 = vsub.s32 %v9527, %v9529
        %v9531 = vrot.slane %v9503, %v9530
        %v9532 = vcombine.low %v9510, %v9517
        %v9533 = vcombine.low %v9524, %v9531
        %v9535 = vunpack.c.l.s4 1966171168
        %v9536 = vunpack.c.0.s8 %v9535
        %v9537 = vlaneseq
        %v9538 = vshrl.u32 %v9537, 7
        %v9539 = vsub.s32 %v9536, %v9538
        %v9540 = vrot.slane %v9532, %v9539
        %v9542 = vunpack.c.l.s4 1966171168
        %v9543 = vunpack.c.0.s8 %v9542
        %v9544 = vlaneseq
        %v9545 = vshrl.u32 %v9544, 7
        %v9546 = vsub.s32 %v9543, %v9545
        %v9547 = vrot.slane %v9533, %v9546
        %v9548 = vcombine.low %v9540, %v9547
        %v9549 = vcombine.low %v6436, %v6450
        %v9550 = vcombine.low %v6458, %v6460
        %v9551 = vcombine.low %v6443, %v6457
        %v9552 = vcombine.low %v6459, %v6461
        %v9554 = vunpack.c.l.s4 1966171168
        %v9555 = vunpack.c.0.s8 %v9554
        %v9556 = vlaneseq
        %v9557 = vshrl.u32 %v9556, 7
        %v9558 = vsub.s32 %v9555, %v9557
        %v9559 = vrot.slane %v9549, %v9558
        %v9561 = vunpack.c.l.s4 1966171168
        %v9562 = vunpack.c.0.s8 %v9561
        %v9563 = vlaneseq
        %v9564 = vshrl.u32 %v9563, 7
        %v9565 = vsub.s32 %v9562, %v9564
        %v9566 = vrot.slane %v9550, %v9565
        %v9568 = vunpack.c.l.s4 1966171168
        %v9569 = vunpack.c.0.s8 %v9568
        %v9570 = vlaneseq
        %v9571 = vshrl.u32 %v9570, 7
        %v9572 = vsub.s32 %v9569, %v9571
        %v9573 = vrot.slane %v9551, %v9572
        %v9575 = vunpack.c.l.s4 1966171168
        %v9576 = vunpack.c.0.s8 %v9575
        %v9577 = vlaneseq
        %v9578 = vshrl.u32 %v9577, 7
        %v9579 = vsub.s32 %v9576, %v9578
        %v9580 = vrot.slane %v9552, %v9579
        %v9581 = vcombine.low %v9559, %v9566
        %v9582 = vcombine.low %v9573, %v9580
        %v9584 = vunpack.c.l.s4 1966171168
        %v9585 = vunpack.c.0.s8 %v9584
        %v9586 = vlaneseq
        %v9587 = vshrl.u32 %v9586, 7
        %v9588 = vsub.s32 %v9585, %v9587
        %v9589 = vrot.slane %v9581, %v9588
        %v9591 = vunpack.c.l.s4 1966171168
        %v9592 = vunpack.c.0.s8 %v9591
        %v9593 = vlaneseq
        %v9594 = vshrl.u32 %v9593, 7
        %v9595 = vsub.s32 %v9592, %v9594
        %v9596 = vrot.slane %v9582, %v9595
        %v9597 = vcombine.low %v9589, %v9596
        %v9598 = vcombine.low %v6485, %v6499
        %v9599 = vcombine.low %v6507, %v6509
        %v9600 = vcombine.low %v6492, %v6506
        %v9601 = vcombine.low %v6508, %v6510
        %v9603 = vunpack.c.l.s4 1966171168
        %v9604 = vunpack.c.0.s8 %v9603
        %v9605 = vlaneseq
        %v9606 = vshrl.u32 %v9605, 7
        %v9607 = vsub.s32 %v9604, %v9606
        %v9608 = vrot.slane %v9598, %v9607
        %v9610 = vunpack.c.l.s4 1966171168
        %v9611 = vunpack.c.0.s8 %v9610
        %v9612 = vlaneseq
        %v9613 = vshrl.u32 %v9612, 7
        %v9614 = vsub.s32 %v9611, %v9613
        %v9615 = vrot.slane %v9599, %v9614
        %v9617 = vunpack.c.l.s4 1966171168
        %v9618 = vunpack.c.0.s8 %v9617
        %v9619 = vlaneseq
        %v9620 = vshrl.u32 %v9619, 7
        %v9621 = vsub.s32 %v9618, %v9620
        %v9622 = vrot.slane %v9600, %v9621
        %v9624 = vunpack.c.l.s4 1966171168
        %v9625 = vunpack.c.0.s8 %v9624
        %v9626 = vlaneseq
        %v9627 = vshrl.u32 %v9626, 7
        %v9628 = vsub.s32 %v9625, %v9627
        %v9629 = vrot.slane %v9601, %v9628
        %v9630 = vcombine.low %v9608, %v9615
        %v9631 = vcombine.low %v9622, %v9629
        %v9633 = vunpack.c.l.s4 1966171168
        %v9634 = vunpack.c.0.s8 %v9633
        %v9635 = vlaneseq
        %v9636 = vshrl.u32 %v9635, 7
        %v9637 = vsub.s32 %v9634, %v9636
        %v9638 = vrot.slane %v9630, %v9637
        %v9640 = vunpack.c.l.s4 1966171168
        %v9641 = vunpack.c.0.s8 %v9640
        %v9642 = vlaneseq
        %v9643 = vshrl.u32 %v9642, 7
        %v9644 = vsub.s32 %v9641, %v9643
        %v9645 = vrot.slane %v9631, %v9644
        %v9646 = vcombine.low %v9638, %v9645
        %v9647 = vcombine.low %v6534, %v6548
        %v9648 = vcombine.low %v6556, %v6558
        %v9649 = vcombine.low %v6541, %v6555
        %v9650 = vcombine.low %v6557, %v6559
        %v9652 = vunpack.c.l.s4 1966171168
        %v9653 = vunpack.c.0.s8 %v9652
        %v9654 = vlaneseq
        %v9655 = vshrl.u32 %v9654, 7
        %v9656 = vsub.s32 %v9653, %v9655
        %v9657 = vrot.slane %v9647, %v9656
        %v9659 = vunpack.c.l.s4 1966171168
        %v9660 = vunpack.c.0.s8 %v9659
        %v9661 = vlaneseq
        %v9662 = vshrl.u32 %v9661, 7
        %v9663 = vsub.s32 %v9660, %v9662
        %v9664 = vrot.slane %v9648, %v9663
        %v9666 = vunpack.c.l.s4 1966171168
        %v9667 = vunpack.c.0.s8 %v9666
        %v9668 = vlaneseq
        %v9669 = vshrl.u32 %v9668, 7
        %v9670 = vsub.s32 %v9667, %v9669
        %v9671 = vrot.slane %v9649, %v9670
        %v9673 = vunpack.c.l.s4 1966171168
        %v9674 = vunpack.c.0.s8 %v9673
        %v9675 = vlaneseq
        %v9676 = vshrl.u32 %v9675, 7
        %v9677 = vsub.s32 %v9674, %v9676
        %v9678 = vrot.slane %v9650, %v9677
        %v9679 = vcombine.low %v9657, %v9664
        %v9680 = vcombine.low %v9671, %v9678
        %v9682 = vunpack.c.l.s4 1966171168
        %v9683 = vunpack.c.0.s8 %v9682
        %v9684 = vlaneseq
        %v9685 = vshrl.u32 %v9684, 7
        %v9686 = vsub.s32 %v9683, %v9685
        %v9687 = vrot.slane %v9679, %v9686
        %v9689 = vunpack.c.l.s4 1966171168
        %v9690 = vunpack.c.0.s8 %v9689
        %v9691 = vlaneseq
        %v9692 = vshrl.u32 %v9691, 7
        %v9693 = vsub.s32 %v9690, %v9692
        %v9694 = vrot.slane %v9680, %v9693
        %v9695 = vcombine.low %v9687, %v9694
        %v9696 = vcombine.low %v6583, %v6597
        %v9697 = vcombine.low %v6605, %v6607
        %v9698 = vcombine.low %v6590, %v6604
        %v9699 = vcombine.low %v6606, %v6608
        %v9701 = vunpack.c.l.s4 1966171168
        %v9702 = vunpack.c.0.s8 %v9701
        %v9703 = vlaneseq
        %v9704 = vshrl.u32 %v9703, 7
        %v9705 = vsub.s32 %v9702, %v9704
        %v9706 = vrot.slane %v9696, %v9705
        %v9708 = vunpack.c.l.s4 1966171168
        %v9709 = vunpack.c.0.s8 %v9708
        %v9710 = vlaneseq
        %v9711 = vshrl.u32 %v9710, 7
        %v9712 = vsub.s32 %v9709, %v9711
        %v9713 = vrot.slane %v9697, %v9712
        %v9715 = vunpack.c.l.s4 1966171168
        %v9716 = vunpack.c.0.s8 %v9715
        %v9717 = vlaneseq
        %v9718 = vshrl.u32 %v9717, 7
        %v9719 = vsub.s32 %v9716, %v9718
        %v9720 = vrot.slane %v9698, %v9719
        %v9722 = vunpack.c.l.s4 1966171168
        %v9723 = vunpack.c.0.s8 %v9722
        %v9724 = vlaneseq
        %v9725 = vshrl.u32 %v9724, 7
        %v9726 = vsub.s32 %v9723, %v9725
        %v9727 = vrot.slane %v9699, %v9726
        %v9728 = vcombine.low %v9706, %v9713
        %v9729 = vcombine.low %v9720, %v9727
        %v9731 = vunpack.c.l.s4 1966171168
        %v9732 = vunpack.c.0.s8 %v9731
        %v9733 = vlaneseq
        %v9734 = vshrl.u32 %v9733, 7
        %v9735 = vsub.s32 %v9732, %v9734
        %v9736 = vrot.slane %v9728, %v9735
        %v9738 = vunpack.c.l.s4 1966171168
        %v9739 = vunpack.c.0.s8 %v9738
        %v9740 = vlaneseq
        %v9741 = vshrl.u32 %v9740, 7
        %v9742 = vsub.s32 %v9739, %v9741
        %v9743 = vrot.slane %v9729, %v9742
        %v9744 = vcombine.low %v9736, %v9743
        %v9745 = vcombine.low %v6632, %v6646
        %v9746 = vcombine.low %v6654, %v6656
        %v9747 = vcombine.low %v6639, %v6653
        %v9748 = vcombine.low %v6655, %v6657
        %v9750 = vunpack.c.l.s4 1966171168
        %v9751 = vunpack.c.0.s8 %v9750
        %v9752 = vlaneseq
        %v9753 = vshrl.u32 %v9752, 7
        %v9754 = vsub.s32 %v9751, %v9753
        %v9755 = vrot.slane %v9745, %v9754
        %v9757 = vunpack.c.l.s4 1966171168
        %v9758 = vunpack.c.0.s8 %v9757
        %v9759 = vlaneseq
        %v9760 = vshrl.u32 %v9759, 7
        %v9761 = vsub.s32 %v9758, %v9760
        %v9762 = vrot.slane %v9746, %v9761
        %v9764 = vunpack.c.l.s4 1966171168
        %v9765 = vunpack.c.0.s8 %v9764
        %v9766 = vlaneseq
        %v9767 = vshrl.u32 %v9766, 7
        %v9768 = vsub.s32 %v9765, %v9767
        %v9769 = vrot.slane %v9747, %v9768
        %v9771 = vunpack.c.l.s4 1966171168
        %v9772 = vunpack.c.0.s8 %v9771
        %v9773 = vlaneseq
        %v9774 = vshrl.u32 %v9773, 7
        %v9775 = vsub.s32 %v9772, %v9774
        %v9776 = vrot.slane %v9748, %v9775
        %v9777 = vcombine.low %v9755, %v9762
        %v9778 = vcombine.low %v9769, %v9776
        %v9780 = vunpack.c.l.s4 1966171168
        %v9781 = vunpack.c.0.s8 %v9780
        %v9782 = vlaneseq
        %v9783 = vshrl.u32 %v9782, 7
        %v9784 = vsub.s32 %v9781, %v9783
        %v9785 = vrot.slane %v9777, %v9784
        %v9787 = vunpack.c.l.s4 1966171168
        %v9788 = vunpack.c.0.s8 %v9787
        %v9789 = vlaneseq
        %v9790 = vshrl.u32 %v9789, 7
        %v9791 = vsub.s32 %v9788, %v9790
        %v9792 = vrot.slane %v9778, %v9791
        %v9793 = vcombine.low %v9785, %v9792
        %v9794 = vcombine.low %v6681, %v6695
        %v9795 = vcombine.low %v6703, %v6705
        %v9796 = vcombine.low %v6688, %v6702
        %v9797 = vcombine.low %v6704, %v6706
        %v9799 = vunpack.c.l.s4 1966171168
        %v9800 = vunpack.c.0.s8 %v9799
        %v9801 = vlaneseq
        %v9802 = vshrl.u32 %v9801, 7
        %v9803 = vsub.s32 %v9800, %v9802
        %v9804 = vrot.slane %v9794, %v9803
        %v9806 = vunpack.c.l.s4 1966171168
        %v9807 = vunpack.c.0.s8 %v9806
        %v9808 = vlaneseq
        %v9809 = vshrl.u32 %v9808, 7
        %v9810 = vsub.s32 %v9807, %v9809
        %v9811 = vrot.slane %v9795, %v9810
        %v9813 = vunpack.c.l.s4 1966171168
        %v9814 = vunpack.c.0.s8 %v9813
        %v9815 = vlaneseq
        %v9816 = vshrl.u32 %v9815, 7
        %v9817 = vsub.s32 %v9814, %v9816
        %v9818 = vrot.slane %v9796, %v9817
        %v9820 = vunpack.c.l.s4 1966171168
        %v9821 = vunpack.c.0.s8 %v9820
        %v9822 = vlaneseq
        %v9823 = vshrl.u32 %v9822, 7
        %v9824 = vsub.s32 %v9821, %v9823
        %v9825 = vrot.slane %v9797, %v9824
        %v9826 = vcombine.low %v9804, %v9811
        %v9827 = vcombine.low %v9818, %v9825
        %v9829 = vunpack.c.l.s4 1966171168
        %v9830 = vunpack.c.0.s8 %v9829
        %v9831 = vlaneseq
        %v9832 = vshrl.u32 %v9831, 7
        %v9833 = vsub.s32 %v9830, %v9832
        %v9834 = vrot.slane %v9826, %v9833
        %v9836 = vunpack.c.l.s4 1966171168
        %v9837 = vunpack.c.0.s8 %v9836
        %v9838 = vlaneseq
        %v9839 = vshrl.u32 %v9838, 7
        %v9840 = vsub.s32 %v9837, %v9839
        %v9841 = vrot.slane %v9827, %v9840
        %v9842 = vcombine.low %v9834, %v9841
        %v9843 = vcombine.low %v6730, %v6744
        %v9844 = vcombine.low %v6752, %v6754
        %v9845 = vcombine.low %v6737, %v6751
        %v9846 = vcombine.low %v6753, %v6755
        %v9848 = vunpack.c.l.s4 1966171168
        %v9849 = vunpack.c.0.s8 %v9848
        %v9850 = vlaneseq
        %v9851 = vshrl.u32 %v9850, 7
        %v9852 = vsub.s32 %v9849, %v9851
        %v9853 = vrot.slane %v9843, %v9852
        %v9855 = vunpack.c.l.s4 1966171168
        %v9856 = vunpack.c.0.s8 %v9855
        %v9857 = vlaneseq
        %v9858 = vshrl.u32 %v9857, 7
        %v9859 = vsub.s32 %v9856, %v9858
        %v9860 = vrot.slane %v9844, %v9859
        %v9862 = vunpack.c.l.s4 1966171168
        %v9863 = vunpack.c.0.s8 %v9862
        %v9864 = vlaneseq
        %v9865 = vshrl.u32 %v9864, 7
        %v9866 = vsub.s32 %v9863, %v9865
        %v9867 = vrot.slane %v9845, %v9866
        %v9869 = vunpack.c.l.s4 1966171168
        %v9870 = vunpack.c.0.s8 %v9869
        %v9871 = vlaneseq
        %v9872 = vshrl.u32 %v9871, 7
        %v9873 = vsub.s32 %v9870, %v9872
        %v9874 = vrot.slane %v9846, %v9873
        %v9875 = vcombine.low %v9853, %v9860
        %v9876 = vcombine.low %v9867, %v9874
        %v9878 = vunpack.c.l.s4 1966171168
        %v9879 = vunpack.c.0.s8 %v9878
        %v9880 = vlaneseq
        %v9881 = vshrl.u32 %v9880, 7
        %v9882 = vsub.s32 %v9879, %v9881
        %v9883 = vrot.slane %v9875, %v9882
        %v9885 = vunpack.c.l.s4 1966171168
        %v9886 = vunpack.c.0.s8 %v9885
        %v9887 = vlaneseq
        %v9888 = vshrl.u32 %v9887, 7
        %v9889 = vsub.s32 %v9886, %v9888
        %v9890 = vrot.slane %v9876, %v9889
        %v9891 = vcombine.low %v9883, %v9890
        %v9892 = vcombine.low %v6779, %v6793
        %v9893 = vcombine.low %v6801, %v6803
        %v9894 = vcombine.low %v6786, %v6800
        %v9895 = vcombine.low %v6802, %v6804
        %v9897 = vunpack.c.l.s4 1966171168
        %v9898 = vunpack.c.0.s8 %v9897
        %v9899 = vlaneseq
        %v9900 = vshrl.u32 %v9899, 7
        %v9901 = vsub.s32 %v9898, %v9900
        %v9902 = vrot.slane %v9892, %v9901
        %v9904 = vunpack.c.l.s4 1966171168
        %v9905 = vunpack.c.0.s8 %v9904
        %v9906 = vlaneseq
        %v9907 = vshrl.u32 %v9906, 7
        %v9908 = vsub.s32 %v9905, %v9907
        %v9909 = vrot.slane %v9893, %v9908
        %v9911 = vunpack.c.l.s4 1966171168
        %v9912 = vunpack.c.0.s8 %v9911
        %v9913 = vlaneseq
        %v9914 = vshrl.u32 %v9913, 7
        %v9915 = vsub.s32 %v9912, %v9914
        %v9916 = vrot.slane %v9894, %v9915
        %v9918 = vunpack.c.l.s4 1966171168
        %v9919 = vunpack.c.0.s8 %v9918
        %v9920 = vlaneseq
        %v9921 = vshrl.u32 %v9920, 7
        %v9922 = vsub.s32 %v9919, %v9921
        %v9923 = vrot.slane %v9895, %v9922
        %v9924 = vcombine.low %v9902, %v9909
        %v9925 = vcombine.low %v9916, %v9923
        %v9927 = vunpack.c.l.s4 1966171168
        %v9928 = vunpack.c.0.s8 %v9927
        %v9929 = vlaneseq
        %v9930 = vshrl.u32 %v9929, 7
        %v9931 = vsub.s32 %v9928, %v9930
        %v9932 = vrot.slane %v9924, %v9931
        %v9934 = vunpack.c.l.s4 1966171168
        %v9935 = vunpack.c.0.s8 %v9934
        %v9936 = vlaneseq
        %v9937 = vshrl.u32 %v9936, 7
        %v9938 = vsub.s32 %v9935, %v9937
        %v9939 = vrot.slane %v9925, %v9938
        %v9940 = vcombine.low %v9932, %v9939
        %v9941 = vcombine.low %v6828, %v6842
        %v9942 = vcombine.low %v6850, %v6852
        %v9943 = vcombine.low %v6835, %v6849
        %v9944 = vcombine.low %v6851, %v6853
        %v9946 = vunpack.c.l.s4 1966171168
        %v9947 = vunpack.c.0.s8 %v9946
        %v9948 = vlaneseq
        %v9949 = vshrl.u32 %v9948, 7
        %v9950 = vsub.s32 %v9947, %v9949
        %v9951 = vrot.slane %v9941, %v9950
        %v9953 = vunpack.c.l.s4 1966171168
        %v9954 = vunpack.c.0.s8 %v9953
        %v9955 = vlaneseq
        %v9956 = vshrl.u32 %v9955, 7
        %v9957 = vsub.s32 %v9954, %v9956
        %v9958 = vrot.slane %v9942, %v9957
        %v9960 = vunpack.c.l.s4 1966171168
        %v9961 = vunpack.c.0.s8 %v9960
        %v9962 = vlaneseq
        %v9963 = vshrl.u32 %v9962, 7
        %v9964 = vsub.s32 %v9961, %v9963
        %v9965 = vrot.slane %v9943, %v9964
        %v9967 = vunpack.c.l.s4 1966171168
        %v9968 = vunpack.c.0.s8 %v9967
        %v9969 = vlaneseq
        %v9970 = vshrl.u32 %v9969, 7
        %v9971 = vsub.s32 %v9968, %v9970
        %v9972 = vrot.slane %v9944, %v9971
        %v9973 = vcombine.low %v9951, %v9958
        %v9974 = vcombine.low %v9965, %v9972
        %v9976 = vunpack.c.l.s4 1966171168
        %v9977 = vunpack.c.0.s8 %v9976
        %v9978 = vlaneseq
        %v9979 = vshrl.u32 %v9978, 7
        %v9980 = vsub.s32 %v9977, %v9979
        %v9981 = vrot.slane %v9973, %v9980
        %v9983 = vunpack.c.l.s4 1966171168
        %v9984 = vunpack.c.0.s8 %v9983
        %v9985 = vlaneseq
        %v9986 = vshrl.u32 %v9985, 7
        %v9987 = vsub.s32 %v9984, %v9986
        %v9988 = vrot.slane %v9974, %v9987
        %v9989 = vcombine.low %v9981, %v9988
        %v9990 = vcombine.low %v6877, %v6891
        %v9991 = vcombine.low %v6899, %v6901
        %v9992 = vcombine.low %v6884, %v6898
        %v9993 = vcombine.low %v6900, %v6902
        %v9995 = vunpack.c.l.s4 1966171168
        %v9996 = vunpack.c.0.s8 %v9995
        %v9997 = vlaneseq
        %v9998 = vshrl.u32 %v9997, 7
        %v9999 = vsub.s32 %v9996, %v9998
        %v10000 = vrot.slane %v9990, %v9999
        %v10002 = vunpack.c.l.s4 1966171168
        %v10003 = vunpack.c.0.s8 %v10002
        %v10004 = vlaneseq
        %v10005 = vshrl.u32 %v10004, 7
        %v10006 = vsub.s32 %v10003, %v10005
        %v10007 = vrot.slane %v9991, %v10006
        %v10009 = vunpack.c.l.s4 1966171168
        %v10010 = vunpack.c.0.s8 %v10009
        %v10011 = vlaneseq
        %v10012 = vshrl.u32 %v10011, 7
        %v10013 = vsub.s32 %v10010, %v10012
        %v10014 = vrot.slane %v9992, %v10013
        %v10016 = vunpack.c.l.s4 1966171168
        %v10017 = vunpack.c.0.s8 %v10016
        %v10018 = vlaneseq
        %v10019 = vshrl.u32 %v10018, 7
        %v10020 = vsub.s32 %v10017, %v10019
        %v10021 = vrot.slane %v9993, %v10020
        %v10022 = vcombine.low %v10000, %v10007
        %v10023 = vcombine.low %v10014, %v10021
        %v10025 = vunpack.c.l.s4 1966171168
        %v10026 = vunpack.c.0.s8 %v10025
        %v10027 = vlaneseq
        %v10028 = vshrl.u32 %v10027, 7
        %v10029 = vsub.s32 %v10026, %v10028
        %v10030 = vrot.slane %v10022, %v10029
        %v10032 = vunpack.c.l.s4 1966171168
        %v10033 = vunpack.c.0.s8 %v10032
        %v10034 = vlaneseq
        %v10035 = vshrl.u32 %v10034, 7
        %v10036 = vsub.s32 %v10033, %v10035
        %v10037 = vrot.slane %v10023, %v10036
        %v10038 = vcombine.low %v10030, %v10037
        %v10039 = vcombine.low %v6926, %v6940
        %v10040 = vcombine.low %v6948, %v6950
        %v10041 = vcombine.low %v6933, %v6947
        %v10042 = vcombine.low %v6949, %v6951
        %v10044 = vunpack.c.l.s4 1966171168
        %v10045 = vunpack.c.0.s8 %v10044
        %v10046 = vlaneseq
        %v10047 = vshrl.u32 %v10046, 7
        %v10048 = vsub.s32 %v10045, %v10047
        %v10049 = vrot.slane %v10039, %v10048
        %v10051 = vunpack.c.l.s4 1966171168
        %v10052 = vunpack.c.0.s8 %v10051
        %v10053 = vlaneseq
        %v10054 = vshrl.u32 %v10053, 7
        %v10055 = vsub.s32 %v10052, %v10054
        %v10056 = vrot.slane %v10040, %v10055
        %v10058 = vunpack.c.l.s4 1966171168
        %v10059 = vunpack.c.0.s8 %v10058
        %v10060 = vlaneseq
        %v10061 = vshrl.u32 %v10060, 7
        %v10062 = vsub.s32 %v10059, %v10061
        %v10063 = vrot.slane %v10041, %v10062
        %v10065 = vunpack.c.l.s4 1966171168
        %v10066 = vunpack.c.0.s8 %v10065
        %v10067 = vlaneseq
        %v10068 = vshrl.u32 %v10067, 7
        %v10069 = vsub.s32 %v10066, %v10068
        %v10070 = vrot.slane %v10042, %v10069
        %v10071 = vcombine.low %v10049, %v10056
        %v10072 = vcombine.low %v10063, %v10070
        %v10074 = vunpack.c.l.s4 1966171168
        %v10075 = vunpack.c.0.s8 %v10074
        %v10076 = vlaneseq
        %v10077 = vshrl.u32 %v10076, 7
        %v10078 = vsub.s32 %v10075, %v10077
        %v10079 = vrot.slane %v10071, %v10078
        %v10081 = vunpack.c.l.s4 1966171168
        %v10082 = vunpack.c.0.s8 %v10081
        %v10083 = vlaneseq
        %v10084 = vshrl.u32 %v10083, 7
        %v10085 = vsub.s32 %v10082, %v10084
        %v10086 = vrot.slane %v10072, %v10085
        %v10087 = vcombine.low %v10079, %v10086
        %v10088 = vcombine.low %v6975, %v6989
        %v10089 = vcombine.low %v6997, %v6999
        %v10090 = vcombine.low %v6982, %v6996
        %v10091 = vcombine.low %v6998, %v7000
        %v10093 = vunpack.c.l.s4 1966171168
        %v10094 = vunpack.c.0.s8 %v10093
        %v10095 = vlaneseq
        %v10096 = vshrl.u32 %v10095, 7
        %v10097 = vsub.s32 %v10094, %v10096
        %v10098 = vrot.slane %v10088, %v10097
        %v10100 = vunpack.c.l.s4 1966171168
        %v10101 = vunpack.c.0.s8 %v10100
        %v10102 = vlaneseq
        %v10103 = vshrl.u32 %v10102, 7
        %v10104 = vsub.s32 %v10101, %v10103
        %v10105 = vrot.slane %v10089, %v10104
        %v10107 = vunpack.c.l.s4 1966171168
        %v10108 = vunpack.c.0.s8 %v10107
        %v10109 = vlaneseq
        %v10110 = vshrl.u32 %v10109, 7
        %v10111 = vsub.s32 %v10108, %v10110
        %v10112 = vrot.slane %v10090, %v10111
        %v10114 = vunpack.c.l.s4 1966171168
        %v10115 = vunpack.c.0.s8 %v10114
        %v10116 = vlaneseq
        %v10117 = vshrl.u32 %v10116, 7
        %v10118 = vsub.s32 %v10115, %v10117
        %v10119 = vrot.slane %v10091, %v10118
        %v10120 = vcombine.low %v10098, %v10105
        %v10121 = vcombine.low %v10112, %v10119
        %v10123 = vunpack.c.l.s4 1966171168
        %v10124 = vunpack.c.0.s8 %v10123
        %v10125 = vlaneseq
        %v10126 = vshrl.u32 %v10125, 7
        %v10127 = vsub.s32 %v10124, %v10126
        %v10128 = vrot.slane %v10120, %v10127
        %v10130 = vunpack.c.l.s4 1966171168
        %v10131 = vunpack.c.0.s8 %v10130
        %v10132 = vlaneseq
        %v10133 = vshrl.u32 %v10132, 7
        %v10134 = vsub.s32 %v10131, %v10133
        %v10135 = vrot.slane %v10121, %v10134
        %v10136 = vcombine.low %v10128, %v10135
        %v10137 = vcombine.low %v7024, %v7038
        %v10138 = vcombine.low %v7046, %v7048
        %v10139 = vcombine.low %v7031, %v7045
        %v10140 = vcombine.low %v7047, %v7049
        %v10142 = vunpack.c.l.s4 1966171168
        %v10143 = vunpack.c.0.s8 %v10142
        %v10144 = vlaneseq
        %v10145 = vshrl.u32 %v10144, 7
        %v10146 = vsub.s32 %v10143, %v10145
        %v10147 = vrot.slane %v10137, %v10146
        %v10149 = vunpack.c.l.s4 1966171168
        %v10150 = vunpack.c.0.s8 %v10149
        %v10151 = vlaneseq
        %v10152 = vshrl.u32 %v10151, 7
        %v10153 = vsub.s32 %v10150, %v10152
        %v10154 = vrot.slane %v10138, %v10153
        %v10156 = vunpack.c.l.s4 1966171168
        %v10157 = vunpack.c.0.s8 %v10156
        %v10158 = vlaneseq
        %v10159 = vshrl.u32 %v10158, 7
        %v10160 = vsub.s32 %v10157, %v10159
        %v10161 = vrot.slane %v10139, %v10160
        %v10163 = vunpack.c.l.s4 1966171168
        %v10164 = vunpack.c.0.s8 %v10163
        %v10165 = vlaneseq
        %v10166 = vshrl.u32 %v10165, 7
        %v10167 = vsub.s32 %v10164, %v10166
        %v10168 = vrot.slane %v10140, %v10167
        %v10169 = vcombine.low %v10147, %v10154
        %v10170 = vcombine.low %v10161, %v10168
        %v10172 = vunpack.c.l.s4 1966171168
        %v10173 = vunpack.c.0.s8 %v10172
        %v10174 = vlaneseq
        %v10175 = vshrl.u32 %v10174, 7
        %v10176 = vsub.s32 %v10173, %v10175
        %v10177 = vrot.slane %v10169, %v10176
        %v10179 = vunpack.c.l.s4 1966171168
        %v10180 = vunpack.c.0.s8 %v10179
        %v10181 = vlaneseq
        %v10182 = vshrl.u32 %v10181, 7
        %v10183 = vsub.s32 %v10180, %v10182
        %v10184 = vrot.slane %v10170, %v10183
        %v10185 = vcombine.low %v10177, %v10184
        %v10186 = vcombine.low %v7073, %v7087
        %v10187 = vcombine.low %v7095, %v7097
        %v10188 = vcombine.low %v7080, %v7094
        %v10189 = vcombine.low %v7096, %v7098
        %v10191 = vunpack.c.l.s4 1966171168
        %v10192 = vunpack.c.0.s8 %v10191
        %v10193 = vlaneseq
        %v10194 = vshrl.u32 %v10193, 7
        %v10195 = vsub.s32 %v10192, %v10194
        %v10196 = vrot.slane %v10186, %v10195
        %v10198 = vunpack.c.l.s4 1966171168
        %v10199 = vunpack.c.0.s8 %v10198
        %v10200 = vlaneseq
        %v10201 = vshrl.u32 %v10200, 7
        %v10202 = vsub.s32 %v10199, %v10201
        %v10203 = vrot.slane %v10187, %v10202
        %v10205 = vunpack.c.l.s4 1966171168
        %v10206 = vunpack.c.0.s8 %v10205
        %v10207 = vlaneseq
        %v10208 = vshrl.u32 %v10207, 7
        %v10209 = vsub.s32 %v10206, %v10208
        %v10210 = vrot.slane %v10188, %v10209
        %v10212 = vunpack.c.l.s4 1966171168
        %v10213 = vunpack.c.0.s8 %v10212
        %v10214 = vlaneseq
        %v10215 = vshrl.u32 %v10214, 7
        %v10216 = vsub.s32 %v10213, %v10215
        %v10217 = vrot.slane %v10189, %v10216
        %v10218 = vcombine.low %v10196, %v10203
        %v10219 = vcombine.low %v10210, %v10217
        %v10221 = vunpack.c.l.s4 1966171168
        %v10222 = vunpack.c.0.s8 %v10221
        %v10223 = vlaneseq
        %v10224 = vshrl.u32 %v10223, 7
        %v10225 = vsub.s32 %v10222, %v10224
        %v10226 = vrot.slane %v10218, %v10225
        %v10228 = vunpack.c.l.s4 1966171168
        %v10229 = vunpack.c.0.s8 %v10228
        %v10230 = vlaneseq
        %v10231 = vshrl.u32 %v10230, 7
        %v10232 = vsub.s32 %v10229, %v10231
        %v10233 = vrot.slane %v10219, %v10232
        %v10234 = vcombine.low %v10226, %v10233
        %v10235 = vcombine.low %v7122, %v7136
        %v10236 = vcombine.low %v7144, %v7146
        %v10237 = vcombine.low %v7129, %v7143
        %v10238 = vcombine.low %v7145, %v7147
        %v10240 = vunpack.c.l.s4 1966171168
        %v10241 = vunpack.c.0.s8 %v10240
        %v10242 = vlaneseq
        %v10243 = vshrl.u32 %v10242, 7
        %v10244 = vsub.s32 %v10241, %v10243
        %v10245 = vrot.slane %v10235, %v10244
        %v10247 = vunpack.c.l.s4 1966171168
        %v10248 = vunpack.c.0.s8 %v10247
        %v10249 = vlaneseq
        %v10250 = vshrl.u32 %v10249, 7
        %v10251 = vsub.s32 %v10248, %v10250
        %v10252 = vrot.slane %v10236, %v10251
        %v10254 = vunpack.c.l.s4 1966171168
        %v10255 = vunpack.c.0.s8 %v10254
        %v10256 = vlaneseq
        %v10257 = vshrl.u32 %v10256, 7
        %v10258 = vsub.s32 %v10255, %v10257
        %v10259 = vrot.slane %v10237, %v10258
        %v10261 = vunpack.c.l.s4 1966171168
        %v10262 = vunpack.c.0.s8 %v10261
        %v10263 = vlaneseq
        %v10264 = vshrl.u32 %v10263, 7
        %v10265 = vsub.s32 %v10262, %v10264
        %v10266 = vrot.slane %v10238, %v10265
        %v10267 = vcombine.low %v10245, %v10252
        %v10268 = vcombine.low %v10259, %v10266
        %v10270 = vunpack.c.l.s4 1966171168
        %v10271 = vunpack.c.0.s8 %v10270
        %v10272 = vlaneseq
        %v10273 = vshrl.u32 %v10272, 7
        %v10274 = vsub.s32 %v10271, %v10273
        %v10275 = vrot.slane %v10267, %v10274
        %v10277 = vunpack.c.l.s4 1966171168
        %v10278 = vunpack.c.0.s8 %v10277
        %v10279 = vlaneseq
        %v10280 = vshrl.u32 %v10279, 7
        %v10281 = vsub.s32 %v10278, %v10280
        %v10282 = vrot.slane %v10268, %v10281
        %v10283 = vcombine.low %v10275, %v10282
        %v10284 = vcombine.low %v7171, %v7185
        %v10285 = vcombine.low %v7193, %v7195
        %v10286 = vcombine.low %v7178, %v7192
        %v10287 = vcombine.low %v7194, %v7196
        %v10289 = vunpack.c.l.s4 1966171168
        %v10290 = vunpack.c.0.s8 %v10289
        %v10291 = vlaneseq
        %v10292 = vshrl.u32 %v10291, 7
        %v10293 = vsub.s32 %v10290, %v10292
        %v10294 = vrot.slane %v10284, %v10293
        %v10296 = vunpack.c.l.s4 1966171168
        %v10297 = vunpack.c.0.s8 %v10296
        %v10298 = vlaneseq
        %v10299 = vshrl.u32 %v10298, 7
        %v10300 = vsub.s32 %v10297, %v10299
        %v10301 = vrot.slane %v10285, %v10300
        %v10303 = vunpack.c.l.s4 1966171168
        %v10304 = vunpack.c.0.s8 %v10303
        %v10305 = vlaneseq
        %v10306 = vshrl.u32 %v10305, 7
        %v10307 = vsub.s32 %v10304, %v10306
        %v10308 = vrot.slane %v10286, %v10307
        %v10310 = vunpack.c.l.s4 1966171168
        %v10311 = vunpack.c.0.s8 %v10310
        %v10312 = vlaneseq
        %v10313 = vshrl.u32 %v10312, 7
        %v10314 = vsub.s32 %v10311, %v10313
        %v10315 = vrot.slane %v10287, %v10314
        %v10316 = vcombine.low %v10294, %v10301
        %v10317 = vcombine.low %v10308, %v10315
        %v10319 = vunpack.c.l.s4 1966171168
        %v10320 = vunpack.c.0.s8 %v10319
        %v10321 = vlaneseq
        %v10322 = vshrl.u32 %v10321, 7
        %v10323 = vsub.s32 %v10320, %v10322
        %v10324 = vrot.slane %v10316, %v10323
        %v10326 = vunpack.c.l.s4 1966171168
        %v10327 = vunpack.c.0.s8 %v10326
        %v10328 = vlaneseq
        %v10329 = vshrl.u32 %v10328, 7
        %v10330 = vsub.s32 %v10327, %v10329
        %v10331 = vrot.slane %v10317, %v10330
        %v10332 = vcombine.low %v10324, %v10331
        %v10333 = vcombine.low %v7220, %v7234
        %v10334 = vcombine.low %v7242, %v7244
        %v10335 = vcombine.low %v7227, %v7241
        %v10336 = vcombine.low %v7243, %v7245
        %v10338 = vunpack.c.l.s4 1966171168
        %v10339 = vunpack.c.0.s8 %v10338
        %v10340 = vlaneseq
        %v10341 = vshrl.u32 %v10340, 7
        %v10342 = vsub.s32 %v10339, %v10341
        %v10343 = vrot.slane %v10333, %v10342
        %v10345 = vunpack.c.l.s4 1966171168
        %v10346 = vunpack.c.0.s8 %v10345
        %v10347 = vlaneseq
        %v10348 = vshrl.u32 %v10347, 7
        %v10349 = vsub.s32 %v10346, %v10348
        %v10350 = vrot.slane %v10334, %v10349
        %v10352 = vunpack.c.l.s4 1966171168
        %v10353 = vunpack.c.0.s8 %v10352
        %v10354 = vlaneseq
        %v10355 = vshrl.u32 %v10354, 7
        %v10356 = vsub.s32 %v10353, %v10355
        %v10357 = vrot.slane %v10335, %v10356
        %v10359 = vunpack.c.l.s4 1966171168
        %v10360 = vunpack.c.0.s8 %v10359
        %v10361 = vlaneseq
        %v10362 = vshrl.u32 %v10361, 7
        %v10363 = vsub.s32 %v10360, %v10362
        %v10364 = vrot.slane %v10336, %v10363
        %v10365 = vcombine.low %v10343, %v10350
        %v10366 = vcombine.low %v10357, %v10364
        %v10368 = vunpack.c.l.s4 1966171168
        %v10369 = vunpack.c.0.s8 %v10368
        %v10370 = vlaneseq
        %v10371 = vshrl.u32 %v10370, 7
        %v10372 = vsub.s32 %v10369, %v10371
        %v10373 = vrot.slane %v10365, %v10372
        %v10375 = vunpack.c.l.s4 1966171168
        %v10376 = vunpack.c.0.s8 %v10375
        %v10377 = vlaneseq
        %v10378 = vshrl.u32 %v10377, 7
        %v10379 = vsub.s32 %v10376, %v10378
        %v10380 = vrot.slane %v10366, %v10379
        %v10381 = vcombine.low %v10373, %v10380
        %v10382 = vcombine.low %v7269, %v7283
        %v10383 = vcombine.low %v7291, %v7293
        %v10384 = vcombine.low %v7276, %v7290
        %v10385 = vcombine.low %v7292, %v7294
        %v10387 = vunpack.c.l.s4 1966171168
        %v10388 = vunpack.c.0.s8 %v10387
        %v10389 = vlaneseq
        %v10390 = vshrl.u32 %v10389, 7
        %v10391 = vsub.s32 %v10388, %v10390
        %v10392 = vrot.slane %v10382, %v10391
        %v10394 = vunpack.c.l.s4 1966171168
        %v10395 = vunpack.c.0.s8 %v10394
        %v10396 = vlaneseq
        %v10397 = vshrl.u32 %v10396, 7
        %v10398 = vsub.s32 %v10395, %v10397
        %v10399 = vrot.slane %v10383, %v10398
        %v10401 = vunpack.c.l.s4 1966171168
        %v10402 = vunpack.c.0.s8 %v10401
        %v10403 = vlaneseq
        %v10404 = vshrl.u32 %v10403, 7
        %v10405 = vsub.s32 %v10402, %v10404
        %v10406 = vrot.slane %v10384, %v10405
        %v10408 = vunpack.c.l.s4 1966171168
        %v10409 = vunpack.c.0.s8 %v10408
        %v10410 = vlaneseq
        %v10411 = vshrl.u32 %v10410, 7
        %v10412 = vsub.s32 %v10409, %v10411
        %v10413 = vrot.slane %v10385, %v10412
        %v10414 = vcombine.low %v10392, %v10399
        %v10415 = vcombine.low %v10406, %v10413
        %v10417 = vunpack.c.l.s4 1966171168
        %v10418 = vunpack.c.0.s8 %v10417
        %v10419 = vlaneseq
        %v10420 = vshrl.u32 %v10419, 7
        %v10421 = vsub.s32 %v10418, %v10420
        %v10422 = vrot.slane %v10414, %v10421
        %v10424 = vunpack.c.l.s4 1966171168
        %v10425 = vunpack.c.0.s8 %v10424
        %v10426 = vlaneseq
        %v10427 = vshrl.u32 %v10426, 7
        %v10428 = vsub.s32 %v10425, %v10427
        %v10429 = vrot.slane %v10415, %v10428
        %v10430 = vcombine.low %v10422, %v10429
        %v10431 = vcombine.low %v7318, %v7332
        %v10432 = vcombine.low %v7340, %v7342
        %v10433 = vcombine.low %v7325, %v7339
        %v10434 = vcombine.low %v7341, %v7343
        %v10436 = vunpack.c.l.s4 1966171168
        %v10437 = vunpack.c.0.s8 %v10436
        %v10438 = vlaneseq
        %v10439 = vshrl.u32 %v10438, 7
        %v10440 = vsub.s32 %v10437, %v10439
        %v10441 = vrot.slane %v10431, %v10440
        %v10443 = vunpack.c.l.s4 1966171168
        %v10444 = vunpack.c.0.s8 %v10443
        %v10445 = vlaneseq
        %v10446 = vshrl.u32 %v10445, 7
        %v10447 = vsub.s32 %v10444, %v10446
        %v10448 = vrot.slane %v10432, %v10447
        %v10450 = vunpack.c.l.s4 1966171168
        %v10451 = vunpack.c.0.s8 %v10450
        %v10452 = vlaneseq
        %v10453 = vshrl.u32 %v10452, 7
        %v10454 = vsub.s32 %v10451, %v10453
        %v10455 = vrot.slane %v10433, %v10454
        %v10457 = vunpack.c.l.s4 1966171168
        %v10458 = vunpack.c.0.s8 %v10457
        %v10459 = vlaneseq
        %v10460 = vshrl.u32 %v10459, 7
        %v10461 = vsub.s32 %v10458, %v10460
        %v10462 = vrot.slane %v10434, %v10461
        %v10463 = vcombine.low %v10441, %v10448
        %v10464 = vcombine.low %v10455, %v10462
        %v10466 = vunpack.c.l.s4 1966171168
        %v10467 = vunpack.c.0.s8 %v10466
        %v10468 = vlaneseq
        %v10469 = vshrl.u32 %v10468, 7
        %v10470 = vsub.s32 %v10467, %v10469
        %v10471 = vrot.slane %v10463, %v10470
        %v10473 = vunpack.c.l.s4 1966171168
        %v10474 = vunpack.c.0.s8 %v10473
        %v10475 = vlaneseq
        %v10476 = vshrl.u32 %v10475, 7
        %v10477 = vsub.s32 %v10474, %v10476
        %v10478 = vrot.slane %v10464, %v10477
        %v10479 = vcombine.low %v10471, %v10478
        %v10480 = vcombine.low %v7367, %v7381
        %v10481 = vcombine.low %v7389, %v7391
        %v10482 = vcombine.low %v7374, %v7388
        %v10483 = vcombine.low %v7390, %v7392
        %v10485 = vunpack.c.l.s4 1966171168
        %v10486 = vunpack.c.0.s8 %v10485
        %v10487 = vlaneseq
        %v10488 = vshrl.u32 %v10487, 7
        %v10489 = vsub.s32 %v10486, %v10488
        %v10490 = vrot.slane %v10480, %v10489
        %v10492 = vunpack.c.l.s4 1966171168
        %v10493 = vunpack.c.0.s8 %v10492
        %v10494 = vlaneseq
        %v10495 = vshrl.u32 %v10494, 7
        %v10496 = vsub.s32 %v10493, %v10495
        %v10497 = vrot.slane %v10481, %v10496
        %v10499 = vunpack.c.l.s4 1966171168
        %v10500 = vunpack.c.0.s8 %v10499
        %v10501 = vlaneseq
        %v10502 = vshrl.u32 %v10501, 7
        %v10503 = vsub.s32 %v10500, %v10502
        %v10504 = vrot.slane %v10482, %v10503
        %v10506 = vunpack.c.l.s4 1966171168
        %v10507 = vunpack.c.0.s8 %v10506
        %v10508 = vlaneseq
        %v10509 = vshrl.u32 %v10508, 7
        %v10510 = vsub.s32 %v10507, %v10509
        %v10511 = vrot.slane %v10483, %v10510
        %v10512 = vcombine.low %v10490, %v10497
        %v10513 = vcombine.low %v10504, %v10511
        %v10515 = vunpack.c.l.s4 1966171168
        %v10516 = vunpack.c.0.s8 %v10515
        %v10517 = vlaneseq
        %v10518 = vshrl.u32 %v10517, 7
        %v10519 = vsub.s32 %v10516, %v10518
        %v10520 = vrot.slane %v10512, %v10519
        %v10522 = vunpack.c.l.s4 1966171168
        %v10523 = vunpack.c.0.s8 %v10522
        %v10524 = vlaneseq
        %v10525 = vshrl.u32 %v10524, 7
        %v10526 = vsub.s32 %v10523, %v10525
        %v10527 = vrot.slane %v10513, %v10526
        %v10528 = vcombine.low %v10520, %v10527
        %v10529 = vcombine.low %v7416, %v7430
        %v10530 = vcombine.low %v7438, %v7440
        %v10531 = vcombine.low %v7423, %v7437
        %v10532 = vcombine.low %v7439, %v7441
        %v10534 = vunpack.c.l.s4 1966171168
        %v10535 = vunpack.c.0.s8 %v10534
        %v10536 = vlaneseq
        %v10537 = vshrl.u32 %v10536, 7
        %v10538 = vsub.s32 %v10535, %v10537
        %v10539 = vrot.slane %v10529, %v10538
        %v10541 = vunpack.c.l.s4 1966171168
        %v10542 = vunpack.c.0.s8 %v10541
        %v10543 = vlaneseq
        %v10544 = vshrl.u32 %v10543, 7
        %v10545 = vsub.s32 %v10542, %v10544
        %v10546 = vrot.slane %v10530, %v10545
        %v10548 = vunpack.c.l.s4 1966171168
        %v10549 = vunpack.c.0.s8 %v10548
        %v10550 = vlaneseq
        %v10551 = vshrl.u32 %v10550, 7
        %v10552 = vsub.s32 %v10549, %v10551
        %v10553 = vrot.slane %v10531, %v10552
        %v10555 = vunpack.c.l.s4 1966171168
        %v10556 = vunpack.c.0.s8 %v10555
        %v10557 = vlaneseq
        %v10558 = vshrl.u32 %v10557, 7
        %v10559 = vsub.s32 %v10556, %v10558
        %v10560 = vrot.slane %v10532, %v10559
        %v10561 = vcombine.low %v10539, %v10546
        %v10562 = vcombine.low %v10553, %v10560
        %v10564 = vunpack.c.l.s4 1966171168
        %v10565 = vunpack.c.0.s8 %v10564
        %v10566 = vlaneseq
        %v10567 = vshrl.u32 %v10566, 7
        %v10568 = vsub.s32 %v10565, %v10567
        %v10569 = vrot.slane %v10561, %v10568
        %v10571 = vunpack.c.l.s4 1966171168
        %v10572 = vunpack.c.0.s8 %v10571
        %v10573 = vlaneseq
        %v10574 = vshrl.u32 %v10573, 7
        %v10575 = vsub.s32 %v10572, %v10574
        %v10576 = vrot.slane %v10562, %v10575
        %v10577 = vcombine.low %v10569, %v10576
        %v10578 = vcombine.low %v7465, %v7479
        %v10579 = vcombine.low %v7487, %v7489
        %v10580 = vcombine.low %v7472, %v7486
        %v10581 = vcombine.low %v7488, %v7490
        %v10583 = vunpack.c.l.s4 1966171168
        %v10584 = vunpack.c.0.s8 %v10583
        %v10585 = vlaneseq
        %v10586 = vshrl.u32 %v10585, 7
        %v10587 = vsub.s32 %v10584, %v10586
        %v10588 = vrot.slane %v10578, %v10587
        %v10590 = vunpack.c.l.s4 1966171168
        %v10591 = vunpack.c.0.s8 %v10590
        %v10592 = vlaneseq
        %v10593 = vshrl.u32 %v10592, 7
        %v10594 = vsub.s32 %v10591, %v10593
        %v10595 = vrot.slane %v10579, %v10594
        %v10597 = vunpack.c.l.s4 1966171168
        %v10598 = vunpack.c.0.s8 %v10597
        %v10599 = vlaneseq
        %v10600 = vshrl.u32 %v10599, 7
        %v10601 = vsub.s32 %v10598, %v10600
        %v10602 = vrot.slane %v10580, %v10601
        %v10604 = vunpack.c.l.s4 1966171168
        %v10605 = vunpack.c.0.s8 %v10604
        %v10606 = vlaneseq
        %v10607 = vshrl.u32 %v10606, 7
        %v10608 = vsub.s32 %v10605, %v10607
        %v10609 = vrot.slane %v10581, %v10608
        %v10610 = vcombine.low %v10588, %v10595
        %v10611 = vcombine.low %v10602, %v10609
        %v10613 = vunpack.c.l.s4 1966171168
        %v10614 = vunpack.c.0.s8 %v10613
        %v10615 = vlaneseq
        %v10616 = vshrl.u32 %v10615, 7
        %v10617 = vsub.s32 %v10614, %v10616
        %v10618 = vrot.slane %v10610, %v10617
        %v10620 = vunpack.c.l.s4 1966171168
        %v10621 = vunpack.c.0.s8 %v10620
        %v10622 = vlaneseq
        %v10623 = vshrl.u32 %v10622, 7
        %v10624 = vsub.s32 %v10621, %v10623
        %v10625 = vrot.slane %v10611, %v10624
        %v10626 = vcombine.low %v10618, %v10625
        %v10627 = vcombine.low %v7514, %v7528
        %v10628 = vcombine.low %v7536, %v7538
        %v10629 = vcombine.low %v7521, %v7535
        %v10630 = vcombine.low %v7537, %v7539
        %v10632 = vunpack.c.l.s4 1966171168
        %v10633 = vunpack.c.0.s8 %v10632
        %v10634 = vlaneseq
        %v10635 = vshrl.u32 %v10634, 7
        %v10636 = vsub.s32 %v10633, %v10635
        %v10637 = vrot.slane %v10627, %v10636
        %v10639 = vunpack.c.l.s4 1966171168
        %v10640 = vunpack.c.0.s8 %v10639
        %v10641 = vlaneseq
        %v10642 = vshrl.u32 %v10641, 7
        %v10643 = vsub.s32 %v10640, %v10642
        %v10644 = vrot.slane %v10628, %v10643
        %v10646 = vunpack.c.l.s4 1966171168
        %v10647 = vunpack.c.0.s8 %v10646
        %v10648 = vlaneseq
        %v10649 = vshrl.u32 %v10648, 7
        %v10650 = vsub.s32 %v10647, %v10649
        %v10651 = vrot.slane %v10629, %v10650
        %v10653 = vunpack.c.l.s4 1966171168
        %v10654 = vunpack.c.0.s8 %v10653
        %v10655 = vlaneseq
        %v10656 = vshrl.u32 %v10655, 7
        %v10657 = vsub.s32 %v10654, %v10656
        %v10658 = vrot.slane %v10630, %v10657
        %v10659 = vcombine.low %v10637, %v10644
        %v10660 = vcombine.low %v10651, %v10658
        %v10662 = vunpack.c.l.s4 1966171168
        %v10663 = vunpack.c.0.s8 %v10662
        %v10664 = vlaneseq
        %v10665 = vshrl.u32 %v10664, 7
        %v10666 = vsub.s32 %v10663, %v10665
        %v10667 = vrot.slane %v10659, %v10666
        %v10669 = vunpack.c.l.s4 1966171168
        %v10670 = vunpack.c.0.s8 %v10669
        %v10671 = vlaneseq
        %v10672 = vshrl.u32 %v10671, 7
        %v10673 = vsub.s32 %v10670, %v10672
        %v10674 = vrot.slane %v10660, %v10673
        %v10675 = vcombine.low %v10667, %v10674
        %v10676 = vcombine.low %v7563, %v7577
        %v10677 = vcombine.low %v7585, %v7587
        %v10678 = vcombine.low %v7570, %v7584
        %v10679 = vcombine.low %v7586, %v7588
        %v10681 = vunpack.c.l.s4 1966171168
        %v10682 = vunpack.c.0.s8 %v10681
        %v10683 = vlaneseq
        %v10684 = vshrl.u32 %v10683, 7
        %v10685 = vsub.s32 %v10682, %v10684
        %v10686 = vrot.slane %v10676, %v10685
        %v10688 = vunpack.c.l.s4 1966171168
        %v10689 = vunpack.c.0.s8 %v10688
        %v10690 = vlaneseq
        %v10691 = vshrl.u32 %v10690, 7
        %v10692 = vsub.s32 %v10689, %v10691
        %v10693 = vrot.slane %v10677, %v10692
        %v10695 = vunpack.c.l.s4 1966171168
        %v10696 = vunpack.c.0.s8 %v10695
        %v10697 = vlaneseq
        %v10698 = vshrl.u32 %v10697, 7
        %v10699 = vsub.s32 %v10696, %v10698
        %v10700 = vrot.slane %v10678, %v10699
        %v10702 = vunpack.c.l.s4 1966171168
        %v10703 = vunpack.c.0.s8 %v10702
        %v10704 = vlaneseq
        %v10705 = vshrl.u32 %v10704, 7
        %v10706 = vsub.s32 %v10703, %v10705
        %v10707 = vrot.slane %v10679, %v10706
        %v10708 = vcombine.low %v10686, %v10693
        %v10709 = vcombine.low %v10700, %v10707
        %v10711 = vunpack.c.l.s4 1966171168
        %v10712 = vunpack.c.0.s8 %v10711
        %v10713 = vlaneseq
        %v10714 = vshrl.u32 %v10713, 7
        %v10715 = vsub.s32 %v10712, %v10714
        %v10716 = vrot.slane %v10708, %v10715
        %v10718 = vunpack.c.l.s4 1966171168
        %v10719 = vunpack.c.0.s8 %v10718
        %v10720 = vlaneseq
        %v10721 = vshrl.u32 %v10720, 7
        %v10722 = vsub.s32 %v10719, %v10721
        %v10723 = vrot.slane %v10709, %v10722
        %v10724 = vcombine.low %v10716, %v10723
        %v10725 = vcombine.low %v7612, %v7626
        %v10726 = vcombine.low %v7634, %v7636
        %v10727 = vcombine.low %v7619, %v7633
        %v10728 = vcombine.low %v7635, %v7637
        %v10730 = vunpack.c.l.s4 1966171168
        %v10731 = vunpack.c.0.s8 %v10730
        %v10732 = vlaneseq
        %v10733 = vshrl.u32 %v10732, 7
        %v10734 = vsub.s32 %v10731, %v10733
        %v10735 = vrot.slane %v10725, %v10734
        %v10737 = vunpack.c.l.s4 1966171168
        %v10738 = vunpack.c.0.s8 %v10737
        %v10739 = vlaneseq
        %v10740 = vshrl.u32 %v10739, 7
        %v10741 = vsub.s32 %v10738, %v10740
        %v10742 = vrot.slane %v10726, %v10741
        %v10744 = vunpack.c.l.s4 1966171168
        %v10745 = vunpack.c.0.s8 %v10744
        %v10746 = vlaneseq
        %v10747 = vshrl.u32 %v10746, 7
        %v10748 = vsub.s32 %v10745, %v10747
        %v10749 = vrot.slane %v10727, %v10748
        %v10751 = vunpack.c.l.s4 1966171168
        %v10752 = vunpack.c.0.s8 %v10751
        %v10753 = vlaneseq
        %v10754 = vshrl.u32 %v10753, 7
        %v10755 = vsub.s32 %v10752, %v10754
        %v10756 = vrot.slane %v10728, %v10755
        %v10757 = vcombine.low %v10735, %v10742
        %v10758 = vcombine.low %v10749, %v10756
        %v10760 = vunpack.c.l.s4 1966171168
        %v10761 = vunpack.c.0.s8 %v10760
        %v10762 = vlaneseq
        %v10763 = vshrl.u32 %v10762, 7
        %v10764 = vsub.s32 %v10761, %v10763
        %v10765 = vrot.slane %v10757, %v10764
        %v10767 = vunpack.c.l.s4 1966171168
        %v10768 = vunpack.c.0.s8 %v10767
        %v10769 = vlaneseq
        %v10770 = vshrl.u32 %v10769, 7
        %v10771 = vsub.s32 %v10768, %v10770
        %v10772 = vrot.slane %v10758, %v10771
        %v10773 = vcombine.low %v10765, %v10772
        %v10774 = vcombine.low %v7661, %v7675
        %v10775 = vcombine.low %v7683, %v7685
        %v10776 = vcombine.low %v7668, %v7682
        %v10777 = vcombine.low %v7684, %v7686
        %v10779 = vunpack.c.l.s4 1966171168
        %v10780 = vunpack.c.0.s8 %v10779
        %v10781 = vlaneseq
        %v10782 = vshrl.u32 %v10781, 7
        %v10783 = vsub.s32 %v10780, %v10782
        %v10784 = vrot.slane %v10774, %v10783
        %v10786 = vunpack.c.l.s4 1966171168
        %v10787 = vunpack.c.0.s8 %v10786
        %v10788 = vlaneseq
        %v10789 = vshrl.u32 %v10788, 7
        %v10790 = vsub.s32 %v10787, %v10789
        %v10791 = vrot.slane %v10775, %v10790
        %v10793 = vunpack.c.l.s4 1966171168
        %v10794 = vunpack.c.0.s8 %v10793
        %v10795 = vlaneseq
        %v10796 = vshrl.u32 %v10795, 7
        %v10797 = vsub.s32 %v10794, %v10796
        %v10798 = vrot.slane %v10776, %v10797
        %v10800 = vunpack.c.l.s4 1966171168
        %v10801 = vunpack.c.0.s8 %v10800
        %v10802 = vlaneseq
        %v10803 = vshrl.u32 %v10802, 7
        %v10804 = vsub.s32 %v10801, %v10803
        %v10805 = vrot.slane %v10777, %v10804
        %v10806 = vcombine.low %v10784, %v10791
        %v10807 = vcombine.low %v10798, %v10805
        %v10809 = vunpack.c.l.s4 1966171168
        %v10810 = vunpack.c.0.s8 %v10809
        %v10811 = vlaneseq
        %v10812 = vshrl.u32 %v10811, 7
        %v10813 = vsub.s32 %v10810, %v10812
        %v10814 = vrot.slane %v10806, %v10813
        %v10816 = vunpack.c.l.s4 1966171168
        %v10817 = vunpack.c.0.s8 %v10816
        %v10818 = vlaneseq
        %v10819 = vshrl.u32 %v10818, 7
        %v10820 = vsub.s32 %v10817, %v10819
        %v10821 = vrot.slane %v10807, %v10820
        %v10822 = vcombine.low %v10814, %v10821
        %v10823 = vcombine.low %v7710, %v7724
        %v10824 = vcombine.low %v7732, %v7734
        %v10825 = vcombine.low %v7717, %v7731
        %v10826 = vcombine.low %v7733, %v7735
        %v10828 = vunpack.c.l.s4 1966171168
        %v10829 = vunpack.c.0.s8 %v10828
        %v10830 = vlaneseq
        %v10831 = vshrl.u32 %v10830, 7
        %v10832 = vsub.s32 %v10829, %v10831
        %v10833 = vrot.slane %v10823, %v10832
        %v10835 = vunpack.c.l.s4 1966171168
        %v10836 = vunpack.c.0.s8 %v10835
        %v10837 = vlaneseq
        %v10838 = vshrl.u32 %v10837, 7
        %v10839 = vsub.s32 %v10836, %v10838
        %v10840 = vrot.slane %v10824, %v10839
        %v10842 = vunpack.c.l.s4 1966171168
        %v10843 = vunpack.c.0.s8 %v10842
        %v10844 = vlaneseq
        %v10845 = vshrl.u32 %v10844, 7
        %v10846 = vsub.s32 %v10843, %v10845
        %v10847 = vrot.slane %v10825, %v10846
        %v10849 = vunpack.c.l.s4 1966171168
        %v10850 = vunpack.c.0.s8 %v10849
        %v10851 = vlaneseq
        %v10852 = vshrl.u32 %v10851, 7
        %v10853 = vsub.s32 %v10850, %v10852
        %v10854 = vrot.slane %v10826, %v10853
        %v10855 = vcombine.low %v10833, %v10840
        %v10856 = vcombine.low %v10847, %v10854
        %v10858 = vunpack.c.l.s4 1966171168
        %v10859 = vunpack.c.0.s8 %v10858
        %v10860 = vlaneseq
        %v10861 = vshrl.u32 %v10860, 7
        %v10862 = vsub.s32 %v10859, %v10861
        %v10863 = vrot.slane %v10855, %v10862
        %v10865 = vunpack.c.l.s4 1966171168
        %v10866 = vunpack.c.0.s8 %v10865
        %v10867 = vlaneseq
        %v10868 = vshrl.u32 %v10867, 7
        %v10869 = vsub.s32 %v10866, %v10868
        %v10870 = vrot.slane %v10856, %v10869
        %v10871 = vcombine.low %v10863, %v10870
        %10872 = vset.pattern.permute.xlu0 0
        %10873 = vperm.xlu0 %10872, %v7784
        %v10874 = vpop.permute.xlu0 %10873
        %10875 = vset.pattern.permute.xlu0 0
        %10876 = vperm.xlu0 %10875, %v7833
        %v10877 = vpop.permute.xlu0 %10876
        %10878 = vset.pattern.permute.xlu0 0
        %10879 = vperm.xlu0 %10878, %v7882
        %v10880 = vpop.permute.xlu0 %10879
        %10881 = vset.pattern.permute.xlu0 0
        %10882 = vperm.xlu0 %10881, %v7931
        %v10883 = vpop.permute.xlu0 %10882
        %10884 = vset.pattern.permute.xlu0 0
        %10885 = vperm.xlu0 %10884, %v7980
        %v10886 = vpop.permute.xlu0 %10885
        %10887 = vset.pattern.permute.xlu0 0
        %10888 = vperm.xlu0 %10887, %v8029
        %v10889 = vpop.permute.xlu0 %10888
        %10890 = vset.pattern.permute.xlu0 0
        %10891 = vperm.xlu0 %10890, %v8078
        %v10892 = vpop.permute.xlu0 %10891
        %10893 = vset.pattern.permute.xlu0 0
        %10894 = vperm.xlu0 %10893, %v8127
        %v10895 = vpop.permute.xlu0 %10894
        %10896 = vset.pattern.permute.xlu0 0
        %10897 = vperm.xlu0 %10896, %v8176
        %v10898 = vpop.permute.xlu0 %10897
        %10899 = vset.pattern.permute.xlu0 0
        %10900 = vperm.xlu0 %10899, %v8225
        %v10901 = vpop.permute.xlu0 %10900
        %10902 = vset.pattern.permute.xlu0 0
        %10903 = vperm.xlu0 %10902, %v8274
        %v10904 = vpop.permute.xlu0 %10903
        %10905 = vset.pattern.permute.xlu0 0
        %10906 = vperm.xlu0 %10905, %v8323
        %v10907 = vpop.permute.xlu0 %10906
        %10908 = vset.pattern.permute.xlu0 0
        %10909 = vperm.xlu0 %10908, %v8372
        %v10910 = vpop.permute.xlu0 %10909
        %10911 = vset.pattern.permute.xlu0 0
        %10912 = vperm.xlu0 %10911, %v8421
        %v10913 = vpop.permute.xlu0 %10912
        %10914 = vset.pattern.permute.xlu0 0
        %10915 = vperm.xlu0 %10914, %v8470
        %v10916 = vpop.permute.xlu0 %10915
        %10917 = vset.pattern.permute.xlu0 0
        %10918 = vperm.xlu0 %10917, %v8519
        %v10919 = vpop.permute.xlu0 %10918
        %10920 = vset.pattern.permute.xlu0 0
        %10921 = vperm.xlu0 %10920, %v8568
        %v10922 = vpop.permute.xlu0 %10921
        %10923 = vset.pattern.permute.xlu0 0
        %10924 = vperm.xlu0 %10923, %v8617
        %v10925 = vpop.permute.xlu0 %10924
        %10926 = vset.pattern.permute.xlu0 0
        %10927 = vperm.xlu0 %10926, %v8666
        %v10928 = vpop.permute.xlu0 %10927
        %10929 = vset.pattern.permute.xlu0 0
        %10930 = vperm.xlu0 %10929, %v8715
        %v10931 = vpop.permute.xlu0 %10930
        %10932 = vset.pattern.permute.xlu0 0
        %10933 = vperm.xlu0 %10932, %v8764
        %v10934 = vpop.permute.xlu0 %10933
        %10935 = vset.pattern.permute.xlu0 0
        %10936 = vperm.xlu0 %10935, %v8813
        %v10937 = vpop.permute.xlu0 %10936
        %10938 = vset.pattern.permute.xlu0 0
        %10939 = vperm.xlu0 %10938, %v8862
        %v10940 = vpop.permute.xlu0 %10939
        %10941 = vset.pattern.permute.xlu0 0
        %10942 = vperm.xlu0 %10941, %v8911
        %v10943 = vpop.permute.xlu0 %10942
        %10944 = vset.pattern.permute.xlu0 0
        %10945 = vperm.xlu0 %10944, %v8960
        %v10946 = vpop.permute.xlu0 %10945
        %10947 = vset.pattern.permute.xlu0 0
        %10948 = vperm.xlu0 %10947, %v9009
        %v10949 = vpop.permute.xlu0 %10948
        %10950 = vset.pattern.permute.xlu0 0
        %10951 = vperm.xlu0 %10950, %v9058
        %v10952 = vpop.permute.xlu0 %10951
        %10953 = vset.pattern.permute.xlu0 0
        %10954 = vperm.xlu0 %10953, %v9107
        %v10955 = vpop.permute.xlu0 %10954
        %10956 = vset.pattern.permute.xlu0 0
        %10957 = vperm.xlu0 %10956, %v9156
        %v10958 = vpop.permute.xlu0 %10957
        %10959 = vset.pattern.permute.xlu0 0
        %10960 = vperm.xlu0 %10959, %v9205
        %v10961 = vpop.permute.xlu0 %10960
        %10962 = vset.pattern.permute.xlu0 0
        %10963 = vperm.xlu0 %10962, %v9254
        %v10964 = vpop.permute.xlu0 %10963
        %10965 = vset.pattern.permute.xlu0 0
        %10966 = vperm.xlu0 %10965, %v9303
        %v10967 = vpop.permute.xlu0 %10966
        %10968 = vset.pattern.permute.xlu0 0
        %10969 = vperm.xlu0 %10968, %v9352
        %v10970 = vpop.permute.xlu0 %10969
        %10971 = vset.pattern.permute.xlu0 0
        %10972 = vperm.xlu0 %10971, %v9401
        %v10973 = vpop.permute.xlu0 %10972
        %10974 = vset.pattern.permute.xlu0 0
        %10975 = vperm.xlu0 %10974, %v9450
        %v10976 = vpop.permute.xlu0 %10975
        %10977 = vset.pattern.permute.xlu0 0
        %10978 = vperm.xlu0 %10977, %v9499
        %v10979 = vpop.permute.xlu0 %10978
        %10980 = vset.pattern.permute.xlu0 0
        %10981 = vperm.xlu0 %10980, %v9548
        %v10982 = vpop.permute.xlu0 %10981
        %10983 = vset.pattern.permute.xlu0 0
        %10984 = vperm.xlu0 %10983, %v9597
        %v10985 = vpop.permute.xlu0 %10984
        %10986 = vset.pattern.permute.xlu0 0
        %10987 = vperm.xlu0 %10986, %v9646
        %v10988 = vpop.permute.xlu0 %10987
        %10989 = vset.pattern.permute.xlu0 0
        %10990 = vperm.xlu0 %10989, %v9695
        %v10991 = vpop.permute.xlu0 %10990
        %10992 = vset.pattern.permute.xlu0 0
        %10993 = vperm.xlu0 %10992, %v9744
        %v10994 = vpop.permute.xlu0 %10993
        %10995 = vset.pattern.permute.xlu0 0
        %10996 = vperm.xlu0 %10995, %v9793
        %v10997 = vpop.permute.xlu0 %10996
        %10998 = vset.pattern.permute.xlu0 0
        %10999 = vperm.xlu0 %10998, %v9842
        %v11000 = vpop.permute.xlu0 %10999
        %11001 = vset.pattern.permute.xlu0 0
        %11002 = vperm.xlu0 %11001, %v9891
        %v11003 = vpop.permute.xlu0 %11002
        %11004 = vset.pattern.permute.xlu0 0
        %11005 = vperm.xlu0 %11004, %v9940
        %v11006 = vpop.permute.xlu0 %11005
        %11007 = vset.pattern.permute.xlu0 0
        %11008 = vperm.xlu0 %11007, %v9989
        %v11009 = vpop.permute.xlu0 %11008
        %11010 = vset.pattern.permute.xlu0 0
        %11011 = vperm.xlu0 %11010, %v10038
        %v11012 = vpop.permute.xlu0 %11011
        %11013 = vset.pattern.permute.xlu0 0
        %11014 = vperm.xlu0 %11013, %v10087
        %v11015 = vpop.permute.xlu0 %11014
        %11016 = vset.pattern.permute.xlu0 0
        %11017 = vperm.xlu0 %11016, %v10136
        %v11018 = vpop.permute.xlu0 %11017
        %11019 = vset.pattern.permute.xlu0 0
        %11020 = vperm.xlu0 %11019, %v10185
        %v11021 = vpop.permute.xlu0 %11020
        %11022 = vset.pattern.permute.xlu0 0
        %11023 = vperm.xlu0 %11022, %v10234
        %v11024 = vpop.permute.xlu0 %11023
        %11025 = vset.pattern.permute.xlu0 0
        %11026 = vperm.xlu0 %11025, %v10283
        %v11027 = vpop.permute.xlu0 %11026
        %11028 = vset.pattern.permute.xlu0 0
        %11029 = vperm.xlu0 %11028, %v10332
        %v11030 = vpop.permute.xlu0 %11029
        %11031 = vset.pattern.permute.xlu0 0
        %11032 = vperm.xlu0 %11031, %v10381
        %v11033 = vpop.permute.xlu0 %11032
        %11034 = vset.pattern.permute.xlu0 0
        %11035 = vperm.xlu0 %11034, %v10430
        %v11036 = vpop.permute.xlu0 %11035
        %11037 = vset.pattern.permute.xlu0 0
        %11038 = vperm.xlu0 %11037, %v10479
        %v11039 = vpop.permute.xlu0 %11038
        %11040 = vset.pattern.permute.xlu0 0
        %11041 = vperm.xlu0 %11040, %v10528
        %v11042 = vpop.permute.xlu0 %11041
        %11043 = vset.pattern.permute.xlu0 0
        %11044 = vperm.xlu0 %11043, %v10577
        %v11045 = vpop.permute.xlu0 %11044
        %11046 = vset.pattern.permute.xlu0 0
        %11047 = vperm.xlu0 %11046, %v10626
        %v11048 = vpop.permute.xlu0 %11047
        %11049 = vset.pattern.permute.xlu0 0
        %11050 = vperm.xlu0 %11049, %v10675
        %v11051 = vpop.permute.xlu0 %11050
        %11052 = vset.pattern.permute.xlu0 0
        %11053 = vperm.xlu0 %11052, %v10724
        %v11054 = vpop.permute.xlu0 %11053
        %11055 = vset.pattern.permute.xlu0 0
        %11056 = vperm.xlu0 %11055, %v10773
        %v11057 = vpop.permute.xlu0 %11056
        %11058 = vset.pattern.permute.xlu0 0
        %11059 = vperm.xlu0 %11058, %v10822
        %v11060 = vpop.permute.xlu0 %11059
        %11061 = vset.pattern.permute.xlu0 0
        %11062 = vperm.xlu0 %11061, %v10871
        %v11063 = vpop.permute.xlu0 %11062
        %v11064 = vlaneseq
        %v11065 = vand.u32 %v11064, 127
        %v11066 = vlaneseq
        %v11067 = vshrl.u32 %v11066, 7
        %v11068 = vsub.s32 %v11065, %v11067
        %v11069 = vrot.slane %v10874, %v11068
        %v11070 = vadd.s32 %v11065, 4294967288
        %v11071 = vlaneseq
        %v11072 = vshrl.u32 %v11071, 7
        %v11073 = vsub.s32 %v11070, %v11072
        %v11074 = vrot.slane %v10877, %v11073
        %vm11075 = vcmask 130112
        %v11076 = vsel %vm11075, %v11074, %v11069
        %v11077 = vadd.s32 %v11065, 4294967280
        %v11078 = vlaneseq
        %v11079 = vshrl.u32 %v11078, 7
        %v11080 = vsub.s32 %v11077, %v11079
        %v11081 = vrot.slane %v10880, %v11080
        %vm11082 = vcmask 195712
        %v11083 = vsel %vm11082, %v11081, %v11076
        %v11084 = vadd.s32 %v11065, 4294967272
        %v11085 = vlaneseq
        %v11086 = vshrl.u32 %v11085, 7
        %v11087 = vsub.s32 %v11084, %v11086
        %v11088 = vrot.slane %v10883, %v11087
        %vm11089 = vcmask 261312
        %v11090 = vsel %vm11089, %v11088, %v11083
        %v11091 = vadd.s32 %v11065, 4294967264
        %v11092 = vlaneseq
        %v11093 = vshrl.u32 %v11092, 7
        %v11094 = vsub.s32 %v11091, %v11093
        %v11095 = vrot.slane %v10886, %v11094
        %vm11096 = vcmask 326912
        %v11097 = vsel %vm11096, %v11095, %v11090
        %v11098 = vadd.s32 %v11065, 4294967256
        %v11099 = vlaneseq
        %v11100 = vshrl.u32 %v11099, 7
        %v11101 = vsub.s32 %v11098, %v11100
        %v11102 = vrot.slane %v10889, %v11101
        %vm11103 = vcmask 392512
        %v11104 = vsel %vm11103, %v11102, %v11097
        %v11105 = vadd.s32 %v11065, 4294967248
        %v11106 = vlaneseq
        %v11107 = vshrl.u32 %v11106, 7
        %v11108 = vsub.s32 %v11105, %v11107
        %v11109 = vrot.slane %v10892, %v11108
        %vm11110 = vcmask 458112
        %v11111 = vsel %vm11110, %v11109, %v11104
        %v11112 = vadd.s32 %v11065, 4294967240
        %v11113 = vlaneseq
        %v11114 = vshrl.u32 %v11113, 7
        %v11115 = vsub.s32 %v11112, %v11114
        %v11116 = vrot.slane %v10895, %v11115
        %vm11117 = vcmask 523712
        %v11118 = vsel %vm11117, %v11116, %v11111
        %v11119 = vadd.s32 %v11065, 4294967232
        %v11120 = vlaneseq
        %v11121 = vshrl.u32 %v11120, 7
        %v11122 = vsub.s32 %v11119, %v11121
        %v11123 = vrot.slane %v10898, %v11122
        %vm11124 = vcmask 589312
        %v11125 = vsel %vm11124, %v11123, %v11118
        %v11126 = vadd.s32 %v11065, 4294967224
        %v11127 = vlaneseq
        %v11128 = vshrl.u32 %v11127, 7
        %v11129 = vsub.s32 %v11126, %v11128
        %v11130 = vrot.slane %v10901, %v11129
        %vm11131 = vcmask 654912
        %v11132 = vsel %vm11131, %v11130, %v11125
        %v11133 = vadd.s32 %v11065, 4294967216
        %v11134 = vlaneseq
        %v11135 = vshrl.u32 %v11134, 7
        %v11136 = vsub.s32 %v11133, %v11135
        %v11137 = vrot.slane %v10904, %v11136
        %vm11138 = vcmask 720512
        %v11139 = vsel %vm11138, %v11137, %v11132
        %v11140 = vadd.s32 %v11065, 4294967208
        %v11141 = vlaneseq
        %v11142 = vshrl.u32 %v11141, 7
        %v11143 = vsub.s32 %v11140, %v11142
        %v11144 = vrot.slane %v10907, %v11143
        %vm11145 = vcmask 786112
        %v11146 = vsel %vm11145, %v11144, %v11139
        %v11147 = vadd.s32 %v11065, 4294967200
        %v11148 = vlaneseq
        %v11149 = vshrl.u32 %v11148, 7
        %v11150 = vsub.s32 %v11147, %v11149
        %v11151 = vrot.slane %v10910, %v11150
        %vm11152 = vcmask 851712
        %v11153 = vsel %vm11152, %v11151, %v11146
        %v11154 = vadd.s32 %v11065, 4294967192
        %v11155 = vlaneseq
        %v11156 = vshrl.u32 %v11155, 7
        %v11157 = vsub.s32 %v11154, %v11156
        %v11158 = vrot.slane %v10913, %v11157
        %vm11159 = vcmask 917312
        %v11160 = vsel %vm11159, %v11158, %v11153
        %v11161 = vadd.s32 %v11065, 4294967184
        %v11162 = vlaneseq
        %v11163 = vshrl.u32 %v11162, 7
        %v11164 = vsub.s32 %v11161, %v11163
        %v11165 = vrot.slane %v10916, %v11164
        %vm11166 = vcmask 982912
        %v11167 = vsel %vm11166, %v11165, %v11160
        %v11168 = vadd.s32 %v11065, 4294967176
        %v11169 = vlaneseq
        %v11170 = vshrl.u32 %v11169, 7
        %v11171 = vsub.s32 %v11168, %v11170
        %v11172 = vrot.slane %v10919, %v11171
        %vm11173 = vcmask 1048512
        %v11174 = vsel %vm11173, %v11172, %v11167
        %v11175 = vlaneseq
        %v11176 = vshrl.u32 %v11175, 7
        %v11177 = vsub.s32 %v11065, %v11176
        %v11178 = vrot.slane %v10922, %v11177
        %v11179 = vlaneseq
        %v11180 = vshrl.u32 %v11179, 7
        %v11181 = vsub.s32 %v11070, %v11180
        %v11182 = vrot.slane %v10925, %v11181
        %v11183 = vsel %vm11075, %v11182, %v11178
        %v11184 = vlaneseq
        %v11185 = vshrl.u32 %v11184, 7
        %v11186 = vsub.s32 %v11077, %v11185
        %v11187 = vrot.slane %v10928, %v11186
        %v11188 = vsel %vm11082, %v11187, %v11183
        %v11189 = vlaneseq
        %v11190 = vshrl.u32 %v11189, 7
        %v11191 = vsub.s32 %v11084, %v11190
        %v11192 = vrot.slane %v10931, %v11191
        %v11193 = vsel %vm11089, %v11192, %v11188
        %v11194 = vlaneseq
        %v11195 = vshrl.u32 %v11194, 7
        %v11196 = vsub.s32 %v11091, %v11195
        %v11197 = vrot.slane %v10934, %v11196
        %v11198 = vsel %vm11096, %v11197, %v11193
        %v11199 = vlaneseq
        %v11200 = vshrl.u32 %v11199, 7
        %v11201 = vsub.s32 %v11098, %v11200
        %v11202 = vrot.slane %v10937, %v11201
        %v11203 = vsel %vm11103, %v11202, %v11198
        %v11204 = vlaneseq
        %v11205 = vshrl.u32 %v11204, 7
        %v11206 = vsub.s32 %v11105, %v11205
        %v11207 = vrot.slane %v10940, %v11206
        %v11208 = vsel %vm11110, %v11207, %v11203
        %v11209 = vlaneseq
        %v11210 = vshrl.u32 %v11209, 7
        %v11211 = vsub.s32 %v11112, %v11210
        %v11212 = vrot.slane %v10943, %v11211
        %v11213 = vsel %vm11117, %v11212, %v11208
        %v11214 = vlaneseq
        %v11215 = vshrl.u32 %v11214, 7
        %v11216 = vsub.s32 %v11119, %v11215
        %v11217 = vrot.slane %v10946, %v11216
        %v11218 = vsel %vm11124, %v11217, %v11213
        %v11219 = vlaneseq
        %v11220 = vshrl.u32 %v11219, 7
        %v11221 = vsub.s32 %v11126, %v11220
        %v11222 = vrot.slane %v10949, %v11221
        %v11223 = vsel %vm11131, %v11222, %v11218
        %v11224 = vlaneseq
        %v11225 = vshrl.u32 %v11224, 7
        %v11226 = vsub.s32 %v11133, %v11225
        %v11227 = vrot.slane %v10952, %v11226
        %v11228 = vsel %vm11138, %v11227, %v11223
        %v11229 = vlaneseq
        %v11230 = vshrl.u32 %v11229, 7
        %v11231 = vsub.s32 %v11140, %v11230
        %v11232 = vrot.slane %v10955, %v11231
        %v11233 = vsel %vm11145, %v11232, %v11228
        %v11234 = vlaneseq
        %v11235 = vshrl.u32 %v11234, 7
        %v11236 = vsub.s32 %v11147, %v11235
        %v11237 = vrot.slane %v10958, %v11236
        %v11238 = vsel %vm11152, %v11237, %v11233
        %v11239 = vlaneseq
        %v11240 = vshrl.u32 %v11239, 7
        %v11241 = vsub.s32 %v11154, %v11240
        %v11242 = vrot.slane %v10961, %v11241
        %v11243 = vsel %vm11159, %v11242, %v11238
        %v11244 = vlaneseq
        %v11245 = vshrl.u32 %v11244, 7
        %v11246 = vsub.s32 %v11161, %v11245
        %v11247 = vrot.slane %v10964, %v11246
        %v11248 = vsel %vm11166, %v11247, %v11243
        %v11249 = vlaneseq
        %v11250 = vshrl.u32 %v11249, 7
        %v11251 = vsub.s32 %v11168, %v11250
        %v11252 = vrot.slane %v10967, %v11251
        %v11253 = vsel %vm11173, %v11252, %v11248
        %v11254 = vlaneseq
        %v11255 = vshrl.u32 %v11254, 7
        %v11256 = vsub.s32 %v11065, %v11255
        %v11257 = vrot.slane %v10970, %v11256
        %v11258 = vlaneseq
        %v11259 = vshrl.u32 %v11258, 7
        %v11260 = vsub.s32 %v11070, %v11259
        %v11261 = vrot.slane %v10973, %v11260
        %v11262 = vsel %vm11075, %v11261, %v11257
        %v11263 = vlaneseq
        %v11264 = vshrl.u32 %v11263, 7
        %v11265 = vsub.s32 %v11077, %v11264
        %v11266 = vrot.slane %v10976, %v11265
        %v11267 = vsel %vm11082, %v11266, %v11262
        %v11268 = vlaneseq
        %v11269 = vshrl.u32 %v11268, 7
        %v11270 = vsub.s32 %v11084, %v11269
        %v11271 = vrot.slane %v10979, %v11270
        %v11272 = vsel %vm11089, %v11271, %v11267
        %v11273 = vlaneseq
        %v11274 = vshrl.u32 %v11273, 7
        %v11275 = vsub.s32 %v11091, %v11274
        %v11276 = vrot.slane %v10982, %v11275
        %v11277 = vsel %vm11096, %v11276, %v11272
        %v11278 = vlaneseq
        %v11279 = vshrl.u32 %v11278, 7
        %v11280 = vsub.s32 %v11098, %v11279
        %v11281 = vrot.slane %v10985, %v11280
        %v11282 = vsel %vm11103, %v11281, %v11277
        %v11283 = vlaneseq
        %v11284 = vshrl.u32 %v11283, 7
        %v11285 = vsub.s32 %v11105, %v11284
        %v11286 = vrot.slane %v10988, %v11285
        %v11287 = vsel %vm11110, %v11286, %v11282
        %v11288 = vlaneseq
        %v11289 = vshrl.u32 %v11288, 7
        %v11290 = vsub.s32 %v11112, %v11289
        %v11291 = vrot.slane %v10991, %v11290
        %v11292 = vsel %vm11117, %v11291, %v11287
        %v11293 = vlaneseq
        %v11294 = vshrl.u32 %v11293, 7
        %v11295 = vsub.s32 %v11119, %v11294
        %v11296 = vrot.slane %v10994, %v11295
        %v11297 = vsel %vm11124, %v11296, %v11292
        %v11298 = vlaneseq
        %v11299 = vshrl.u32 %v11298, 7
        %v11300 = vsub.s32 %v11126, %v11299
        %v11301 = vrot.slane %v10997, %v11300
        %v11302 = vsel %vm11131, %v11301, %v11297
        %v11303 = vlaneseq
        %v11304 = vshrl.u32 %v11303, 7
        %v11305 = vsub.s32 %v11133, %v11304
        %v11306 = vrot.slane %v11000, %v11305
        %v11307 = vsel %vm11138, %v11306, %v11302
        %v11308 = vlaneseq
        %v11309 = vshrl.u32 %v11308, 7
        %v11310 = vsub.s32 %v11140, %v11309
        %v11311 = vrot.slane %v11003, %v11310
        %v11312 = vsel %vm11145, %v11311, %v11307
        %v11313 = vlaneseq
        %v11314 = vshrl.u32 %v11313, 7
        %v11315 = vsub.s32 %v11147, %v11314
        %v11316 = vrot.slane %v11006, %v11315
        %v11317 = vsel %vm11152, %v11316, %v11312
        %v11318 = vlaneseq
        %v11319 = vshrl.u32 %v11318, 7
        %v11320 = vsub.s32 %v11154, %v11319
        %v11321 = vrot.slane %v11009, %v11320
        %v11322 = vsel %vm11159, %v11321, %v11317
        %v11323 = vlaneseq
        %v11324 = vshrl.u32 %v11323, 7
        %v11325 = vsub.s32 %v11161, %v11324
        %v11326 = vrot.slane %v11012, %v11325
        %v11327 = vsel %vm11166, %v11326, %v11322
        %v11328 = vlaneseq
        %v11329 = vshrl.u32 %v11328, 7
        %v11330 = vsub.s32 %v11168, %v11329
        %v11331 = vrot.slane %v11015, %v11330
        %v11332 = vsel %vm11173, %v11331, %v11327
        %v11333 = vlaneseq
        %v11334 = vshrl.u32 %v11333, 7
        %v11335 = vsub.s32 %v11065, %v11334
        %v11336 = vrot.slane %v11018, %v11335
        %v11337 = vlaneseq
        %v11338 = vshrl.u32 %v11337, 7
        %v11339 = vsub.s32 %v11070, %v11338
        %v11340 = vrot.slane %v11021, %v11339
        %v11341 = vsel %vm11075, %v11340, %v11336
        %v11342 = vlaneseq
        %v11343 = vshrl.u32 %v11342, 7
        %v11344 = vsub.s32 %v11077, %v11343
        %v11345 = vrot.slane %v11024, %v11344
        %v11346 = vsel %vm11082, %v11345, %v11341
        %v11347 = vlaneseq
        %v11348 = vshrl.u32 %v11347, 7
        %v11349 = vsub.s32 %v11084, %v11348
        %v11350 = vrot.slane %v11027, %v11349
        %v11351 = vsel %vm11089, %v11350, %v11346
        %v11352 = vlaneseq
        %v11353 = vshrl.u32 %v11352, 7
        %v11354 = vsub.s32 %v11091, %v11353
        %v11355 = vrot.slane %v11030, %v11354
        %v11356 = vsel %vm11096, %v11355, %v11351
        %v11357 = vlaneseq
        %v11358 = vshrl.u32 %v11357, 7
        %v11359 = vsub.s32 %v11098, %v11358
        %v11360 = vrot.slane %v11033, %v11359
        %v11361 = vsel %vm11103, %v11360, %v11356
        %v11362 = vlaneseq
        %v11363 = vshrl.u32 %v11362, 7
        %v11364 = vsub.s32 %v11105, %v11363
        %v11365 = vrot.slane %v11036, %v11364
        %v11366 = vsel %vm11110, %v11365, %v11361
        %v11367 = vlaneseq
        %v11368 = vshrl.u32 %v11367, 7
        %v11369 = vsub.s32 %v11112, %v11368
        %v11370 = vrot.slane %v11039, %v11369
        %v11371 = vsel %vm11117, %v11370, %v11366
        %v11372 = vlaneseq
        %v11373 = vshrl.u32 %v11372, 7
        %v11374 = vsub.s32 %v11119, %v11373
        %v11375 = vrot.slane %v11042, %v11374
        %v11376 = vsel %vm11124, %v11375, %v11371
        %v11377 = vlaneseq
        %v11378 = vshrl.u32 %v11377, 7
        %v11379 = vsub.s32 %v11126, %v11378
        %v11380 = vrot.slane %v11045, %v11379
        %v11381 = vsel %vm11131, %v11380, %v11376
        %v11382 = vlaneseq
        %v11383 = vshrl.u32 %v11382, 7
        %v11384 = vsub.s32 %v11133, %v11383
        %v11385 = vrot.slane %v11048, %v11384
        %v11386 = vsel %vm11138, %v11385, %v11381
        %v11387 = vlaneseq
        %v11388 = vshrl.u32 %v11387, 7
        %v11389 = vsub.s32 %v11140, %v11388
        %v11390 = vrot.slane %v11051, %v11389
        %v11391 = vsel %vm11145, %v11390, %v11386
        %v11392 = vlaneseq
        %v11393 = vshrl.u32 %v11392, 7
        %v11394 = vsub.s32 %v11147, %v11393
        %v11395 = vrot.slane %v11054, %v11394
        %v11396 = vsel %vm11152, %v11395, %v11391
        %v11397 = vlaneseq
        %v11398 = vshrl.u32 %v11397, 7
        %v11399 = vsub.s32 %v11154, %v11398
        %v11400 = vrot.slane %v11057, %v11399
        %v11401 = vsel %vm11159, %v11400, %v11396
        %v11402 = vlaneseq
        %v11403 = vshrl.u32 %v11402, 7
        %v11404 = vsub.s32 %v11161, %v11403
        %v11405 = vrot.slane %v11060, %v11404
        %v11406 = vsel %vm11166, %v11405, %v11401
        %v11407 = vlaneseq
        %v11408 = vshrl.u32 %v11407, 7
        %v11409 = vsub.s32 %v11168, %v11408
        %v11410 = vrot.slane %v11063, %v11409
        %v11411 = vsel %vm11173, %v11410, %v11406
        %v11412 = vcombine.low %v11174, %v11253
        %v11413 = vcombine.low %v11332, %v11411
        %v11415 = vunpack.c.l.s4 1966171168
        %v11416 = vunpack.c.0.s8 %v11415
        %v11417 = vlaneseq
        %v11418 = vshrl.u32 %v11417, 7
        %v11419 = vsub.s32 %v11416, %v11418
        %v11420 = vrot.slane %v11412, %v11419
        %v11422 = vunpack.c.l.s4 1966171168
        %v11423 = vunpack.c.0.s8 %v11422
        %v11424 = vlaneseq
        %v11425 = vshrl.u32 %v11424, 7
        %v11426 = vsub.s32 %v11423, %v11425
        %v11427 = vrot.slane %v11413, %v11426
        %v11428 = vcombine.low %v11420, %v11427
        %v11430 = vunpack.c.l.s4 1966171168
        %v11431 = vunpack.c.0.s8 %v11430
        %v11432 = vlaneseq
        %v11433 = vshrl.u32 %v11432, 7
        %v11434 = vsub.s32 %v11431, %v11433
        %v11435 = vrot.slane %v11428, %v11434
        %v11437 = vlaneseq
        %vm11438 = vcmp.ge.s32.totalorder %v11437, 0
        %vm11439 = vcmp.lt.s32.totalorder %v11437, 512
        %vm11440 = vmand %vm11438, %vm11439
        %11441 = vst.msk [vmem:[%s345] sm:$0xf] %vm11440, %v11435
        %s11442 = sand.u32 %s227, 1
        %s11443 = scalar_lea.sflag [#allocation4], %s11442
        %s11444 = sand.u32 %s227, 1
        %s11445 = smul.addr %s11444, 4
        %s11446 = scalar_lea.vmem [#allocation3], %s11445
        // Predicated region
        $region57: #{tpu_custom_call.1} parent=55 // pred_check
          %p11447 = pneg %p237
        $region58: #{tpu_custom_call.1} parent=55 // pred_check_branch
          %11449 = sbr.rel (%p11447) target = $region60
        $region59: #{tpu_custom_call.1} parent=55 // pred_region
          %s11450 = smul.u32 4, %s25
          %s11452 = ssub.s32 64, 64
          %11453 = vsyncadd %s11443, %s11452
          %s11454 = smul.addr %s11450, 16
          %s11455 = scalar_lea.hbm %s9, %s11454
          %s11457 = sshll.u32 %s11446, 4
          %s11458 = int_to_ptr.vmem [resolvable:$true] %s11457
          %11460 = dma.vmem_to_hbm [thread:$0]  %s11458, 64, %s11455, %s11443
        $region60: #{tpu_custom_call.1} parent=55 // pred_fallthru
          _
      $region56: #{tpu_custom_call.1} parent=5 // pred_fallthru
        _
      %p11461 = scmp.le.s32.totalorder 2, %s20
      // Predicated region
      $region61: #{tpu_custom_call.1} parent=5 // pred_check
        %p11462 = pneg %p11461
      $region62: #{tpu_custom_call.1} parent=5 // pred_check_branch
        %11464 = sbr.rel (%p11462) target = $region64
      $region63: #{tpu_custom_call.1} parent=5 // pred_region
        %s11465 = ssub.s32 %s20, 2
        // Predicated region
        $region65: #{tpu_custom_call.1} parent=63 // pred_check
          %p11466 = pneg %p243
        $region66: #{tpu_custom_call.1} parent=63 // pred_check_branch
          %11468 = sbr.rel (%p11466) target = $region68
        $region67: #{tpu_custom_call.1} parent=63 // pred_region
          %s11469 = sand.u32 %s228, 1
          %s11470 = scalar_lea.sflag [#allocation4], %s11469
          %s11471 = sand.u32 %s228, 1
          %s11472 = smul.addr %s11471, 4
          %s11473 = scalar_lea.vmem [#allocation3], %s11472
          %11474 = dma.done %s11470, 64
        $region68: #{tpu_custom_call.1} parent=63 // pred_fallthru
          _
      $region64: #{tpu_custom_call.1} parent=5 // pred_fallthru
        _
    $region6: #{tpu_custom_call.1} parent=1 // loop_footer
      %s24 = sadd.s32 1, %s20
    $region7: #{tpu_custom_call.1} parent=1 // loop_footer_branch
      %19 = sbr.rel target = $region3
    $region8: #{tpu_custom_call.1} parent=1 // loop_exit
      _
    %11475 = vsyncpa [#allocation4], 1
    %s11476 = scalar_lea.sflag [#allocation4], 1
    %11477 = vsyncpa %s11476, 1

</llo_original>
